<compile_context>
chip_gen: v7x
topology: tpu7x:2x2x1
jax: 0.10.0
libtpu: 0.0.40
codegen_flags: <defaults>
</compile_context>

<pallas_src>
import math

import jax
import jax.numpy as jnp
from jax.experimental import pallas as pl
from jax.experimental.pallas import tpu as pltpu


# ---------------------------------------------------------------------------
# In-kernel helpers (traced inline into each kernel body)
# ---------------------------------------------------------------------------
def _build_dx_im2col(x_ref, halo_ref, xrows_ref, xcat_ref):
    """Assemble the dx-concatenated im2col buffer for one row strip.

    xrows[r, w, c]      = input row (strip_start - 1 + r), column w  (halo at r=0, th+1)
    xcat[r, w, dx*C+c]  = zero-padded input[strip_start - 1 + r, w + dx - 1, c]
    """
    th, W, cin = x_ref.shape
    dt = xrows_ref.dtype

    # rows: [top halo, strip rows, bottom halo]  (halo rows are zero at image borders)
    xrows_ref[pl.ds(0, 1), :, :] = halo_ref[pl.ds(0, 1), :, :]
    xrows_ref[pl.ds(1, th), :, :] = x_ref[...]
    xrows_ref[pl.ds(th + 1, 1), :, :] = halo_ref[pl.ds(1, 1), :, :]

    zcol = jnp.zeros((th + 2, 1, cin), dt)
    # dx = 1 (centre column): straight copy
    xcat_ref[:, :, pl.ds(cin, cin)] = xrows_ref[...]
    # dx = 0 (left neighbour, zero pad at w = 0)
    xcat_ref[:, pl.ds(0, 1), pl.ds(0, cin)] = zcol
    xcat_ref[:, pl.ds(1, W - 1), pl.ds(0, cin)] = xrows_ref[:, pl.ds(0, W - 1), :]
    # dx = 2 (right neighbour, zero pad at w = W-1)
    xcat_ref[:, pl.ds(0, W - 1), pl.ds(2 * cin, cin)] = xrows_ref[:, pl.ds(1, W - 1), :]
    xcat_ref[:, pl.ds(W - 1, 1), pl.ds(2 * cin, cin)] = zcol


def _conv_strip(xcat_ref, w_ref, b_ref, th, W, cin):
    """3 MXU dots of K = 3*Cin, accumulated in a traced f32 value; bias+ReLU fused."""
    acc = None
    for dy in range(3):
        patch = xcat_ref[pl.ds(dy, th), :, :].reshape(th * W, 3 * cin)   # aligned load
        part = jnp.dot(patch, w_ref[dy], preferred_element_type=jnp.float32)
        acc = part if acc is None else acc + part
    return jnp.maximum(acc + b_ref[...], 0.0)            # (th*W, cout) f32


# ---------------------------------------------------------------------------
# Kernels
# ---------------------------------------------------------------------------
def _conv3x3_relu_kernel(x_ref, halo_ref, w_ref, b_ref, o_ref, xrows_ref, xcat_ref):
    # x_ref: (th, W, Cin) bf16   halo_ref: (2, W, Cin) bf16
    # w_ref: (3, 3*Cin, Cout) bf16   b_ref: (1, Cout) f32   o_ref: (th, W, Cout)
    th, W, cin = x_ref.shape
    cout = o_ref.shape[-1]
    _build_dx_im2col(x_ref, halo_ref, xrows_ref, xcat_ref)
    y = _conv_strip(xcat_ref, w_ref, b_ref, th, W, cin)
    o_ref[...] = y.reshape(th, W, cout).astype(o_ref.dtype)


def _conv3x3_relu_pool_kernel(x_ref, halo_ref, w_ref, b_ref, o_ref,
                              xrows_ref, xcat_ref, row_ref):
    # conv + ReLU + fused 2x2 max-pool.  o_ref: (th//2, W//2, Cout)
    th, W, cin = x_ref.shape
    cout = o_ref.shape[-1]
    Hh, Wh = th // 2, W // 2
    _build_dx_im2col(x_ref, halo_ref, xrows_ref, xcat_ref)
    y = _conv_strip(xcat_ref, w_ref, b_ref, th, W, cin)
    # row pairs: leading-dim reshape of the f32 value (no relayout), static index
    y = y.reshape(Hh, 2, W, cout)
    row_ref[...] = jnp.maximum(y[:, 0], y[:, 1])
    # column pairs: strided sublane reads from the small scratch
    o_ref[...] = jnp.maximum(
        row_ref[:, pl.ds(0, Wh, stride=2), :],
        row_ref[:, pl.ds(1, Wh, stride=2), :],
    ).astype(o_ref.dtype)


# ---------------------------------------------------------------------------
# pallas_call wrappers
# ---------------------------------------------------------------------------
def _row_tile(h):
    for t in (32, 16, 8):
        if h % t == 0 and h // t >= 2:
            return t
    return h


def _make_halo(x, th):
    """(N, 2*nstrips, W, C): the rows just above / below every th-row strip
    (zero rows at the image borders) -> halo stays a plain pipelined BlockSpec DMA."""
    N, H, W, C = x.shape
    nh = H // th
    zero = jnp.zeros((N, 1, W, C), x.dtype)
    top = jnp.concatenate([zero, x[:, th - 1:H - 1:th]], axis=1)   # row h*th - 1
    bot = jnp.concatenate([x[:, th:H:th], zero], axis=1)           # row (h+1)*th
    return jnp.stack([top, bot], axis=2).reshape(N, 2 * nh, W, C)


def _padded_bytes(shape, dtype):
    s = list(shape)
    s[-1] = pl.cdiv(s[-1], 128) * 128
    if len(s) >= 2:
        s[-2] = pl.cdiv(s[-2], 8) * 8
    n = 1
    for d in s:
        n *= d
    return n * jnp.dtype(dtype).itemsize


def _cparams(block_bytes, scratch_bytes):
    # per-call VMEM budget from the actual (lane-padded) block sizes, not a blanket limit
    est = 2 * block_bytes + scratch_bytes                 # double-buffered blocks + scratch
    limit = int(min(64 * 1024 * 1024, max(32 * 1024 * 1024, 2 * est)))
    return pltpu.CompilerParams(
        dimension_semantics=("parallel", "parallel"),
        vmem_limit_bytes=limit,
    )


def conv3x3_relu(x, w, b, out_dtype=jnp.bfloat16):
    """3x3 'same' conv + bias + ReLU (NHWC, bf16 in)."""
    N, H, W, Cin = x.shape
    Cout = w.shape[-1]
    th = _row_tile(H)
    nh = H // th
    halo = _make_halo(x, th)

    block_bytes = (_padded_bytes((th, W, Cin), x.dtype)
                   + _padded_bytes((2, W, Cin), x.dtype)
                   + _padded_bytes((3, 3 * Cin, Cout), w.dtype)
                   + _padded_bytes((1, Cout), b.dtype)
                   + _padded_bytes((th, W, Cout), out_dtype))
    scratch_bytes = (_padded_bytes((th + 2, W, Cin), jnp.bfloat16)
                     + _padded_bytes((th + 2, W, 3 * Cin), jnp.bfloat16))

    return pl.pallas_call(
        _conv3x3_relu_kernel,
        out_shape=jax.ShapeDtypeStruct((N, H, W, Cout), out_dtype),
        grid=(N, nh),
        in_specs=[
            pl.BlockSpec((None, th, W, Cin), lambda n, h: (n, h, 0, 0)),
            pl.BlockSpec((None, 2, W, Cin), lambda n, h: (n, h, 0, 0)),
            pl.BlockSpec((3, 3 * Cin, Cout), lambda n, h: (0, 0, 0)),
            pl.BlockSpec((1, Cout), lambda n, h: (0, 0)),
        ],
        out_specs=pl.BlockSpec((None, th, W, Cout), lambda n, h: (n, h, 0, 0)),
        scratch_shapes=[
            pltpu.VMEM((th + 2, W, Cin), jnp.bfloat16),
            pltpu.VMEM((th + 2, W, 3 * Cin), jnp.bfloat16),
        ],
        compiler_params=_cparams(block_bytes, scratch_bytes),
    )(x, halo, w, b)


def conv3x3_relu_pool(x, w, b, out_dtype=jnp.bfloat16):
    """3x3 'same' conv + bias + ReLU + fused 2x2 max-pool (stride 2)."""
    N, H, W, Cin = x.shape
    Cout = w.shape[-1]
    assert H % 2 == 0 and W % 2 == 0, "2x2 max-pool needs even spatial dims"
    th = _row_tile(H)
    assert th % 2 == 0
    nh = H // th
    halo = _make_halo(x, th)
    Hh, Wh = H // 2, W // 2

    block_bytes = (_padded_bytes((th, W, Cin), x.dtype)
                   + _padded_bytes((2, W, Cin), x.dtype)
                   + _padded_bytes((3, 3 * Cin, Cout), w.dtype)
                   + _padded_bytes((1, Cout), b.dtype)
                   + _padded_bytes((th // 2, Wh, Cout), out_dtype))
    scratch_bytes = (_padded_bytes((th + 2, W, Cin), jnp.bfloat16)
                     + _padded_bytes((th + 2, W, 3 * Cin), jnp.bfloat16)
                     + _padded_bytes((th // 2, W, Cout), jnp.float32))

    return pl.pallas_call(
        _conv3x3_relu_pool_kernel,
        out_shape=jax.ShapeDtypeStruct((N, Hh, Wh, Cout), out_dtype),
        grid=(N, nh),
        in_specs=[
            pl.BlockSpec((None, th, W, Cin), lambda n, h: (n, h, 0, 0)),
            pl.BlockSpec((None, 2, W, Cin), lambda n, h: (n, h, 0, 0)),
            pl.BlockSpec((3, 3 * Cin, Cout), lambda n, h: (0, 0, 0)),
            pl.BlockSpec((1, Cout), lambda n, h: (0, 0)),
        ],
        out_specs=pl.BlockSpec((None, th // 2, Wh, Cout), lambda n, h: (n, h, 0, 0)),
        scratch_shapes=[
            pltpu.VMEM((th + 2, W, Cin), jnp.bfloat16),
            pltpu.VMEM((th + 2, W, 3 * Cin), jnp.bfloat16),
            pltpu.VMEM((th // 2, W, Cout), jnp.float32),
        ],
        compiler_params=_cparams(block_bytes, scratch_bytes),
    )(x, halo, w, b)


# ---------------------------------------------------------------------------
# Parameter init (deterministic stand-in for the pretrained VGG16 weights)
# ---------------------------------------------------------------------------
def _init_conv(key, cin, cout):
    kw_, kb_ = jax.random.split(key)
    fan_in = cin * 9
    w = jax.random.normal(kw_, (3, 3, cin, cout), jnp.float32) / math.sqrt(fan_in)
    b = jax.random.normal(kb_, (cout,), jnp.float32) * 0.01
    # (kh, kw, cin, cout) -> (kh, kw*cin, cout): matches the in-kernel dx-im2col
    # ordering (K index = dx*Cin + c).
    return w.reshape(3, 3 * cin, cout).astype(jnp.bfloat16), b.reshape(1, cout)


def init_params(key):
    k1, k2, k3, k4 = jax.random.split(key, 4)
    return {
        "conv1": _init_conv(k1, 3, 64),
        "conv2": _init_conv(k2, 64, 64),
        "conv3": _init_conv(k3, 64, 128),
        "conv4": _init_conv(k4, 128, 128),
    }


# ---------------------------------------------------------------------------
# Full Content.forward
# ---------------------------------------------------------------------------
def content_forward(images_nchw, params):
    # (images * 0.5 - mean) / std  -- exactly the PyTorch buffers.
    mean = jnp.array([0.485 - 0.5, 0.456 - 0.5, 0.406 - 0.5], jnp.float32)
    std = jnp.array([0.229, 0.224, 0.225], jnp.float32)
    x = jnp.transpose(images_nchw, (0, 2, 3, 1))                      # NCHW -> NHWC
    xn = ((x * 0.5 - mean) / std).astype(jnp.bfloat16)                # tiny fused XLA pass

    x1 = conv3x3_relu(xn, *params["conv1"])                           # 3   -> 64
    x2 = conv3x3_relu_pool(x1, *params["conv2"])                      # 64  -> 64, + 2x2 pool
    x3 = conv3x3_relu(x2, *params["conv3"])                           # 64  -> 128
    x4 = conv3x3_relu(x3, *params["conv4"], out_dtype=jnp.float32)    # 128 -> 128 (f32 out)
    return jnp.transpose(x4, (0, 3, 1, 2))                            # NHWC -> NCHW


if __name__ == "__main__":
    key = jax.random.PRNGKey(0)
    k_img, k_par = jax.random.split(key)

    images = jax.random.uniform(k_img, (2, 3, 16, 16), jnp.float32,
                                minval=-1.0, maxval=1.0)              # NCHW, like PyTorch
    params = init_params(k_par)

    out = jax.jit(content_forward)(images, params)
    out = jax.block_until_ready(out)

    assert out.shape == (2, 128, 8, 8), out.shape
    assert out.dtype == jnp.float32
    assert bool(jnp.all(jnp.isfinite(out)))
    print("KERNEL_OK")
</pallas_src>

<mosaic_0001>
module attributes {stable_mosaic.version = 11 : i64} {
  func.func @_conv3x3_relu_kernel(%arg0: i32, %arg1: i32, %arg2: memref<1x8x16x3xbf16, #tpu.memory_space<vmem>>, %arg3: memref<1x2x16x3xbf16, #tpu.memory_space<vmem>>, %arg4: memref<3x9x64xbf16, #tpu.memory_space<vmem>>, %arg5: memref<1x64xf32, #tpu.memory_space<vmem>>, %arg6: memref<1x8x16x64xbf16, #tpu.memory_space<vmem>>, %arg7: memref<10x16x3xbf16, #tpu.memory_space<vmem>>, %arg8: memref<10x16x9xbf16, #tpu.memory_space<vmem>>) attributes {dimension_semantics = [#tpu.dimension_semantics<parallel>, #tpu.dimension_semantics<parallel>], iteration_bounds = array<i64: 2, 2>, scalar_prefetch = 0 : i64, scratch_operands = 2 : i64, tpu.core_type = #tpu.core_type<tc>, window_params = [{transform_indices = @transform_0, window_bounds = array<i64: 1, 8, 16, 3>}, {transform_indices = @transform_1, window_bounds = array<i64: 1, 2, 16, 3>}, {pipeline_mode = #tpu.pipeline_mode<synchronous>, transform_indices = @transform_2, window_bounds = array<i64: 3, 9, 64>}, {pipeline_mode = #tpu.pipeline_mode<synchronous>, transform_indices = @transform_3, window_bounds = array<i64: 1, 64>}, {transform_indices = @transform_4, window_bounds = array<i64: 1, 8, 16, 64>}]} {
    %c0 = arith.constant 0 : index
    %c0_0 = arith.constant 0 : index
    %c0_1 = arith.constant 0 : index
    %c0_2 = arith.constant 0 : index
    %0 = vector.load %arg3[%c0, %c0_0, %c0_1, %c0_2] : memref<1x2x16x3xbf16, #tpu.memory_space<vmem>>, vector<1x1x16x3xbf16>
    %1 = vector.shape_cast %0 : vector<1x1x16x3xbf16> to vector<1x16x3xbf16>
    %c0_3 = arith.constant 0 : index
    %c0_4 = arith.constant 0 : index
    %c0_5 = arith.constant 0 : index
    %2 = vector.load %arg7[%c0_3, %c0_4, %c0_5] : memref<10x16x3xbf16, #tpu.memory_space<vmem>>, vector<1x16x3xbf16>
    tpu.vector_store %arg7[%c0_3, %c0_4, %c0_5], %1 {strides = array<i32>} : memref<10x16x3xbf16, #tpu.memory_space<vmem>>, vector<1x16x3xbf16>,
    %c0_6 = arith.constant 0 : index
    %c0_7 = arith.constant 0 : index
    %c0_8 = arith.constant 0 : index
    %c0_9 = arith.constant 0 : index
    %3 = vector.load %arg2[%c0_6, %c0_7, %c0_8, %c0_9] : memref<1x8x16x3xbf16, #tpu.memory_space<vmem>>, vector<1x8x16x3xbf16>
    %4 = vector.shape_cast %3 : vector<1x8x16x3xbf16> to vector<8x16x3xbf16>
    %c1 = arith.constant 1 : index
    %c0_10 = arith.constant 0 : index
    %c0_11 = arith.constant 0 : index
    %5 = vector.load %arg7[%c1, %c0_10, %c0_11] : memref<10x16x3xbf16, #tpu.memory_space<vmem>>, vector<8x16x3xbf16>
    tpu.vector_store %arg7[%c1, %c0_10, %c0_11], %4 {strides = array<i32>} : memref<10x16x3xbf16, #tpu.memory_space<vmem>>, vector<8x16x3xbf16>,
    %c0_12 = arith.constant 0 : index
    %c1_13 = arith.constant 1 : index
    %c0_14 = arith.constant 0 : index
    %c0_15 = arith.constant 0 : index
    %6 = vector.load %arg3[%c0_12, %c1_13, %c0_14, %c0_15] : memref<1x2x16x3xbf16, #tpu.memory_space<vmem>>, vector<1x1x16x3xbf16>
    %7 = vector.shape_cast %6 : vector<1x1x16x3xbf16> to vector<1x16x3xbf16>
    %c9 = arith.constant 9 : index
    %c0_16 = arith.constant 0 : index
    %c0_17 = arith.constant 0 : index
    %8 = vector.load %arg7[%c9, %c0_16, %c0_17] : memref<10x16x3xbf16, #tpu.memory_space<vmem>>, vector<1x16x3xbf16>
    tpu.vector_store %arg7[%c9, %c0_16, %c0_17], %7 {strides = array<i32>} : memref<10x16x3xbf16, #tpu.memory_space<vmem>>, vector<1x16x3xbf16>,
    %cst = arith.constant 0.000000e+00 : bf16
    %9 = vector.broadcast %cst : bf16 to vector<10x1x3xbf16>
    %c0_18 = arith.constant 0 : index
    %c0_19 = arith.constant 0 : index
    %c0_20 = arith.constant 0 : index
    %10 = vector.load %arg7[%c0_18, %c0_19, %c0_20] : memref<10x16x3xbf16, #tpu.memory_space<vmem>>, vector<10x16x3xbf16>
    %c0_21 = arith.constant 0 : index
    %c0_22 = arith.constant 0 : index
    %c3 = arith.constant 3 : index
    %11 = vector.load %arg8[%c0_21, %c0_22, %c3] : memref<10x16x9xbf16, #tpu.memory_space<vmem>>, vector<10x16x3xbf16>
    tpu.vector_store %arg8[%c0_21, %c0_22, %c3], %10 {strides = array<i32>} : memref<10x16x9xbf16, #tpu.memory_space<vmem>>, vector<10x16x3xbf16>,
    %c0_23 = arith.constant 0 : index
    %c0_24 = arith.constant 0 : index
    %c0_25 = arith.constant 0 : index
    %12 = vector.load %arg8[%c0_23, %c0_24, %c0_25] : memref<10x16x9xbf16, #tpu.memory_space<vmem>>, vector<10x1x3xbf16>
    tpu.vector_store %arg8[%c0_23, %c0_24, %c0_25], %9 {strides = array<i32>} : memref<10x16x9xbf16, #tpu.memory_space<vmem>>, vector<10x1x3xbf16>,
    %c0_26 = arith.constant 0 : index
    %c0_27 = arith.constant 0 : index
    %c0_28 = arith.constant 0 : index
    %13 = vector.load %arg7[%c0_26, %c0_27, %c0_28] : memref<10x16x3xbf16, #tpu.memory_space<vmem>>, vector<10x15x3xbf16>
    %c0_29 = arith.constant 0 : index
    %c1_30 = arith.constant 1 : index
    %c0_31 = arith.constant 0 : index
    %14 = vector.load %arg8[%c0_29, %c1_30, %c0_31] : memref<10x16x9xbf16, #tpu.memory_space<vmem>>, vector<10x15x3xbf16>
    tpu.vector_store %arg8[%c0_29, %c1_30, %c0_31], %13 {strides = array<i32>} : memref<10x16x9xbf16, #tpu.memory_space<vmem>>, vector<10x15x3xbf16>,
    %c0_32 = arith.constant 0 : index
    %c1_33 = arith.constant 1 : index
    %c0_34 = arith.constant 0 : index
    %15 = vector.load %arg7[%c0_32, %c1_33, %c0_34] : memref<10x16x3xbf16, #tpu.memory_space<vmem>>, vector<10x15x3xbf16>
    %c0_35 = arith.constant 0 : index
    %c0_36 = arith.constant 0 : index
    %c6 = arith.constant 6 : index
    %16 = vector.load %arg8[%c0_35, %c0_36, %c6] : memref<10x16x9xbf16, #tpu.memory_space<vmem>>, vector<10x15x3xbf16>
    tpu.vector_store %arg8[%c0_35, %c0_36, %c6], %15 {strides = array<i32>} : memref<10x16x9xbf16, #tpu.memory_space<vmem>>, vector<10x15x3xbf16>,
    %c0_37 = arith.constant 0 : index
    %c15 = arith.constant 15 : index
    %c6_38 = arith.constant 6 : index
    %17 = vector.load %arg8[%c0_37, %c15, %c6_38] : memref<10x16x9xbf16, #tpu.memory_space<vmem>>, vector<10x1x3xbf16>
    tpu.vector_store %arg8[%c0_37, %c15, %c6_38], %9 {strides = array<i32>} : memref<10x16x9xbf16, #tpu.memory_space<vmem>>, vector<10x1x3xbf16>,
    %c0_39 = arith.constant 0 : index
    %c0_40 = arith.constant 0 : index
    %c0_41 = arith.constant 0 : index
    %18 = vector.load %arg8[%c0_39, %c0_40, %c0_41] : memref<10x16x9xbf16, #tpu.memory_space<vmem>>, vector<8x16x9xbf16>
    %19 = vector.shape_cast %18 : vector<8x16x9xbf16> to vector<128x9xbf16>
    %c0_42 = arith.constant 0 : index
    %c0_43 = arith.constant 0 : index
    %c0_44 = arith.constant 0 : index
    %20 = vector.load %arg4[%c0_42, %c0_43, %c0_44] : memref<3x9x64xbf16, #tpu.memory_space<vmem>>, vector<1x9x64xbf16>
    %21 = vector.shape_cast %20 : vector<1x9x64xbf16> to vector<9x64xbf16>
    %cst_45 = arith.constant dense<0.000000e+00> : vector<128x64xf32>
    %22 = tpu.matmul %19, %21, %cst_45 {dimension_numbers = #tpu.dot_dimension_numbers<[1], [0], [0], [1], [0, 0, 1, 1], [], []>} : vector<128x9xbf16>, vector<9x64xbf16>, vector<128x64xf32> -> vector<128x64xf32>
    %c1_46 = arith.constant 1 : index
    %c0_47 = arith.constant 0 : index
    %c0_48 = arith.constant 0 : index
    %23 = vector.load %arg8[%c1_46, %c0_47, %c0_48] : memref<10x16x9xbf16, #tpu.memory_space<vmem>>, vector<8x16x9xbf16>
    %24 = vector.shape_cast %23 : vector<8x16x9xbf16> to vector<128x9xbf16>
    %c1_49 = arith.constant 1 : index
    %c0_50 = arith.constant 0 : index
    %c0_51 = arith.constant 0 : index
    %25 = vector.load %arg4[%c1_49, %c0_50, %c0_51] : memref<3x9x64xbf16, #tpu.memory_space<vmem>>, vector<1x9x64xbf16>
    %26 = vector.shape_cast %25 : vector<1x9x64xbf16> to vector<9x64xbf16>
    %cst_52 = arith.constant dense<0.000000e+00> : vector<128x64xf32>
    %27 = tpu.matmul %24, %26, %cst_52 {dimension_numbers = #tpu.dot_dimension_numbers<[1], [0], [0], [1], [0, 0, 1, 1], [], []>} : vector<128x9xbf16>, vector<9x64xbf16>, vector<128x64xf32> -> vector<128x64xf32>
    %28 = arith.addf %22, %27 : vector<128x64xf32>
    %c2 = arith.constant 2 : index
    %c0_53 = arith.constant 0 : index
    %c0_54 = arith.constant 0 : index
    %29 = vector.load %arg8[%c2, %c0_53, %c0_54] : memref<10x16x9xbf16, #tpu.memory_space<vmem>>, vector<8x16x9xbf16>
    %30 = vector.shape_cast %29 : vector<8x16x9xbf16> to vector<128x9xbf16>
    %c2_55 = arith.constant 2 : index
    %c0_56 = arith.constant 0 : index
    %c0_57 = arith.constant 0 : index
    %31 = vector.load %arg4[%c2_55, %c0_56, %c0_57] : memref<3x9x64xbf16, #tpu.memory_space<vmem>>, vector<1x9x64xbf16>
    %32 = vector.shape_cast %31 : vector<1x9x64xbf16> to vector<9x64xbf16>
    %cst_58 = arith.constant dense<0.000000e+00> : vector<128x64xf32>
    %33 = tpu.matmul %30, %32, %cst_58 {dimension_numbers = #tpu.dot_dimension_numbers<[1], [0], [0], [1], [0, 0, 1, 1], [], []>} : vector<128x9xbf16>, vector<9x64xbf16>, vector<128x64xf32> -> vector<128x64xf32>
    %34 = arith.addf %28, %33 : vector<128x64xf32>
    %c0_59 = arith.constant 0 : index
    %c0_60 = arith.constant 0 : index
    %35 = vector.load %arg5[%c0_59, %c0_60] : memref<1x64xf32, #tpu.memory_space<vmem>>, vector<1x64xf32>
    %36 = vector.broadcast %35 : vector<1x64xf32> to vector<128x64xf32>
    %37 = arith.addf %34, %36 : vector<128x64xf32>
    %cst_61 = arith.constant 0.000000e+00 : f32
    %38 = vector.broadcast %cst_61 : f32 to vector<128x64xf32>
    %39 = arith.maximumf %37, %38 : vector<128x64xf32>
    %40 = vector.shape_cast %39 : vector<128x64xf32> to vector<8x16x64xf32>
    %41 = arith.truncf %40 : vector<8x16x64xf32> to vector<8x16x64xbf16>
    %c0_62 = arith.constant 0 : index
    %c0_63 = arith.constant 0 : index
    %c0_64 = arith.constant 0 : index
    %c0_65 = arith.constant 0 : index
    %42 = vector.load %arg6[%c0_62, %c0_63, %c0_64, %c0_65] : memref<1x8x16x64xbf16, #tpu.memory_space<vmem>>, vector<1x8x16x64xbf16>
    %43 = vector.shape_cast %42 : vector<1x8x16x64xbf16> to vector<8x16x64xbf16>
    %44 = vector.shape_cast %41 : vector<8x16x64xbf16> to vector<1x8x16x64xbf16>
    tpu.vector_store %arg6[%c0_62, %c0_63, %c0_64, %c0_65], %44 {strides = array<i32>} : memref<1x8x16x64xbf16, #tpu.memory_space<vmem>>, vector<1x8x16x64xbf16>,
    return
  }
  func.func @transform_0(%arg0: i32, %arg1: i32) -> (i32, i32, i32, i32) {
    %c0_i32 = arith.constant 0 : i32
    %c0_i32_0 = arith.constant 0 : i32
    %c0_i32_1 = arith.constant 0 : i32
    return %arg0, %arg1, %c0_i32, %c0_i32_0 : i32, i32, i32, i32
  }
  func.func @transform_1(%arg0: i32, %arg1: i32) -> (i32, i32, i32, i32) {
    %c0_i32 = arith.constant 0 : i32
    %c0_i32_0 = arith.constant 0 : i32
    %c0_i32_1 = arith.constant 0 : i32
    return %arg0, %arg1, %c0_i32, %c0_i32_0 : i32, i32, i32, i32
  }
  func.func @transform_2(%arg0: i32, %arg1: i32) -> (i32, i32, i32) {
    %c0_i32 = arith.constant 0 : i32
    %c0_i32_0 = arith.constant 0 : i32
    %c0_i32_1 = arith.constant 0 : i32
    %c0_i32_2 = arith.constant 0 : i32
    return %c0_i32, %c0_i32_0, %c0_i32_1 : i32, i32, i32
  }
  func.func @transform_3(%arg0: i32, %arg1: i32) -> (i32, i32) {
    %c0_i32 = arith.constant 0 : i32
    %c0_i32_0 = arith.constant 0 : i32
    %c0_i32_1 = arith.constant 0 : i32
    return %c0_i32, %c0_i32_0 : i32, i32
  }
  func.func @transform_4(%arg0: i32, %arg1: i32) -> (i32, i32, i32, i32) {
    %c0_i32 = arith.constant 0 : i32
    %c0_i32_0 = arith.constant 0 : i32
    %c0_i32_1 = arith.constant 0 : i32
    return %arg0, %arg1, %c0_i32, %c0_i32_0 : i32, i32, i32, i32
  }
}

module attributes {stable_mosaic.version = 11 : i64} {
  func.func @_conv3x3_relu_pool_kernel(%arg0: i32, %arg1: i32, %arg2: memref<1x8x16x64xbf16, #tpu.memory_space<vmem>>, %arg3: memref<1x2x16x64xbf16, #tpu.memory_space<vmem>>, %arg4: memref<3x192x64xbf16, #tpu.memory_space<vmem>>, %arg5: memref<1x64xf32, #tpu.memory_space<vmem>>, %arg6: memref<1x4x8x64xbf16, #tpu.memory_space<vmem>>, %arg7: memref<10x16x64xbf16, #tpu.memory_space<vmem>>, %arg8: memref<10x16x192xbf16, #tpu.memory_space<vmem>>, %arg9: memref<4x16x64xf32, #tpu.memory_space<vmem>>) attributes {dimension_semantics = [#tpu.dimension_semantics<parallel>, #tpu.dimension_semantics<parallel>], iteration_bounds = array<i64: 2, 2>, scalar_prefetch = 0 : i64, scratch_operands = 3 : i64, tpu.core_type = #tpu.core_type<tc>, window_params = [{transform_indices = @transform_0, window_bounds = array<i64: 1, 8, 16, 64>}, {transform_indices = @transform_1, window_bounds = array<i64: 1, 2, 16, 64>}, {pipeline_mode = #tpu.pipeline_mode<synchronous>, transform_indices = @transform_2, window_bounds = array<i64: 3, 192, 64>}, {pipeline_mode = #tpu.pipeline_mode<synchronous>, transform_indices = @transform_3, window_bounds = array<i64: 1, 64>}, {transform_indices = @transform_4, window_bounds = array<i64: 1, 4, 8, 64>}]} {
    %c0 = arith.constant 0 : index
    %c0_0 = arith.constant 0 : index
    %c0_1 = arith.constant 0 : index
    %c0_2 = arith.constant 0 : index
    %0 = vector.load %arg3[%c0, %c0_0, %c0_1, %c0_2] : memref<1x2x16x64xbf16, #tpu.memory_space<vmem>>, vector<1x1x16x64xbf16>
    %1 = vector.shape_cast %0 : vector<1x1x16x64xbf16> to vector<1x16x64xbf16>
    %c0_3 = arith.constant 0 : index
    %c0_4 = arith.constant 0 : index
    %c0_5 = arith.constant 0 : index
    %2 = vector.load %arg7[%c0_3, %c0_4, %c0_5] : memref<10x16x64xbf16, #tpu.memory_space<vmem>>, vector<1x16x64xbf16>
    tpu.vector_store %arg7[%c0_3, %c0_4, %c0_5], %1 {strides = array<i32>} : memref<10x16x64xbf16, #tpu.memory_space<vmem>>, vector<1x16x64xbf16>,
    %c0_6 = arith.constant 0 : index
    %c0_7 = arith.constant 0 : index
    %c0_8 = arith.constant 0 : index
    %c0_9 = arith.constant 0 : index
    %3 = vector.load %arg2[%c0_6, %c0_7, %c0_8, %c0_9] : memref<1x8x16x64xbf16, #tpu.memory_space<vmem>>, vector<1x8x16x64xbf16>
    %4 = vector.shape_cast %3 : vector<1x8x16x64xbf16> to vector<8x16x64xbf16>
    %c1 = arith.constant 1 : index
    %c0_10 = arith.constant 0 : index
    %c0_11 = arith.constant 0 : index
    %5 = vector.load %arg7[%c1, %c0_10, %c0_11] : memref<10x16x64xbf16, #tpu.memory_space<vmem>>, vector<8x16x64xbf16>
    tpu.vector_store %arg7[%c1, %c0_10, %c0_11], %4 {strides = array<i32>} : memref<10x16x64xbf16, #tpu.memory_space<vmem>>, vector<8x16x64xbf16>,
    %c0_12 = arith.constant 0 : index
    %c1_13 = arith.constant 1 : index
    %c0_14 = arith.constant 0 : index
    %c0_15 = arith.constant 0 : index
    %6 = vector.load %arg3[%c0_12, %c1_13, %c0_14, %c0_15] : memref<1x2x16x64xbf16, #tpu.memory_space<vmem>>, vector<1x1x16x64xbf16>
    %7 = vector.shape_cast %6 : vector<1x1x16x64xbf16> to vector<1x16x64xbf16>
    %c9 = arith.constant 9 : index
    %c0_16 = arith.constant 0 : index
    %c0_17 = arith.constant 0 : index
    %8 = vector.load %arg7[%c9, %c0_16, %c0_17] : memref<10x16x64xbf16, #tpu.memory_space<vmem>>, vector<1x16x64xbf16>
    tpu.vector_store %arg7[%c9, %c0_16, %c0_17], %7 {strides = array<i32>} : memref<10x16x64xbf16, #tpu.memory_space<vmem>>, vector<1x16x64xbf16>,
    %cst = arith.constant 0.000000e+00 : bf16
    %9 = vector.broadcast %cst : bf16 to vector<10x1x64xbf16>
    %c0_18 = arith.constant 0 : index
    %c0_19 = arith.constant 0 : index
    %c0_20 = arith.constant 0 : index
    %10 = vector.load %arg7[%c0_18, %c0_19, %c0_20] : memref<10x16x64xbf16, #tpu.memory_space<vmem>>, vector<10x16x64xbf16>
    %c0_21 = arith.constant 0 : index
    %c0_22 = arith.constant 0 : index
    %c64 = arith.constant 64 : index
    %11 = vector.load %arg8[%c0_21, %c0_22, %c64] : memref<10x16x192xbf16, #tpu.memory_space<vmem>>, vector<10x16x64xbf16>
    tpu.vector_store %arg8[%c0_21, %c0_22, %c64], %10 {strides = array<i32>} : memref<10x16x192xbf16, #tpu.memory_space<vmem>>, vector<10x16x64xbf16>,
    %c0_23 = arith.constant 0 : index
    %c0_24 = arith.constant 0 : index
    %c0_25 = arith.constant 0 : index
    %12 = vector.load %arg8[%c0_23, %c0_24, %c0_25] : memref<10x16x192xbf16, #tpu.memory_space<vmem>>, vector<10x1x64xbf16>
    tpu.vector_store %arg8[%c0_23, %c0_24, %c0_25], %9 {strides = array<i32>} : memref<10x16x192xbf16, #tpu.memory_space<vmem>>, vector<10x1x64xbf16>,
    %c0_26 = arith.constant 0 : index
    %c0_27 = arith.constant 0 : index
    %c0_28 = arith.constant 0 : index
    %13 = vector.load %arg7[%c0_26, %c0_27, %c0_28] : memref<10x16x64xbf16, #tpu.memory_space<vmem>>, vector<10x15x64xbf16>
    %c0_29 = arith.constant 0 : index
    %c1_30 = arith.constant 1 : index
    %c0_31 = arith.constant 0 : index
    %14 = vector.load %arg8[%c0_29, %c1_30, %c0_31] : memref<10x16x192xbf16, #tpu.memory_space<vmem>>, vector<10x15x64xbf16>
    tpu.vector_store %arg8[%c0_29, %c1_30, %c0_31], %13 {strides = array<i32>} : memref<10x16x192xbf16, #tpu.memory_space<vmem>>, vector<10x15x64xbf16>,
    %c0_32 = arith.constant 0 : index
    %c1_33 = arith.constant 1 : index
    %c0_34 = arith.constant 0 : index
    %15 = vector.load %arg7[%c0_32, %c1_33, %c0_34] : memref<10x16x64xbf16, #tpu.memory_space<vmem>>, vector<10x15x64xbf16>
    %c0_35 = arith.constant 0 : index
    %c0_36 = arith.constant 0 : index
    %c128 = arith.constant 128 : index
    %16 = vector.load %arg8[%c0_35, %c0_36, %c128] : memref<10x16x192xbf16, #tpu.memory_space<vmem>>, vector<10x15x64xbf16>
    tpu.vector_store %arg8[%c0_35, %c0_36, %c128], %15 {strides = array<i32>} : memref<10x16x192xbf16, #tpu.memory_space<vmem>>, vector<10x15x64xbf16>,
    %c0_37 = arith.constant 0 : index
    %c15 = arith.constant 15 : index
    %c128_38 = arith.constant 128 : index
    %17 = vector.load %arg8[%c0_37, %c15, %c128_38] : memref<10x16x192xbf16, #tpu.memory_space<vmem>>, vector<10x1x64xbf16>
    tpu.vector_store %arg8[%c0_37, %c15, %c128_38], %9 {strides = array<i32>} : memref<10x16x192xbf16, #tpu.memory_space<vmem>>, vector<10x1x64xbf16>,
    %c0_39 = arith.constant 0 : index
    %c0_40 = arith.constant 0 : index
    %c0_41 = arith.constant 0 : index
    %18 = vector.load %arg8[%c0_39, %c0_40, %c0_41] : memref<10x16x192xbf16, #tpu.memory_space<vmem>>, vector<8x16x192xbf16>
    %19 = vector.shape_cast %18 : vector<8x16x192xbf16> to vector<128x192xbf16>
    %c0_42 = arith.constant 0 : index
    %c0_43 = arith.constant 0 : index
    %c0_44 = arith.constant 0 : index
    %20 = vector.load %arg4[%c0_42, %c0_43, %c0_44] : memref<3x192x64xbf16, #tpu.memory_space<vmem>>, vector<1x192x64xbf16>
    %21 = vector.shape_cast %20 : vector<1x192x64xbf16> to vector<192x64xbf16>
    %cst_45 = arith.constant dense<0.000000e+00> : vector<128x64xf32>
    %22 = tpu.matmul %19, %21, %cst_45 {dimension_numbers = #tpu.dot_dimension_numbers<[1], [0], [0], [1], [0, 0, 1, 1], [], []>} : vector<128x192xbf16>, vector<192x64xbf16>, vector<128x64xf32> -> vector<128x64xf32>
    %c1_46 = arith.constant 1 : index
    %c0_47 = arith.constant 0 : index
    %c0_48 = arith.constant 0 : index
    %23 = vector.load %arg8[%c1_46, %c0_47, %c0_48] : memref<10x16x192xbf16, #tpu.memory_space<vmem>>, vector<8x16x192xbf16>
    %24 = vector.shape_cast %23 : vector<8x16x192xbf16> to vector<128x192xbf16>
    %c1_49 = arith.constant 1 : index
    %c0_50 = arith.constant 0 : index
    %c0_51 = arith.constant 0 : index
    %25 = vector.load %arg4[%c1_49, %c0_50, %c0_51] : memref<3x192x64xbf16, #tpu.memory_space<vmem>>, vector<1x192x64xbf16>
    %26 = vector.shape_cast %25 : vector<1x192x64xbf16> to vector<192x64xbf16>
    %cst_52 = arith.constant dense<0.000000e+00> : vector<128x64xf32>
    %27 = tpu.matmul %24, %26, %cst_52 {dimension_numbers = #tpu.dot_dimension_numbers<[1], [0], [0], [1], [0, 0, 1, 1], [], []>} : vector<128x192xbf16>, vector<192x64xbf16>, vector<128x64xf32> -> vector<128x64xf32>
    %28 = arith.addf %22, %27 : vector<128x64xf32>
    %c2 = arith.constant 2 : index
    %c0_53 = arith.constant 0 : index
    %c0_54 = arith.constant 0 : index
    %29 = vector.load %arg8[%c2, %c0_53, %c0_54] : memref<10x16x192xbf16, #tpu.memory_space<vmem>>, vector<8x16x192xbf16>
    %30 = vector.shape_cast %29 : vector<8x16x192xbf16> to vector<128x192xbf16>
    %c2_55 = arith.constant 2 : index
    %c0_56 = arith.constant 0 : index
    %c0_57 = arith.constant 0 : index
    %31 = vector.load %arg4[%c2_55, %c0_56, %c0_57] : memref<3x192x64xbf16, #tpu.memory_space<vmem>>, vector<1x192x64xbf16>
    %32 = vector.shape_cast %31 : vector<1x192x64xbf16> to vector<192x64xbf16>
    %cst_58 = arith.constant dense<0.000000e+00> : vector<128x64xf32>
    %33 = tpu.matmul %30, %32, %cst_58 {dimension_numbers = #tpu.dot_dimension_numbers<[1], [0], [0], [1], [0, 0, 1, 1], [], []>} : vector<128x192xbf16>, vector<192x64xbf16>, vector<128x64xf32> -> vector<128x64xf32>
    %34 = arith.addf %28, %33 : vector<128x64xf32>
    %c0_59 = arith.constant 0 : index
    %c0_60 = arith.constant 0 : index
    %35 = vector.load %arg5[%c0_59, %c0_60] : memref<1x64xf32, #tpu.memory_space<vmem>>, vector<1x64xf32>
    %36 = vector.broadcast %35 : vector<1x64xf32> to vector<128x64xf32>
    %37 = arith.addf %34, %36 : vector<128x64xf32>
    %cst_61 = arith.constant 0.000000e+00 : f32
    %38 = vector.broadcast %cst_61 : f32 to vector<128x64xf32>
    %39 = arith.maximumf %37, %38 : vector<128x64xf32>
    %40 = vector.shape_cast %39 : vector<128x64xf32> to vector<4x2x16x64xf32>
    %41 = vector.extract_strided_slice %40 {offsets = [0, 0, 0, 0], sizes = [4, 1, 16, 64], strides = [1, 1, 1, 1]} : vector<4x2x16x64xf32> to vector<4x1x16x64xf32>
    %42 = vector.shape_cast %41 : vector<4x1x16x64xf32> to vector<4x16x64xf32>
    %43 = vector.extract_strided_slice %40 {offsets = [0, 1, 0, 0], sizes = [4, 1, 16, 64], strides = [1, 1, 1, 1]} : vector<4x2x16x64xf32> to vector<4x1x16x64xf32>
    %44 = vector.shape_cast %43 : vector<4x1x16x64xf32> to vector<4x16x64xf32>
    %45 = arith.maximumf %42, %44 : vector<4x16x64xf32>
    %c0_62 = arith.constant 0 : index
    %c0_63 = arith.constant 0 : index
    %c0_64 = arith.constant 0 : index
    %46 = vector.load %arg9[%c0_62, %c0_63, %c0_64] : memref<4x16x64xf32, #tpu.memory_space<vmem>>, vector<4x16x64xf32>
    tpu.vector_store %arg9[%c0_62, %c0_63, %c0_64], %45 {strides = array<i32>} : memref<4x16x64xf32, #tpu.memory_space<vmem>>, vector<4x16x64xf32>,
    %c0_65 = arith.constant 0 : index
    %c0_66 = arith.constant 0 : index
    %c0_67 = arith.constant 0 : index
    %47 = tpu.strided_load %arg9[%c0_65, %c0_66, %c0_67] {strides = array<i32: 1, 2, 1>} : memref<4x16x64xf32, #tpu.memory_space<vmem>>, vector<4x8x64xf32>
    %c0_68 = arith.constant 0 : index
    %c1_69 = arith.constant 1 : index
    %c0_70 = arith.constant 0 : index
    %48 = tpu.strided_load %arg9[%c0_68, %c1_69, %c0_70] {strides = array<i32: 1, 2, 1>} : memref<4x16x64xf32, #tpu.memory_space<vmem>>, vector<4x8x64xf32>
    %49 = arith.maximumf %47, %48 : vector<4x8x64xf32>
    %50 = arith.truncf %49 : vector<4x8x64xf32> to vector<4x8x64xbf16>
    %c0_71 = arith.constant 0 : index
    %c0_72 = arith.constant 0 : index
    %c0_73 = arith.constant 0 : index
    %c0_74 = arith.constant 0 : index
    %51 = vector.load %arg6[%c0_71, %c0_72, %c0_73, %c0_74] : memref<1x4x8x64xbf16, #tpu.memory_space<vmem>>, vector<1x4x8x64xbf16>
    %52 = vector.shape_cast %51 : vector<1x4x8x64xbf16> to vector<4x8x64xbf16>
    %53 = vector.shape_cast %50 : vector<4x8x64xbf16> to vector<1x4x8x64xbf16>
    tpu.vector_store %arg6[%c0_71, %c0_72, %c0_73, %c0_74], %53 {strides = array<i32>} : memref<1x4x8x64xbf16, #tpu.memory_space<vmem>>, vector<1x4x8x64xbf16>,
    return
  }
  func.func @transform_0(%arg0: i32, %arg1: i32) -> (i32, i32, i32, i32) {
    %c0_i32 = arith.constant 0 : i32
    %c0_i32_0 = arith.constant 0 : i32
    %c0_i32_1 = arith.constant 0 : i32
    return %arg0, %arg1, %c0_i32, %c0_i32_0 : i32, i32, i32, i32
  }
  func.func @transform_1(%arg0: i32, %arg1: i32) -> (i32, i32, i32, i32) {
    %c0_i32 = arith.constant 0 : i32
    %c0_i32_0 = arith.constant 0 : i32
    %c0_i32_1 = arith.constant 0 : i32
    return %arg0, %arg1, %c0_i32, %c0_i32_0 : i32, i32, i32, i32
  }
  func.func @transform_2(%arg0: i32, %arg1: i32) -> (i32, i32, i32) {
    %c0_i32 = arith.constant 0 : i32
    %c0_i32_0 = arith.constant 0 : i32
    %c0_i32_1 = arith.constant 0 : i32
    %c0_i32_2 = arith.constant 0 : i32
    return %c0_i32, %c0_i32_0, %c0_i32_1 : i32, i32, i32
  }
  func.func @transform_3(%arg0: i32, %arg1: i32) -> (i32, i32) {
    %c0_i32 = arith.constant 0 : i32
    %c0_i32_0 = arith.constant 0 : i32
    %c0_i32_1 = arith.constant 0 : i32
    return %c0_i32, %c0_i32_0 : i32, i32
  }
  func.func @transform_4(%arg0: i32, %arg1: i32) -> (i32, i32, i32, i32) {
    %c0_i32 = arith.constant 0 : i32
    %c0_i32_0 = arith.constant 0 : i32
    %c0_i32_1 = arith.constant 0 : i32
    return %arg0, %arg1, %c0_i32, %c0_i32_0 : i32, i32, i32, i32
  }
}

module attributes {stable_mosaic.version = 11 : i64} {
  func.func @_conv3x3_relu_kernel(%arg0: i32, %arg1: i32, %arg2: memref<1x8x8x64xbf16, #tpu.memory_space<vmem>>, %arg3: memref<1x2x8x64xbf16, #tpu.memory_space<vmem>>, %arg4: memref<3x192x128xbf16, #tpu.memory_space<vmem>>, %arg5: memref<1x128xf32, #tpu.memory_space<vmem>>, %arg6: memref<1x8x8x128xbf16, #tpu.memory_space<vmem>>, %arg7: memref<10x8x64xbf16, #tpu.memory_space<vmem>>, %arg8: memref<10x8x192xbf16, #tpu.memory_space<vmem>>) attributes {dimension_semantics = [#tpu.dimension_semantics<parallel>, #tpu.dimension_semantics<parallel>], iteration_bounds = array<i64: 2, 1>, scalar_prefetch = 0 : i64, scratch_operands = 2 : i64, tpu.core_type = #tpu.core_type<tc>, window_params = [{transform_indices = @transform_0, window_bounds = array<i64: 1, 8, 8, 64>}, {transform_indices = @transform_1, window_bounds = array<i64: 1, 2, 8, 64>}, {pipeline_mode = #tpu.pipeline_mode<synchronous>, transform_indices = @transform_2, window_bounds = array<i64: 3, 192, 128>}, {pipeline_mode = #tpu.pipeline_mode<synchronous>, transform_indices = @transform_3, window_bounds = array<i64: 1, 128>}, {transform_indices = @transform_4, window_bounds = array<i64: 1, 8, 8, 128>}]} {
    %c0 = arith.constant 0 : index
    %c0_0 = arith.constant 0 : index
    %c0_1 = arith.constant 0 : index
    %c0_2 = arith.constant 0 : index
    %0 = vector.load %arg3[%c0, %c0_0, %c0_1, %c0_2] : memref<1x2x8x64xbf16, #tpu.memory_space<vmem>>, vector<1x1x8x64xbf16>
    %1 = vector.shape_cast %0 : vector<1x1x8x64xbf16> to vector<1x8x64xbf16>
    %c0_3 = arith.constant 0 : index
    %c0_4 = arith.constant 0 : index
    %c0_5 = arith.constant 0 : index
    %2 = vector.load %arg7[%c0_3, %c0_4, %c0_5] : memref<10x8x64xbf16, #tpu.memory_space<vmem>>, vector<1x8x64xbf16>
    tpu.vector_store %arg7[%c0_3, %c0_4, %c0_5], %1 {strides = array<i32>} : memref<10x8x64xbf16, #tpu.memory_space<vmem>>, vector<1x8x64xbf16>,
    %c0_6 = arith.constant 0 : index
    %c0_7 = arith.constant 0 : index
    %c0_8 = arith.constant 0 : index
    %c0_9 = arith.constant 0 : index
    %3 = vector.load %arg2[%c0_6, %c0_7, %c0_8, %c0_9] : memref<1x8x8x64xbf16, #tpu.memory_space<vmem>>, vector<1x8x8x64xbf16>
    %4 = vector.shape_cast %3 : vector<1x8x8x64xbf16> to vector<8x8x64xbf16>
    %c1 = arith.constant 1 : index
    %c0_10 = arith.constant 0 : index
    %c0_11 = arith.constant 0 : index
    %5 = vector.load %arg7[%c1, %c0_10, %c0_11] : memref<10x8x64xbf16, #tpu.memory_space<vmem>>, vector<8x8x64xbf16>
    tpu.vector_store %arg7[%c1, %c0_10, %c0_11], %4 {strides = array<i32>} : memref<10x8x64xbf16, #tpu.memory_space<vmem>>, vector<8x8x64xbf16>,
    %c0_12 = arith.constant 0 : index
    %c1_13 = arith.constant 1 : index
    %c0_14 = arith.constant 0 : index
    %c0_15 = arith.constant 0 : index
    %6 = vector.load %arg3[%c0_12, %c1_13, %c0_14, %c0_15] : memref<1x2x8x64xbf16, #tpu.memory_space<vmem>>, vector<1x1x8x64xbf16>
    %7 = vector.shape_cast %6 : vector<1x1x8x64xbf16> to vector<1x8x64xbf16>
    %c9 = arith.constant 9 : index
    %c0_16 = arith.constant 0 : index
    %c0_17 = arith.constant 0 : index
    %8 = vector.load %arg7[%c9, %c0_16, %c0_17] : memref<10x8x64xbf16, #tpu.memory_space<vmem>>, vector<1x8x64xbf16>
    tpu.vector_store %arg7[%c9, %c0_16, %c0_17], %7 {strides = array<i32>} : memref<10x8x64xbf16, #tpu.memory_space<vmem>>, vector<1x8x64xbf16>,
    %cst = arith.constant 0.000000e+00 : bf16
    %9 = vector.broadcast %cst : bf16 to vector<10x1x64xbf16>
    %c0_18 = arith.constant 0 : index
    %c0_19 = arith.constant 0 : index
    %c0_20 = arith.constant 0 : index
    %10 = vector.load %arg7[%c0_18, %c0_19, %c0_20] : memref<10x8x64xbf16, #tpu.memory_space<vmem>>, vector<10x8x64xbf16>
    %c0_21 = arith.constant 0 : index
    %c0_22 = arith.constant 0 : index
    %c64 = arith.constant 64 : index
    %11 = vector.load %arg8[%c0_21, %c0_22, %c64] : memref<10x8x192xbf16, #tpu.memory_space<vmem>>, vector<10x8x64xbf16>
    tpu.vector_store %arg8[%c0_21, %c0_22, %c64], %10 {strides = array<i32>} : memref<10x8x192xbf16, #tpu.memory_space<vmem>>, vector<10x8x64xbf16>,
    %c0_23 = arith.constant 0 : index
    %c0_24 = arith.constant 0 : index
    %c0_25 = arith.constant 0 : index
    %12 = vector.load %arg8[%c0_23, %c0_24, %c0_25] : memref<10x8x192xbf16, #tpu.memory_space<vmem>>, vector<10x1x64xbf16>
    tpu.vector_store %arg8[%c0_23, %c0_24, %c0_25], %9 {strides = array<i32>} : memref<10x8x192xbf16, #tpu.memory_space<vmem>>, vector<10x1x64xbf16>,
    %c0_26 = arith.constant 0 : index
    %c0_27 = arith.constant 0 : index
    %c0_28 = arith.constant 0 : index
    %13 = vector.load %arg7[%c0_26, %c0_27, %c0_28] : memref<10x8x64xbf16, #tpu.memory_space<vmem>>, vector<10x7x64xbf16>
    %c0_29 = arith.constant 0 : index
    %c1_30 = arith.constant 1 : index
    %c0_31 = arith.constant 0 : index
    %14 = vector.load %arg8[%c0_29, %c1_30, %c0_31] : memref<10x8x192xbf16, #tpu.memory_space<vmem>>, vector<10x7x64xbf16>
    tpu.vector_store %arg8[%c0_29, %c1_30, %c0_31], %13 {strides = array<i32>} : memref<10x8x192xbf16, #tpu.memory_space<vmem>>, vector<10x7x64xbf16>,
    %c0_32 = arith.constant 0 : index
    %c1_33 = arith.constant 1 : index
    %c0_34 = arith.constant 0 : index
    %15 = vector.load %arg7[%c0_32, %c1_33, %c0_34] : memref<10x8x64xbf16, #tpu.memory_space<vmem>>, vector<10x7x64xbf16>
    %c0_35 = arith.constant 0 : index
    %c0_36 = arith.constant 0 : index
    %c128 = arith.constant 128 : index
    %16 = vector.load %arg8[%c0_35, %c0_36, %c128] : memref<10x8x192xbf16, #tpu.memory_space<vmem>>, vector<10x7x64xbf16>
    tpu.vector_store %arg8[%c0_35, %c0_36, %c128], %15 {strides = array<i32>} : memref<10x8x192xbf16, #tpu.memory_space<vmem>>, vector<10x7x64xbf16>,
    %c0_37 = arith.constant 0 : index
    %c7 = arith.constant 7 : index
    %c128_38 = arith.constant 128 : index
    %17 = vector.load %arg8[%c0_37, %c7, %c128_38] : memref<10x8x192xbf16, #tpu.memory_space<vmem>>, vector<10x1x64xbf16>
    tpu.vector_store %arg8[%c0_37, %c7, %c128_38], %9 {strides = array<i32>} : memref<10x8x192xbf16, #tpu.memory_space<vmem>>, vector<10x1x64xbf16>,
    %c0_39 = arith.constant 0 : index
    %c0_40 = arith.constant 0 : index
    %c0_41 = arith.constant 0 : index
    %18 = vector.load %arg8[%c0_39, %c0_40, %c0_41] : memref<10x8x192xbf16, #tpu.memory_space<vmem>>, vector<8x8x192xbf16>
    %19 = vector.shape_cast %18 : vector<8x8x192xbf16> to vector<64x192xbf16>
    %c0_42 = arith.constant 0 : index
    %c0_43 = arith.constant 0 : index
    %c0_44 = arith.constant 0 : index
    %20 = vector.load %arg4[%c0_42, %c0_43, %c0_44] : memref<3x192x128xbf16, #tpu.memory_space<vmem>>, vector<1x192x128xbf16>
    %21 = vector.shape_cast %20 : vector<1x192x128xbf16> to vector<192x128xbf16>
    %cst_45 = arith.constant dense<0.000000e+00> : vector<64x128xf32>
    %22 = tpu.matmul %19, %21, %cst_45 {dimension_numbers = #tpu.dot_dimension_numbers<[1], [0], [0], [1], [0, 0, 1, 1], [], []>} : vector<64x192xbf16>, vector<192x128xbf16>, vector<64x128xf32> -> vector<64x128xf32>
    %c1_46 = arith.constant 1 : index
    %c0_47 = arith.constant 0 : index
    %c0_48 = arith.constant 0 : index
    %23 = vector.load %arg8[%c1_46, %c0_47, %c0_48] : memref<10x8x192xbf16, #tpu.memory_space<vmem>>, vector<8x8x192xbf16>
    %24 = vector.shape_cast %23 : vector<8x8x192xbf16> to vector<64x192xbf16>
    %c1_49 = arith.constant 1 : index
    %c0_50 = arith.constant 0 : index
    %c0_51 = arith.constant 0 : index
    %25 = vector.load %arg4[%c1_49, %c0_50, %c0_51] : memref<3x192x128xbf16, #tpu.memory_space<vmem>>, vector<1x192x128xbf16>
    %26 = vector.shape_cast %25 : vector<1x192x128xbf16> to vector<192x128xbf16>
    %cst_52 = arith.constant dense<0.000000e+00> : vector<64x128xf32>
    %27 = tpu.matmul %24, %26, %cst_52 {dimension_numbers = #tpu.dot_dimension_numbers<[1], [0], [0], [1], [0, 0, 1, 1], [], []>} : vector<64x192xbf16>, vector<192x128xbf16>, vector<64x128xf32> -> vector<64x128xf32>
    %28 = arith.addf %22, %27 : vector<64x128xf32>
    %c2 = arith.constant 2 : index
    %c0_53 = arith.constant 0 : index
    %c0_54 = arith.constant 0 : index
    %29 = vector.load %arg8[%c2, %c0_53, %c0_54] : memref<10x8x192xbf16, #tpu.memory_space<vmem>>, vector<8x8x192xbf16>
    %30 = vector.shape_cast %29 : vector<8x8x192xbf16> to vector<64x192xbf16>
    %c2_55 = arith.constant 2 : index
    %c0_56 = arith.constant 0 : index
    %c0_57 = arith.constant 0 : index
    %31 = vector.load %arg4[%c2_55, %c0_56, %c0_57] : memref<3x192x128xbf16, #tpu.memory_space<vmem>>, vector<1x192x128xbf16>
    %32 = vector.shape_cast %31 : vector<1x192x128xbf16> to vector<192x128xbf16>
    %cst_58 = arith.constant dense<0.000000e+00> : vector<64x128xf32>
    %33 = tpu.matmul %30, %32, %cst_58 {dimension_numbers = #tpu.dot_dimension_numbers<[1], [0], [0], [1], [0, 0, 1, 1], [], []>} : vector<64x192xbf16>, vector<192x128xbf16>, vector<64x128xf32> -> vector<64x128xf32>
    %34 = arith.addf %28, %33 : vector<64x128xf32>
    %c0_59 = arith.constant 0 : index
    %c0_60 = arith.constant 0 : index
    %35 = vector.load %arg5[%c0_59, %c0_60] : memref<1x128xf32, #tpu.memory_space<vmem>>, vector<1x128xf32>
    %36 = vector.broadcast %35 : vector<1x128xf32> to vector<64x128xf32>
    %37 = arith.addf %34, %36 : vector<64x128xf32>
    %cst_61 = arith.constant 0.000000e+00 : f32
    %38 = vector.broadcast %cst_61 : f32 to vector<64x128xf32>
    %39 = arith.maximumf %37, %38 : vector<64x128xf32>
    %40 = vector.shape_cast %39 : vector<64x128xf32> to vector<8x8x128xf32>
    %41 = arith.truncf %40 : vector<8x8x128xf32> to vector<8x8x128xbf16>
    %c0_62 = arith.constant 0 : index
    %c0_63 = arith.constant 0 : index
    %c0_64 = arith.constant 0 : index
    %c0_65 = arith.constant 0 : index
    %42 = vector.load %arg6[%c0_62, %c0_63, %c0_64, %c0_65] : memref<1x8x8x128xbf16, #tpu.memory_space<vmem>>, vector<1x8x8x128xbf16>
    %43 = vector.shape_cast %42 : vector<1x8x8x128xbf16> to vector<8x8x128xbf16>
    %44 = vector.shape_cast %41 : vector<8x8x128xbf16> to vector<1x8x8x128xbf16>
    tpu.vector_store %arg6[%c0_62, %c0_63, %c0_64, %c0_65], %44 {strides = array<i32>} : memref<1x8x8x128xbf16, #tpu.memory_space<vmem>>, vector<1x8x8x128xbf16>,
    return
  }
  func.func @transform_0(%arg0: i32, %arg1: i32) -> (i32, i32, i32, i32) {
    %c0_i32 = arith.constant 0 : i32
    %c0_i32_0 = arith.constant 0 : i32
    %c0_i32_1 = arith.constant 0 : i32
    return %arg0, %arg1, %c0_i32, %c0_i32_0 : i32, i32, i32, i32
  }
  func.func @transform_1(%arg0: i32, %arg1: i32) -> (i32, i32, i32, i32) {
    %c0_i32 = arith.constant 0 : i32
    %c0_i32_0 = arith.constant 0 : i32
    %c0_i32_1 = arith.constant 0 : i32
    return %arg0, %arg1, %c0_i32, %c0_i32_0 : i32, i32, i32, i32
  }
  func.func @transform_2(%arg0: i32, %arg1: i32) -> (i32, i32, i32) {
    %c0_i32 = arith.constant 0 : i32
    %c0_i32_0 = arith.constant 0 : i32
    %c0_i32_1 = arith.constant 0 : i32
    %c0_i32_2 = arith.constant 0 : i32
    return %c0_i32, %c0_i32_0, %c0_i32_1 : i32, i32, i32
  }
  func.func @transform_3(%arg0: i32, %arg1: i32) -> (i32, i32) {
    %c0_i32 = arith.constant 0 : i32
    %c0_i32_0 = arith.constant 0 : i32
    %c0_i32_1 = arith.constant 0 : i32
    return %c0_i32, %c0_i32_0 : i32, i32
  }
  func.func @transform_4(%arg0: i32, %arg1: i32) -> (i32, i32, i32, i32) {
    %c0_i32 = arith.constant 0 : i32
    %c0_i32_0 = arith.constant 0 : i32
    %c0_i32_1 = arith.constant 0 : i32
    return %arg0, %arg1, %c0_i32, %c0_i32_0 : i32, i32, i32, i32
  }
}

module attributes {stable_mosaic.version = 11 : i64} {
  func.func @_conv3x3_relu_kernel(%arg0: i32, %arg1: i32, %arg2: memref<1x8x8x128xbf16, #tpu.memory_space<vmem>>, %arg3: memref<1x2x8x128xbf16, #tpu.memory_space<vmem>>, %arg4: memref<3x384x128xbf16, #tpu.memory_space<vmem>>, %arg5: memref<1x128xf32, #tpu.memory_space<vmem>>, %arg6: memref<1x8x8x128xf32, #tpu.memory_space<vmem>>, %arg7: memref<10x8x128xbf16, #tpu.memory_space<vmem>>, %arg8: memref<10x8x384xbf16, #tpu.memory_space<vmem>>) attributes {dimension_semantics = [#tpu.dimension_semantics<parallel>, #tpu.dimension_semantics<parallel>], iteration_bounds = array<i64: 2, 1>, scalar_prefetch = 0 : i64, scratch_operands = 2 : i64, tpu.core_type = #tpu.core_type<tc>, window_params = [{transform_indices = @transform_0, window_bounds = array<i64: 1, 8, 8, 128>}, {transform_indices = @transform_1, window_bounds = array<i64: 1, 2, 8, 128>}, {pipeline_mode = #tpu.pipeline_mode<synchronous>, transform_indices = @transform_2, window_bounds = array<i64: 3, 384, 128>}, {pipeline_mode = #tpu.pipeline_mode<synchronous>, transform_indices = @transform_3, window_bounds = array<i64: 1, 128>}, {transform_indices = @transform_4, window_bounds = array<i64: 1, 8, 8, 128>}]} {
    %c0 = arith.constant 0 : index
    %c0_0 = arith.constant 0 : index
    %c0_1 = arith.constant 0 : index
    %c0_2 = arith.constant 0 : index
    %0 = vector.load %arg3[%c0, %c0_0, %c0_1, %c0_2] : memref<1x2x8x128xbf16, #tpu.memory_space<vmem>>, vector<1x1x8x128xbf16>
    %1 = vector.shape_cast %0 : vector<1x1x8x128xbf16> to vector<1x8x128xbf16>
    %c0_3 = arith.constant 0 : index
    %c0_4 = arith.constant 0 : index
    %c0_5 = arith.constant 0 : index
    %2 = vector.load %arg7[%c0_3, %c0_4, %c0_5] : memref<10x8x128xbf16, #tpu.memory_space<vmem>>, vector<1x8x128xbf16>
    tpu.vector_store %arg7[%c0_3, %c0_4, %c0_5], %1 {strides = array<i32>} : memref<10x8x128xbf16, #tpu.memory_space<vmem>>, vector<1x8x128xbf16>,
    %c0_6 = arith.constant 0 : index
    %c0_7 = arith.constant 0 : index
    %c0_8 = arith.constant 0 : index
    %c0_9 = arith.constant 0 : index
    %3 = vector.load %arg2[%c0_6, %c0_7, %c0_8, %c0_9] : memref<1x8x8x128xbf16, #tpu.memory_space<vmem>>, vector<1x8x8x128xbf16>
    %4 = vector.shape_cast %3 : vector<1x8x8x128xbf16> to vector<8x8x128xbf16>
    %c1 = arith.constant 1 : index
    %c0_10 = arith.constant 0 : index
    %c0_11 = arith.constant 0 : index
    %5 = vector.load %arg7[%c1, %c0_10, %c0_11] : memref<10x8x128xbf16, #tpu.memory_space<vmem>>, vector<8x8x128xbf16>
    tpu.vector_store %arg7[%c1, %c0_10, %c0_11], %4 {strides = array<i32>} : memref<10x8x128xbf16, #tpu.memory_space<vmem>>, vector<8x8x128xbf16>,
    %c0_12 = arith.constant 0 : index
    %c1_13 = arith.constant 1 : index
    %c0_14 = arith.constant 0 : index
    %c0_15 = arith.constant 0 : index
    %6 = vector.load %arg3[%c0_12, %c1_13, %c0_14, %c0_15] : memref<1x2x8x128xbf16, #tpu.memory_space<vmem>>, vector<1x1x8x128xbf16>
    %7 = vector.shape_cast %6 : vector<1x1x8x128xbf16> to vector<1x8x128xbf16>
    %c9 = arith.constant 9 : index
    %c0_16 = arith.constant 0 : index
    %c0_17 = arith.constant 0 : index
    %8 = vector.load %arg7[%c9, %c0_16, %c0_17] : memref<10x8x128xbf16, #tpu.memory_space<vmem>>, vector<1x8x128xbf16>
    tpu.vector_store %arg7[%c9, %c0_16, %c0_17], %7 {strides = array<i32>} : memref<10x8x128xbf16, #tpu.memory_space<vmem>>, vector<1x8x128xbf16>,
    %cst = arith.constant 0.000000e+00 : bf16
    %9 = vector.broadcast %cst : bf16 to vector<10x1x128xbf16>
    %c0_18 = arith.constant 0 : index
    %c0_19 = arith.constant 0 : index
    %c0_20 = arith.constant 0 : index
    %10 = vector.load %arg7[%c0_18, %c0_19, %c0_20] : memref<10x8x128xbf16, #tpu.memory_space<vmem>>, vector<10x8x128xbf16>
    %c0_21 = arith.constant 0 : index
    %c0_22 = arith.constant 0 : index
    %c128 = arith.constant 128 : index
    %11 = vector.load %arg8[%c0_21, %c0_22, %c128] : memref<10x8x384xbf16, #tpu.memory_space<vmem>>, vector<10x8x128xbf16>
    tpu.vector_store %arg8[%c0_21, %c0_22, %c128], %10 {strides = array<i32>} : memref<10x8x384xbf16, #tpu.memory_space<vmem>>, vector<10x8x128xbf16>,
    %c0_23 = arith.constant 0 : index
    %c0_24 = arith.constant 0 : index
    %c0_25 = arith.constant 0 : index
    %12 = vector.load %arg8[%c0_23, %c0_24, %c0_25] : memref<10x8x384xbf16, #tpu.memory_space<vmem>>, vector<10x1x128xbf16>
    tpu.vector_store %arg8[%c0_23, %c0_24, %c0_25], %9 {strides = array<i32>} : memref<10x8x384xbf16, #tpu.memory_space<vmem>>, vector<10x1x128xbf16>,
    %c0_26 = arith.constant 0 : index
    %c0_27 = arith.constant 0 : index
    %c0_28 = arith.constant 0 : index
    %13 = vector.load %arg7[%c0_26, %c0_27, %c0_28] : memref<10x8x128xbf16, #tpu.memory_space<vmem>>, vector<10x7x128xbf16>
    %c0_29 = arith.constant 0 : index
    %c1_30 = arith.constant 1 : index
    %c0_31 = arith.constant 0 : index
    %14 = vector.load %arg8[%c0_29, %c1_30, %c0_31] : memref<10x8x384xbf16, #tpu.memory_space<vmem>>, vector<10x7x128xbf16>
    tpu.vector_store %arg8[%c0_29, %c1_30, %c0_31], %13 {strides = array<i32>} : memref<10x8x384xbf16, #tpu.memory_space<vmem>>, vector<10x7x128xbf16>,
    %c0_32 = arith.constant 0 : index
    %c1_33 = arith.constant 1 : index
    %c0_34 = arith.constant 0 : index
    %15 = vector.load %arg7[%c0_32, %c1_33, %c0_34] : memref<10x8x128xbf16, #tpu.memory_space<vmem>>, vector<10x7x128xbf16>
    %c0_35 = arith.constant 0 : index
    %c0_36 = arith.constant 0 : index
    %c256 = arith.constant 256 : index
    %16 = vector.load %arg8[%c0_35, %c0_36, %c256] : memref<10x8x384xbf16, #tpu.memory_space<vmem>>, vector<10x7x128xbf16>
    tpu.vector_store %arg8[%c0_35, %c0_36, %c256], %15 {strides = array<i32>} : memref<10x8x384xbf16, #tpu.memory_space<vmem>>, vector<10x7x128xbf16>,
    %c0_37 = arith.constant 0 : index
    %c7 = arith.constant 7 : index
    %c256_38 = arith.constant 256 : index
    %17 = vector.load %arg8[%c0_37, %c7, %c256_38] : memref<10x8x384xbf16, #tpu.memory_space<vmem>>, vector<10x1x128xbf16>
    tpu.vector_store %arg8[%c0_37, %c7, %c256_38], %9 {strides = array<i32>} : memref<10x8x384xbf16, #tpu.memory_space<vmem>>, vector<10x1x128xbf16>,
    %c0_39 = arith.constant 0 : index
    %c0_40 = arith.constant 0 : index
    %c0_41 = arith.constant 0 : index
    %18 = vector.load %arg8[%c0_39, %c0_40, %c0_41] : memref<10x8x384xbf16, #tpu.memory_space<vmem>>, vector<8x8x384xbf16>
    %19 = vector.shape_cast %18 : vector<8x8x384xbf16> to vector<64x384xbf16>
    %c0_42 = arith.constant 0 : index
    %c0_43 = arith.constant 0 : index
    %c0_44 = arith.constant 0 : index
    %20 = vector.load %arg4[%c0_42, %c0_43, %c0_44] : memref<3x384x128xbf16, #tpu.memory_space<vmem>>, vector<1x384x128xbf16>
    %21 = vector.shape_cast %20 : vector<1x384x128xbf16> to vector<384x128xbf16>
    %cst_45 = arith.constant dense<0.000000e+00> : vector<64x128xf32>
    %22 = tpu.matmul %19, %21, %cst_45 {dimension_numbers = #tpu.dot_dimension_numbers<[1], [0], [0], [1], [0, 0, 1, 1], [], []>} : vector<64x384xbf16>, vector<384x128xbf16>, vector<64x128xf32> -> vector<64x128xf32>
    %c1_46 = arith.constant 1 : index
    %c0_47 = arith.constant 0 : index
    %c0_48 = arith.constant 0 : index
    %23 = vector.load %arg8[%c1_46, %c0_47, %c0_48] : memref<10x8x384xbf16, #tpu.memory_space<vmem>>, vector<8x8x384xbf16>
    %24 = vector.shape_cast %23 : vector<8x8x384xbf16> to vector<64x384xbf16>
    %c1_49 = arith.constant 1 : index
    %c0_50 = arith.constant 0 : index
    %c0_51 = arith.constant 0 : index
    %25 = vector.load %arg4[%c1_49, %c0_50, %c0_51] : memref<3x384x128xbf16, #tpu.memory_space<vmem>>, vector<1x384x128xbf16>
    %26 = vector.shape_cast %25 : vector<1x384x128xbf16> to vector<384x128xbf16>
    %cst_52 = arith.constant dense<0.000000e+00> : vector<64x128xf32>
    %27 = tpu.matmul %24, %26, %cst_52 {dimension_numbers = #tpu.dot_dimension_numbers<[1], [0], [0], [1], [0, 0, 1, 1], [], []>} : vector<64x384xbf16>, vector<384x128xbf16>, vector<64x128xf32> -> vector<64x128xf32>
    %28 = arith.addf %22, %27 : vector<64x128xf32>
    %c2 = arith.constant 2 : index
    %c0_53 = arith.constant 0 : index
    %c0_54 = arith.constant 0 : index
    %29 = vector.load %arg8[%c2, %c0_53, %c0_54] : memref<10x8x384xbf16, #tpu.memory_space<vmem>>, vector<8x8x384xbf16>
    %30 = vector.shape_cast %29 : vector<8x8x384xbf16> to vector<64x384xbf16>
    %c2_55 = arith.constant 2 : index
    %c0_56 = arith.constant 0 : index
    %c0_57 = arith.constant 0 : index
    %31 = vector.load %arg4[%c2_55, %c0_56, %c0_57] : memref<3x384x128xbf16, #tpu.memory_space<vmem>>, vector<1x384x128xbf16>
    %32 = vector.shape_cast %31 : vector<1x384x128xbf16> to vector<384x128xbf16>
    %cst_58 = arith.constant dense<0.000000e+00> : vector<64x128xf32>
    %33 = tpu.matmul %30, %32, %cst_58 {dimension_numbers = #tpu.dot_dimension_numbers<[1], [0], [0], [1], [0, 0, 1, 1], [], []>} : vector<64x384xbf16>, vector<384x128xbf16>, vector<64x128xf32> -> vector<64x128xf32>
    %34 = arith.addf %28, %33 : vector<64x128xf32>
    %c0_59 = arith.constant 0 : index
    %c0_60 = arith.constant 0 : index
    %35 = vector.load %arg5[%c0_59, %c0_60] : memref<1x128xf32, #tpu.memory_space<vmem>>, vector<1x128xf32>
    %36 = vector.broadcast %35 : vector<1x128xf32> to vector<64x128xf32>
    %37 = arith.addf %34, %36 : vector<64x128xf32>
    %cst_61 = arith.constant 0.000000e+00 : f32
    %38 = vector.broadcast %cst_61 : f32 to vector<64x128xf32>
    %39 = arith.maximumf %37, %38 : vector<64x128xf32>
    %40 = vector.shape_cast %39 : vector<64x128xf32> to vector<8x8x128xf32>
    %c0_62 = arith.constant 0 : index
    %c0_63 = arith.constant 0 : index
    %c0_64 = arith.constant 0 : index
    %c0_65 = arith.constant 0 : index
    %41 = vector.load %arg6[%c0_62, %c0_63, %c0_64, %c0_65] : memref<1x8x8x128xf32, #tpu.memory_space<vmem>>, vector<1x8x8x128xf32>
    %42 = vector.shape_cast %41 : vector<1x8x8x128xf32> to vector<8x8x128xf32>
    %43 = vector.shape_cast %40 : vector<8x8x128xf32> to vector<1x8x8x128xf32>
    tpu.vector_store %arg6[%c0_62, %c0_63, %c0_64, %c0_65], %43 {strides = array<i32>} : memref<1x8x8x128xf32, #tpu.memory_space<vmem>>, vector<1x8x8x128xf32>,
    return
  }
  func.func @transform_0(%arg0: i32, %arg1: i32) -> (i32, i32, i32, i32) {
    %c0_i32 = arith.constant 0 : i32
    %c0_i32_0 = arith.constant 0 : i32
    %c0_i32_1 = arith.constant 0 : i32
    return %arg0, %arg1, %c0_i32, %c0_i32_0 : i32, i32, i32, i32
  }
  func.func @transform_1(%arg0: i32, %arg1: i32) -> (i32, i32, i32, i32) {
    %c0_i32 = arith.constant 0 : i32
    %c0_i32_0 = arith.constant 0 : i32
    %c0_i32_1 = arith.constant 0 : i32
    return %arg0, %arg1, %c0_i32, %c0_i32_0 : i32, i32, i32, i32
  }
  func.func @transform_2(%arg0: i32, %arg1: i32) -> (i32, i32, i32) {
    %c0_i32 = arith.constant 0 : i32
    %c0_i32_0 = arith.constant 0 : i32
    %c0_i32_1 = arith.constant 0 : i32
    %c0_i32_2 = arith.constant 0 : i32
    return %c0_i32, %c0_i32_0, %c0_i32_1 : i32, i32, i32
  }
  func.func @transform_3(%arg0: i32, %arg1: i32) -> (i32, i32) {
    %c0_i32 = arith.constant 0 : i32
    %c0_i32_0 = arith.constant 0 : i32
    %c0_i32_1 = arith.constant 0 : i32
    return %c0_i32, %c0_i32_0 : i32, i32
  }
  func.func @transform_4(%arg0: i32, %arg1: i32) -> (i32, i32, i32, i32) {
    %c0_i32 = arith.constant 0 : i32
    %c0_i32_0 = arith.constant 0 : i32
    %c0_i32_1 = arith.constant 0 : i32
    return %arg0, %arg1, %c0_i32, %c0_i32_0 : i32, i32, i32, i32
  }
}

</mosaic_0001>

<llo_original>
// kernel: content_forward.6
$region0: #{content_forward.6}
  #allocation0 [shape = 'u32[]', space=smem, size = 0x4, offset = 0x4, fixed_abs, tag = 'smem constant byte address 0x4 - core index']
  #allocation1 [shape = 'u32[144,128]{1,0:T(1,128)}', space=vmem, size = 0x12000, scoped, tag = 'internal scratch']
  #allocation2 [shape = 'bf16[10,8,64]{2,1,0:T(8,128)(2,1)}', space=vmem, size = 0x5000, scoped, tag = 'scratch operand']
  #allocation3 [shape = 'bf16[10,8,192]{2,1,0:T(8,128)(2,1)}', space=vmem, size = 0xa000, scoped, tag = 'scratch operand']
  %s0 = inlined_call_operand.vmem [shape: bf16[2,8,8,64], index: 0, kind: input, shape index: {}]
  %s1 = inlined_call_operand.vmem [shape: bf16[2,2,8,64], index: 1, kind: input, shape index: {}]
  %s2 = inlined_call_operand.vmem [shape: bf16[3,192,128], index: 2, kind: input, shape index: {}]
  %s3 = inlined_call_operand.vmem [shape: f32[1,128], index: 3, kind: input, shape index: {}]
  %s4 = inlined_call_operand.vmem [shape: bf16[2,8,8,128], index: 4, kind: output, shape index: {}]
  %s5 = sld [smem:[#allocation0]]
  $region49: #{content_forward.6} parent=0
    _
  %s7 = ssub.s32 1, %s5
  %s8 = scalar_select 0, %s7, %s5
  loop: start=0, step=1, limit=4
  $region2: #{content_forward.6} parent=0 // loop_pre_header
    _
  $region3: #{content_forward.6} parent=0 // loop_header
    %s10 = sphi 0, %s14
    %p11 = scmp.ge.s32.totalorder %s10, 4
    %s17 = sphi 0, %s29
    %s18 = sphi 0, %s25
    %s19 = sphi 0, %s17
    %s20 = sphi 0, %s18
    %s21 = sphi 0, %s19
    %s22 = sphi 0, %s20
    %s34 = sphi 0, %s36
    %s37 = sphi 0, %s34
    %s38 = sphi 0, %s37
    %s54 = sphi 0, %s38
    %s62 = sphi 0, %s64
    %s65 = sphi 0, %s62
    %s66 = sphi 0, %s65
    %s82 = sphi 0, %s66
    %s86 = sphi 0, %s86
    %s88 = sphi 0, %s86
    %s89 = sphi 0, %s88
    %s103 = sphi 0, %s89
    %s107 = sphi 0, %s107
    %s109 = sphi 0, %s107
    %s110 = sphi 0, %s109
    %s124 = sphi 0, %s110
    %s132 = sphi 0, %s134
    %s135 = sphi 0, %s132
    %s136 = sphi 0, %s135
    %s152 = sphi 0, %s136
  $region4: #{content_forward.6} parent=0 // loop_header_branch
    %13 = sbr.rel (%p11) target = $region8
  $region5: #{content_forward.6} parent=0 // loop_body
    %s15 = ssub.s32 %s10, 1
    %s16 = ssub.s32 %s10, 2
    %s23 = sadd.s32 1, %s18
    %p24 = scmp.ge.s32.totalorder %s23, 1
    %s25 = scalar_select %p24, 0, %s23
    %s26 = sadd.s32 1, %s17
    %s27 = scalar_select %p24, %s26, %s17
    %p28 = scmp.ge.s32.totalorder %s27, 2
    %s29 = scalar_select %p28, 0, %s27
    %s30 = ssub.s32 %s17, %s29
    %s31 = ssub.s32 %s18, %s25
    %s32 = sor.u32 %s30, %s31
    %p33 = scmp.eq.s32.totalorder %s32, 0
    %s35 = sadd.s32 %s34, 1
    %s36 = scalar_select %p33, %s34, %s35
    %p39 = pneg %p33
    %p40 = scmp.eq.s32.totalorder %s10, 1
    %p41 = por %p39, %p40
    %p42 = scmp.ne.s32.totalorder %s34, %s37
    %p43 = scmp.eq.s32.totalorder %s10, 0
    %p44 = por %p42, %p43
    %p45 = scmp.ne.s32.totalorder %s34, %s37
    %p46 = scmp.eq.s32.totalorder %s15, 1
    %p47 = por %p45, %p46
    %p48 = scmp.ne.s32.totalorder %s37, %s38
    %p49 = scmp.eq.s32.totalorder %s15, 0
    %p50 = por %p48, %p49
    %p51 = scmp.ne.s32.totalorder %s37, %s38
    %p52 = scmp.eq.s32.totalorder %s16, 1
    %p53 = por %p51, %p52
    %p55 = scmp.ne.s32.totalorder %s38, %s54
    %p56 = scmp.eq.s32.totalorder %s16, 0
    %p57 = por %p55, %p56
    %s58 = ssub.s32 %s17, %s29
    %s59 = ssub.s32 %s18, %s25
    %s60 = sor.u32 %s58, %s59
    %p61 = scmp.eq.s32.totalorder %s60, 0
    %s63 = sadd.s32 %s62, 1
    %s64 = scalar_select %p61, %s62, %s63
    %p67 = pneg %p61
    %p68 = scmp.eq.s32.totalorder %s10, 1
    %p69 = por %p67, %p68
    %p70 = scmp.ne.s32.totalorder %s62, %s65
    %p71 = scmp.eq.s32.totalorder %s10, 0
    %p72 = por %p70, %p71
    %p73 = scmp.ne.s32.totalorder %s62, %s65
    %p74 = scmp.eq.s32.totalorder %s15, 1
    %p75 = por %p73, %p74
    %p76 = scmp.ne.s32.totalorder %s65, %s66
    %p77 = scmp.eq.s32.totalorder %s15, 0
    %p78 = por %p76, %p77
    %p79 = scmp.ne.s32.totalorder %s65, %s66
    %p80 = scmp.eq.s32.totalorder %s16, 1
    %p81 = por %p79, %p80
    %p83 = scmp.ne.s32.totalorder %s66, %s82
    %p84 = scmp.eq.s32.totalorder %s16, 0
    %p85 = por %p83, %p84
    %s87 = sadd.s32 %s86, 1
    %p90 = scmp.eq.s32.totalorder %s10, 1
    %p91 = scmp.ne.s32.totalorder %s86, %s88
    %p92 = scmp.eq.s32.totalorder %s10, 0
    %p93 = por %p91, %p92
    %p94 = scmp.ne.s32.totalorder %s86, %s88
    %p95 = scmp.eq.s32.totalorder %s15, 1
    %p96 = por %p94, %p95
    %p97 = scmp.ne.s32.totalorder %s88, %s89
    %p98 = scmp.eq.s32.totalorder %s15, 0
    %p99 = por %p97, %p98
    %p100 = scmp.ne.s32.totalorder %s88, %s89
    %p101 = scmp.eq.s32.totalorder %s16, 1
    %p102 = por %p100, %p101
    %p104 = scmp.ne.s32.totalorder %s89, %s103
    %p105 = scmp.eq.s32.totalorder %s16, 0
    %p106 = por %p104, %p105
    %s108 = sadd.s32 %s107, 1
    %p111 = scmp.eq.s32.totalorder %s10, 1
    %p112 = scmp.ne.s32.totalorder %s107, %s109
    %p113 = scmp.eq.s32.totalorder %s10, 0
    %p114 = por %p112, %p113
    %p115 = scmp.ne.s32.totalorder %s107, %s109
    %p116 = scmp.eq.s32.totalorder %s15, 1
    %p117 = por %p115, %p116
    %p118 = scmp.ne.s32.totalorder %s109, %s110
    %p119 = scmp.eq.s32.totalorder %s15, 0
    %p120 = por %p118, %p119
    %p121 = scmp.ne.s32.totalorder %s109, %s110
    %p122 = scmp.eq.s32.totalorder %s16, 1
    %p123 = por %p121, %p122
    %p125 = scmp.ne.s32.totalorder %s110, %s124
    %p126 = scmp.eq.s32.totalorder %s16, 0
    %p127 = por %p125, %p126
    %s128 = ssub.s32 %s17, %s29
    %s129 = ssub.s32 %s18, %s25
    %s130 = sor.u32 %s128, %s129
    %p131 = scmp.eq.s32.totalorder %s130, 0
    %s133 = sadd.s32 %s132, 1
    %s134 = scalar_select %p131, %s132, %s133
    %p137 = pneg %p131
    %p138 = scmp.eq.s32.totalorder %s10, 1
    %p139 = por %p137, %p138
    %p140 = scmp.ne.s32.totalorder %s132, %s135
    %p141 = scmp.eq.s32.totalorder %s10, 0
    %p142 = por %p140, %p141
    %p143 = scmp.ne.s32.totalorder %s132, %s135
    %p144 = scmp.eq.s32.totalorder %s15, 1
    %p145 = por %p143, %p144
    %p146 = scmp.ne.s32.totalorder %s135, %s136
    %p147 = scmp.eq.s32.totalorder %s15, 0
    %p148 = por %p146, %p147
    %p149 = scmp.ne.s32.totalorder %s135, %s136
    %p150 = scmp.eq.s32.totalorder %s16, 1
    %p151 = por %p149, %p150
    %p153 = scmp.ne.s32.totalorder %s136, %s152
    %p154 = scmp.eq.s32.totalorder %s16, 0
    %p155 = por %p153, %p154
    %p156 = scmp.le.s32.totalorder 1, %s10
    %p157 = scmp.lt.s32.totalorder %s10, 3
    %p158 = pnand %p156, %p157
    %p159 = pneg %p158
    // Predicated region
    $region9: #{content_forward.6} parent=5 // pred_check
      _
    $region10: #{content_forward.6} parent=5 // pred_check_branch
      %161 = sbr.rel (%p158) target = $region12
    $region11: #{content_forward.6} parent=5 // pred_region
      %s162 = ssub.s32 %s10, 1
      // Predicated region
      $region13: #{content_forward.6} parent=11 // pred_check
        %p163 = pneg %p99
      $region14: #{content_forward.6} parent=11 // pred_check_branch
        %165 = sbr.rel (%p163) target = $region16
      $region15: #{content_forward.6} parent=11 // pred_region
        _
      $region16: #{content_forward.6} parent=11 // pred_fallthru
        _
      // Predicated region
      $region17: #{content_forward.6} parent=11 // pred_check
        %p166 = pneg %p120
      $region18: #{content_forward.6} parent=11 // pred_check_branch
        %168 = sbr.rel (%p166) target = $region20
      $region19: #{content_forward.6} parent=11 // pred_region
        _
      $region20: #{content_forward.6} parent=11 // pred_fallthru
        _
    $region12: #{content_forward.6} parent=5 // pred_fallthru
      _
    %p169 = scmp.lt.s32.totalorder %s10, 2
    // Predicated region
    $region21: #{content_forward.6} parent=5 // pred_check
      %p170 = pneg %p169
    $region22: #{content_forward.6} parent=5 // pred_check_branch
      %172 = sbr.rel (%p170) target = $region24
    $region23: #{content_forward.6} parent=5 // pred_region
      // Predicated region
      $region25: #{content_forward.6} parent=23 // pred_check
        %p173 = pneg %p44
      $region26: #{content_forward.6} parent=23 // pred_check_branch
        %175 = sbr.rel (%p173) target = $region28
      $region27: #{content_forward.6} parent=23 // pred_region
        %s176 = smul.u32 8, %s18
        %p177 = scmp.lt.s32.totalorder %s17, 1
        %s178 = scalar_select %p177, %s17, 1
        %p179 = scmp.lt.s32.totalorder %s176, 7
        %s180 = scalar_select %p179, %s176, 7
        %s181 = smul.addr %s178, 8
        %s182 = sadd.s32 %s180, %s181
        %s183 = smul.addr %s182, 4
        %s184 = scalar_lea.vmem %s0, %s183
        %s185 = smul.u32 8, %s18
      $region28: #{content_forward.6} parent=23 // pred_fallthru
        _
      // Predicated region
      $region29: #{content_forward.6} parent=23 // pred_check
        %p186 = pneg %p72
      $region30: #{content_forward.6} parent=23 // pred_check_branch
        %188 = sbr.rel (%p186) target = $region32
      $region31: #{content_forward.6} parent=23 // pred_region
        %s189 = smul.u32 2, %s18
        %p190 = scmp.lt.s32.totalorder %s17, 1
        %s191 = scalar_select %p190, %s17, 1
        %p192 = scmp.lt.s32.totalorder %s189, 1
        %s193 = scalar_select %p192, %s189, 1
        %s194 = smul.addr %s191, 2
        %s195 = sadd.s32 %s193, %s194
        %s196 = smul.addr %s195, 4
        %s197 = scalar_lea.vmem %s1, %s196
        %s198 = smul.u32 2, %s18
      $region32: #{content_forward.6} parent=23 // pred_fallthru
        _
    $region24: #{content_forward.6} parent=5 // pred_fallthru
      _
    %p199 = scmp.le.s32.totalorder 1, %s10
    %p200 = scmp.lt.s32.totalorder %s10, 3
    %p201 = pnand %p199, %p200
    %p202 = pneg %p201
    // Predicated region
    $region33: #{content_forward.6} parent=5 // pred_check
      _
    $region34: #{content_forward.6} parent=5 // pred_check_branch
      %204 = sbr.rel (%p201) target = $region36
    $region35: #{content_forward.6} parent=5 // pred_region
      %s205 = ssub.s32 %s10, 1
      %s206 = smul.u32 8, %s20
      %p207 = scmp.lt.s32.totalorder %s19, 1
      %s208 = scalar_select %p207, %s19, 1
      %p209 = scmp.lt.s32.totalorder %s206, 7
      %s210 = scalar_select %p209, %s206, 7
      %s211 = smul.addr %s208, 8
      %s212 = sadd.s32 %s210, %s211
      %s213 = smul.addr %s212, 4
      %s214 = scalar_lea.vmem %s0, %s213
      %p215 = pneg %p50
      %p216 = pneg %p47
      %s217 = smul.u32 2, %s20
      %p218 = scmp.lt.s32.totalorder %s19, 1
      %s219 = scalar_select %p218, %s19, 1
      %p220 = scmp.lt.s32.totalorder %s217, 1
      %s221 = scalar_select %p220, %s217, 1
      %s222 = smul.addr %s219, 2
      %s223 = sadd.s32 %s221, %s222
      %s224 = smul.addr %s223, 4
      %s225 = scalar_lea.vmem %s1, %s224
      %p226 = pneg %p78
      %p227 = pneg %p75
      %p228 = pneg %p99
      %p229 = pneg %p96
      %p230 = pneg %p120
      %p231 = pneg %p117
      %p232 = pneg %p148
      %p233 = pneg %p145
      %s234 = smul.u32 8, %s20
      %p235 = scmp.lt.s32.totalorder %s19, 1
      %s236 = scalar_select %p235, %s19, 1
      %p237 = scmp.lt.s32.totalorder %s234, 7
      %s238 = scalar_select %p237, %s234, 7
      %s239 = smul.addr %s236, 8
      %s240 = sadd.s32 %s238, %s239
      %s241 = smul.addr %s240, 4
      %s242 = scalar_lea.vmem %s4, %s241
      %s243 = smul.u32 8, %s20
      %p244 = scmp.lt.s32.totalorder %s19, 1
      %s245 = scalar_select %p244, %s19, 1
      %p246 = scmp.lt.s32.totalorder %s243, 7
      %s247 = scalar_select %p246, %s243, 7
      %s248 = smul.addr %s245, 8
      %s249 = sadd.s32 %s247, %s248
      %s250 = smul.addr %s249, 4
      %s251 = scalar_lea.vmem %s0, %s250
      %s252 = smul.u32 8, %s20
      %s253 = smul.u32 2, %s20
      %p254 = scmp.lt.s32.totalorder %s19, 1
      %s255 = scalar_select %p254, %s19, 1
      %p256 = scmp.lt.s32.totalorder %s253, 1
      %s257 = scalar_select %p256, %s253, 1
      %s258 = smul.addr %s255, 2
      %s259 = sadd.s32 %s257, %s258
      %s260 = smul.addr %s259, 4
      %s261 = scalar_lea.vmem %s1, %s260
      %s262 = smul.u32 2, %s20
      %s263 = smul.u32 8, %s20
      %p264 = scmp.lt.s32.totalorder %s19, 1
      %s265 = scalar_select %p264, %s19, 1
      %p266 = scmp.lt.s32.totalorder %s263, 7
      %s267 = scalar_select %p266, %s263, 7
      %s268 = smul.addr %s265, 8
      %s269 = sadd.s32 %s267, %s268
      %s270 = smul.addr %s269, 4
      %s271 = scalar_lea.vmem %s4, %s270
      %s272 = smul.u32 8, %s20
      %v274 = vld [vmem:[%s261] sm:$0xf]
      %vm275 = vcmask 519168
      %276 = vst.msk [vmem:[#allocation2] sm:$0xf] %vm275, %v274
      %v277 = vld [vmem:[%s251] sm:$0xf]
      %v278 = vld [vmem:[%s251 + $0x4] sm:$0xf]
      %v279 = vld [vmem:[%s251 + $0x8] sm:$0xf]
      %v280 = vld [vmem:[%s251 + $0xc] sm:$0xf]
      %v281 = vld [vmem:[%s251 + $0x10] sm:$0xf]
      %v282 = vld [vmem:[%s251 + $0x14] sm:$0xf]
      %v283 = vld [vmem:[%s251 + $0x18] sm:$0xf]
      %v284 = vld [vmem:[%s251 + $0x1c] sm:$0xf]
      %s285 = scalar_lea.vmem [#allocation2], 4
      %286 = vst.msk [vmem:[%s285] sm:$0xf] %vm275, %v277
      %287 = vst.msk [vmem:[%s285 + $0x4] sm:$0xf] %vm275, %v278
      %288 = vst.msk [vmem:[%s285 + $0x8] sm:$0xf] %vm275, %v279
      %289 = vst.msk [vmem:[%s285 + $0xc] sm:$0xf] %vm275, %v280
      %290 = vst.msk [vmem:[%s285 + $0x10] sm:$0xf] %vm275, %v281
      %291 = vst.msk [vmem:[%s285 + $0x14] sm:$0xf] %vm275, %v282
      %292 = vst.msk [vmem:[%s285 + $0x18] sm:$0xf] %vm275, %v283
      %293 = vst.msk [vmem:[%s285 + $0x1c] sm:$0xf] %vm275, %v284
      %s294 = scalar_lea.vmem %s261, 4
      %v295 = vld [vmem:[%s294] sm:$0xf]
      %s296 = scalar_lea.vmem [#allocation2], 36
      %297 = vst.msk [vmem:[%s296] sm:$0xf] %vm275, %v295
      %v298 = vld [vmem:[#allocation2] sm:$0xf]
      %v299 = vld [vmem:[#allocation2 + $0x4] sm:$0xf]
      %v300 = vld [vmem:[#allocation2 + $0x8] sm:$0xf]
      %v301 = vld [vmem:[#allocation2 + $0xc] sm:$0xf]
      %v302 = vld [vmem:[#allocation2 + $0x10] sm:$0xf]
      %v303 = vld [vmem:[#allocation2 + $0x14] sm:$0xf]
      %v304 = vld [vmem:[#allocation2 + $0x18] sm:$0xf]
      %v305 = vld [vmem:[#allocation2 + $0x1c] sm:$0xf]
      %v306 = vld [vmem:[#allocation2 + $0x20] sm:$0xf]
      %v307 = vld [vmem:[#allocation2 + $0x24] sm:$0xf]
      %318 = vrot.lane.b32.xlu0 %v298, 64
      %v319 = vpop.permute.xlu0 %318
      %320 = vrot.lane.b32.xlu0 %v299, 64
      %v321 = vpop.permute.xlu0 %320
      %322 = vrot.lane.b32.xlu0 %v300, 64
      %v323 = vpop.permute.xlu0 %322
      %324 = vrot.lane.b32.xlu0 %v301, 64
      %v325 = vpop.permute.xlu0 %324
      %326 = vrot.lane.b32.xlu0 %v302, 64
      %v327 = vpop.permute.xlu0 %326
      %328 = vrot.lane.b32.xlu0 %v303, 64
      %v329 = vpop.permute.xlu0 %328
      %330 = vrot.lane.b32.xlu0 %v304, 64
      %v331 = vpop.permute.xlu0 %330
      %332 = vrot.lane.b32.xlu0 %v305, 64
      %v333 = vpop.permute.xlu0 %332
      %334 = vrot.lane.b32.xlu0 %v306, 64
      %v335 = vpop.permute.xlu0 %334
      %336 = vrot.lane.b32.xlu0 %v307, 64
      %v337 = vpop.permute.xlu0 %336
      %vm348 = vcmask 1043968
      %349 = vst.msk [vmem:[#allocation3] sm:$0xf] %vm348, %v319
      %350 = vst.msk [vmem:[#allocation3 + $0x8] sm:$0xf] %vm348, %v321
      %351 = vst.msk [vmem:[#allocation3 + $0x10] sm:$0xf] %vm348, %v323
      %352 = vst.msk [vmem:[#allocation3 + $0x18] sm:$0xf] %vm348, %v325
      %353 = vst.msk [vmem:[#allocation3 + $0x20] sm:$0xf] %vm348, %v327
      %354 = vst.msk [vmem:[#allocation3 + $0x28] sm:$0xf] %vm348, %v329
      %355 = vst.msk [vmem:[#allocation3 + $0x30] sm:$0xf] %vm348, %v331
      %356 = vst.msk [vmem:[#allocation3 + $0x38] sm:$0xf] %vm348, %v333
      %357 = vst.msk [vmem:[#allocation3 + $0x40] sm:$0xf] %vm348, %v335
      %358 = vst.msk [vmem:[#allocation3 + $0x48] sm:$0xf] %vm348, %v337
      %vm359 = vcmask 516096
      %vm360 = vsmask.f32 256
      %vm361 = vmand %vm359, %vm360
      %v362 = vld [vmem:[#allocation3] sm:$0x1]
      %v363 = vsel %vm361, 0, %v362
      %364 = vst [vmem:[#allocation3] sm:$0x1] %v363
      %v365 = vld [vmem:[#allocation3 + $0x8] sm:$0x1]
      %v366 = vsel %vm361, 0, %v365
      %367 = vst [vmem:[#allocation3 + $0x8] sm:$0x1] %v366
      %v368 = vld [vmem:[#allocation3 + $0x10] sm:$0x1]
      %v369 = vsel %vm361, 0, %v368
      %370 = vst [vmem:[#allocation3 + $0x10] sm:$0x1] %v369
      %v371 = vld [vmem:[#allocation3 + $0x18] sm:$0x1]
      %v372 = vsel %vm361, 0, %v371
      %373 = vst [vmem:[#allocation3 + $0x18] sm:$0x1] %v372
      %v374 = vld [vmem:[#allocation3 + $0x20] sm:$0x1]
      %v375 = vsel %vm361, 0, %v374
      %376 = vst [vmem:[#allocation3 + $0x20] sm:$0x1] %v375
      %v377 = vld [vmem:[#allocation3 + $0x28] sm:$0x1]
      %v378 = vsel %vm361, 0, %v377
      %379 = vst [vmem:[#allocation3 + $0x28] sm:$0x1] %v378
      %v380 = vld [vmem:[#allocation3 + $0x30] sm:$0x1]
      %v381 = vsel %vm361, 0, %v380
      %382 = vst [vmem:[#allocation3 + $0x30] sm:$0x1] %v381
      %v383 = vld [vmem:[#allocation3 + $0x38] sm:$0x1]
      %v384 = vsel %vm361, 0, %v383
      %385 = vst [vmem:[#allocation3 + $0x38] sm:$0x1] %v384
      %v386 = vld [vmem:[#allocation3 + $0x40] sm:$0x1]
      %v387 = vsel %vm361, 0, %v386
      %388 = vst [vmem:[#allocation3 + $0x40] sm:$0x1] %v387
      %v389 = vld [vmem:[#allocation3 + $0x48] sm:$0x1]
      %v390 = vsel %vm361, 0, %v389
      %391 = vst [vmem:[#allocation3 + $0x48] sm:$0x1] %v390
      %v392 = vld [vmem:[#allocation2] sm:$0xf]
      %v393 = vld [vmem:[#allocation2 + $0x4] sm:$0xf]
      %v394 = vld [vmem:[#allocation2 + $0x8] sm:$0xf]
      %v395 = vld [vmem:[#allocation2 + $0xc] sm:$0xf]
      %v396 = vld [vmem:[#allocation2 + $0x10] sm:$0xf]
      %v397 = vld [vmem:[#allocation2 + $0x14] sm:$0xf]
      %v398 = vld [vmem:[#allocation2 + $0x18] sm:$0xf]
      %v399 = vld [vmem:[#allocation2 + $0x1c] sm:$0xf]
      %v400 = vld [vmem:[#allocation2 + $0x20] sm:$0xf]
      %v401 = vld [vmem:[#allocation2 + $0x24] sm:$0xf]
      %v403 = vshrl.u32 %v392, 16
      %v405 = vrot.slane %v403, 7
      %v406 = vshll.u32 %v392, 16
      %v408 = vor.u32 %v405, %v406
      %v410 = vshrl.u32 %v393, 16
      %v412 = vrot.slane %v410, 7
      %v413 = vshll.u32 %v393, 16
      %v415 = vor.u32 %v412, %v413
      %v417 = vshrl.u32 %v394, 16
      %v419 = vrot.slane %v417, 7
      %v420 = vshll.u32 %v394, 16
      %v422 = vor.u32 %v419, %v420
      %v424 = vshrl.u32 %v395, 16
      %v426 = vrot.slane %v424, 7
      %v427 = vshll.u32 %v395, 16
      %v429 = vor.u32 %v426, %v427
      %v431 = vshrl.u32 %v396, 16
      %v433 = vrot.slane %v431, 7
      %v434 = vshll.u32 %v396, 16
      %v436 = vor.u32 %v433, %v434
      %v438 = vshrl.u32 %v397, 16
      %v440 = vrot.slane %v438, 7
      %v441 = vshll.u32 %v397, 16
      %v443 = vor.u32 %v440, %v441
      %v445 = vshrl.u32 %v398, 16
      %v447 = vrot.slane %v445, 7
      %v448 = vshll.u32 %v398, 16
      %v450 = vor.u32 %v447, %v448
      %v452 = vshrl.u32 %v399, 16
      %v454 = vrot.slane %v452, 7
      %v455 = vshll.u32 %v399, 16
      %v457 = vor.u32 %v454, %v455
      %v459 = vshrl.u32 %v400, 16
      %v461 = vrot.slane %v459, 7
      %v462 = vshll.u32 %v400, 16
      %v464 = vor.u32 %v461, %v462
      %v466 = vshrl.u32 %v401, 16
      %v468 = vrot.slane %v466, 7
      %v469 = vshll.u32 %v401, 16
      %v471 = vor.u32 %v468, %v469
      %vm482 = vcmask 519168
      %vm483 = vsmask.f32 7938
      %vm484 = vmand %vm482, %vm483
      %v485 = vld [vmem:[#allocation3] sm:$0xf]
      %v486 = vsel %vm484, %v408, %v485
      %487 = vst [vmem:[#allocation3] sm:$0xf] %v486
      %v488 = vld [vmem:[#allocation3 + $0x8] sm:$0xf]
      %v489 = vsel %vm484, %v415, %v488
      %490 = vst [vmem:[#allocation3 + $0x8] sm:$0xf] %v489
      %v491 = vld [vmem:[#allocation3 + $0x10] sm:$0xf]
      %v492 = vsel %vm484, %v422, %v491
      %493 = vst [vmem:[#allocation3 + $0x10] sm:$0xf] %v492
      %v494 = vld [vmem:[#allocation3 + $0x18] sm:$0xf]
      %v495 = vsel %vm484, %v429, %v494
      %496 = vst [vmem:[#allocation3 + $0x18] sm:$0xf] %v495
      %v497 = vld [vmem:[#allocation3 + $0x20] sm:$0xf]
      %v498 = vsel %vm484, %v436, %v497
      %499 = vst [vmem:[#allocation3 + $0x20] sm:$0xf] %v498
      %v500 = vld [vmem:[#allocation3 + $0x28] sm:$0xf]
      %v501 = vsel %vm484, %v443, %v500
      %502 = vst [vmem:[#allocation3 + $0x28] sm:$0xf] %v501
      %v503 = vld [vmem:[#allocation3 + $0x30] sm:$0xf]
      %v504 = vsel %vm484, %v450, %v503
      %505 = vst [vmem:[#allocation3 + $0x30] sm:$0xf] %v504
      %v506 = vld [vmem:[#allocation3 + $0x38] sm:$0xf]
      %v507 = vsel %vm484, %v457, %v506
      %508 = vst [vmem:[#allocation3 + $0x38] sm:$0xf] %v507
      %v509 = vld [vmem:[#allocation3 + $0x40] sm:$0xf]
      %v510 = vsel %vm484, %v464, %v509
      %511 = vst [vmem:[#allocation3 + $0x40] sm:$0xf] %v510
      %v512 = vld [vmem:[#allocation3 + $0x48] sm:$0xf]
      %v513 = vsel %vm484, %v471, %v512
      %514 = vst [vmem:[#allocation3 + $0x48] sm:$0xf] %v513
      %v515 = vld [vmem:[#allocation2] sm:$0xf]
      %v516 = vld [vmem:[#allocation2 + $0x4] sm:$0xf]
      %v517 = vld [vmem:[#allocation2 + $0x8] sm:$0xf]
      %v518 = vld [vmem:[#allocation2 + $0xc] sm:$0xf]
      %v519 = vld [vmem:[#allocation2 + $0x10] sm:$0xf]
      %v520 = vld [vmem:[#allocation2 + $0x14] sm:$0xf]
      %v521 = vld [vmem:[#allocation2 + $0x18] sm:$0xf]
      %v522 = vld [vmem:[#allocation2 + $0x1c] sm:$0xf]
      %v523 = vld [vmem:[#allocation2 + $0x20] sm:$0xf]
      %v524 = vld [vmem:[#allocation2 + $0x24] sm:$0xf]
      %v526 = vshrl.u32 %v515, 16
      %v528 = vrot.slane %v526, 4
      %v529 = vshll.u32 %v515, 16
      %v531 = vrot.slane %v529, 5
      %v532 = vor.u32 %v528, %v531
      %v533 = vrot.slane %v532, 4
      %v535 = vshrl.u32 %v516, 16
      %v537 = vrot.slane %v535, 4
      %v538 = vshll.u32 %v516, 16
      %v540 = vrot.slane %v538, 5
      %v541 = vor.u32 %v537, %v540
      %v542 = vrot.slane %v541, 4
      %v544 = vshrl.u32 %v517, 16
      %v546 = vrot.slane %v544, 4
      %v547 = vshll.u32 %v517, 16
      %v549 = vrot.slane %v547, 5
      %v550 = vor.u32 %v546, %v549
      %v551 = vrot.slane %v550, 4
      %v553 = vshrl.u32 %v518, 16
      %v555 = vrot.slane %v553, 4
      %v556 = vshll.u32 %v518, 16
      %v558 = vrot.slane %v556, 5
      %v559 = vor.u32 %v555, %v558
      %v560 = vrot.slane %v559, 4
      %v562 = vshrl.u32 %v519, 16
      %v564 = vrot.slane %v562, 4
      %v565 = vshll.u32 %v519, 16
      %v567 = vrot.slane %v565, 5
      %v568 = vor.u32 %v564, %v567
      %v569 = vrot.slane %v568, 4
      %v571 = vshrl.u32 %v520, 16
      %v573 = vrot.slane %v571, 4
      %v574 = vshll.u32 %v520, 16
      %v576 = vrot.slane %v574, 5
      %v577 = vor.u32 %v573, %v576
      %v578 = vrot.slane %v577, 4
      %v580 = vshrl.u32 %v521, 16
      %v582 = vrot.slane %v580, 4
      %v583 = vshll.u32 %v521, 16
      %v585 = vrot.slane %v583, 5
      %v586 = vor.u32 %v582, %v585
      %v587 = vrot.slane %v586, 4
      %v589 = vshrl.u32 %v522, 16
      %v591 = vrot.slane %v589, 4
      %v592 = vshll.u32 %v522, 16
      %v594 = vrot.slane %v592, 5
      %v595 = vor.u32 %v591, %v594
      %v596 = vrot.slane %v595, 4
      %v598 = vshrl.u32 %v523, 16
      %v600 = vrot.slane %v598, 4
      %v601 = vshll.u32 %v523, 16
      %v603 = vrot.slane %v601, 5
      %v604 = vor.u32 %v600, %v603
      %v605 = vrot.slane %v604, 4
      %v607 = vshrl.u32 %v524, 16
      %v609 = vrot.slane %v607, 4
      %v610 = vshll.u32 %v524, 16
      %v612 = vrot.slane %v610, 5
      %v613 = vor.u32 %v609, %v612
      %v614 = vrot.slane %v613, 4
      %vm625 = vsmask.f32 3328
      %vm626 = vmand %vm482, %vm625
      %v627 = vld [vmem:[#allocation3 + $0x4] sm:$0xf]
      %v628 = vsel %vm626, %v533, %v627
      %629 = vst [vmem:[#allocation3 + $0x4] sm:$0xf] %v628
      %v630 = vld [vmem:[#allocation3 + $0xc] sm:$0xf]
      %v631 = vsel %vm626, %v542, %v630
      %632 = vst [vmem:[#allocation3 + $0xc] sm:$0xf] %v631
      %v633 = vld [vmem:[#allocation3 + $0x14] sm:$0xf]
      %v634 = vsel %vm626, %v551, %v633
      %635 = vst [vmem:[#allocation3 + $0x14] sm:$0xf] %v634
      %v636 = vld [vmem:[#allocation3 + $0x1c] sm:$0xf]
      %v637 = vsel %vm626, %v560, %v636
      %638 = vst [vmem:[#allocation3 + $0x1c] sm:$0xf] %v637
      %v639 = vld [vmem:[#allocation3 + $0x24] sm:$0xf]
      %v640 = vsel %vm626, %v569, %v639
      %641 = vst [vmem:[#allocation3 + $0x24] sm:$0xf] %v640
      %v642 = vld [vmem:[#allocation3 + $0x2c] sm:$0xf]
      %v643 = vsel %vm626, %v578, %v642
      %644 = vst [vmem:[#allocation3 + $0x2c] sm:$0xf] %v643
      %v645 = vld [vmem:[#allocation3 + $0x34] sm:$0xf]
      %v646 = vsel %vm626, %v587, %v645
      %647 = vst [vmem:[#allocation3 + $0x34] sm:$0xf] %v646
      %v648 = vld [vmem:[#allocation3 + $0x3c] sm:$0xf]
      %v649 = vsel %vm626, %v596, %v648
      %650 = vst [vmem:[#allocation3 + $0x3c] sm:$0xf] %v649
      %v651 = vld [vmem:[#allocation3 + $0x44] sm:$0xf]
      %v652 = vsel %vm626, %v605, %v651
      %653 = vst [vmem:[#allocation3 + $0x44] sm:$0xf] %v652
      %v654 = vld [vmem:[#allocation3 + $0x4c] sm:$0xf]
      %v655 = vsel %vm626, %v614, %v654
      %656 = vst [vmem:[#allocation3 + $0x4c] sm:$0xf] %v655
      %vm657 = vcmask 519171
      %vm658 = vsmask.f32 7950
      %vm659 = vmand %vm657, %vm658
      %v660 = vld [vmem:[#allocation3 + $0x4] sm:$0x8]
      %v661 = vsel %vm659, 0, %v660
      %662 = vst [vmem:[#allocation3 + $0x4] sm:$0x8] %v661
      %v663 = vld [vmem:[#allocation3 + $0xc] sm:$0x8]
      %v664 = vsel %vm659, 0, %v663
      %665 = vst [vmem:[#allocation3 + $0xc] sm:$0x8] %v664
      %v666 = vld [vmem:[#allocation3 + $0x14] sm:$0x8]
      %v667 = vsel %vm659, 0, %v666
      %668 = vst [vmem:[#allocation3 + $0x14] sm:$0x8] %v667
      %v669 = vld [vmem:[#allocation3 + $0x1c] sm:$0x8]
      %v670 = vsel %vm659, 0, %v669
      %671 = vst [vmem:[#allocation3 + $0x1c] sm:$0x8] %v670
      %v672 = vld [vmem:[#allocation3 + $0x24] sm:$0x8]
      %v673 = vsel %vm659, 0, %v672
      %674 = vst [vmem:[#allocation3 + $0x24] sm:$0x8] %v673
      %v675 = vld [vmem:[#allocation3 + $0x2c] sm:$0x8]
      %v676 = vsel %vm659, 0, %v675
      %677 = vst [vmem:[#allocation3 + $0x2c] sm:$0x8] %v676
      %v678 = vld [vmem:[#allocation3 + $0x34] sm:$0x8]
      %v679 = vsel %vm659, 0, %v678
      %680 = vst [vmem:[#allocation3 + $0x34] sm:$0x8] %v679
      %v681 = vld [vmem:[#allocation3 + $0x3c] sm:$0x8]
      %v682 = vsel %vm659, 0, %v681
      %683 = vst [vmem:[#allocation3 + $0x3c] sm:$0x8] %v682
      %v684 = vld [vmem:[#allocation3 + $0x44] sm:$0x8]
      %v685 = vsel %vm659, 0, %v684
      %686 = vst [vmem:[#allocation3 + $0x44] sm:$0x8] %v685
      %v687 = vld [vmem:[#allocation3 + $0x4c] sm:$0x8]
      %v688 = vsel %vm659, 0, %v687
      %689 = vst [vmem:[#allocation3 + $0x4c] sm:$0x8] %v688
      %v690 = vld [vmem:[#allocation3] sm:$0xff]
      %v691 = vld [vmem:[#allocation3 + $0x8] sm:$0xff]
      %v692 = vld [vmem:[#allocation3 + $0x10] sm:$0xff]
      %v693 = vld [vmem:[#allocation3 + $0x18] sm:$0xff]
      %v694 = vld [vmem:[#allocation3 + $0x20] sm:$0xff]
      %v695 = vld [vmem:[#allocation3 + $0x28] sm:$0xff]
      %v696 = vld [vmem:[#allocation3 + $0x30] sm:$0xff]
      %v697 = vld [vmem:[#allocation3 + $0x38] sm:$0xff]
      %v698 = vld [vmem:[%s2] sm:$0xf]
      %v699 = vld [vmem:[%s2 + $0x4] sm:$0xf]
      %v700 = vld [vmem:[%s2 + $0x8] sm:$0xf]
      %v701 = vld [vmem:[%s2 + $0xc] sm:$0xf]
      %v702 = vld [vmem:[%s2 + $0x10] sm:$0xf]
      %v703 = vld [vmem:[%s2 + $0x14] sm:$0xf]
      %v704 = vld [vmem:[%s2 + $0x18] sm:$0xf]
      %v705 = vld [vmem:[%s2 + $0x1c] sm:$0xf]
      %v706 = vld [vmem:[%s2 + $0x20] sm:$0xf]
      %v707 = vld [vmem:[%s2 + $0x24] sm:$0xf]
      %v708 = vld [vmem:[%s2 + $0x28] sm:$0xf]
      %v709 = vld [vmem:[%s2 + $0x2c] sm:$0xf]
      %v710 = vld [vmem:[%s2 + $0x30] sm:$0xf]
      %v711 = vld [vmem:[%s2 + $0x34] sm:$0xf]
      %v712 = vld [vmem:[%s2 + $0x38] sm:$0xf]
      %v713 = vld [vmem:[%s2 + $0x3c] sm:$0xf]
      %v714 = vld [vmem:[%s2 + $0x40] sm:$0xf]
      %v715 = vld [vmem:[%s2 + $0x44] sm:$0xf]
      %v716 = vld [vmem:[%s2 + $0x48] sm:$0xf]
      %v717 = vld [vmem:[%s2 + $0x4c] sm:$0xf]
      %v718 = vld [vmem:[%s2 + $0x50] sm:$0xf]
      %v719 = vld [vmem:[%s2 + $0x54] sm:$0xf]
      %v720 = vld [vmem:[%s2 + $0x58] sm:$0xf]
      %v721 = vld [vmem:[%s2 + $0x5c] sm:$0xf]
      %s722 = scalar_lea.vmem [#allocation3], 8
      %v723 = vld [vmem:[%s722] sm:$0xff]
      %v724 = vld [vmem:[%s722 + $0x8] sm:$0xff]
      %v725 = vld [vmem:[%s722 + $0x10] sm:$0xff]
      %v726 = vld [vmem:[%s722 + $0x18] sm:$0xff]
      %v727 = vld [vmem:[%s722 + $0x20] sm:$0xff]
      %v728 = vld [vmem:[%s722 + $0x28] sm:$0xff]
      %v729 = vld [vmem:[%s722 + $0x30] sm:$0xff]
      %v730 = vld [vmem:[%s722 + $0x38] sm:$0xff]
      %s731 = scalar_lea.vmem %s2, 96
      %v732 = vld [vmem:[%s731] sm:$0xf]
      %v733 = vld [vmem:[%s731 + $0x4] sm:$0xf]
      %v734 = vld [vmem:[%s731 + $0x8] sm:$0xf]
      %v735 = vld [vmem:[%s731 + $0xc] sm:$0xf]
      %v736 = vld [vmem:[%s731 + $0x10] sm:$0xf]
      %v737 = vld [vmem:[%s731 + $0x14] sm:$0xf]
      %v738 = vld [vmem:[%s731 + $0x18] sm:$0xf]
      %v739 = vld [vmem:[%s731 + $0x1c] sm:$0xf]
      %v740 = vld [vmem:[%s731 + $0x20] sm:$0xf]
      %v741 = vld [vmem:[%s731 + $0x24] sm:$0xf]
      %v742 = vld [vmem:[%s731 + $0x28] sm:$0xf]
      %v743 = vld [vmem:[%s731 + $0x2c] sm:$0xf]
      %v744 = vld [vmem:[%s731 + $0x30] sm:$0xf]
      %v745 = vld [vmem:[%s731 + $0x34] sm:$0xf]
      %v746 = vld [vmem:[%s731 + $0x38] sm:$0xf]
      %v747 = vld [vmem:[%s731 + $0x3c] sm:$0xf]
      %v748 = vld [vmem:[%s731 + $0x40] sm:$0xf]
      %v749 = vld [vmem:[%s731 + $0x44] sm:$0xf]
      %v750 = vld [vmem:[%s731 + $0x48] sm:$0xf]
      %v751 = vld [vmem:[%s731 + $0x4c] sm:$0xf]
      %v752 = vld [vmem:[%s731 + $0x50] sm:$0xf]
      %v753 = vld [vmem:[%s731 + $0x54] sm:$0xf]
      %v754 = vld [vmem:[%s731 + $0x58] sm:$0xf]
      %v755 = vld [vmem:[%s731 + $0x5c] sm:$0xf]
      %v764 = vunpack.c.l.b16 %v723
      %v765 = vunpack.c.h.b16 %v723
      %v766 = vunpack.c.l.b16 %v724
      %v767 = vunpack.c.h.b16 %v724
      %v768 = vunpack.c.l.b16 %v725
      %v769 = vunpack.c.h.b16 %v725
      %v770 = vunpack.c.l.b16 %v726
      %v771 = vunpack.c.h.b16 %v726
      %v772 = vunpack.c.l.b16 %v727
      %v773 = vunpack.c.h.b16 %v727
      %v774 = vunpack.c.l.b16 %v728
      %v775 = vunpack.c.h.b16 %v728
      %v776 = vunpack.c.l.b16 %v729
      %v777 = vunpack.c.h.b16 %v729
      %v778 = vunpack.c.l.b16 %v730
      %v779 = vunpack.c.h.b16 %v730
      %v780 = vpack.c.b16 %v766, %v764
      %v781 = vpack.c.b16 %v767, %v765
      %v782 = vpack.c.b16 %v770, %v768
      %v783 = vpack.c.b16 %v771, %v769
      %v784 = vpack.c.b16 %v774, %v772
      %v785 = vpack.c.b16 %v775, %v773
      %v786 = vpack.c.b16 %v778, %v776
      %v787 = vpack.c.b16 %v779, %v777
      %v816 = vunpack.c.l.b16 %v732
      %v817 = vunpack.c.l.b16 %v733
      %v818 = vunpack.c.l.b16 %v734
      %v819 = vunpack.c.l.b16 %v735
      %v820 = vunpack.c.l.b16 %v736
      %v821 = vunpack.c.l.b16 %v737
      %v822 = vunpack.c.l.b16 %v738
      %v823 = vunpack.c.l.b16 %v739
      %v824 = vunpack.c.l.b16 %v740
      %v825 = vunpack.c.l.b16 %v741
      %v826 = vunpack.c.l.b16 %v742
      %v827 = vunpack.c.l.b16 %v743
      %v828 = vunpack.c.l.b16 %v744
      %v829 = vunpack.c.l.b16 %v745
      %v830 = vunpack.c.l.b16 %v746
      %v831 = vunpack.c.l.b16 %v747
      %v832 = vunpack.c.l.b16 %v748
      %v833 = vunpack.c.l.b16 %v749
      %v834 = vunpack.c.l.b16 %v750
      %v835 = vunpack.c.l.b16 %v751
      %v836 = vunpack.c.l.b16 %v752
      %v837 = vunpack.c.l.b16 %v753
      %v838 = vunpack.c.l.b16 %v754
      %v839 = vunpack.c.l.b16 %v755
      %v840 = vpack.c.b16 %v817, %v816
      %v841 = vpack.c.b16 %v819, %v818
      %v842 = vpack.c.b16 %v821, %v820
      %v843 = vpack.c.b16 %v823, %v822
      %v844 = vpack.c.b16 %v825, %v824
      %v845 = vpack.c.b16 %v827, %v826
      %v846 = vpack.c.b16 %v829, %v828
      %v847 = vpack.c.b16 %v831, %v830
      %v848 = vpack.c.b16 %v833, %v832
      %v849 = vpack.c.b16 %v835, %v834
      %v850 = vpack.c.b16 %v837, %v836
      %v851 = vpack.c.b16 %v839, %v838
      %vm864 = vcmask 523264
      %v866 = vsel %vm864, %v781, 0
      %v869 = vsel %vm864, %v783, 0
      %v872 = vsel %vm864, %v785, 0
      %v875 = vsel %vm864, %v787, 0
      %877 = vmatprep.subr.bf16.mxu0 0
      %878 = vmatpush1.bf16.msra.mxu0 %v840
      %879 = vmatprep.subr.bf16.mxu0 0
      %880 = vmatpush1.bf16.msra.mxu0 %v841
      %881 = vmatprep.subr.bf16.mxu0 0
      %882 = vmatpush1.bf16.msra.mxu0 %v842
      %883 = vmatprep.subr.bf16.mxu0 0
      %884 = vmatpush1.bf16.msra.mxu0 %v843
      %885 = vmatprep.subr.bf16.mxu0 0
      %886 = vmatpush1.bf16.msra.mxu0 %v844
      %887 = vmatprep.subr.bf16.mxu0 0
      %888 = vmatpush1.bf16.msra.mxu0 %v845
      %889 = vmatprep.subr.bf16.mxu0 0
      %890 = vmatpush1.bf16.msra.mxu0 %v846
      %891 = vmatprep.subr.bf16.mxu0 0
      %892 = vmatpush1.bf16.msra.mxu0 %v847
      %893 = vmatprep.subr.bf16.mxu0 0
      %894 = vmatpush1.bf16.msra.mxu0 %v848
      %895 = vmatprep.subr.bf16.mxu0 0
      %896 = vmatpush1.bf16.msra.mxu0 %v849
      %897 = vmatprep.subr.bf16.mxu0 0
      %898 = vmatpush1.bf16.msra.mxu0 %v850
      %899 = vmatprep.subr.bf16.mxu0 0
      %900 = vmatpush1.bf16.msra.mxu0 %v851
      %901 = vmatprep.subr.bf16.mxu0 0
      %902 = vmatpush1.bf16.msra.mxu0 0
      %903 = vmatprep.subr.bf16.mxu0 0
      %904 = vmatpush1.bf16.msra.mxu0 0
      %905 = vmatprep.subr.bf16.mxu0 0
      %906 = vmatpush1.bf16.msra.mxu0 0
      %907 = vmatprep.subr.bf16.mxu0 0
      %908 = vmatpush1.bf16.msra.mxu0 0
      %909 = vmatprep.mubr.bf16.mxu0 %v866
      %910 = vmatmul.mubr.bf16.gmra.mrb[0].mxu0 %v780
      %v911 = vpop.f32.mrb[0].mxu0
      %v912 = vadd.f32 0.0, %v911
      %v913 = vpop.f32.mrb[0].mxu0
      %v914 = vpop.f32.mrb[0].mxu0
      %v915 = vadd.f32 0.0, %v914
      %v916 = vpop.f32.mrb[0].mxu0
      %917 = vmatprep.mubr.bf16.mxu0 %v869
      %918 = vmatmul.mubr.bf16.gmra.mrb[0].mxu0 %v782
      %v919 = vpop.f32.mrb[0].mxu0
      %v920 = vadd.f32 0.0, %v919
      %v921 = vpop.f32.mrb[0].mxu0
      %v922 = vpop.f32.mrb[0].mxu0
      %v923 = vadd.f32 0.0, %v922
      %v924 = vpop.f32.mrb[0].mxu0
      %925 = vmatprep.mubr.bf16.mxu0 %v872
      %926 = vmatmul.mubr.bf16.gmra.mrb[0].mxu0 %v784
      %v927 = vpop.f32.mrb[0].mxu0
      %v928 = vadd.f32 0.0, %v927
      %v929 = vpop.f32.mrb[0].mxu0
      %v930 = vpop.f32.mrb[0].mxu0
      %v931 = vadd.f32 0.0, %v930
      %v932 = vpop.f32.mrb[0].mxu0
      %933 = vmatprep.mubr.bf16.mxu0 %v875
      %934 = vmatmul.mubr.bf16.gmra.mrb[0].mxu0 %v786
      %v935 = vpop.f32.mrb[0].mxu0
      %v936 = vadd.f32 0.0, %v935
      %v937 = vpop.f32.mrb[0].mxu0
      %v938 = vpop.f32.mrb[0].mxu0
      %v939 = vadd.f32 0.0, %v938
      %v940 = vpop.f32.mrb[0].mxu0
      %941 = vdwg.mxu0
      %v950 = vunpack.c.l.b16 %v690
      %v951 = vunpack.c.h.b16 %v690
      %v952 = vunpack.c.l.b16 %v691
      %v953 = vunpack.c.h.b16 %v691
      %v954 = vunpack.c.l.b16 %v692
      %v955 = vunpack.c.h.b16 %v692
      %v956 = vunpack.c.l.b16 %v693
      %v957 = vunpack.c.h.b16 %v693
      %v958 = vunpack.c.l.b16 %v694
      %v959 = vunpack.c.h.b16 %v694
      %v960 = vunpack.c.l.b16 %v695
      %v961 = vunpack.c.h.b16 %v695
      %v962 = vunpack.c.l.b16 %v696
      %v963 = vunpack.c.h.b16 %v696
      %v964 = vunpack.c.l.b16 %v697
      %v965 = vunpack.c.h.b16 %v697
      %v966 = vpack.c.b16 %v952, %v950
      %v967 = vpack.c.b16 %v953, %v951
      %v968 = vpack.c.b16 %v956, %v954
      %v969 = vpack.c.b16 %v957, %v955
      %v970 = vpack.c.b16 %v960, %v958
      %v971 = vpack.c.b16 %v961, %v959
      %v972 = vpack.c.b16 %v964, %v962
      %v973 = vpack.c.b16 %v965, %v963
      %v1002 = vunpack.c.l.b16 %v698
      %v1003 = vunpack.c.l.b16 %v699
      %v1004 = vunpack.c.l.b16 %v700
      %v1005 = vunpack.c.l.b16 %v701
      %v1006 = vunpack.c.l.b16 %v702
      %v1007 = vunpack.c.l.b16 %v703
      %v1008 = vunpack.c.l.b16 %v704
      %v1009 = vunpack.c.l.b16 %v705
      %v1010 = vunpack.c.l.b16 %v706
      %v1011 = vunpack.c.l.b16 %v707
      %v1012 = vunpack.c.l.b16 %v708
      %v1013 = vunpack.c.l.b16 %v709
      %v1014 = vunpack.c.l.b16 %v710
      %v1015 = vunpack.c.l.b16 %v711
      %v1016 = vunpack.c.l.b16 %v712
      %v1017 = vunpack.c.l.b16 %v713
      %v1018 = vunpack.c.l.b16 %v714
      %v1019 = vunpack.c.l.b16 %v715
      %v1020 = vunpack.c.l.b16 %v716
      %v1021 = vunpack.c.l.b16 %v717
      %v1022 = vunpack.c.l.b16 %v718
      %v1023 = vunpack.c.l.b16 %v719
      %v1024 = vunpack.c.l.b16 %v720
      %v1025 = vunpack.c.l.b16 %v721
      %v1026 = vpack.c.b16 %v1003, %v1002
      %v1027 = vpack.c.b16 %v1005, %v1004
      %v1028 = vpack.c.b16 %v1007, %v1006
      %v1029 = vpack.c.b16 %v1009, %v1008
      %v1030 = vpack.c.b16 %v1011, %v1010
      %v1031 = vpack.c.b16 %v1013, %v1012
      %v1032 = vpack.c.b16 %v1015, %v1014
      %v1033 = vpack.c.b16 %v1017, %v1016
      %v1034 = vpack.c.b16 %v1019, %v1018
      %v1035 = vpack.c.b16 %v1021, %v1020
      %v1036 = vpack.c.b16 %v1023, %v1022
      %v1037 = vpack.c.b16 %v1025, %v1024
      %v1051 = vsel %vm864, %v967, 0
      %v1054 = vsel %vm864, %v969, 0
      %v1057 = vsel %vm864, %v971, 0
      %v1060 = vsel %vm864, %v973, 0
      %1062 = vmatprep.subr.bf16.mxu0 0
      %1063 = vmatpush1.bf16.msra.mxu0 %v1026
      %1064 = vmatprep.subr.bf16.mxu0 0
      %1065 = vmatpush1.bf16.msra.mxu0 %v1027
      %1066 = vmatprep.subr.bf16.mxu0 0
      %1067 = vmatpush1.bf16.msra.mxu0 %v1028
      %1068 = vmatprep.subr.bf16.mxu0 0
      %1069 = vmatpush1.bf16.msra.mxu0 %v1029
      %1070 = vmatprep.subr.bf16.mxu0 0
      %1071 = vmatpush1.bf16.msra.mxu0 %v1030
      %1072 = vmatprep.subr.bf16.mxu0 0
      %1073 = vmatpush1.bf16.msra.mxu0 %v1031
      %1074 = vmatprep.subr.bf16.mxu0 0
      %1075 = vmatpush1.bf16.msra.mxu0 %v1032
      %1076 = vmatprep.subr.bf16.mxu0 0
      %1077 = vmatpush1.bf16.msra.mxu0 %v1033
      %1078 = vmatprep.subr.bf16.mxu0 0
      %1079 = vmatpush1.bf16.msra.mxu0 %v1034
      %1080 = vmatprep.subr.bf16.mxu0 0
      %1081 = vmatpush1.bf16.msra.mxu0 %v1035
      %1082 = vmatprep.subr.bf16.mxu0 0
      %1083 = vmatpush1.bf16.msra.mxu0 %v1036
      %1084 = vmatprep.subr.bf16.mxu0 0
      %1085 = vmatpush1.bf16.msra.mxu0 %v1037
      %1086 = vmatprep.subr.bf16.mxu0 0
      %1087 = vmatpush1.bf16.msra.mxu0 0
      %1088 = vmatprep.subr.bf16.mxu0 0
      %1089 = vmatpush1.bf16.msra.mxu0 0
      %1090 = vmatprep.subr.bf16.mxu0 0
      %1091 = vmatpush1.bf16.msra.mxu0 0
      %1092 = vmatprep.subr.bf16.mxu0 0
      %1093 = vmatpush1.bf16.msra.mxu0 0
      %1094 = vmatprep.mubr.bf16.mxu0 %v1051
      %1095 = vmatmul.mubr.bf16.gmra.mrb[0].mxu0 %v966
      %v1096 = vpop.f32.mrb[0].mxu0
      %v1097 = vadd.f32 %v912, %v1096
      %v1098 = vpop.f32.mrb[0].mxu0
      %v1099 = vpop.f32.mrb[0].mxu0
      %v1100 = vadd.f32 %v915, %v1099
      %v1101 = vpop.f32.mrb[0].mxu0
      %1102 = vmatprep.mubr.bf16.mxu0 %v1054
      %1103 = vmatmul.mubr.bf16.gmra.mrb[0].mxu0 %v968
      %v1104 = vpop.f32.mrb[0].mxu0
      %v1105 = vadd.f32 %v920, %v1104
      %v1106 = vpop.f32.mrb[0].mxu0
      %v1107 = vpop.f32.mrb[0].mxu0
      %v1108 = vadd.f32 %v923, %v1107
      %v1109 = vpop.f32.mrb[0].mxu0
      %1110 = vmatprep.mubr.bf16.mxu0 %v1057
      %1111 = vmatmul.mubr.bf16.gmra.mrb[0].mxu0 %v970
      %v1112 = vpop.f32.mrb[0].mxu0
      %v1113 = vadd.f32 %v928, %v1112
      %v1114 = vpop.f32.mrb[0].mxu0
      %v1115 = vpop.f32.mrb[0].mxu0
      %v1116 = vadd.f32 %v931, %v1115
      %v1117 = vpop.f32.mrb[0].mxu0
      %1118 = vmatprep.mubr.bf16.mxu0 %v1060
      %1119 = vmatmul.mubr.bf16.gmra.mrb[0].mxu0 %v972
      %v1120 = vpop.f32.mrb[0].mxu0
      %v1121 = vadd.f32 %v936, %v1120
      %v1122 = vpop.f32.mrb[0].mxu0
      %v1123 = vpop.f32.mrb[0].mxu0
      %v1124 = vadd.f32 %v939, %v1123
      %v1125 = vpop.f32.mrb[0].mxu0
      %1126 = vdwg.mxu0
      %s1127 = scalar_lea.vmem [#allocation3], 16
      %v1128 = vld [vmem:[%s1127] sm:$0xff]
      %v1129 = vld [vmem:[%s1127 + $0x8] sm:$0xff]
      %v1130 = vld [vmem:[%s1127 + $0x10] sm:$0xff]
      %v1131 = vld [vmem:[%s1127 + $0x18] sm:$0xff]
      %v1132 = vld [vmem:[%s1127 + $0x20] sm:$0xff]
      %v1133 = vld [vmem:[%s1127 + $0x28] sm:$0xff]
      %v1134 = vld [vmem:[%s1127 + $0x30] sm:$0xff]
      %v1135 = vld [vmem:[%s1127 + $0x38] sm:$0xff]
      %s1136 = scalar_lea.vmem %s2, 192
      %v1137 = vld [vmem:[%s1136] sm:$0xf]
      %v1138 = vld [vmem:[%s1136 + $0x4] sm:$0xf]
      %v1139 = vld [vmem:[%s1136 + $0x8] sm:$0xf]
      %v1140 = vld [vmem:[%s1136 + $0xc] sm:$0xf]
      %v1141 = vld [vmem:[%s1136 + $0x10] sm:$0xf]
      %v1142 = vld [vmem:[%s1136 + $0x14] sm:$0xf]
      %v1143 = vld [vmem:[%s1136 + $0x18] sm:$0xf]
      %v1144 = vld [vmem:[%s1136 + $0x1c] sm:$0xf]
      %v1145 = vld [vmem:[%s1136 + $0x20] sm:$0xf]
      %v1146 = vld [vmem:[%s1136 + $0x24] sm:$0xf]
      %v1147 = vld [vmem:[%s1136 + $0x28] sm:$0xf]
      %v1148 = vld [vmem:[%s1136 + $0x2c] sm:$0xf]
      %v1149 = vld [vmem:[%s1136 + $0x30] sm:$0xf]
      %v1150 = vld [vmem:[%s1136 + $0x34] sm:$0xf]
      %v1151 = vld [vmem:[%s1136 + $0x38] sm:$0xf]
      %v1152 = vld [vmem:[%s1136 + $0x3c] sm:$0xf]
      %v1153 = vld [vmem:[%s1136 + $0x40] sm:$0xf]
      %v1154 = vld [vmem:[%s1136 + $0x44] sm:$0xf]
      %v1155 = vld [vmem:[%s1136 + $0x48] sm:$0xf]
      %v1156 = vld [vmem:[%s1136 + $0x4c] sm:$0xf]
      %v1157 = vld [vmem:[%s1136 + $0x50] sm:$0xf]
      %v1158 = vld [vmem:[%s1136 + $0x54] sm:$0xf]
      %v1159 = vld [vmem:[%s1136 + $0x58] sm:$0xf]
      %v1160 = vld [vmem:[%s1136 + $0x5c] sm:$0xf]
      %v1169 = vunpack.c.l.b16 %v1128
      %v1170 = vunpack.c.h.b16 %v1128
      %v1171 = vunpack.c.l.b16 %v1129
      %v1172 = vunpack.c.h.b16 %v1129
      %v1173 = vunpack.c.l.b16 %v1130
      %v1174 = vunpack.c.h.b16 %v1130
      %v1175 = vunpack.c.l.b16 %v1131
      %v1176 = vunpack.c.h.b16 %v1131
      %v1177 = vunpack.c.l.b16 %v1132
      %v1178 = vunpack.c.h.b16 %v1132
      %v1179 = vunpack.c.l.b16 %v1133
      %v1180 = vunpack.c.h.b16 %v1133
      %v1181 = vunpack.c.l.b16 %v1134
      %v1182 = vunpack.c.h.b16 %v1134
      %v1183 = vunpack.c.l.b16 %v1135
      %v1184 = vunpack.c.h.b16 %v1135
      %v1185 = vpack.c.b16 %v1171, %v1169
      %v1186 = vpack.c.b16 %v1172, %v1170
      %v1187 = vpack.c.b16 %v1175, %v1173
      %v1188 = vpack.c.b16 %v1176, %v1174
      %v1189 = vpack.c.b16 %v1179, %v1177
      %v1190 = vpack.c.b16 %v1180, %v1178
      %v1191 = vpack.c.b16 %v1183, %v1181
      %v1192 = vpack.c.b16 %v1184, %v1182
      %v1221 = vunpack.c.l.b16 %v1137
      %v1222 = vunpack.c.l.b16 %v1138
      %v1223 = vunpack.c.l.b16 %v1139
      %v1224 = vunpack.c.l.b16 %v1140
      %v1225 = vunpack.c.l.b16 %v1141
      %v1226 = vunpack.c.l.b16 %v1142
      %v1227 = vunpack.c.l.b16 %v1143
      %v1228 = vunpack.c.l.b16 %v1144
      %v1229 = vunpack.c.l.b16 %v1145
      %v1230 = vunpack.c.l.b16 %v1146
      %v1231 = vunpack.c.l.b16 %v1147
      %v1232 = vunpack.c.l.b16 %v1148
      %v1233 = vunpack.c.l.b16 %v1149
      %v1234 = vunpack.c.l.b16 %v1150
      %v1235 = vunpack.c.l.b16 %v1151
      %v1236 = vunpack.c.l.b16 %v1152
      %v1237 = vunpack.c.l.b16 %v1153
      %v1238 = vunpack.c.l.b16 %v1154
      %v1239 = vunpack.c.l.b16 %v1155
      %v1240 = vunpack.c.l.b16 %v1156
      %v1241 = vunpack.c.l.b16 %v1157
      %v1242 = vunpack.c.l.b16 %v1158
      %v1243 = vunpack.c.l.b16 %v1159
      %v1244 = vunpack.c.l.b16 %v1160
      %v1245 = vpack.c.b16 %v1222, %v1221
      %v1246 = vpack.c.b16 %v1224, %v1223
      %v1247 = vpack.c.b16 %v1226, %v1225
      %v1248 = vpack.c.b16 %v1228, %v1227
      %v1249 = vpack.c.b16 %v1230, %v1229
      %v1250 = vpack.c.b16 %v1232, %v1231
      %v1251 = vpack.c.b16 %v1234, %v1233
      %v1252 = vpack.c.b16 %v1236, %v1235
      %v1253 = vpack.c.b16 %v1238, %v1237
      %v1254 = vpack.c.b16 %v1240, %v1239
      %v1255 = vpack.c.b16 %v1242, %v1241
      %v1256 = vpack.c.b16 %v1244, %v1243
      %v1270 = vsel %vm864, %v1186, 0
      %v1273 = vsel %vm864, %v1188, 0
      %v1276 = vsel %vm864, %v1190, 0
      %v1279 = vsel %vm864, %v1192, 0
      %1281 = vmatprep.subr.bf16.mxu0 0
      %1282 = vmatpush1.bf16.msra.mxu0 %v1245
      %1283 = vmatprep.subr.bf16.mxu0 0
      %1284 = vmatpush1.bf16.msra.mxu0 %v1246
      %1285 = vmatprep.subr.bf16.mxu0 0
      %1286 = vmatpush1.bf16.msra.mxu0 %v1247
      %1287 = vmatprep.subr.bf16.mxu0 0
      %1288 = vmatpush1.bf16.msra.mxu0 %v1248
      %1289 = vmatprep.subr.bf16.mxu0 0
      %1290 = vmatpush1.bf16.msra.mxu0 %v1249
      %1291 = vmatprep.subr.bf16.mxu0 0
      %1292 = vmatpush1.bf16.msra.mxu0 %v1250
      %1293 = vmatprep.subr.bf16.mxu0 0
      %1294 = vmatpush1.bf16.msra.mxu0 %v1251
      %1295 = vmatprep.subr.bf16.mxu0 0
      %1296 = vmatpush1.bf16.msra.mxu0 %v1252
      %1297 = vmatprep.subr.bf16.mxu0 0
      %1298 = vmatpush1.bf16.msra.mxu0 %v1253
      %1299 = vmatprep.subr.bf16.mxu0 0
      %1300 = vmatpush1.bf16.msra.mxu0 %v1254
      %1301 = vmatprep.subr.bf16.mxu0 0
      %1302 = vmatpush1.bf16.msra.mxu0 %v1255
      %1303 = vmatprep.subr.bf16.mxu0 0
      %1304 = vmatpush1.bf16.msra.mxu0 %v1256
      %1305 = vmatprep.subr.bf16.mxu0 0
      %1306 = vmatpush1.bf16.msra.mxu0 0
      %1307 = vmatprep.subr.bf16.mxu0 0
      %1308 = vmatpush1.bf16.msra.mxu0 0
      %1309 = vmatprep.subr.bf16.mxu0 0
      %1310 = vmatpush1.bf16.msra.mxu0 0
      %1311 = vmatprep.subr.bf16.mxu0 0
      %1312 = vmatpush1.bf16.msra.mxu0 0
      %1313 = vmatprep.mubr.bf16.mxu0 %v1270
      %1314 = vmatmul.mubr.bf16.gmra.mrb[0].mxu0 %v1185
      %v1315 = vpop.f32.mrb[0].mxu0
      %v1316 = vadd.f32 0.0, %v1315
      %v1317 = vpop.f32.mrb[0].mxu0
      %v1318 = vpop.f32.mrb[0].mxu0
      %v1319 = vadd.f32 0.0, %v1318
      %v1320 = vpop.f32.mrb[0].mxu0
      %1321 = vmatprep.mubr.bf16.mxu0 %v1273
      %1322 = vmatmul.mubr.bf16.gmra.mrb[0].mxu0 %v1187
      %v1323 = vpop.f32.mrb[0].mxu0
      %v1324 = vadd.f32 0.0, %v1323
      %v1325 = vpop.f32.mrb[0].mxu0
      %v1326 = vpop.f32.mrb[0].mxu0
      %v1327 = vadd.f32 0.0, %v1326
      %v1328 = vpop.f32.mrb[0].mxu0
      %1329 = vmatprep.mubr.bf16.mxu0 %v1276
      %1330 = vmatmul.mubr.bf16.gmra.mrb[0].mxu0 %v1189
      %v1331 = vpop.f32.mrb[0].mxu0
      %v1332 = vadd.f32 0.0, %v1331
      %v1333 = vpop.f32.mrb[0].mxu0
      %v1334 = vpop.f32.mrb[0].mxu0
      %v1335 = vadd.f32 0.0, %v1334
      %v1336 = vpop.f32.mrb[0].mxu0
      %1337 = vmatprep.mubr.bf16.mxu0 %v1279
      %1338 = vmatmul.mubr.bf16.gmra.mrb[0].mxu0 %v1191
      %v1339 = vpop.f32.mrb[0].mxu0
      %v1340 = vadd.f32 0.0, %v1339
      %v1341 = vpop.f32.mrb[0].mxu0
      %v1342 = vpop.f32.mrb[0].mxu0
      %v1343 = vadd.f32 0.0, %v1342
      %v1344 = vpop.f32.mrb[0].mxu0
      %1345 = vdwg.mxu0
      %v1346 = vadd.f32 %v1097, %v1316
      %v1347 = vadd.f32 %v1100, %v1319
      %v1348 = vadd.f32 %v1105, %v1324
      %v1349 = vadd.f32 %v1108, %v1327
      %v1350 = vadd.f32 %v1113, %v1332
      %v1351 = vadd.f32 %v1116, %v1335
      %v1352 = vadd.f32 %v1121, %v1340
      %v1353 = vadd.f32 %v1124, %v1343
      %v1354 = vld [vmem:[%s3] sm:$0x1]
      %v1356 = vlaneseq
      %v1357 = vshrl.u32 %v1356, 7
      %v1358 = vsub.s32 0, %v1357
      %v1359 = vrot.slane %v1354, %v1358
      %v1361 = vadd.f32 %v1346, %v1359
      %v1362 = vadd.f32 %v1347, %v1359
      %v1363 = vadd.f32 %v1348, %v1359
      %v1364 = vadd.f32 %v1349, %v1359
      %v1365 = vadd.f32 %v1350, %v1359
      %v1366 = vadd.f32 %v1351, %v1359
      %v1367 = vadd.f32 %v1352, %v1359
      %v1368 = vadd.f32 %v1353, %v1359
      %v1369 = vmax.f32 %v1361, 0.0
      %v1370 = vmax.f32 %v1362, 0.0
      %v1371 = vmax.f32 %v1363, 0.0
      %v1372 = vmax.f32 %v1364, 0.0
      %v1373 = vmax.f32 %v1365, 0.0
      %v1374 = vmax.f32 %v1366, 0.0
      %v1375 = vmax.f32 %v1367, 0.0
      %v1376 = vmax.f32 %v1368, 0.0
      %v1377 = vpack.c.bf16 %v1369, %v1369
      %v1378 = vpack.c.bf16 %v1370, %v1370
      %v1379 = vpack.c.bf16 %v1371, %v1371
      %v1380 = vpack.c.bf16 %v1372, %v1372
      %v1381 = vpack.c.bf16 %v1373, %v1373
      %v1382 = vpack.c.bf16 %v1374, %v1374
      %v1383 = vpack.c.bf16 %v1375, %v1375
      %v1384 = vpack.c.bf16 %v1376, %v1376
      %1385 = vst [vmem:[%s271] sm:$0xf] %v1377
      %1386 = vst [vmem:[%s271 + $0x4] sm:$0xf] %v1378
      %1387 = vst [vmem:[%s271 + $0x8] sm:$0xf] %v1379
      %1388 = vst [vmem:[%s271 + $0xc] sm:$0xf] %v1380
      %1389 = vst [vmem:[%s271 + $0x10] sm:$0xf] %v1381
      %1390 = vst [vmem:[%s271 + $0x14] sm:$0xf] %v1382
      %1391 = vst [vmem:[%s271 + $0x18] sm:$0xf] %v1383
      %1392 = vst [vmem:[%s271 + $0x1c] sm:$0xf] %v1384
      %s1393 = smul.u32 8, %s20
      %p1394 = scmp.lt.s32.totalorder %s19, 1
      %s1395 = scalar_select %p1394, %s19, 1
      %p1396 = scmp.lt.s32.totalorder %s1393, 7
      %s1397 = scalar_select %p1396, %s1393, 7
      %s1398 = smul.addr %s1395, 8
      %s1399 = sadd.s32 %s1397, %s1398
      %s1400 = smul.addr %s1399, 4
      %s1401 = scalar_lea.vmem %s4, %s1400
      // Predicated region
      $region37: #{content_forward.6} parent=35 // pred_check
        %p1402 = pneg %p145
      $region38: #{content_forward.6} parent=35 // pred_check_branch
        %1404 = sbr.rel (%p1402) target = $region40
      $region39: #{content_forward.6} parent=35 // pred_region
        %s1405 = smul.u32 8, %s20
      $region40: #{content_forward.6} parent=35 // pred_fallthru
        _
    $region36: #{content_forward.6} parent=5 // pred_fallthru
      _
    %p1406 = scmp.le.s32.totalorder 2, %s10
    // Predicated region
    $region41: #{content_forward.6} parent=5 // pred_check
      %p1407 = pneg %p1406
    $region42: #{content_forward.6} parent=5 // pred_check_branch
      %1409 = sbr.rel (%p1407) target = $region44
    $region43: #{content_forward.6} parent=5 // pred_region
      %s1410 = ssub.s32 %s10, 2
      // Predicated region
      $region45: #{content_forward.6} parent=43 // pred_check
        %p1411 = pneg %p151
      $region46: #{content_forward.6} parent=43 // pred_check_branch
        %1413 = sbr.rel (%p1411) target = $region48
      $region47: #{content_forward.6} parent=43 // pred_region
        %s1414 = smul.u32 8, %s22
        %p1415 = scmp.lt.s32.totalorder %s21, 1
        %s1416 = scalar_select %p1415, %s21, 1
        %p1417 = scmp.lt.s32.totalorder %s1414, 7
        %s1418 = scalar_select %p1417, %s1414, 7
        %s1419 = smul.addr %s1416, 8
        %s1420 = sadd.s32 %s1418, %s1419
        %s1421 = smul.addr %s1420, 4
        %s1422 = scalar_lea.vmem %s4, %s1421
      $region48: #{content_forward.6} parent=43 // pred_fallthru
        _
    $region44: #{content_forward.6} parent=5 // pred_fallthru
      _
  $region6: #{content_forward.6} parent=0 // loop_footer
    %s14 = sadd.s32 1, %s10
  $region7: #{content_forward.6} parent=0 // loop_footer_branch
    %9 = sbr.rel target = $region3
  $region8: #{content_forward.6} parent=0 // loop_exit
    _

// kernel: content_forward.4
$region0: #{content_forward.4}
  #allocation0 [shape = 'u32[]', space=smem, size = 0x4, offset = 0x4, fixed_abs, tag = 'smem constant byte address 0x4 - core index']
  #allocation1 [shape = 'u32[144,128]{1,0:T(1,128)}', space=vmem, size = 0x12000, scoped, tag = 'internal scratch']
  #allocation2 [shape = 'bf16[10,16,3]{2,1,0:T(16,128)(2,1)}', space=vmem, size = 0xa000, scoped, tag = 'scratch operand']
  #allocation3 [shape = 'bf16[10,16,9]{2,1,0:T(16,128)(2,1)}', space=vmem, size = 0xa000, scoped, tag = 'scratch operand']
  %s0 = inlined_call_operand.vmem [shape: bf16[2,16,16,3], index: 0, kind: input, shape index: {}]
  %s1 = inlined_call_operand.vmem [shape: bf16[2,4,16,3], index: 1, kind: input, shape index: {}]
  %s2 = inlined_call_operand.vmem [shape: bf16[3,9,64], index: 2, kind: input, shape index: {}]
  %s3 = inlined_call_operand.vmem [shape: f32[1,64], index: 3, kind: input, shape index: {}]
  %s4 = inlined_call_operand.vmem [shape: bf16[2,16,16,64], index: 4, kind: output, shape index: {}]
  %s5 = sld [smem:[#allocation0]]
  $region49: #{content_forward.4} parent=0
    _
  %s7 = ssub.s32 1, %s5
  %s8 = scalar_select 0, %s7, %s5
  loop: start=0, step=1, limit=6
  $region2: #{content_forward.4} parent=0 // loop_pre_header
    _
  $region3: #{content_forward.4} parent=0 // loop_header
    %s10 = sphi 0, %s14
    %p11 = scmp.ge.s32.totalorder %s10, 6
    %s17 = sphi 0, %s29
    %s18 = sphi 0, %s25
    %s19 = sphi 0, %s17
    %s20 = sphi 0, %s18
    %s21 = sphi 0, %s19
    %s22 = sphi 0, %s20
    %s34 = sphi 0, %s36
    %s37 = sphi 0, %s34
    %s38 = sphi 0, %s37
    %s54 = sphi 0, %s38
    %s62 = sphi 0, %s64
    %s65 = sphi 0, %s62
    %s66 = sphi 0, %s65
    %s82 = sphi 0, %s66
    %s86 = sphi 0, %s86
    %s88 = sphi 0, %s86
    %s89 = sphi 0, %s88
    %s103 = sphi 0, %s89
    %s107 = sphi 0, %s107
    %s109 = sphi 0, %s107
    %s110 = sphi 0, %s109
    %s124 = sphi 0, %s110
    %s132 = sphi 0, %s134
    %s135 = sphi 0, %s132
    %s136 = sphi 0, %s135
    %s152 = sphi 0, %s136
  $region4: #{content_forward.4} parent=0 // loop_header_branch
    %13 = sbr.rel (%p11) target = $region8
  $region5: #{content_forward.4} parent=0 // loop_body
    %s15 = ssub.s32 %s10, 1
    %s16 = ssub.s32 %s10, 2
    %s23 = sadd.s32 1, %s18
    %p24 = scmp.ge.s32.totalorder %s23, 2
    %s25 = scalar_select %p24, 0, %s23
    %s26 = sadd.s32 1, %s17
    %s27 = scalar_select %p24, %s26, %s17
    %p28 = scmp.ge.s32.totalorder %s27, 2
    %s29 = scalar_select %p28, 0, %s27
    %s30 = ssub.s32 %s17, %s29
    %s31 = ssub.s32 %s18, %s25
    %s32 = sor.u32 %s30, %s31
    %p33 = scmp.eq.s32.totalorder %s32, 0
    %s35 = sadd.s32 %s34, 1
    %s36 = scalar_select %p33, %s34, %s35
    %p39 = pneg %p33
    %p40 = scmp.eq.s32.totalorder %s10, 3
    %p41 = por %p39, %p40
    %p42 = scmp.ne.s32.totalorder %s34, %s37
    %p43 = scmp.eq.s32.totalorder %s10, 0
    %p44 = por %p42, %p43
    %p45 = scmp.ne.s32.totalorder %s34, %s37
    %p46 = scmp.eq.s32.totalorder %s15, 3
    %p47 = por %p45, %p46
    %p48 = scmp.ne.s32.totalorder %s37, %s38
    %p49 = scmp.eq.s32.totalorder %s15, 0
    %p50 = por %p48, %p49
    %p51 = scmp.ne.s32.totalorder %s37, %s38
    %p52 = scmp.eq.s32.totalorder %s16, 3
    %p53 = por %p51, %p52
    %p55 = scmp.ne.s32.totalorder %s38, %s54
    %p56 = scmp.eq.s32.totalorder %s16, 0
    %p57 = por %p55, %p56
    %s58 = ssub.s32 %s17, %s29
    %s59 = ssub.s32 %s18, %s25
    %s60 = sor.u32 %s58, %s59
    %p61 = scmp.eq.s32.totalorder %s60, 0
    %s63 = sadd.s32 %s62, 1
    %s64 = scalar_select %p61, %s62, %s63
    %p67 = pneg %p61
    %p68 = scmp.eq.s32.totalorder %s10, 3
    %p69 = por %p67, %p68
    %p70 = scmp.ne.s32.totalorder %s62, %s65
    %p71 = scmp.eq.s32.totalorder %s10, 0
    %p72 = por %p70, %p71
    %p73 = scmp.ne.s32.totalorder %s62, %s65
    %p74 = scmp.eq.s32.totalorder %s15, 3
    %p75 = por %p73, %p74
    %p76 = scmp.ne.s32.totalorder %s65, %s66
    %p77 = scmp.eq.s32.totalorder %s15, 0
    %p78 = por %p76, %p77
    %p79 = scmp.ne.s32.totalorder %s65, %s66
    %p80 = scmp.eq.s32.totalorder %s16, 3
    %p81 = por %p79, %p80
    %p83 = scmp.ne.s32.totalorder %s66, %s82
    %p84 = scmp.eq.s32.totalorder %s16, 0
    %p85 = por %p83, %p84
    %s87 = sadd.s32 %s86, 1
    %p90 = scmp.eq.s32.totalorder %s10, 3
    %p91 = scmp.ne.s32.totalorder %s86, %s88
    %p92 = scmp.eq.s32.totalorder %s10, 0
    %p93 = por %p91, %p92
    %p94 = scmp.ne.s32.totalorder %s86, %s88
    %p95 = scmp.eq.s32.totalorder %s15, 3
    %p96 = por %p94, %p95
    %p97 = scmp.ne.s32.totalorder %s88, %s89
    %p98 = scmp.eq.s32.totalorder %s15, 0
    %p99 = por %p97, %p98
    %p100 = scmp.ne.s32.totalorder %s88, %s89
    %p101 = scmp.eq.s32.totalorder %s16, 3
    %p102 = por %p100, %p101
    %p104 = scmp.ne.s32.totalorder %s89, %s103
    %p105 = scmp.eq.s32.totalorder %s16, 0
    %p106 = por %p104, %p105
    %s108 = sadd.s32 %s107, 1
    %p111 = scmp.eq.s32.totalorder %s10, 3
    %p112 = scmp.ne.s32.totalorder %s107, %s109
    %p113 = scmp.eq.s32.totalorder %s10, 0
    %p114 = por %p112, %p113
    %p115 = scmp.ne.s32.totalorder %s107, %s109
    %p116 = scmp.eq.s32.totalorder %s15, 3
    %p117 = por %p115, %p116
    %p118 = scmp.ne.s32.totalorder %s109, %s110
    %p119 = scmp.eq.s32.totalorder %s15, 0
    %p120 = por %p118, %p119
    %p121 = scmp.ne.s32.totalorder %s109, %s110
    %p122 = scmp.eq.s32.totalorder %s16, 3
    %p123 = por %p121, %p122
    %p125 = scmp.ne.s32.totalorder %s110, %s124
    %p126 = scmp.eq.s32.totalorder %s16, 0
    %p127 = por %p125, %p126
    %s128 = ssub.s32 %s17, %s29
    %s129 = ssub.s32 %s18, %s25
    %s130 = sor.u32 %s128, %s129
    %p131 = scmp.eq.s32.totalorder %s130, 0
    %s133 = sadd.s32 %s132, 1
    %s134 = scalar_select %p131, %s132, %s133
    %p137 = pneg %p131
    %p138 = scmp.eq.s32.totalorder %s10, 3
    %p139 = por %p137, %p138
    %p140 = scmp.ne.s32.totalorder %s132, %s135
    %p141 = scmp.eq.s32.totalorder %s10, 0
    %p142 = por %p140, %p141
    %p143 = scmp.ne.s32.totalorder %s132, %s135
    %p144 = scmp.eq.s32.totalorder %s15, 3
    %p145 = por %p143, %p144
    %p146 = scmp.ne.s32.totalorder %s135, %s136
    %p147 = scmp.eq.s32.totalorder %s15, 0
    %p148 = por %p146, %p147
    %p149 = scmp.ne.s32.totalorder %s135, %s136
    %p150 = scmp.eq.s32.totalorder %s16, 3
    %p151 = por %p149, %p150
    %p153 = scmp.ne.s32.totalorder %s136, %s152
    %p154 = scmp.eq.s32.totalorder %s16, 0
    %p155 = por %p153, %p154
    %p156 = scmp.le.s32.totalorder 1, %s10
    %p157 = scmp.lt.s32.totalorder %s10, 5
    %p158 = pnand %p156, %p157
    %p159 = pneg %p158
    // Predicated region
    $region9: #{content_forward.4} parent=5 // pred_check
      _
    $region10: #{content_forward.4} parent=5 // pred_check_branch
      %161 = sbr.rel (%p158) target = $region12
    $region11: #{content_forward.4} parent=5 // pred_region
      %s162 = ssub.s32 %s10, 1
      // Predicated region
      $region13: #{content_forward.4} parent=11 // pred_check
        %p163 = pneg %p99
      $region14: #{content_forward.4} parent=11 // pred_check_branch
        %165 = sbr.rel (%p163) target = $region16
      $region15: #{content_forward.4} parent=11 // pred_region
        _
      $region16: #{content_forward.4} parent=11 // pred_fallthru
        _
      // Predicated region
      $region17: #{content_forward.4} parent=11 // pred_check
        %p166 = pneg %p120
      $region18: #{content_forward.4} parent=11 // pred_check_branch
        %168 = sbr.rel (%p166) target = $region20
      $region19: #{content_forward.4} parent=11 // pred_region
        _
      $region20: #{content_forward.4} parent=11 // pred_fallthru
        _
    $region12: #{content_forward.4} parent=5 // pred_fallthru
      _
    %p169 = scmp.lt.s32.totalorder %s10, 4
    // Predicated region
    $region21: #{content_forward.4} parent=5 // pred_check
      %p170 = pneg %p169
    $region22: #{content_forward.4} parent=5 // pred_check_branch
      %172 = sbr.rel (%p170) target = $region24
    $region23: #{content_forward.4} parent=5 // pred_region
      // Predicated region
      $region25: #{content_forward.4} parent=23 // pred_check
        %p173 = pneg %p44
      $region26: #{content_forward.4} parent=23 // pred_check_branch
        %175 = sbr.rel (%p173) target = $region28
      $region27: #{content_forward.4} parent=23 // pred_region
        %s176 = smul.u32 8, %s18
        %p177 = scmp.lt.s32.totalorder %s17, 1
        %s178 = scalar_select %p177, %s17, 1
        %p179 = scmp.lt.s32.totalorder %s176, 15
        %s180 = scalar_select %p179, %s176, 15
        %s181 = smul.addr %s180, 2
        %s182 = smul.addr %s178, 32
        %s183 = sadd.s32 %s181, %s182
        %s184 = smul.addr %s183, 4
        %s185 = scalar_lea.vmem %s0, %s184
        %s186 = smul.u32 8, %s18
      $region28: #{content_forward.4} parent=23 // pred_fallthru
        _
      // Predicated region
      $region29: #{content_forward.4} parent=23 // pred_check
        %p187 = pneg %p72
      $region30: #{content_forward.4} parent=23 // pred_check_branch
        %189 = sbr.rel (%p187) target = $region32
      $region31: #{content_forward.4} parent=23 // pred_region
        %s190 = smul.u32 2, %s18
        %p191 = scmp.lt.s32.totalorder %s17, 1
        %s192 = scalar_select %p191, %s17, 1
        %p193 = scmp.lt.s32.totalorder %s190, 3
        %s194 = scalar_select %p193, %s190, 3
        %s195 = smul.addr %s194, 2
        %s196 = smul.addr %s192, 8
        %s197 = sadd.s32 %s195, %s196
        %s198 = smul.addr %s197, 4
        %s199 = scalar_lea.vmem %s1, %s198
        %s200 = smul.u32 2, %s18
      $region32: #{content_forward.4} parent=23 // pred_fallthru
        _
    $region24: #{content_forward.4} parent=5 // pred_fallthru
      _
    %p201 = scmp.le.s32.totalorder 1, %s10
    %p202 = scmp.lt.s32.totalorder %s10, 5
    %p203 = pnand %p201, %p202
    %p204 = pneg %p203
    // Predicated region
    $region33: #{content_forward.4} parent=5 // pred_check
      _
    $region34: #{content_forward.4} parent=5 // pred_check_branch
      %206 = sbr.rel (%p203) target = $region36
    $region35: #{content_forward.4} parent=5 // pred_region
      %s207 = ssub.s32 %s10, 1
      %s208 = smul.u32 8, %s20
      %p209 = scmp.lt.s32.totalorder %s19, 1
      %s210 = scalar_select %p209, %s19, 1
      %p211 = scmp.lt.s32.totalorder %s208, 15
      %s212 = scalar_select %p211, %s208, 15
      %s213 = smul.addr %s212, 2
      %s214 = smul.addr %s210, 32
      %s215 = sadd.s32 %s213, %s214
      %s216 = smul.addr %s215, 4
      %s217 = scalar_lea.vmem %s0, %s216
      %p218 = pneg %p50
      %p219 = pneg %p47
      %s220 = smul.u32 2, %s20
      %p221 = scmp.lt.s32.totalorder %s19, 1
      %s222 = scalar_select %p221, %s19, 1
      %p223 = scmp.lt.s32.totalorder %s220, 3
      %s224 = scalar_select %p223, %s220, 3
      %s225 = smul.addr %s224, 2
      %s226 = smul.addr %s222, 8
      %s227 = sadd.s32 %s225, %s226
      %s228 = smul.addr %s227, 4
      %s229 = scalar_lea.vmem %s1, %s228
      %p230 = pneg %p78
      %p231 = pneg %p75
      %p232 = pneg %p99
      %p233 = pneg %p96
      %p234 = pneg %p120
      %p235 = pneg %p117
      %p236 = pneg %p148
      %p237 = pneg %p145
      %s238 = smul.u32 8, %s20
      %p239 = scmp.lt.s32.totalorder %s19, 1
      %s240 = scalar_select %p239, %s19, 1
      %p241 = scmp.lt.s32.totalorder %s238, 15
      %s242 = scalar_select %p241, %s238, 15
      %s243 = smul.addr %s242, 2
      %s244 = smul.addr %s240, 32
      %s245 = sadd.s32 %s243, %s244
      %s246 = smul.addr %s245, 4
      %s247 = scalar_lea.vmem %s4, %s246
      %s248 = smul.u32 8, %s20
      %p249 = scmp.lt.s32.totalorder %s19, 1
      %s250 = scalar_select %p249, %s19, 1
      %p251 = scmp.lt.s32.totalorder %s248, 15
      %s252 = scalar_select %p251, %s248, 15
      %s253 = smul.addr %s252, 2
      %s254 = smul.addr %s250, 32
      %s255 = sadd.s32 %s253, %s254
      %s256 = smul.addr %s255, 4
      %s257 = scalar_lea.vmem %s0, %s256
      %s258 = smul.u32 8, %s20
      %s259 = smul.u32 2, %s20
      %p260 = scmp.lt.s32.totalorder %s19, 1
      %s261 = scalar_select %p260, %s19, 1
      %p262 = scmp.lt.s32.totalorder %s259, 3
      %s263 = scalar_select %p262, %s259, 3
      %s264 = smul.addr %s263, 2
      %s265 = smul.addr %s261, 8
      %s266 = sadd.s32 %s264, %s265
      %s267 = smul.addr %s266, 4
      %s268 = scalar_lea.vmem %s1, %s267
      %s269 = smul.u32 2, %s20
      %s270 = smul.u32 8, %s20
      %p271 = scmp.lt.s32.totalorder %s19, 1
      %s272 = scalar_select %p271, %s19, 1
      %p273 = scmp.lt.s32.totalorder %s270, 15
      %s274 = scalar_select %p273, %s270, 15
      %s275 = smul.addr %s274, 2
      %s276 = smul.addr %s272, 32
      %s277 = sadd.s32 %s275, %s276
      %s278 = smul.addr %s277, 4
      %s279 = scalar_lea.vmem %s4, %s278
      %s280 = smul.u32 8, %s20
      %v282 = vld [vmem:[%s268] sm:$0xf]
      %v283 = vld [vmem:[%s268 + $0x4] sm:$0xf]
      %v286 = vunpack.c.l.b16 %v282
      %v287 = vunpack.c.l.b16 %v283
      %v288 = vpack.c.b16 %v287, %v286
      %vm290 = vcmask 23552
      %291 = vst.msk [vmem:[#allocation2] sm:$0xff] %vm290, %v288
      %v292 = vld [vmem:[%s257] sm:$0xf]
      %v293 = vld [vmem:[%s257 + $0x4] sm:$0xf]
      %v294 = vld [vmem:[%s257 + $0x8] sm:$0xf]
      %v295 = vld [vmem:[%s257 + $0xc] sm:$0xf]
      %v296 = vld [vmem:[%s257 + $0x10] sm:$0xf]
      %v297 = vld [vmem:[%s257 + $0x14] sm:$0xf]
      %v298 = vld [vmem:[%s257 + $0x18] sm:$0xf]
      %v299 = vld [vmem:[%s257 + $0x1c] sm:$0xf]
      %v300 = vld [vmem:[%s257 + $0x20] sm:$0xf]
      %v301 = vld [vmem:[%s257 + $0x24] sm:$0xf]
      %v302 = vld [vmem:[%s257 + $0x28] sm:$0xf]
      %v303 = vld [vmem:[%s257 + $0x2c] sm:$0xf]
      %v304 = vld [vmem:[%s257 + $0x30] sm:$0xf]
      %v305 = vld [vmem:[%s257 + $0x34] sm:$0xf]
      %v306 = vld [vmem:[%s257 + $0x38] sm:$0xf]
      %v307 = vld [vmem:[%s257 + $0x3c] sm:$0xf]
      %v324 = vunpack.c.l.b16 %v292
      %v325 = vunpack.c.l.b16 %v293
      %v326 = vunpack.c.l.b16 %v294
      %v327 = vunpack.c.l.b16 %v295
      %v328 = vunpack.c.l.b16 %v296
      %v329 = vunpack.c.l.b16 %v297
      %v330 = vunpack.c.l.b16 %v298
      %v331 = vunpack.c.l.b16 %v299
      %v332 = vunpack.c.l.b16 %v300
      %v333 = vunpack.c.l.b16 %v301
      %v334 = vunpack.c.l.b16 %v302
      %v335 = vunpack.c.l.b16 %v303
      %v336 = vunpack.c.l.b16 %v304
      %v337 = vunpack.c.l.b16 %v305
      %v338 = vunpack.c.l.b16 %v306
      %v339 = vunpack.c.l.b16 %v307
      %v340 = vpack.c.b16 %v325, %v324
      %v341 = vpack.c.b16 %v327, %v326
      %v342 = vpack.c.b16 %v329, %v328
      %v343 = vpack.c.b16 %v331, %v330
      %v344 = vpack.c.b16 %v333, %v332
      %v345 = vpack.c.b16 %v335, %v334
      %v346 = vpack.c.b16 %v337, %v336
      %v347 = vpack.c.b16 %v339, %v338
      %s356 = scalar_lea.vmem [#allocation2], 8
      %357 = vst.msk [vmem:[%s356] sm:$0xff] %vm290, %v340
      %358 = vst.msk [vmem:[%s356 + $0x8] sm:$0xff] %vm290, %v341
      %359 = vst.msk [vmem:[%s356 + $0x10] sm:$0xff] %vm290, %v342
      %360 = vst.msk [vmem:[%s356 + $0x18] sm:$0xff] %vm290, %v343
      %361 = vst.msk [vmem:[%s356 + $0x20] sm:$0xff] %vm290, %v344
      %362 = vst.msk [vmem:[%s356 + $0x28] sm:$0xff] %vm290, %v345
      %363 = vst.msk [vmem:[%s356 + $0x30] sm:$0xff] %vm290, %v346
      %364 = vst.msk [vmem:[%s356 + $0x38] sm:$0xff] %vm290, %v347
      %s365 = scalar_lea.vmem %s268, 8
      %v366 = vld [vmem:[%s365] sm:$0xf]
      %v367 = vld [vmem:[%s365 + $0x4] sm:$0xf]
      %v370 = vunpack.c.l.b16 %v366
      %v371 = vunpack.c.l.b16 %v367
      %v372 = vpack.c.b16 %v371, %v370
      %s374 = scalar_lea.vmem [#allocation2], 72
      %375 = vst.msk [vmem:[%s374] sm:$0xff] %vm290, %v372
      %v376 = vld [vmem:[#allocation2] sm:$0xff]
      %v377 = vld [vmem:[#allocation2 + $0x8] sm:$0xff]
      %v378 = vld [vmem:[#allocation2 + $0x10] sm:$0xff]
      %v379 = vld [vmem:[#allocation2 + $0x18] sm:$0xff]
      %v380 = vld [vmem:[#allocation2 + $0x20] sm:$0xff]
      %v381 = vld [vmem:[#allocation2 + $0x28] sm:$0xff]
      %v382 = vld [vmem:[#allocation2 + $0x30] sm:$0xff]
      %v383 = vld [vmem:[#allocation2 + $0x38] sm:$0xff]
      %v384 = vld [vmem:[#allocation2 + $0x40] sm:$0xff]
      %v385 = vld [vmem:[#allocation2 + $0x48] sm:$0xff]
      %396 = vrot.lane.b32.xlu0 %v376, 3
      %v397 = vpop.permute.xlu0 %396
      %398 = vrot.lane.b32.xlu0 %v377, 3
      %v399 = vpop.permute.xlu0 %398
      %400 = vrot.lane.b32.xlu0 %v378, 3
      %v401 = vpop.permute.xlu0 %400
      %402 = vrot.lane.b32.xlu0 %v379, 3
      %v403 = vpop.permute.xlu0 %402
      %404 = vrot.lane.b32.xlu0 %v380, 3
      %v405 = vpop.permute.xlu0 %404
      %406 = vrot.lane.b32.xlu0 %v381, 3
      %v407 = vpop.permute.xlu0 %406
      %408 = vrot.lane.b32.xlu0 %v382, 3
      %v409 = vpop.permute.xlu0 %408
      %410 = vrot.lane.b32.xlu0 %v383, 3
      %v411 = vpop.permute.xlu0 %410
      %412 = vrot.lane.b32.xlu0 %v384, 3
      %v413 = vpop.permute.xlu0 %412
      %414 = vrot.lane.b32.xlu0 %v385, 3
      %v415 = vpop.permute.xlu0 %414
      %vm426 = vcmask 48152
      %427 = vst.msk [vmem:[#allocation3] sm:$0xff] %vm426, %v397
      %428 = vst.msk [vmem:[#allocation3 + $0x8] sm:$0xff] %vm426, %v399
      %429 = vst.msk [vmem:[#allocation3 + $0x10] sm:$0xff] %vm426, %v401
      %430 = vst.msk [vmem:[#allocation3 + $0x18] sm:$0xff] %vm426, %v403
      %431 = vst.msk [vmem:[#allocation3 + $0x20] sm:$0xff] %vm426, %v405
      %432 = vst.msk [vmem:[#allocation3 + $0x28] sm:$0xff] %vm426, %v407
      %433 = vst.msk [vmem:[#allocation3 + $0x30] sm:$0xff] %vm426, %v409
      %434 = vst.msk [vmem:[#allocation3 + $0x38] sm:$0xff] %vm426, %v411
      %435 = vst.msk [vmem:[#allocation3 + $0x40] sm:$0xff] %vm426, %v413
      %436 = vst.msk [vmem:[#allocation3 + $0x48] sm:$0xff] %vm426, %v415
      %vm437 = vcmask 16384
      %vm438 = vsmask.f32 256
      %vm439 = vmand %vm437, %vm438
      %v440 = vld [vmem:[#allocation3] sm:$0x1]
      %v441 = vsel %vm439, 0, %v440
      %442 = vst [vmem:[#allocation3] sm:$0x1] %v441
      %v443 = vld [vmem:[#allocation3 + $0x8] sm:$0x1]
      %v444 = vsel %vm439, 0, %v443
      %445 = vst [vmem:[#allocation3 + $0x8] sm:$0x1] %v444
      %v446 = vld [vmem:[#allocation3 + $0x10] sm:$0x1]
      %v447 = vsel %vm439, 0, %v446
      %448 = vst [vmem:[#allocation3 + $0x10] sm:$0x1] %v447
      %v449 = vld [vmem:[#allocation3 + $0x18] sm:$0x1]
      %v450 = vsel %vm439, 0, %v449
      %451 = vst [vmem:[#allocation3 + $0x18] sm:$0x1] %v450
      %v452 = vld [vmem:[#allocation3 + $0x20] sm:$0x1]
      %v453 = vsel %vm439, 0, %v452
      %454 = vst [vmem:[#allocation3 + $0x20] sm:$0x1] %v453
      %v455 = vld [vmem:[#allocation3 + $0x28] sm:$0x1]
      %v456 = vsel %vm439, 0, %v455
      %457 = vst [vmem:[#allocation3 + $0x28] sm:$0x1] %v456
      %v458 = vld [vmem:[#allocation3 + $0x30] sm:$0x1]
      %v459 = vsel %vm439, 0, %v458
      %460 = vst [vmem:[#allocation3 + $0x30] sm:$0x1] %v459
      %v461 = vld [vmem:[#allocation3 + $0x38] sm:$0x1]
      %v462 = vsel %vm439, 0, %v461
      %463 = vst [vmem:[#allocation3 + $0x38] sm:$0x1] %v462
      %v464 = vld [vmem:[#allocation3 + $0x40] sm:$0x1]
      %v465 = vsel %vm439, 0, %v464
      %466 = vst [vmem:[#allocation3 + $0x40] sm:$0x1] %v465
      %v467 = vld [vmem:[#allocation3 + $0x48] sm:$0x1]
      %v468 = vsel %vm439, 0, %v467
      %469 = vst [vmem:[#allocation3 + $0x48] sm:$0x1] %v468
      %v470 = vld [vmem:[#allocation2] sm:$0xff]
      %v471 = vld [vmem:[#allocation2 + $0x8] sm:$0xff]
      %v472 = vld [vmem:[#allocation2 + $0x10] sm:$0xff]
      %v473 = vld [vmem:[#allocation2 + $0x18] sm:$0xff]
      %v474 = vld [vmem:[#allocation2 + $0x20] sm:$0xff]
      %v475 = vld [vmem:[#allocation2 + $0x28] sm:$0xff]
      %v476 = vld [vmem:[#allocation2 + $0x30] sm:$0xff]
      %v477 = vld [vmem:[#allocation2 + $0x38] sm:$0xff]
      %v478 = vld [vmem:[#allocation2 + $0x40] sm:$0xff]
      %v479 = vld [vmem:[#allocation2 + $0x48] sm:$0xff]
      %v481 = vshrl.u32 %v470, 16
      %v483 = vrot.slane %v481, 7
      %v484 = vshll.u32 %v470, 16
      %v486 = vor.u32 %v483, %v484
      %v488 = vshrl.u32 %v471, 16
      %v490 = vrot.slane %v488, 7
      %v491 = vshll.u32 %v471, 16
      %v493 = vor.u32 %v490, %v491
      %v495 = vshrl.u32 %v472, 16
      %v497 = vrot.slane %v495, 7
      %v498 = vshll.u32 %v472, 16
      %v500 = vor.u32 %v497, %v498
      %v502 = vshrl.u32 %v473, 16
      %v504 = vrot.slane %v502, 7
      %v505 = vshll.u32 %v473, 16
      %v507 = vor.u32 %v504, %v505
      %v509 = vshrl.u32 %v474, 16
      %v511 = vrot.slane %v509, 7
      %v512 = vshll.u32 %v474, 16
      %v514 = vor.u32 %v511, %v512
      %v516 = vshrl.u32 %v475, 16
      %v518 = vrot.slane %v516, 7
      %v519 = vshll.u32 %v475, 16
      %v521 = vor.u32 %v518, %v519
      %v523 = vshrl.u32 %v476, 16
      %v525 = vrot.slane %v523, 7
      %v526 = vshll.u32 %v476, 16
      %v528 = vor.u32 %v525, %v526
      %v530 = vshrl.u32 %v477, 16
      %v532 = vrot.slane %v530, 7
      %v533 = vshll.u32 %v477, 16
      %v535 = vor.u32 %v532, %v533
      %v537 = vshrl.u32 %v478, 16
      %v539 = vrot.slane %v537, 7
      %v540 = vshll.u32 %v478, 16
      %v542 = vor.u32 %v539, %v540
      %v544 = vshrl.u32 %v479, 16
      %v546 = vrot.slane %v544, 7
      %v547 = vshll.u32 %v479, 16
      %v549 = vor.u32 %v546, %v547
      %vm560 = vcmask 23552
      %vm561 = vsmask.f32 7938
      %vm562 = vmand %vm560, %vm561
      %v563 = vld [vmem:[#allocation3] sm:$0xff]
      %v564 = vsel %vm562, %v486, %v563
      %565 = vst [vmem:[#allocation3] sm:$0xff] %v564
      %v566 = vld [vmem:[#allocation3 + $0x8] sm:$0xff]
      %v567 = vsel %vm562, %v493, %v566
      %568 = vst [vmem:[#allocation3 + $0x8] sm:$0xff] %v567
      %v569 = vld [vmem:[#allocation3 + $0x10] sm:$0xff]
      %v570 = vsel %vm562, %v500, %v569
      %571 = vst [vmem:[#allocation3 + $0x10] sm:$0xff] %v570
      %v572 = vld [vmem:[#allocation3 + $0x18] sm:$0xff]
      %v573 = vsel %vm562, %v507, %v572
      %574 = vst [vmem:[#allocation3 + $0x18] sm:$0xff] %v573
      %v575 = vld [vmem:[#allocation3 + $0x20] sm:$0xff]
      %v576 = vsel %vm562, %v514, %v575
      %577 = vst [vmem:[#allocation3 + $0x20] sm:$0xff] %v576
      %v578 = vld [vmem:[#allocation3 + $0x28] sm:$0xff]
      %v579 = vsel %vm562, %v521, %v578
      %580 = vst [vmem:[#allocation3 + $0x28] sm:$0xff] %v579
      %v581 = vld [vmem:[#allocation3 + $0x30] sm:$0xff]
      %v582 = vsel %vm562, %v528, %v581
      %583 = vst [vmem:[#allocation3 + $0x30] sm:$0xff] %v582
      %v584 = vld [vmem:[#allocation3 + $0x38] sm:$0xff]
      %v585 = vsel %vm562, %v535, %v584
      %586 = vst [vmem:[#allocation3 + $0x38] sm:$0xff] %v585
      %v587 = vld [vmem:[#allocation3 + $0x40] sm:$0xff]
      %v588 = vsel %vm562, %v542, %v587
      %589 = vst [vmem:[#allocation3 + $0x40] sm:$0xff] %v588
      %v590 = vld [vmem:[#allocation3 + $0x48] sm:$0xff]
      %v591 = vsel %vm562, %v549, %v590
      %592 = vst [vmem:[#allocation3 + $0x48] sm:$0xff] %v591
      %v593 = vld [vmem:[#allocation2] sm:$0xff]
      %v594 = vld [vmem:[#allocation2 + $0x8] sm:$0xff]
      %v595 = vld [vmem:[#allocation2 + $0x10] sm:$0xff]
      %v596 = vld [vmem:[#allocation2 + $0x18] sm:$0xff]
      %v597 = vld [vmem:[#allocation2 + $0x20] sm:$0xff]
      %v598 = vld [vmem:[#allocation2 + $0x28] sm:$0xff]
      %v599 = vld [vmem:[#allocation2 + $0x30] sm:$0xff]
      %v600 = vld [vmem:[#allocation2 + $0x38] sm:$0xff]
      %v601 = vld [vmem:[#allocation2 + $0x40] sm:$0xff]
      %v602 = vld [vmem:[#allocation2 + $0x48] sm:$0xff]
      %v604 = vshrl.u32 %v593, 16
      %v606 = vshll.u32 %v593, 16
      %v608 = vrot.slane %v606, 1
      %v609 = vor.u32 %v604, %v608
      %v611 = vshrl.u32 %v594, 16
      %v613 = vshll.u32 %v594, 16
      %v615 = vrot.slane %v613, 1
      %v616 = vor.u32 %v611, %v615
      %v618 = vshrl.u32 %v595, 16
      %v620 = vshll.u32 %v595, 16
      %v622 = vrot.slane %v620, 1
      %v623 = vor.u32 %v618, %v622
      %v625 = vshrl.u32 %v596, 16
      %v627 = vshll.u32 %v596, 16
      %v629 = vrot.slane %v627, 1
      %v630 = vor.u32 %v625, %v629
      %v632 = vshrl.u32 %v597, 16
      %v634 = vshll.u32 %v597, 16
      %v636 = vrot.slane %v634, 1
      %v637 = vor.u32 %v632, %v636
      %v639 = vshrl.u32 %v598, 16
      %v641 = vshll.u32 %v598, 16
      %v643 = vrot.slane %v641, 1
      %v644 = vor.u32 %v639, %v643
      %v646 = vshrl.u32 %v599, 16
      %v648 = vshll.u32 %v599, 16
      %v650 = vrot.slane %v648, 1
      %v651 = vor.u32 %v646, %v650
      %v653 = vshrl.u32 %v600, 16
      %v655 = vshll.u32 %v600, 16
      %v657 = vrot.slane %v655, 1
      %v658 = vor.u32 %v653, %v657
      %v660 = vshrl.u32 %v601, 16
      %v662 = vshll.u32 %v601, 16
      %v664 = vrot.slane %v662, 1
      %v665 = vor.u32 %v660, %v664
      %v667 = vshrl.u32 %v602, 16
      %v669 = vshll.u32 %v602, 16
      %v671 = vrot.slane %v669, 1
      %v672 = vor.u32 %v667, %v671
      %673 = vrot.lane.b32.xlu0 %v609, 6
      %v674 = vpop.permute.xlu0 %673
      %675 = vrot.lane.b32.xlu0 %v616, 6
      %v676 = vpop.permute.xlu0 %675
      %677 = vrot.lane.b32.xlu0 %v623, 6
      %v678 = vpop.permute.xlu0 %677
      %679 = vrot.lane.b32.xlu0 %v630, 6
      %v680 = vpop.permute.xlu0 %679
      %681 = vrot.lane.b32.xlu0 %v637, 6
      %v682 = vpop.permute.xlu0 %681
      %683 = vrot.lane.b32.xlu0 %v644, 6
      %v684 = vpop.permute.xlu0 %683
      %685 = vrot.lane.b32.xlu0 %v651, 6
      %v686 = vpop.permute.xlu0 %685
      %687 = vrot.lane.b32.xlu0 %v658, 6
      %v688 = vpop.permute.xlu0 %687
      %689 = vrot.lane.b32.xlu0 %v665, 6
      %v690 = vpop.permute.xlu0 %689
      %691 = vrot.lane.b32.xlu0 %v672, 6
      %v692 = vpop.permute.xlu0 %691
      %vm703 = vcmask 72752
      %vm704 = vsmask.f32 7424
      %vm705 = vmand %vm703, %vm704
      %v706 = vld [vmem:[#allocation3] sm:$0xff]
      %v707 = vsel %vm705, %v674, %v706
      %708 = vst [vmem:[#allocation3] sm:$0xff] %v707
      %v709 = vld [vmem:[#allocation3 + $0x8] sm:$0xff]
      %v710 = vsel %vm705, %v676, %v709
      %711 = vst [vmem:[#allocation3 + $0x8] sm:$0xff] %v710
      %v712 = vld [vmem:[#allocation3 + $0x10] sm:$0xff]
      %v713 = vsel %vm705, %v678, %v712
      %714 = vst [vmem:[#allocation3 + $0x10] sm:$0xff] %v713
      %v715 = vld [vmem:[#allocation3 + $0x18] sm:$0xff]
      %v716 = vsel %vm705, %v680, %v715
      %717 = vst [vmem:[#allocation3 + $0x18] sm:$0xff] %v716
      %v718 = vld [vmem:[#allocation3 + $0x20] sm:$0xff]
      %v719 = vsel %vm705, %v682, %v718
      %720 = vst [vmem:[#allocation3 + $0x20] sm:$0xff] %v719
      %v721 = vld [vmem:[#allocation3 + $0x28] sm:$0xff]
      %v722 = vsel %vm705, %v684, %v721
      %723 = vst [vmem:[#allocation3 + $0x28] sm:$0xff] %v722
      %v724 = vld [vmem:[#allocation3 + $0x30] sm:$0xff]
      %v725 = vsel %vm705, %v686, %v724
      %726 = vst [vmem:[#allocation3 + $0x30] sm:$0xff] %v725
      %v727 = vld [vmem:[#allocation3 + $0x38] sm:$0xff]
      %v728 = vsel %vm705, %v688, %v727
      %729 = vst [vmem:[#allocation3 + $0x38] sm:$0xff] %v728
      %v730 = vld [vmem:[#allocation3 + $0x40] sm:$0xff]
      %v731 = vsel %vm705, %v690, %v730
      %732 = vst [vmem:[#allocation3 + $0x40] sm:$0xff] %v731
      %v733 = vld [vmem:[#allocation3 + $0x48] sm:$0xff]
      %v734 = vsel %vm705, %v692, %v733
      %735 = vst [vmem:[#allocation3 + $0x48] sm:$0xff] %v734
      %vm736 = vcmask 72759
      %vm737 = vsmask.f32 7966
      %vm738 = vmand %vm736, %vm737
      %v739 = vld [vmem:[#allocation3] sm:$0x80]
      %v740 = vsel %vm738, 0, %v739
      %741 = vst [vmem:[#allocation3] sm:$0x80] %v740
      %v742 = vld [vmem:[#allocation3 + $0x8] sm:$0x80]
      %v743 = vsel %vm738, 0, %v742
      %744 = vst [vmem:[#allocation3 + $0x8] sm:$0x80] %v743
      %v745 = vld [vmem:[#allocation3 + $0x10] sm:$0x80]
      %v746 = vsel %vm738, 0, %v745
      %747 = vst [vmem:[#allocation3 + $0x10] sm:$0x80] %v746
      %v748 = vld [vmem:[#allocation3 + $0x18] sm:$0x80]
      %v749 = vsel %vm738, 0, %v748
      %750 = vst [vmem:[#allocation3 + $0x18] sm:$0x80] %v749
      %v751 = vld [vmem:[#allocation3 + $0x20] sm:$0x80]
      %v752 = vsel %vm738, 0, %v751
      %753 = vst [vmem:[#allocation3 + $0x20] sm:$0x80] %v752
      %v754 = vld [vmem:[#allocation3 + $0x28] sm:$0x80]
      %v755 = vsel %vm738, 0, %v754
      %756 = vst [vmem:[#allocation3 + $0x28] sm:$0x80] %v755
      %v757 = vld [vmem:[#allocation3 + $0x30] sm:$0x80]
      %v758 = vsel %vm738, 0, %v757
      %759 = vst [vmem:[#allocation3 + $0x30] sm:$0x80] %v758
      %v760 = vld [vmem:[#allocation3 + $0x38] sm:$0x80]
      %v761 = vsel %vm738, 0, %v760
      %762 = vst [vmem:[#allocation3 + $0x38] sm:$0x80] %v761
      %v763 = vld [vmem:[#allocation3 + $0x40] sm:$0x80]
      %v764 = vsel %vm738, 0, %v763
      %765 = vst [vmem:[#allocation3 + $0x40] sm:$0x80] %v764
      %v766 = vld [vmem:[#allocation3 + $0x48] sm:$0x80]
      %v767 = vsel %vm738, 0, %v766
      %768 = vst [vmem:[#allocation3 + $0x48] sm:$0x80] %v767
      %v769 = vld [vmem:[#allocation3] sm:$0xff]
      %v770 = vld [vmem:[#allocation3 + $0x8] sm:$0xff]
      %v771 = vld [vmem:[#allocation3 + $0x10] sm:$0xff]
      %v772 = vld [vmem:[#allocation3 + $0x18] sm:$0xff]
      %v773 = vld [vmem:[#allocation3 + $0x20] sm:$0xff]
      %v774 = vld [vmem:[#allocation3 + $0x28] sm:$0xff]
      %v775 = vld [vmem:[#allocation3 + $0x30] sm:$0xff]
      %v776 = vld [vmem:[#allocation3 + $0x38] sm:$0xff]
      %v777 = vld [vmem:[%s2] sm:$0xf]
      %v778 = vld [vmem:[%s2 + $0x4] sm:$0x1]
      %s779 = scalar_lea.vmem [#allocation3], 8
      %v780 = vld [vmem:[%s779] sm:$0xff]
      %v781 = vld [vmem:[%s779 + $0x8] sm:$0xff]
      %v782 = vld [vmem:[%s779 + $0x10] sm:$0xff]
      %v783 = vld [vmem:[%s779 + $0x18] sm:$0xff]
      %v784 = vld [vmem:[%s779 + $0x20] sm:$0xff]
      %v785 = vld [vmem:[%s779 + $0x28] sm:$0xff]
      %v786 = vld [vmem:[%s779 + $0x30] sm:$0xff]
      %v787 = vld [vmem:[%s779 + $0x38] sm:$0xff]
      %s788 = scalar_lea.vmem %s2, 8
      %v789 = vld [vmem:[%s788] sm:$0xf]
      %v790 = vld [vmem:[%s788 + $0x4] sm:$0x1]
      %v793 = vunpack.c.l.b16 %v789
      %v794 = vunpack.c.l.b16 %v790
      %v795 = vpack.c.b16 %v794, %v793
      %vm796 = vcmask 72704
      %v798 = vsel %vm796, %v780, 0
      %v801 = vsel %vm796, %v781, 0
      %v804 = vsel %vm796, %v782, 0
      %v807 = vsel %vm796, %v783, 0
      %v810 = vsel %vm796, %v784, 0
      %v813 = vsel %vm796, %v785, 0
      %v816 = vsel %vm796, %v786, 0
      %v819 = vsel %vm796, %v787, 0
      %vm821 = vcmask 1043456
      %vm822 = vcmask 1044480
      %v823 = vsel %vm821, 4294967295, 65535
      %v824 = vsel %vm822, %v823, 0
      %v826 = vand.u32 %v795, %v824
      %828 = vmatprep.subr.bf16.mxu0 0
      %829 = vmatpush1.bf16.msra.mxu0 %v826
      %830 = vmatprep.subr.bf16.mxu0 0
      %831 = vmatpush1.bf16.msra.mxu0 0
      %832 = vmatprep.subr.bf16.mxu0 0
      %833 = vmatpush1.bf16.msra.mxu0 0
      %834 = vmatprep.subr.bf16.mxu0 0
      %835 = vmatpush1.bf16.msra.mxu0 0
      %836 = vmatprep.subr.bf16.mxu0 0
      %837 = vmatpush1.bf16.msra.mxu0 0
      %838 = vmatprep.subr.bf16.mxu0 0
      %839 = vmatpush1.bf16.msra.mxu0 0
      %840 = vmatprep.subr.bf16.mxu0 0
      %841 = vmatpush1.bf16.msra.mxu0 0
      %842 = vmatprep.subr.bf16.mxu0 0
      %843 = vmatpush1.bf16.msra.mxu0 0
      %844 = vmatprep.subr.bf16.mxu0 0
      %845 = vmatpush1.bf16.msra.mxu0 0
      %846 = vmatprep.subr.bf16.mxu0 0
      %847 = vmatpush1.bf16.msra.mxu0 0
      %848 = vmatprep.subr.bf16.mxu0 0
      %849 = vmatpush1.bf16.msra.mxu0 0
      %850 = vmatprep.subr.bf16.mxu0 0
      %851 = vmatpush1.bf16.msra.mxu0 0
      %852 = vmatprep.subr.bf16.mxu0 0
      %853 = vmatpush1.bf16.msra.mxu0 0
      %854 = vmatprep.subr.bf16.mxu0 0
      %855 = vmatpush1.bf16.msra.mxu0 0
      %856 = vmatprep.subr.bf16.mxu0 0
      %857 = vmatpush1.bf16.msra.mxu0 0
      %858 = vmatprep.subr.bf16.mxu0 0
      %859 = vmatpush1.bf16.msra.mxu0 0
      %860 = vmatprep.mubr.bf16.mxu0 0
      %861 = vmatmul.mubr.bf16.gmra.mrb[0].mxu0 %v798
      %v862 = vpop.f32.mrb[0].mxu0
      %v863 = vadd.f32 0.0, %v862
      %v864 = vpop.f32.mrb[0].mxu0
      %v865 = vpop.f32.mrb[0].mxu0
      %v866 = vadd.f32 0.0, %v865
      %v867 = vpop.f32.mrb[0].mxu0
      %868 = vmatprep.mubr.bf16.mxu0 0
      %869 = vmatmul.mubr.bf16.gmra.mrb[0].mxu0 %v801
      %v870 = vpop.f32.mrb[0].mxu0
      %v871 = vadd.f32 0.0, %v870
      %v872 = vpop.f32.mrb[0].mxu0
      %v873 = vpop.f32.mrb[0].mxu0
      %v874 = vadd.f32 0.0, %v873
      %v875 = vpop.f32.mrb[0].mxu0
      %876 = vmatprep.mubr.bf16.mxu0 0
      %877 = vmatmul.mubr.bf16.gmra.mrb[0].mxu0 %v804
      %v878 = vpop.f32.mrb[0].mxu0
      %v879 = vadd.f32 0.0, %v878
      %v880 = vpop.f32.mrb[0].mxu0
      %v881 = vpop.f32.mrb[0].mxu0
      %v882 = vadd.f32 0.0, %v881
      %v883 = vpop.f32.mrb[0].mxu0
      %884 = vmatprep.mubr.bf16.mxu0 0
      %885 = vmatmul.mubr.bf16.gmra.mrb[0].mxu0 %v807
      %v886 = vpop.f32.mrb[0].mxu0
      %v887 = vadd.f32 0.0, %v886
      %v888 = vpop.f32.mrb[0].mxu0
      %v889 = vpop.f32.mrb[0].mxu0
      %v890 = vadd.f32 0.0, %v889
      %v891 = vpop.f32.mrb[0].mxu0
      %892 = vmatprep.mubr.bf16.mxu0 0
      %893 = vmatmul.mubr.bf16.gmra.mrb[0].mxu0 %v810
      %v894 = vpop.f32.mrb[0].mxu0
      %v895 = vadd.f32 0.0, %v894
      %v896 = vpop.f32.mrb[0].mxu0
      %v897 = vpop.f32.mrb[0].mxu0
      %v898 = vadd.f32 0.0, %v897
      %v899 = vpop.f32.mrb[0].mxu0
      %900 = vmatprep.mubr.bf16.mxu0 0
      %901 = vmatmul.mubr.bf16.gmra.mrb[0].mxu0 %v813
      %v902 = vpop.f32.mrb[0].mxu0
      %v903 = vadd.f32 0.0, %v902
      %v904 = vpop.f32.mrb[0].mxu0
      %v905 = vpop.f32.mrb[0].mxu0
      %v906 = vadd.f32 0.0, %v905
      %v907 = vpop.f32.mrb[0].mxu0
      %908 = vmatprep.mubr.bf16.mxu0 0
      %909 = vmatmul.mubr.bf16.gmra.mrb[0].mxu0 %v816
      %v910 = vpop.f32.mrb[0].mxu0
      %v911 = vadd.f32 0.0, %v910
      %v912 = vpop.f32.mrb[0].mxu0
      %v913 = vpop.f32.mrb[0].mxu0
      %v914 = vadd.f32 0.0, %v913
      %v915 = vpop.f32.mrb[0].mxu0
      %916 = vmatprep.mubr.bf16.mxu0 0
      %917 = vmatmul.mubr.bf16.gmra.mrb[0].mxu0 %v819
      %v918 = vpop.f32.mrb[0].mxu0
      %v919 = vadd.f32 0.0, %v918
      %v920 = vpop.f32.mrb[0].mxu0
      %v921 = vpop.f32.mrb[0].mxu0
      %v922 = vadd.f32 0.0, %v921
      %v923 = vpop.f32.mrb[0].mxu0
      %924 = vdwg.mxu0
      %v927 = vunpack.c.l.b16 %v777
      %v928 = vunpack.c.l.b16 %v778
      %v929 = vpack.c.b16 %v928, %v927
      %v931 = vsel %vm796, %v769, 0
      %v934 = vsel %vm796, %v770, 0
      %v937 = vsel %vm796, %v771, 0
      %v940 = vsel %vm796, %v772, 0
      %v943 = vsel %vm796, %v773, 0
      %v946 = vsel %vm796, %v774, 0
      %v949 = vsel %vm796, %v775, 0
      %v952 = vsel %vm796, %v776, 0
      %v955 = vand.u32 %v929, %v824
      %957 = vmatprep.subr.bf16.mxu0 0
      %958 = vmatpush1.bf16.msra.mxu0 %v955
      %959 = vmatprep.subr.bf16.mxu0 0
      %960 = vmatpush1.bf16.msra.mxu0 0
      %961 = vmatprep.subr.bf16.mxu0 0
      %962 = vmatpush1.bf16.msra.mxu0 0
      %963 = vmatprep.subr.bf16.mxu0 0
      %964 = vmatpush1.bf16.msra.mxu0 0
      %965 = vmatprep.subr.bf16.mxu0 0
      %966 = vmatpush1.bf16.msra.mxu0 0
      %967 = vmatprep.subr.bf16.mxu0 0
      %968 = vmatpush1.bf16.msra.mxu0 0
      %969 = vmatprep.subr.bf16.mxu0 0
      %970 = vmatpush1.bf16.msra.mxu0 0
      %971 = vmatprep.subr.bf16.mxu0 0
      %972 = vmatpush1.bf16.msra.mxu0 0
      %973 = vmatprep.subr.bf16.mxu0 0
      %974 = vmatpush1.bf16.msra.mxu0 0
      %975 = vmatprep.subr.bf16.mxu0 0
      %976 = vmatpush1.bf16.msra.mxu0 0
      %977 = vmatprep.subr.bf16.mxu0 0
      %978 = vmatpush1.bf16.msra.mxu0 0
      %979 = vmatprep.subr.bf16.mxu0 0
      %980 = vmatpush1.bf16.msra.mxu0 0
      %981 = vmatprep.subr.bf16.mxu0 0
      %982 = vmatpush1.bf16.msra.mxu0 0
      %983 = vmatprep.subr.bf16.mxu0 0
      %984 = vmatpush1.bf16.msra.mxu0 0
      %985 = vmatprep.subr.bf16.mxu0 0
      %986 = vmatpush1.bf16.msra.mxu0 0
      %987 = vmatprep.subr.bf16.mxu0 0
      %988 = vmatpush1.bf16.msra.mxu0 0
      %989 = vmatprep.mubr.bf16.mxu0 0
      %990 = vmatmul.mubr.bf16.gmra.mrb[0].mxu0 %v931
      %v991 = vpop.f32.mrb[0].mxu0
      %v992 = vadd.f32 %v863, %v991
      %v993 = vpop.f32.mrb[0].mxu0
      %v994 = vpop.f32.mrb[0].mxu0
      %v995 = vadd.f32 %v866, %v994
      %v996 = vpop.f32.mrb[0].mxu0
      %997 = vmatprep.mubr.bf16.mxu0 0
      %998 = vmatmul.mubr.bf16.gmra.mrb[0].mxu0 %v934
      %v999 = vpop.f32.mrb[0].mxu0
      %v1000 = vadd.f32 %v871, %v999
      %v1001 = vpop.f32.mrb[0].mxu0
      %v1002 = vpop.f32.mrb[0].mxu0
      %v1003 = vadd.f32 %v874, %v1002
      %v1004 = vpop.f32.mrb[0].mxu0
      %1005 = vmatprep.mubr.bf16.mxu0 0
      %1006 = vmatmul.mubr.bf16.gmra.mrb[0].mxu0 %v937
      %v1007 = vpop.f32.mrb[0].mxu0
      %v1008 = vadd.f32 %v879, %v1007
      %v1009 = vpop.f32.mrb[0].mxu0
      %v1010 = vpop.f32.mrb[0].mxu0
      %v1011 = vadd.f32 %v882, %v1010
      %v1012 = vpop.f32.mrb[0].mxu0
      %1013 = vmatprep.mubr.bf16.mxu0 0
      %1014 = vmatmul.mubr.bf16.gmra.mrb[0].mxu0 %v940
      %v1015 = vpop.f32.mrb[0].mxu0
      %v1016 = vadd.f32 %v887, %v1015
      %v1017 = vpop.f32.mrb[0].mxu0
      %v1018 = vpop.f32.mrb[0].mxu0
      %v1019 = vadd.f32 %v890, %v1018
      %v1020 = vpop.f32.mrb[0].mxu0
      %1021 = vmatprep.mubr.bf16.mxu0 0
      %1022 = vmatmul.mubr.bf16.gmra.mrb[0].mxu0 %v943
      %v1023 = vpop.f32.mrb[0].mxu0
      %v1024 = vadd.f32 %v895, %v1023
      %v1025 = vpop.f32.mrb[0].mxu0
      %v1026 = vpop.f32.mrb[0].mxu0
      %v1027 = vadd.f32 %v898, %v1026
      %v1028 = vpop.f32.mrb[0].mxu0
      %1029 = vmatprep.mubr.bf16.mxu0 0
      %1030 = vmatmul.mubr.bf16.gmra.mrb[0].mxu0 %v946
      %v1031 = vpop.f32.mrb[0].mxu0
      %v1032 = vadd.f32 %v903, %v1031
      %v1033 = vpop.f32.mrb[0].mxu0
      %v1034 = vpop.f32.mrb[0].mxu0
      %v1035 = vadd.f32 %v906, %v1034
      %v1036 = vpop.f32.mrb[0].mxu0
      %1037 = vmatprep.mubr.bf16.mxu0 0
      %1038 = vmatmul.mubr.bf16.gmra.mrb[0].mxu0 %v949
      %v1039 = vpop.f32.mrb[0].mxu0
      %v1040 = vadd.f32 %v911, %v1039
      %v1041 = vpop.f32.mrb[0].mxu0
      %v1042 = vpop.f32.mrb[0].mxu0
      %v1043 = vadd.f32 %v914, %v1042
      %v1044 = vpop.f32.mrb[0].mxu0
      %1045 = vmatprep.mubr.bf16.mxu0 0
      %1046 = vmatmul.mubr.bf16.gmra.mrb[0].mxu0 %v952
      %v1047 = vpop.f32.mrb[0].mxu0
      %v1048 = vadd.f32 %v919, %v1047
      %v1049 = vpop.f32.mrb[0].mxu0
      %v1050 = vpop.f32.mrb[0].mxu0
      %v1051 = vadd.f32 %v922, %v1050
      %v1052 = vpop.f32.mrb[0].mxu0
      %1053 = vdwg.mxu0
      %s1054 = scalar_lea.vmem [#allocation3], 16
      %v1055 = vld [vmem:[%s1054] sm:$0xff]
      %v1056 = vld [vmem:[%s1054 + $0x8] sm:$0xff]
      %v1057 = vld [vmem:[%s1054 + $0x10] sm:$0xff]
      %v1058 = vld [vmem:[%s1054 + $0x18] sm:$0xff]
      %v1059 = vld [vmem:[%s1054 + $0x20] sm:$0xff]
      %v1060 = vld [vmem:[%s1054 + $0x28] sm:$0xff]
      %v1061 = vld [vmem:[%s1054 + $0x30] sm:$0xff]
      %v1062 = vld [vmem:[%s1054 + $0x38] sm:$0xff]
      %s1063 = scalar_lea.vmem %s2, 16
      %v1064 = vld [vmem:[%s1063] sm:$0xf]
      %v1065 = vld [vmem:[%s1063 + $0x4] sm:$0x1]
      %v1068 = vunpack.c.l.b16 %v1064
      %v1069 = vunpack.c.l.b16 %v1065
      %v1070 = vpack.c.b16 %v1069, %v1068
      %v1072 = vsel %vm796, %v1055, 0
      %v1075 = vsel %vm796, %v1056, 0
      %v1078 = vsel %vm796, %v1057, 0
      %v1081 = vsel %vm796, %v1058, 0
      %v1084 = vsel %vm796, %v1059, 0
      %v1087 = vsel %vm796, %v1060, 0
      %v1090 = vsel %vm796, %v1061, 0
      %v1093 = vsel %vm796, %v1062, 0
      %v1096 = vand.u32 %v1070, %v824
      %1098 = vmatprep.subr.bf16.mxu0 0
      %1099 = vmatpush1.bf16.msra.mxu0 %v1096
      %1100 = vmatprep.subr.bf16.mxu0 0
      %1101 = vmatpush1.bf16.msra.mxu0 0
      %1102 = vmatprep.subr.bf16.mxu0 0
      %1103 = vmatpush1.bf16.msra.mxu0 0
      %1104 = vmatprep.subr.bf16.mxu0 0
      %1105 = vmatpush1.bf16.msra.mxu0 0
      %1106 = vmatprep.subr.bf16.mxu0 0
      %1107 = vmatpush1.bf16.msra.mxu0 0
      %1108 = vmatprep.subr.bf16.mxu0 0
      %1109 = vmatpush1.bf16.msra.mxu0 0
      %1110 = vmatprep.subr.bf16.mxu0 0
      %1111 = vmatpush1.bf16.msra.mxu0 0
      %1112 = vmatprep.subr.bf16.mxu0 0
      %1113 = vmatpush1.bf16.msra.mxu0 0
      %1114 = vmatprep.subr.bf16.mxu0 0
      %1115 = vmatpush1.bf16.msra.mxu0 0
      %1116 = vmatprep.subr.bf16.mxu0 0
      %1117 = vmatpush1.bf16.msra.mxu0 0
      %1118 = vmatprep.subr.bf16.mxu0 0
      %1119 = vmatpush1.bf16.msra.mxu0 0
      %1120 = vmatprep.subr.bf16.mxu0 0
      %1121 = vmatpush1.bf16.msra.mxu0 0
      %1122 = vmatprep.subr.bf16.mxu0 0
      %1123 = vmatpush1.bf16.msra.mxu0 0
      %1124 = vmatprep.subr.bf16.mxu0 0
      %1125 = vmatpush1.bf16.msra.mxu0 0
      %1126 = vmatprep.subr.bf16.mxu0 0
      %1127 = vmatpush1.bf16.msra.mxu0 0
      %1128 = vmatprep.subr.bf16.mxu0 0
      %1129 = vmatpush1.bf16.msra.mxu0 0
      %1130 = vmatprep.mubr.bf16.mxu0 0
      %1131 = vmatmul.mubr.bf16.gmra.mrb[0].mxu0 %v1072
      %v1132 = vpop.f32.mrb[0].mxu0
      %v1133 = vadd.f32 0.0, %v1132
      %v1134 = vpop.f32.mrb[0].mxu0
      %v1135 = vpop.f32.mrb[0].mxu0
      %v1136 = vadd.f32 0.0, %v1135
      %v1137 = vpop.f32.mrb[0].mxu0
      %1138 = vmatprep.mubr.bf16.mxu0 0
      %1139 = vmatmul.mubr.bf16.gmra.mrb[0].mxu0 %v1075
      %v1140 = vpop.f32.mrb[0].mxu0
      %v1141 = vadd.f32 0.0, %v1140
      %v1142 = vpop.f32.mrb[0].mxu0
      %v1143 = vpop.f32.mrb[0].mxu0
      %v1144 = vadd.f32 0.0, %v1143
      %v1145 = vpop.f32.mrb[0].mxu0
      %1146 = vmatprep.mubr.bf16.mxu0 0
      %1147 = vmatmul.mubr.bf16.gmra.mrb[0].mxu0 %v1078
      %v1148 = vpop.f32.mrb[0].mxu0
      %v1149 = vadd.f32 0.0, %v1148
      %v1150 = vpop.f32.mrb[0].mxu0
      %v1151 = vpop.f32.mrb[0].mxu0
      %v1152 = vadd.f32 0.0, %v1151
      %v1153 = vpop.f32.mrb[0].mxu0
      %1154 = vmatprep.mubr.bf16.mxu0 0
      %1155 = vmatmul.mubr.bf16.gmra.mrb[0].mxu0 %v1081
      %v1156 = vpop.f32.mrb[0].mxu0
      %v1157 = vadd.f32 0.0, %v1156
      %v1158 = vpop.f32.mrb[0].mxu0
      %v1159 = vpop.f32.mrb[0].mxu0
      %v1160 = vadd.f32 0.0, %v1159
      %v1161 = vpop.f32.mrb[0].mxu0
      %1162 = vmatprep.mubr.bf16.mxu0 0
      %1163 = vmatmul.mubr.bf16.gmra.mrb[0].mxu0 %v1084
      %v1164 = vpop.f32.mrb[0].mxu0
      %v1165 = vadd.f32 0.0, %v1164
      %v1166 = vpop.f32.mrb[0].mxu0
      %v1167 = vpop.f32.mrb[0].mxu0
      %v1168 = vadd.f32 0.0, %v1167
      %v1169 = vpop.f32.mrb[0].mxu0
      %1170 = vmatprep.mubr.bf16.mxu0 0
      %1171 = vmatmul.mubr.bf16.gmra.mrb[0].mxu0 %v1087
      %v1172 = vpop.f32.mrb[0].mxu0
      %v1173 = vadd.f32 0.0, %v1172
      %v1174 = vpop.f32.mrb[0].mxu0
      %v1175 = vpop.f32.mrb[0].mxu0
      %v1176 = vadd.f32 0.0, %v1175
      %v1177 = vpop.f32.mrb[0].mxu0
      %1178 = vmatprep.mubr.bf16.mxu0 0
      %1179 = vmatmul.mubr.bf16.gmra.mrb[0].mxu0 %v1090
      %v1180 = vpop.f32.mrb[0].mxu0
      %v1181 = vadd.f32 0.0, %v1180
      %v1182 = vpop.f32.mrb[0].mxu0
      %v1183 = vpop.f32.mrb[0].mxu0
      %v1184 = vadd.f32 0.0, %v1183
      %v1185 = vpop.f32.mrb[0].mxu0
      %1186 = vmatprep.mubr.bf16.mxu0 0
      %1187 = vmatmul.mubr.bf16.gmra.mrb[0].mxu0 %v1093
      %v1188 = vpop.f32.mrb[0].mxu0
      %v1189 = vadd.f32 0.0, %v1188
      %v1190 = vpop.f32.mrb[0].mxu0
      %v1191 = vpop.f32.mrb[0].mxu0
      %v1192 = vadd.f32 0.0, %v1191
      %v1193 = vpop.f32.mrb[0].mxu0
      %1194 = vdwg.mxu0
      %v1195 = vadd.f32 %v992, %v1133
      %v1196 = vadd.f32 %v995, %v1136
      %v1197 = vadd.f32 %v1000, %v1141
      %v1198 = vadd.f32 %v1003, %v1144
      %v1199 = vadd.f32 %v1008, %v1149
      %v1200 = vadd.f32 %v1011, %v1152
      %v1201 = vadd.f32 %v1016, %v1157
      %v1202 = vadd.f32 %v1019, %v1160
      %v1203 = vadd.f32 %v1024, %v1165
      %v1204 = vadd.f32 %v1027, %v1168
      %v1205 = vadd.f32 %v1032, %v1173
      %v1206 = vadd.f32 %v1035, %v1176
      %v1207 = vadd.f32 %v1040, %v1181
      %v1208 = vadd.f32 %v1043, %v1184
      %v1209 = vadd.f32 %v1048, %v1189
      %v1210 = vadd.f32 %v1051, %v1192
      %v1211 = vld [vmem:[%s3] sm:$0x1]
      %v1213 = vlaneseq
      %v1214 = vshrl.u32 %v1213, 7
      %v1215 = vsub.s32 0, %v1214
      %v1216 = vrot.slane %v1211, %v1215
      %v1218 = vadd.f32 %v1195, %v1216
      %v1219 = vadd.f32 %v1196, %v1216
      %v1220 = vadd.f32 %v1197, %v1216
      %v1221 = vadd.f32 %v1198, %v1216
      %v1222 = vadd.f32 %v1199, %v1216
      %v1223 = vadd.f32 %v1200, %v1216
      %v1224 = vadd.f32 %v1201, %v1216
      %v1225 = vadd.f32 %v1202, %v1216
      %v1226 = vadd.f32 %v1203, %v1216
      %v1227 = vadd.f32 %v1204, %v1216
      %v1228 = vadd.f32 %v1205, %v1216
      %v1229 = vadd.f32 %v1206, %v1216
      %v1230 = vadd.f32 %v1207, %v1216
      %v1231 = vadd.f32 %v1208, %v1216
      %v1232 = vadd.f32 %v1209, %v1216
      %v1233 = vadd.f32 %v1210, %v1216
      %v1234 = vmax.f32 %v1218, 0.0
      %v1235 = vmax.f32 %v1219, 0.0
      %v1236 = vmax.f32 %v1220, 0.0
      %v1237 = vmax.f32 %v1221, 0.0
      %v1238 = vmax.f32 %v1222, 0.0
      %v1239 = vmax.f32 %v1223, 0.0
      %v1240 = vmax.f32 %v1224, 0.0
      %v1241 = vmax.f32 %v1225, 0.0
      %v1242 = vmax.f32 %v1226, 0.0
      %v1243 = vmax.f32 %v1227, 0.0
      %v1244 = vmax.f32 %v1228, 0.0
      %v1245 = vmax.f32 %v1229, 0.0
      %v1246 = vmax.f32 %v1230, 0.0
      %v1247 = vmax.f32 %v1231, 0.0
      %v1248 = vmax.f32 %v1232, 0.0
      %v1249 = vmax.f32 %v1233, 0.0
      %v1250 = vpack.c.bf16 %v1235, %v1234
      %v1251 = vpack.c.bf16 %v1237, %v1236
      %v1252 = vpack.c.bf16 %v1239, %v1238
      %v1253 = vpack.c.bf16 %v1241, %v1240
      %v1254 = vpack.c.bf16 %v1243, %v1242
      %v1255 = vpack.c.bf16 %v1245, %v1244
      %v1256 = vpack.c.bf16 %v1247, %v1246
      %v1257 = vpack.c.bf16 %v1249, %v1248
      %v1266 = vunpack.c.l.b16 %v1250
      %v1267 = vunpack.c.h.b16 %v1250
      %v1268 = vunpack.c.l.b16 %v1251
      %v1269 = vunpack.c.h.b16 %v1251
      %v1270 = vunpack.c.l.b16 %v1252
      %v1271 = vunpack.c.h.b16 %v1252
      %v1272 = vunpack.c.l.b16 %v1253
      %v1273 = vunpack.c.h.b16 %v1253
      %v1274 = vunpack.c.l.b16 %v1254
      %v1275 = vunpack.c.h.b16 %v1254
      %v1276 = vunpack.c.l.b16 %v1255
      %v1277 = vunpack.c.h.b16 %v1255
      %v1278 = vunpack.c.l.b16 %v1256
      %v1279 = vunpack.c.h.b16 %v1256
      %v1280 = vunpack.c.l.b16 %v1257
      %v1281 = vunpack.c.h.b16 %v1257
      %v1282 = vpack.c.b16 %v1266, %v1266
      %v1283 = vpack.c.b16 %v1267, %v1267
      %v1284 = vpack.c.b16 %v1268, %v1268
      %v1285 = vpack.c.b16 %v1269, %v1269
      %v1286 = vpack.c.b16 %v1270, %v1270
      %v1287 = vpack.c.b16 %v1271, %v1271
      %v1288 = vpack.c.b16 %v1272, %v1272
      %v1289 = vpack.c.b16 %v1273, %v1273
      %v1290 = vpack.c.b16 %v1274, %v1274
      %v1291 = vpack.c.b16 %v1275, %v1275
      %v1292 = vpack.c.b16 %v1276, %v1276
      %v1293 = vpack.c.b16 %v1277, %v1277
      %v1294 = vpack.c.b16 %v1278, %v1278
      %v1295 = vpack.c.b16 %v1279, %v1279
      %v1296 = vpack.c.b16 %v1280, %v1280
      %v1297 = vpack.c.b16 %v1281, %v1281
      %vm1314 = vcmask 519168
      %1315 = vst.msk [vmem:[%s279] sm:$0xf] %vm1314, %v1282
      %1316 = vst.msk [vmem:[%s279 + $0x4] sm:$0xf] %vm1314, %v1283
      %1317 = vst.msk [vmem:[%s279 + $0x8] sm:$0xf] %vm1314, %v1284
      %1318 = vst.msk [vmem:[%s279 + $0xc] sm:$0xf] %vm1314, %v1285
      %1319 = vst.msk [vmem:[%s279 + $0x10] sm:$0xf] %vm1314, %v1286
      %1320 = vst.msk [vmem:[%s279 + $0x14] sm:$0xf] %vm1314, %v1287
      %1321 = vst.msk [vmem:[%s279 + $0x18] sm:$0xf] %vm1314, %v1288
      %1322 = vst.msk [vmem:[%s279 + $0x1c] sm:$0xf] %vm1314, %v1289
      %1323 = vst.msk [vmem:[%s279 + $0x20] sm:$0xf] %vm1314, %v1290
      %1324 = vst.msk [vmem:[%s279 + $0x24] sm:$0xf] %vm1314, %v1291
      %1325 = vst.msk [vmem:[%s279 + $0x28] sm:$0xf] %vm1314, %v1292
      %1326 = vst.msk [vmem:[%s279 + $0x2c] sm:$0xf] %vm1314, %v1293
      %1327 = vst.msk [vmem:[%s279 + $0x30] sm:$0xf] %vm1314, %v1294
      %1328 = vst.msk [vmem:[%s279 + $0x34] sm:$0xf] %vm1314, %v1295
      %1329 = vst.msk [vmem:[%s279 + $0x38] sm:$0xf] %vm1314, %v1296
      %1330 = vst.msk [vmem:[%s279 + $0x3c] sm:$0xf] %vm1314, %v1297
      %s1331 = smul.u32 8, %s20
      %p1332 = scmp.lt.s32.totalorder %s19, 1
      %s1333 = scalar_select %p1332, %s19, 1
      %p1334 = scmp.lt.s32.totalorder %s1331, 15
      %s1335 = scalar_select %p1334, %s1331, 15
      %s1336 = smul.addr %s1335, 2
      %s1337 = smul.addr %s1333, 32
      %s1338 = sadd.s32 %s1336, %s1337
      %s1339 = smul.addr %s1338, 4
      %s1340 = scalar_lea.vmem %s4, %s1339
      // Predicated region
      $region37: #{content_forward.4} parent=35 // pred_check
        %p1341 = pneg %p145
      $region38: #{content_forward.4} parent=35 // pred_check_branch
        %1343 = sbr.rel (%p1341) target = $region40
      $region39: #{content_forward.4} parent=35 // pred_region
        %s1344 = smul.u32 8, %s20
      $region40: #{content_forward.4} parent=35 // pred_fallthru
        _
    $region36: #{content_forward.4} parent=5 // pred_fallthru
      _
    %p1345 = scmp.le.s32.totalorder 2, %s10
    // Predicated region
    $region41: #{content_forward.4} parent=5 // pred_check
      %p1346 = pneg %p1345
    $region42: #{content_forward.4} parent=5 // pred_check_branch
      %1348 = sbr.rel (%p1346) target = $region44
    $region43: #{content_forward.4} parent=5 // pred_region
      %s1349 = ssub.s32 %s10, 2
      // Predicated region
      $region45: #{content_forward.4} parent=43 // pred_check
        %p1350 = pneg %p151
      $region46: #{content_forward.4} parent=43 // pred_check_branch
        %1352 = sbr.rel (%p1350) target = $region48
      $region47: #{content_forward.4} parent=43 // pred_region
        %s1353 = smul.u32 8, %s22
        %p1354 = scmp.lt.s32.totalorder %s21, 1
        %s1355 = scalar_select %p1354, %s21, 1
        %p1356 = scmp.lt.s32.totalorder %s1353, 15
        %s1357 = scalar_select %p1356, %s1353, 15
        %s1358 = smul.addr %s1357, 2
        %s1359 = smul.addr %s1355, 32
        %s1360 = sadd.s32 %s1358, %s1359
        %s1361 = smul.addr %s1360, 4
        %s1362 = scalar_lea.vmem %s4, %s1361
      $region48: #{content_forward.4} parent=43 // pred_fallthru
        _
    $region44: #{content_forward.4} parent=5 // pred_fallthru
      _
  $region6: #{content_forward.4} parent=0 // loop_footer
    %s14 = sadd.s32 1, %s10
  $region7: #{content_forward.4} parent=0 // loop_footer_branch
    %9 = sbr.rel target = $region3
  $region8: #{content_forward.4} parent=0 // loop_exit
    _

// kernel: content_forward.5
$region0: #{content_forward.5}
  #allocation0 [shape = 'u32[]', space=smem, size = 0x4, offset = 0x4, fixed_abs, tag = 'smem constant byte address 0x4 - core index']
  #allocation1 [shape = 'u32[144,128]{1,0:T(1,128)}', space=vmem, size = 0x12000, scoped, tag = 'internal scratch']
  #allocation2 [shape = 'bf16[10,16,64]{2,1,0:T(16,128)(2,1)}', space=vmem, size = 0xa000, scoped, tag = 'scratch operand']
  #allocation3 [shape = 'bf16[10,16,192]{2,1,0:T(16,128)(2,1)}', space=vmem, size = 0x14000, scoped, tag = 'scratch operand']
  #allocation4 [shape = 'f32[4,16,64]{2,1,0:T(8,128)}', space=vmem, size = 0x8000, scoped, tag = 'scratch operand']
  %s0 = inlined_call_operand.vmem [shape: bf16[2,16,16,64], index: 0, kind: input, shape index: {}]
  %s1 = inlined_call_operand.vmem [shape: bf16[2,4,16,64], index: 1, kind: input, shape index: {}]
  %s2 = inlined_call_operand.vmem [shape: bf16[3,192,64], index: 2, kind: input, shape index: {}]
  %s3 = inlined_call_operand.vmem [shape: f32[1,64], index: 3, kind: input, shape index: {}]
  %s4 = inlined_call_operand.vmem [shape: bf16[2,8,8,64], index: 4, kind: output, shape index: {}]
  %s5 = sld [smem:[#allocation0]]
  $region49: #{content_forward.5} parent=0
    _
  %s7 = ssub.s32 1, %s5
  %s8 = scalar_select 0, %s7, %s5
  loop: start=0, step=1, limit=6
  $region2: #{content_forward.5} parent=0 // loop_pre_header
    _
  $region3: #{content_forward.5} parent=0 // loop_header
    %s10 = sphi 0, %s14
    %p11 = scmp.ge.s32.totalorder %s10, 6
    %s17 = sphi 0, %s29
    %s18 = sphi 0, %s25
    %s19 = sphi 0, %s17
    %s20 = sphi 0, %s18
    %s21 = sphi 0, %s19
    %s22 = sphi 0, %s20
    %s34 = sphi 0, %s36
    %s37 = sphi 0, %s34
    %s38 = sphi 0, %s37
    %s54 = sphi 0, %s38
    %s62 = sphi 0, %s64
    %s65 = sphi 0, %s62
    %s66 = sphi 0, %s65
    %s82 = sphi 0, %s66
    %s86 = sphi 0, %s86
    %s88 = sphi 0, %s86
    %s89 = sphi 0, %s88
    %s103 = sphi 0, %s89
    %s107 = sphi 0, %s107
    %s109 = sphi 0, %s107
    %s110 = sphi 0, %s109
    %s124 = sphi 0, %s110
    %s132 = sphi 0, %s134
    %s135 = sphi 0, %s132
    %s136 = sphi 0, %s135
    %s152 = sphi 0, %s136
  $region4: #{content_forward.5} parent=0 // loop_header_branch
    %13 = sbr.rel (%p11) target = $region8
  $region5: #{content_forward.5} parent=0 // loop_body
    %s15 = ssub.s32 %s10, 1
    %s16 = ssub.s32 %s10, 2
    %s23 = sadd.s32 1, %s18
    %p24 = scmp.ge.s32.totalorder %s23, 2
    %s25 = scalar_select %p24, 0, %s23
    %s26 = sadd.s32 1, %s17
    %s27 = scalar_select %p24, %s26, %s17
    %p28 = scmp.ge.s32.totalorder %s27, 2
    %s29 = scalar_select %p28, 0, %s27
    %s30 = ssub.s32 %s17, %s29
    %s31 = ssub.s32 %s18, %s25
    %s32 = sor.u32 %s30, %s31
    %p33 = scmp.eq.s32.totalorder %s32, 0
    %s35 = sadd.s32 %s34, 1
    %s36 = scalar_select %p33, %s34, %s35
    %p39 = pneg %p33
    %p40 = scmp.eq.s32.totalorder %s10, 3
    %p41 = por %p39, %p40
    %p42 = scmp.ne.s32.totalorder %s34, %s37
    %p43 = scmp.eq.s32.totalorder %s10, 0
    %p44 = por %p42, %p43
    %p45 = scmp.ne.s32.totalorder %s34, %s37
    %p46 = scmp.eq.s32.totalorder %s15, 3
    %p47 = por %p45, %p46
    %p48 = scmp.ne.s32.totalorder %s37, %s38
    %p49 = scmp.eq.s32.totalorder %s15, 0
    %p50 = por %p48, %p49
    %p51 = scmp.ne.s32.totalorder %s37, %s38
    %p52 = scmp.eq.s32.totalorder %s16, 3
    %p53 = por %p51, %p52
    %p55 = scmp.ne.s32.totalorder %s38, %s54
    %p56 = scmp.eq.s32.totalorder %s16, 0
    %p57 = por %p55, %p56
    %s58 = ssub.s32 %s17, %s29
    %s59 = ssub.s32 %s18, %s25
    %s60 = sor.u32 %s58, %s59
    %p61 = scmp.eq.s32.totalorder %s60, 0
    %s63 = sadd.s32 %s62, 1
    %s64 = scalar_select %p61, %s62, %s63
    %p67 = pneg %p61
    %p68 = scmp.eq.s32.totalorder %s10, 3
    %p69 = por %p67, %p68
    %p70 = scmp.ne.s32.totalorder %s62, %s65
    %p71 = scmp.eq.s32.totalorder %s10, 0
    %p72 = por %p70, %p71
    %p73 = scmp.ne.s32.totalorder %s62, %s65
    %p74 = scmp.eq.s32.totalorder %s15, 3
    %p75 = por %p73, %p74
    %p76 = scmp.ne.s32.totalorder %s65, %s66
    %p77 = scmp.eq.s32.totalorder %s15, 0
    %p78 = por %p76, %p77
    %p79 = scmp.ne.s32.totalorder %s65, %s66
    %p80 = scmp.eq.s32.totalorder %s16, 3
    %p81 = por %p79, %p80
    %p83 = scmp.ne.s32.totalorder %s66, %s82
    %p84 = scmp.eq.s32.totalorder %s16, 0
    %p85 = por %p83, %p84
    %s87 = sadd.s32 %s86, 1
    %p90 = scmp.eq.s32.totalorder %s10, 3
    %p91 = scmp.ne.s32.totalorder %s86, %s88
    %p92 = scmp.eq.s32.totalorder %s10, 0
    %p93 = por %p91, %p92
    %p94 = scmp.ne.s32.totalorder %s86, %s88
    %p95 = scmp.eq.s32.totalorder %s15, 3
    %p96 = por %p94, %p95
    %p97 = scmp.ne.s32.totalorder %s88, %s89
    %p98 = scmp.eq.s32.totalorder %s15, 0
    %p99 = por %p97, %p98
    %p100 = scmp.ne.s32.totalorder %s88, %s89
    %p101 = scmp.eq.s32.totalorder %s16, 3
    %p102 = por %p100, %p101
    %p104 = scmp.ne.s32.totalorder %s89, %s103
    %p105 = scmp.eq.s32.totalorder %s16, 0
    %p106 = por %p104, %p105
    %s108 = sadd.s32 %s107, 1
    %p111 = scmp.eq.s32.totalorder %s10, 3
    %p112 = scmp.ne.s32.totalorder %s107, %s109
    %p113 = scmp.eq.s32.totalorder %s10, 0
    %p114 = por %p112, %p113
    %p115 = scmp.ne.s32.totalorder %s107, %s109
    %p116 = scmp.eq.s32.totalorder %s15, 3
    %p117 = por %p115, %p116
    %p118 = scmp.ne.s32.totalorder %s109, %s110
    %p119 = scmp.eq.s32.totalorder %s15, 0
    %p120 = por %p118, %p119
    %p121 = scmp.ne.s32.totalorder %s109, %s110
    %p122 = scmp.eq.s32.totalorder %s16, 3
    %p123 = por %p121, %p122
    %p125 = scmp.ne.s32.totalorder %s110, %s124
    %p126 = scmp.eq.s32.totalorder %s16, 0
    %p127 = por %p125, %p126
    %s128 = ssub.s32 %s17, %s29
    %s129 = ssub.s32 %s18, %s25
    %s130 = sor.u32 %s128, %s129
    %p131 = scmp.eq.s32.totalorder %s130, 0
    %s133 = sadd.s32 %s132, 1
    %s134 = scalar_select %p131, %s132, %s133
    %p137 = pneg %p131
    %p138 = scmp.eq.s32.totalorder %s10, 3
    %p139 = por %p137, %p138
    %p140 = scmp.ne.s32.totalorder %s132, %s135
    %p141 = scmp.eq.s32.totalorder %s10, 0
    %p142 = por %p140, %p141
    %p143 = scmp.ne.s32.totalorder %s132, %s135
    %p144 = scmp.eq.s32.totalorder %s15, 3
    %p145 = por %p143, %p144
    %p146 = scmp.ne.s32.totalorder %s135, %s136
    %p147 = scmp.eq.s32.totalorder %s15, 0
    %p148 = por %p146, %p147
    %p149 = scmp.ne.s32.totalorder %s135, %s136
    %p150 = scmp.eq.s32.totalorder %s16, 3
    %p151 = por %p149, %p150
    %p153 = scmp.ne.s32.totalorder %s136, %s152
    %p154 = scmp.eq.s32.totalorder %s16, 0
    %p155 = por %p153, %p154
    %p156 = scmp.le.s32.totalorder 1, %s10
    %p157 = scmp.lt.s32.totalorder %s10, 5
    %p158 = pnand %p156, %p157
    %p159 = pneg %p158
    // Predicated region
    $region9: #{content_forward.5} parent=5 // pred_check
      _
    $region10: #{content_forward.5} parent=5 // pred_check_branch
      %161 = sbr.rel (%p158) target = $region12
    $region11: #{content_forward.5} parent=5 // pred_region
      %s162 = ssub.s32 %s10, 1
      // Predicated region
      $region13: #{content_forward.5} parent=11 // pred_check
        %p163 = pneg %p99
      $region14: #{content_forward.5} parent=11 // pred_check_branch
        %165 = sbr.rel (%p163) target = $region16
      $region15: #{content_forward.5} parent=11 // pred_region
        _
      $region16: #{content_forward.5} parent=11 // pred_fallthru
        _
      // Predicated region
      $region17: #{content_forward.5} parent=11 // pred_check
        %p166 = pneg %p120
      $region18: #{content_forward.5} parent=11 // pred_check_branch
        %168 = sbr.rel (%p166) target = $region20
      $region19: #{content_forward.5} parent=11 // pred_region
        _
      $region20: #{content_forward.5} parent=11 // pred_fallthru
        _
    $region12: #{content_forward.5} parent=5 // pred_fallthru
      _
    %p169 = scmp.lt.s32.totalorder %s10, 4
    // Predicated region
    $region21: #{content_forward.5} parent=5 // pred_check
      %p170 = pneg %p169
    $region22: #{content_forward.5} parent=5 // pred_check_branch
      %172 = sbr.rel (%p170) target = $region24
    $region23: #{content_forward.5} parent=5 // pred_region
      // Predicated region
      $region25: #{content_forward.5} parent=23 // pred_check
        %p173 = pneg %p44
      $region26: #{content_forward.5} parent=23 // pred_check_branch
        %175 = sbr.rel (%p173) target = $region28
      $region27: #{content_forward.5} parent=23 // pred_region
        %s176 = smul.u32 8, %s18
        %p177 = scmp.lt.s32.totalorder %s17, 1
        %s178 = scalar_select %p177, %s17, 1
        %p179 = scmp.lt.s32.totalorder %s176, 15
        %s180 = scalar_select %p179, %s176, 15
        %s181 = smul.addr %s180, 2
        %s182 = smul.addr %s178, 32
        %s183 = sadd.s32 %s181, %s182
        %s184 = smul.addr %s183, 4
        %s185 = scalar_lea.vmem %s0, %s184
        %s186 = smul.u32 8, %s18
      $region28: #{content_forward.5} parent=23 // pred_fallthru
        _
      // Predicated region
      $region29: #{content_forward.5} parent=23 // pred_check
        %p187 = pneg %p72
      $region30: #{content_forward.5} parent=23 // pred_check_branch
        %189 = sbr.rel (%p187) target = $region32
      $region31: #{content_forward.5} parent=23 // pred_region
        %s190 = smul.u32 2, %s18
        %p191 = scmp.lt.s32.totalorder %s17, 1
        %s192 = scalar_select %p191, %s17, 1
        %p193 = scmp.lt.s32.totalorder %s190, 3
        %s194 = scalar_select %p193, %s190, 3
        %s195 = smul.addr %s194, 2
        %s196 = smul.addr %s192, 8
        %s197 = sadd.s32 %s195, %s196
        %s198 = smul.addr %s197, 4
        %s199 = scalar_lea.vmem %s1, %s198
        %s200 = smul.u32 2, %s18
      $region32: #{content_forward.5} parent=23 // pred_fallthru
        _
    $region24: #{content_forward.5} parent=5 // pred_fallthru
      _
    %p201 = scmp.le.s32.totalorder 1, %s10
    %p202 = scmp.lt.s32.totalorder %s10, 5
    %p203 = pnand %p201, %p202
    %p204 = pneg %p203
    // Predicated region
    $region33: #{content_forward.5} parent=5 // pred_check
      _
    $region34: #{content_forward.5} parent=5 // pred_check_branch
      %206 = sbr.rel (%p203) target = $region36
    $region35: #{content_forward.5} parent=5 // pred_region
      %s207 = ssub.s32 %s10, 1
      %s208 = smul.u32 8, %s20
      %p209 = scmp.lt.s32.totalorder %s19, 1
      %s210 = scalar_select %p209, %s19, 1
      %p211 = scmp.lt.s32.totalorder %s208, 15
      %s212 = scalar_select %p211, %s208, 15
      %s213 = smul.addr %s212, 2
      %s214 = smul.addr %s210, 32
      %s215 = sadd.s32 %s213, %s214
      %s216 = smul.addr %s215, 4
      %s217 = scalar_lea.vmem %s0, %s216
      %p218 = pneg %p50
      %p219 = pneg %p47
      %s220 = smul.u32 2, %s20
      %p221 = scmp.lt.s32.totalorder %s19, 1
      %s222 = scalar_select %p221, %s19, 1
      %p223 = scmp.lt.s32.totalorder %s220, 3
      %s224 = scalar_select %p223, %s220, 3
      %s225 = smul.addr %s224, 2
      %s226 = smul.addr %s222, 8
      %s227 = sadd.s32 %s225, %s226
      %s228 = smul.addr %s227, 4
      %s229 = scalar_lea.vmem %s1, %s228
      %p230 = pneg %p78
      %p231 = pneg %p75
      %p232 = pneg %p99
      %p233 = pneg %p96
      %p234 = pneg %p120
      %p235 = pneg %p117
      %p236 = pneg %p148
      %p237 = pneg %p145
      %s238 = smul.u32 4, %s20
      %p239 = scmp.lt.s32.totalorder %s19, 1
      %s240 = scalar_select %p239, %s19, 1
      %p241 = scmp.lt.s32.totalorder %s238, 7
      %s242 = scalar_select %p241, %s238, 7
      %s243 = smul.addr %s240, 8
      %s244 = sadd.s32 %s242, %s243
      %s245 = smul.addr %s244, 4
      %s246 = scalar_lea.vmem %s4, %s245
      %s247 = smul.u32 8, %s20
      %p248 = scmp.lt.s32.totalorder %s19, 1
      %s249 = scalar_select %p248, %s19, 1
      %p250 = scmp.lt.s32.totalorder %s247, 15
      %s251 = scalar_select %p250, %s247, 15
      %s252 = smul.addr %s251, 2
      %s253 = smul.addr %s249, 32
      %s254 = sadd.s32 %s252, %s253
      %s255 = smul.addr %s254, 4
      %s256 = scalar_lea.vmem %s0, %s255
      %s257 = smul.u32 8, %s20
      %s258 = smul.u32 2, %s20
      %p259 = scmp.lt.s32.totalorder %s19, 1
      %s260 = scalar_select %p259, %s19, 1
      %p261 = scmp.lt.s32.totalorder %s258, 3
      %s262 = scalar_select %p261, %s258, 3
      %s263 = smul.addr %s262, 2
      %s264 = smul.addr %s260, 8
      %s265 = sadd.s32 %s263, %s264
      %s266 = smul.addr %s265, 4
      %s267 = scalar_lea.vmem %s1, %s266
      %s268 = smul.u32 2, %s20
      %s269 = smul.u32 4, %s20
      %p270 = scmp.lt.s32.totalorder %s19, 1
      %s271 = scalar_select %p270, %s19, 1
      %p272 = scmp.lt.s32.totalorder %s269, 7
      %s273 = scalar_select %p272, %s269, 7
      %s274 = smul.addr %s271, 8
      %s275 = sadd.s32 %s273, %s274
      %s276 = smul.addr %s275, 4
      %s277 = scalar_lea.vmem %s4, %s276
      %s278 = smul.u32 4, %s20
      %v280 = vld [vmem:[%s267] sm:$0xf]
      %v281 = vld [vmem:[%s267 + $0x4] sm:$0xf]
      %v284 = vunpack.c.l.b16 %v280
      %v285 = vunpack.c.l.b16 %v281
      %v286 = vpack.c.b16 %v285, %v284
      %vm288 = vcmask 523264
      %289 = vst.msk [vmem:[#allocation2] sm:$0xff] %vm288, %v286
      %v290 = vld [vmem:[%s256] sm:$0xf]
      %v291 = vld [vmem:[%s256 + $0x4] sm:$0xf]
      %v292 = vld [vmem:[%s256 + $0x8] sm:$0xf]
      %v293 = vld [vmem:[%s256 + $0xc] sm:$0xf]
      %v294 = vld [vmem:[%s256 + $0x10] sm:$0xf]
      %v295 = vld [vmem:[%s256 + $0x14] sm:$0xf]
      %v296 = vld [vmem:[%s256 + $0x18] sm:$0xf]
      %v297 = vld [vmem:[%s256 + $0x1c] sm:$0xf]
      %v298 = vld [vmem:[%s256 + $0x20] sm:$0xf]
      %v299 = vld [vmem:[%s256 + $0x24] sm:$0xf]
      %v300 = vld [vmem:[%s256 + $0x28] sm:$0xf]
      %v301 = vld [vmem:[%s256 + $0x2c] sm:$0xf]
      %v302 = vld [vmem:[%s256 + $0x30] sm:$0xf]
      %v303 = vld [vmem:[%s256 + $0x34] sm:$0xf]
      %v304 = vld [vmem:[%s256 + $0x38] sm:$0xf]
      %v305 = vld [vmem:[%s256 + $0x3c] sm:$0xf]
      %v322 = vunpack.c.l.b16 %v290
      %v323 = vunpack.c.l.b16 %v291
      %v324 = vunpack.c.l.b16 %v292
      %v325 = vunpack.c.l.b16 %v293
      %v326 = vunpack.c.l.b16 %v294
      %v327 = vunpack.c.l.b16 %v295
      %v328 = vunpack.c.l.b16 %v296
      %v329 = vunpack.c.l.b16 %v297
      %v330 = vunpack.c.l.b16 %v298
      %v331 = vunpack.c.l.b16 %v299
      %v332 = vunpack.c.l.b16 %v300
      %v333 = vunpack.c.l.b16 %v301
      %v334 = vunpack.c.l.b16 %v302
      %v335 = vunpack.c.l.b16 %v303
      %v336 = vunpack.c.l.b16 %v304
      %v337 = vunpack.c.l.b16 %v305
      %v338 = vpack.c.b16 %v323, %v322
      %v339 = vpack.c.b16 %v325, %v324
      %v340 = vpack.c.b16 %v327, %v326
      %v341 = vpack.c.b16 %v329, %v328
      %v342 = vpack.c.b16 %v331, %v330
      %v343 = vpack.c.b16 %v333, %v332
      %v344 = vpack.c.b16 %v335, %v334
      %v345 = vpack.c.b16 %v337, %v336
      %s354 = scalar_lea.vmem [#allocation2], 8
      %355 = vst.msk [vmem:[%s354] sm:$0xff] %vm288, %v338
      %356 = vst.msk [vmem:[%s354 + $0x8] sm:$0xff] %vm288, %v339
      %357 = vst.msk [vmem:[%s354 + $0x10] sm:$0xff] %vm288, %v340
      %358 = vst.msk [vmem:[%s354 + $0x18] sm:$0xff] %vm288, %v341
      %359 = vst.msk [vmem:[%s354 + $0x20] sm:$0xff] %vm288, %v342
      %360 = vst.msk [vmem:[%s354 + $0x28] sm:$0xff] %vm288, %v343
      %361 = vst.msk [vmem:[%s354 + $0x30] sm:$0xff] %vm288, %v344
      %362 = vst.msk [vmem:[%s354 + $0x38] sm:$0xff] %vm288, %v345
      %s363 = scalar_lea.vmem %s267, 8
      %v364 = vld [vmem:[%s363] sm:$0xf]
      %v365 = vld [vmem:[%s363 + $0x4] sm:$0xf]
      %v368 = vunpack.c.l.b16 %v364
      %v369 = vunpack.c.l.b16 %v365
      %v370 = vpack.c.b16 %v369, %v368
      %s372 = scalar_lea.vmem [#allocation2], 72
      %373 = vst.msk [vmem:[%s372] sm:$0xff] %vm288, %v370
      %v374 = vld [vmem:[#allocation2] sm:$0xff]
      %v375 = vld [vmem:[#allocation2 + $0x8] sm:$0xff]
      %v376 = vld [vmem:[#allocation2 + $0x10] sm:$0xff]
      %v377 = vld [vmem:[#allocation2 + $0x18] sm:$0xff]
      %v378 = vld [vmem:[#allocation2 + $0x20] sm:$0xff]
      %v379 = vld [vmem:[#allocation2 + $0x28] sm:$0xff]
      %v380 = vld [vmem:[#allocation2 + $0x30] sm:$0xff]
      %v381 = vld [vmem:[#allocation2 + $0x38] sm:$0xff]
      %v382 = vld [vmem:[#allocation2 + $0x40] sm:$0xff]
      %v383 = vld [vmem:[#allocation2 + $0x48] sm:$0xff]
      %394 = vrot.lane.b32.xlu0 %v374, 64
      %v395 = vpop.permute.xlu0 %394
      %396 = vrot.lane.b32.xlu0 %v375, 64
      %v397 = vpop.permute.xlu0 %396
      %398 = vrot.lane.b32.xlu0 %v376, 64
      %v399 = vpop.permute.xlu0 %398
      %400 = vrot.lane.b32.xlu0 %v377, 64
      %v401 = vpop.permute.xlu0 %400
      %402 = vrot.lane.b32.xlu0 %v378, 64
      %v403 = vpop.permute.xlu0 %402
      %404 = vrot.lane.b32.xlu0 %v379, 64
      %v405 = vpop.permute.xlu0 %404
      %406 = vrot.lane.b32.xlu0 %v380, 64
      %v407 = vpop.permute.xlu0 %406
      %408 = vrot.lane.b32.xlu0 %v381, 64
      %v409 = vpop.permute.xlu0 %408
      %410 = vrot.lane.b32.xlu0 %v382, 64
      %v411 = vpop.permute.xlu0 %410
      %412 = vrot.lane.b32.xlu0 %v383, 64
      %v413 = vpop.permute.xlu0 %412
      %vm424 = vcmask 1048064
      %425 = vst.msk [vmem:[#allocation3] sm:$0xff] %vm424, %v395
      %426 = vst.msk [vmem:[#allocation3 + $0x10] sm:$0xff] %vm424, %v397
      %427 = vst.msk [vmem:[#allocation3 + $0x20] sm:$0xff] %vm424, %v399
      %428 = vst.msk [vmem:[#allocation3 + $0x30] sm:$0xff] %vm424, %v401
      %429 = vst.msk [vmem:[#allocation3 + $0x40] sm:$0xff] %vm424, %v403
      %430 = vst.msk [vmem:[#allocation3 + $0x50] sm:$0xff] %vm424, %v405
      %431 = vst.msk [vmem:[#allocation3 + $0x60] sm:$0xff] %vm424, %v407
      %432 = vst.msk [vmem:[#allocation3 + $0x70] sm:$0xff] %vm424, %v409
      %433 = vst.msk [vmem:[#allocation3 + $0x80] sm:$0xff] %vm424, %v411
      %434 = vst.msk [vmem:[#allocation3 + $0x90] sm:$0xff] %vm424, %v413
      %vm435 = vcmask 516096
      %vm436 = vsmask.f32 256
      %vm437 = vmand %vm435, %vm436
      %v438 = vld [vmem:[#allocation3] sm:$0x1]
      %v439 = vsel %vm437, 0, %v438
      %440 = vst [vmem:[#allocation3] sm:$0x1] %v439
      %v441 = vld [vmem:[#allocation3 + $0x10] sm:$0x1]
      %v442 = vsel %vm437, 0, %v441
      %443 = vst [vmem:[#allocation3 + $0x10] sm:$0x1] %v442
      %v444 = vld [vmem:[#allocation3 + $0x20] sm:$0x1]
      %v445 = vsel %vm437, 0, %v444
      %446 = vst [vmem:[#allocation3 + $0x20] sm:$0x1] %v445
      %v447 = vld [vmem:[#allocation3 + $0x30] sm:$0x1]
      %v448 = vsel %vm437, 0, %v447
      %449 = vst [vmem:[#allocation3 + $0x30] sm:$0x1] %v448
      %v450 = vld [vmem:[#allocation3 + $0x40] sm:$0x1]
      %v451 = vsel %vm437, 0, %v450
      %452 = vst [vmem:[#allocation3 + $0x40] sm:$0x1] %v451
      %v453 = vld [vmem:[#allocation3 + $0x50] sm:$0x1]
      %v454 = vsel %vm437, 0, %v453
      %455 = vst [vmem:[#allocation3 + $0x50] sm:$0x1] %v454
      %v456 = vld [vmem:[#allocation3 + $0x60] sm:$0x1]
      %v457 = vsel %vm437, 0, %v456
      %458 = vst [vmem:[#allocation3 + $0x60] sm:$0x1] %v457
      %v459 = vld [vmem:[#allocation3 + $0x70] sm:$0x1]
      %v460 = vsel %vm437, 0, %v459
      %461 = vst [vmem:[#allocation3 + $0x70] sm:$0x1] %v460
      %v462 = vld [vmem:[#allocation3 + $0x80] sm:$0x1]
      %v463 = vsel %vm437, 0, %v462
      %464 = vst [vmem:[#allocation3 + $0x80] sm:$0x1] %v463
      %v465 = vld [vmem:[#allocation3 + $0x90] sm:$0x1]
      %v466 = vsel %vm437, 0, %v465
      %467 = vst [vmem:[#allocation3 + $0x90] sm:$0x1] %v466
      %v468 = vld [vmem:[#allocation2] sm:$0xff]
      %v469 = vld [vmem:[#allocation2 + $0x8] sm:$0xff]
      %v470 = vld [vmem:[#allocation2 + $0x10] sm:$0xff]
      %v471 = vld [vmem:[#allocation2 + $0x18] sm:$0xff]
      %v472 = vld [vmem:[#allocation2 + $0x20] sm:$0xff]
      %v473 = vld [vmem:[#allocation2 + $0x28] sm:$0xff]
      %v474 = vld [vmem:[#allocation2 + $0x30] sm:$0xff]
      %v475 = vld [vmem:[#allocation2 + $0x38] sm:$0xff]
      %v476 = vld [vmem:[#allocation2 + $0x40] sm:$0xff]
      %v477 = vld [vmem:[#allocation2 + $0x48] sm:$0xff]
      %v479 = vshrl.u32 %v468, 16
      %v481 = vrot.slane %v479, 7
      %v482 = vshll.u32 %v468, 16
      %v484 = vor.u32 %v481, %v482
      %v486 = vshrl.u32 %v469, 16
      %v488 = vrot.slane %v486, 7
      %v489 = vshll.u32 %v469, 16
      %v491 = vor.u32 %v488, %v489
      %v493 = vshrl.u32 %v470, 16
      %v495 = vrot.slane %v493, 7
      %v496 = vshll.u32 %v470, 16
      %v498 = vor.u32 %v495, %v496
      %v500 = vshrl.u32 %v471, 16
      %v502 = vrot.slane %v500, 7
      %v503 = vshll.u32 %v471, 16
      %v505 = vor.u32 %v502, %v503
      %v507 = vshrl.u32 %v472, 16
      %v509 = vrot.slane %v507, 7
      %v510 = vshll.u32 %v472, 16
      %v512 = vor.u32 %v509, %v510
      %v514 = vshrl.u32 %v473, 16
      %v516 = vrot.slane %v514, 7
      %v517 = vshll.u32 %v473, 16
      %v519 = vor.u32 %v516, %v517
      %v521 = vshrl.u32 %v474, 16
      %v523 = vrot.slane %v521, 7
      %v524 = vshll.u32 %v474, 16
      %v526 = vor.u32 %v523, %v524
      %v528 = vshrl.u32 %v475, 16
      %v530 = vrot.slane %v528, 7
      %v531 = vshll.u32 %v475, 16
      %v533 = vor.u32 %v530, %v531
      %v535 = vshrl.u32 %v476, 16
      %v537 = vrot.slane %v535, 7
      %v538 = vshll.u32 %v476, 16
      %v540 = vor.u32 %v537, %v538
      %v542 = vshrl.u32 %v477, 16
      %v544 = vrot.slane %v542, 7
      %v545 = vshll.u32 %v477, 16
      %v547 = vor.u32 %v544, %v545
      %vm558 = vcmask 523264
      %vm559 = vsmask.f32 7938
      %vm560 = vmand %vm558, %vm559
      %v561 = vld [vmem:[#allocation3] sm:$0xff]
      %v562 = vsel %vm560, %v484, %v561
      %563 = vst [vmem:[#allocation3] sm:$0xff] %v562
      %v564 = vld [vmem:[#allocation3 + $0x10] sm:$0xff]
      %v565 = vsel %vm560, %v491, %v564
      %566 = vst [vmem:[#allocation3 + $0x10] sm:$0xff] %v565
      %v567 = vld [vmem:[#allocation3 + $0x20] sm:$0xff]
      %v568 = vsel %vm560, %v498, %v567
      %569 = vst [vmem:[#allocation3 + $0x20] sm:$0xff] %v568
      %v570 = vld [vmem:[#allocation3 + $0x30] sm:$0xff]
      %v571 = vsel %vm560, %v505, %v570
      %572 = vst [vmem:[#allocation3 + $0x30] sm:$0xff] %v571
      %v573 = vld [vmem:[#allocation3 + $0x40] sm:$0xff]
      %v574 = vsel %vm560, %v512, %v573
      %575 = vst [vmem:[#allocation3 + $0x40] sm:$0xff] %v574
      %v576 = vld [vmem:[#allocation3 + $0x50] sm:$0xff]
      %v577 = vsel %vm560, %v519, %v576
      %578 = vst [vmem:[#allocation3 + $0x50] sm:$0xff] %v577
      %v579 = vld [vmem:[#allocation3 + $0x60] sm:$0xff]
      %v580 = vsel %vm560, %v526, %v579
      %581 = vst [vmem:[#allocation3 + $0x60] sm:$0xff] %v580
      %v582 = vld [vmem:[#allocation3 + $0x70] sm:$0xff]
      %v583 = vsel %vm560, %v533, %v582
      %584 = vst [vmem:[#allocation3 + $0x70] sm:$0xff] %v583
      %v585 = vld [vmem:[#allocation3 + $0x80] sm:$0xff]
      %v586 = vsel %vm560, %v540, %v585
      %587 = vst [vmem:[#allocation3 + $0x80] sm:$0xff] %v586
      %v588 = vld [vmem:[#allocation3 + $0x90] sm:$0xff]
      %v589 = vsel %vm560, %v547, %v588
      %590 = vst [vmem:[#allocation3 + $0x90] sm:$0xff] %v589
      %v591 = vld [vmem:[#allocation2] sm:$0xff]
      %v592 = vld [vmem:[#allocation2 + $0x8] sm:$0xff]
      %v593 = vld [vmem:[#allocation2 + $0x10] sm:$0xff]
      %v594 = vld [vmem:[#allocation2 + $0x18] sm:$0xff]
      %v595 = vld [vmem:[#allocation2 + $0x20] sm:$0xff]
      %v596 = vld [vmem:[#allocation2 + $0x28] sm:$0xff]
      %v597 = vld [vmem:[#allocation2 + $0x30] sm:$0xff]
      %v598 = vld [vmem:[#allocation2 + $0x38] sm:$0xff]
      %v599 = vld [vmem:[#allocation2 + $0x40] sm:$0xff]
      %v600 = vld [vmem:[#allocation2 + $0x48] sm:$0xff]
      %v602 = vshrl.u32 %v591, 16
      %v604 = vshll.u32 %v591, 16
      %v606 = vrot.slane %v604, 1
      %v607 = vor.u32 %v602, %v606
      %v609 = vshrl.u32 %v592, 16
      %v611 = vshll.u32 %v592, 16
      %v613 = vrot.slane %v611, 1
      %v614 = vor.u32 %v609, %v613
      %v616 = vshrl.u32 %v593, 16
      %v618 = vshll.u32 %v593, 16
      %v620 = vrot.slane %v618, 1
      %v621 = vor.u32 %v616, %v620
      %v623 = vshrl.u32 %v594, 16
      %v625 = vshll.u32 %v594, 16
      %v627 = vrot.slane %v625, 1
      %v628 = vor.u32 %v623, %v627
      %v630 = vshrl.u32 %v595, 16
      %v632 = vshll.u32 %v595, 16
      %v634 = vrot.slane %v632, 1
      %v635 = vor.u32 %v630, %v634
      %v637 = vshrl.u32 %v596, 16
      %v639 = vshll.u32 %v596, 16
      %v641 = vrot.slane %v639, 1
      %v642 = vor.u32 %v637, %v641
      %v644 = vshrl.u32 %v597, 16
      %v646 = vshll.u32 %v597, 16
      %v648 = vrot.slane %v646, 1
      %v649 = vor.u32 %v644, %v648
      %v651 = vshrl.u32 %v598, 16
      %v653 = vshll.u32 %v598, 16
      %v655 = vrot.slane %v653, 1
      %v656 = vor.u32 %v651, %v655
      %v658 = vshrl.u32 %v599, 16
      %v660 = vshll.u32 %v599, 16
      %v662 = vrot.slane %v660, 1
      %v663 = vor.u32 %v658, %v662
      %v665 = vshrl.u32 %v600, 16
      %v667 = vshll.u32 %v600, 16
      %v669 = vrot.slane %v667, 1
      %v670 = vor.u32 %v665, %v669
      %vm681 = vsmask.f32 7424
      %vm682 = vmand %vm558, %vm681
      %v683 = vld [vmem:[#allocation3 + $0x8] sm:$0xff]
      %v684 = vsel %vm682, %v607, %v683
      %685 = vst [vmem:[#allocation3 + $0x8] sm:$0xff] %v684
      %v686 = vld [vmem:[#allocation3 + $0x18] sm:$0xff]
      %v687 = vsel %vm682, %v614, %v686
      %688 = vst [vmem:[#allocation3 + $0x18] sm:$0xff] %v687
      %v689 = vld [vmem:[#allocation3 + $0x28] sm:$0xff]
      %v690 = vsel %vm682, %v621, %v689
      %691 = vst [vmem:[#allocation3 + $0x28] sm:$0xff] %v690
      %v692 = vld [vmem:[#allocation3 + $0x38] sm:$0xff]
      %v693 = vsel %vm682, %v628, %v692
      %694 = vst [vmem:[#allocation3 + $0x38] sm:$0xff] %v693
      %v695 = vld [vmem:[#allocation3 + $0x48] sm:$0xff]
      %v696 = vsel %vm682, %v635, %v695
      %697 = vst [vmem:[#allocation3 + $0x48] sm:$0xff] %v696
      %v698 = vld [vmem:[#allocation3 + $0x58] sm:$0xff]
      %v699 = vsel %vm682, %v642, %v698
      %700 = vst [vmem:[#allocation3 + $0x58] sm:$0xff] %v699
      %v701 = vld [vmem:[#allocation3 + $0x68] sm:$0xff]
      %v702 = vsel %vm682, %v649, %v701
      %703 = vst [vmem:[#allocation3 + $0x68] sm:$0xff] %v702
      %v704 = vld [vmem:[#allocation3 + $0x78] sm:$0xff]
      %v705 = vsel %vm682, %v656, %v704
      %706 = vst [vmem:[#allocation3 + $0x78] sm:$0xff] %v705
      %v707 = vld [vmem:[#allocation3 + $0x88] sm:$0xff]
      %v708 = vsel %vm682, %v663, %v707
      %709 = vst [vmem:[#allocation3 + $0x88] sm:$0xff] %v708
      %v710 = vld [vmem:[#allocation3 + $0x98] sm:$0xff]
      %v711 = vsel %vm682, %v670, %v710
      %712 = vst [vmem:[#allocation3 + $0x98] sm:$0xff] %v711
      %vm713 = vcmask 523271
      %vm714 = vsmask.f32 7966
      %vm715 = vmand %vm713, %vm714
      %v716 = vld [vmem:[#allocation3 + $0x8] sm:$0x80]
      %v717 = vsel %vm715, 0, %v716
      %718 = vst [vmem:[#allocation3 + $0x8] sm:$0x80] %v717
      %v719 = vld [vmem:[#allocation3 + $0x18] sm:$0x80]
      %v720 = vsel %vm715, 0, %v719
      %721 = vst [vmem:[#allocation3 + $0x18] sm:$0x80] %v720
      %v722 = vld [vmem:[#allocation3 + $0x28] sm:$0x80]
      %v723 = vsel %vm715, 0, %v722
      %724 = vst [vmem:[#allocation3 + $0x28] sm:$0x80] %v723
      %v725 = vld [vmem:[#allocation3 + $0x38] sm:$0x80]
      %v726 = vsel %vm715, 0, %v725
      %727 = vst [vmem:[#allocation3 + $0x38] sm:$0x80] %v726
      %v728 = vld [vmem:[#allocation3 + $0x48] sm:$0x80]
      %v729 = vsel %vm715, 0, %v728
      %730 = vst [vmem:[#allocation3 + $0x48] sm:$0x80] %v729
      %v731 = vld [vmem:[#allocation3 + $0x58] sm:$0x80]
      %v732 = vsel %vm715, 0, %v731
      %733 = vst [vmem:[#allocation3 + $0x58] sm:$0x80] %v732
      %v734 = vld [vmem:[#allocation3 + $0x68] sm:$0x80]
      %v735 = vsel %vm715, 0, %v734
      %736 = vst [vmem:[#allocation3 + $0x68] sm:$0x80] %v735
      %v737 = vld [vmem:[#allocation3 + $0x78] sm:$0x80]
      %v738 = vsel %vm715, 0, %v737
      %739 = vst [vmem:[#allocation3 + $0x78] sm:$0x80] %v738
      %v740 = vld [vmem:[#allocation3 + $0x88] sm:$0x80]
      %v741 = vsel %vm715, 0, %v740
      %742 = vst [vmem:[#allocation3 + $0x88] sm:$0x80] %v741
      %v743 = vld [vmem:[#allocation3 + $0x98] sm:$0x80]
      %v744 = vsel %vm715, 0, %v743
      %745 = vst [vmem:[#allocation3 + $0x98] sm:$0x80] %v744
      %v746 = vld [vmem:[#allocation3] sm:$0xff]
      %v747 = vld [vmem:[#allocation3 + $0x8] sm:$0xff]
      %v748 = vld [vmem:[#allocation3 + $0x10] sm:$0xff]
      %v749 = vld [vmem:[#allocation3 + $0x18] sm:$0xff]
      %v750 = vld [vmem:[#allocation3 + $0x20] sm:$0xff]
      %v751 = vld [vmem:[#allocation3 + $0x28] sm:$0xff]
      %v752 = vld [vmem:[#allocation3 + $0x30] sm:$0xff]
      %v753 = vld [vmem:[#allocation3 + $0x38] sm:$0xff]
      %v754 = vld [vmem:[#allocation3 + $0x40] sm:$0xff]
      %v755 = vld [vmem:[#allocation3 + $0x48] sm:$0xff]
      %v756 = vld [vmem:[#allocation3 + $0x50] sm:$0xff]
      %v757 = vld [vmem:[#allocation3 + $0x58] sm:$0xff]
      %v758 = vld [vmem:[#allocation3 + $0x60] sm:$0xff]
      %v759 = vld [vmem:[#allocation3 + $0x68] sm:$0xff]
      %v760 = vld [vmem:[#allocation3 + $0x70] sm:$0xff]
      %v761 = vld [vmem:[#allocation3 + $0x78] sm:$0xff]
      %v762 = vld [vmem:[%s2] sm:$0xf]
      %v763 = vld [vmem:[%s2 + $0x4] sm:$0xf]
      %v764 = vld [vmem:[%s2 + $0x8] sm:$0xf]
      %v765 = vld [vmem:[%s2 + $0xc] sm:$0xf]
      %v766 = vld [vmem:[%s2 + $0x10] sm:$0xf]
      %v767 = vld [vmem:[%s2 + $0x14] sm:$0xf]
      %v768 = vld [vmem:[%s2 + $0x18] sm:$0xf]
      %v769 = vld [vmem:[%s2 + $0x1c] sm:$0xf]
      %v770 = vld [vmem:[%s2 + $0x20] sm:$0xf]
      %v771 = vld [vmem:[%s2 + $0x24] sm:$0xf]
      %v772 = vld [vmem:[%s2 + $0x28] sm:$0xf]
      %v773 = vld [vmem:[%s2 + $0x2c] sm:$0xf]
      %v774 = vld [vmem:[%s2 + $0x30] sm:$0xf]
      %v775 = vld [vmem:[%s2 + $0x34] sm:$0xf]
      %v776 = vld [vmem:[%s2 + $0x38] sm:$0xf]
      %v777 = vld [vmem:[%s2 + $0x3c] sm:$0xf]
      %v778 = vld [vmem:[%s2 + $0x40] sm:$0xf]
      %v779 = vld [vmem:[%s2 + $0x44] sm:$0xf]
      %v780 = vld [vmem:[%s2 + $0x48] sm:$0xf]
      %v781 = vld [vmem:[%s2 + $0x4c] sm:$0xf]
      %v782 = vld [vmem:[%s2 + $0x50] sm:$0xf]
      %v783 = vld [vmem:[%s2 + $0x54] sm:$0xf]
      %v784 = vld [vmem:[%s2 + $0x58] sm:$0xf]
      %v785 = vld [vmem:[%s2 + $0x5c] sm:$0xf]
      %s786 = scalar_lea.vmem [#allocation3], 16
      %v787 = vld [vmem:[%s786] sm:$0xff]
      %v788 = vld [vmem:[%s786 + $0x8] sm:$0xff]
      %v789 = vld [vmem:[%s786 + $0x10] sm:$0xff]
      %v790 = vld [vmem:[%s786 + $0x18] sm:$0xff]
      %v791 = vld [vmem:[%s786 + $0x20] sm:$0xff]
      %v792 = vld [vmem:[%s786 + $0x28] sm:$0xff]
      %v793 = vld [vmem:[%s786 + $0x30] sm:$0xff]
      %v794 = vld [vmem:[%s786 + $0x38] sm:$0xff]
      %v795 = vld [vmem:[%s786 + $0x40] sm:$0xff]
      %v796 = vld [vmem:[%s786 + $0x48] sm:$0xff]
      %v797 = vld [vmem:[%s786 + $0x50] sm:$0xff]
      %v798 = vld [vmem:[%s786 + $0x58] sm:$0xff]
      %v799 = vld [vmem:[%s786 + $0x60] sm:$0xff]
      %v800 = vld [vmem:[%s786 + $0x68] sm:$0xff]
      %v801 = vld [vmem:[%s786 + $0x70] sm:$0xff]
      %v802 = vld [vmem:[%s786 + $0x78] sm:$0xff]
      %s803 = scalar_lea.vmem %s2, 96
      %v804 = vld [vmem:[%s803] sm:$0xf]
      %v805 = vld [vmem:[%s803 + $0x4] sm:$0xf]
      %v806 = vld [vmem:[%s803 + $0x8] sm:$0xf]
      %v807 = vld [vmem:[%s803 + $0xc] sm:$0xf]
      %v808 = vld [vmem:[%s803 + $0x10] sm:$0xf]
      %v809 = vld [vmem:[%s803 + $0x14] sm:$0xf]
      %v810 = vld [vmem:[%s803 + $0x18] sm:$0xf]
      %v811 = vld [vmem:[%s803 + $0x1c] sm:$0xf]
      %v812 = vld [vmem:[%s803 + $0x20] sm:$0xf]
      %v813 = vld [vmem:[%s803 + $0x24] sm:$0xf]
      %v814 = vld [vmem:[%s803 + $0x28] sm:$0xf]
      %v815 = vld [vmem:[%s803 + $0x2c] sm:$0xf]
      %v816 = vld [vmem:[%s803 + $0x30] sm:$0xf]
      %v817 = vld [vmem:[%s803 + $0x34] sm:$0xf]
      %v818 = vld [vmem:[%s803 + $0x38] sm:$0xf]
      %v819 = vld [vmem:[%s803 + $0x3c] sm:$0xf]
      %v820 = vld [vmem:[%s803 + $0x40] sm:$0xf]
      %v821 = vld [vmem:[%s803 + $0x44] sm:$0xf]
      %v822 = vld [vmem:[%s803 + $0x48] sm:$0xf]
      %v823 = vld [vmem:[%s803 + $0x4c] sm:$0xf]
      %v824 = vld [vmem:[%s803 + $0x50] sm:$0xf]
      %v825 = vld [vmem:[%s803 + $0x54] sm:$0xf]
      %v826 = vld [vmem:[%s803 + $0x58] sm:$0xf]
      %v827 = vld [vmem:[%s803 + $0x5c] sm:$0xf]
      %v852 = vunpack.c.l.b16 %v804
      %v853 = vunpack.c.l.b16 %v805
      %v854 = vunpack.c.l.b16 %v806
      %v855 = vunpack.c.l.b16 %v807
      %v856 = vunpack.c.l.b16 %v808
      %v857 = vunpack.c.l.b16 %v809
      %v858 = vunpack.c.l.b16 %v810
      %v859 = vunpack.c.l.b16 %v811
      %v860 = vunpack.c.l.b16 %v812
      %v861 = vunpack.c.l.b16 %v813
      %v862 = vunpack.c.l.b16 %v814
      %v863 = vunpack.c.l.b16 %v815
      %v864 = vunpack.c.l.b16 %v816
      %v865 = vunpack.c.l.b16 %v817
      %v866 = vunpack.c.l.b16 %v818
      %v867 = vunpack.c.l.b16 %v819
      %v868 = vunpack.c.l.b16 %v820
      %v869 = vunpack.c.l.b16 %v821
      %v870 = vunpack.c.l.b16 %v822
      %v871 = vunpack.c.l.b16 %v823
      %v872 = vunpack.c.l.b16 %v824
      %v873 = vunpack.c.l.b16 %v825
      %v874 = vunpack.c.l.b16 %v826
      %v875 = vunpack.c.l.b16 %v827
      %v876 = vpack.c.b16 %v853, %v852
      %v877 = vpack.c.b16 %v855, %v854
      %v878 = vpack.c.b16 %v857, %v856
      %v879 = vpack.c.b16 %v859, %v858
      %v880 = vpack.c.b16 %v861, %v860
      %v881 = vpack.c.b16 %v863, %v862
      %v882 = vpack.c.b16 %v865, %v864
      %v883 = vpack.c.b16 %v867, %v866
      %v884 = vpack.c.b16 %v869, %v868
      %v885 = vpack.c.b16 %v871, %v870
      %v886 = vpack.c.b16 %v873, %v872
      %v887 = vpack.c.b16 %v875, %v874
      %v901 = vsel %vm288, %v788, 0
      %v904 = vsel %vm288, %v790, 0
      %v907 = vsel %vm288, %v792, 0
      %v910 = vsel %vm288, %v794, 0
      %v913 = vsel %vm288, %v796, 0
      %v916 = vsel %vm288, %v798, 0
      %v919 = vsel %vm288, %v800, 0
      %v922 = vsel %vm288, %v802, 0
      %924 = vmatprep.subr.bf16.mxu0 0
      %925 = vmatpush1.bf16.msra.mxu0 %v876
      %926 = vmatprep.subr.bf16.mxu0 0
      %927 = vmatpush1.bf16.msra.mxu0 %v877
      %928 = vmatprep.subr.bf16.mxu0 0
      %929 = vmatpush1.bf16.msra.mxu0 %v878
      %930 = vmatprep.subr.bf16.mxu0 0
      %931 = vmatpush1.bf16.msra.mxu0 %v879
      %932 = vmatprep.subr.bf16.mxu0 0
      %933 = vmatpush1.bf16.msra.mxu0 %v880
      %934 = vmatprep.subr.bf16.mxu0 0
      %935 = vmatpush1.bf16.msra.mxu0 %v881
      %936 = vmatprep.subr.bf16.mxu0 0
      %937 = vmatpush1.bf16.msra.mxu0 %v882
      %938 = vmatprep.subr.bf16.mxu0 0
      %939 = vmatpush1.bf16.msra.mxu0 %v883
      %940 = vmatprep.subr.bf16.mxu0 0
      %941 = vmatpush1.bf16.msra.mxu0 %v884
      %942 = vmatprep.subr.bf16.mxu0 0
      %943 = vmatpush1.bf16.msra.mxu0 %v885
      %944 = vmatprep.subr.bf16.mxu0 0
      %945 = vmatpush1.bf16.msra.mxu0 %v886
      %946 = vmatprep.subr.bf16.mxu0 0
      %947 = vmatpush1.bf16.msra.mxu0 %v887
      %948 = vmatprep.subr.bf16.mxu0 0
      %949 = vmatpush1.bf16.msra.mxu0 0
      %950 = vmatprep.subr.bf16.mxu0 0
      %951 = vmatpush1.bf16.msra.mxu0 0
      %952 = vmatprep.subr.bf16.mxu0 0
      %953 = vmatpush1.bf16.msra.mxu0 0
      %954 = vmatprep.subr.bf16.mxu0 0
      %955 = vmatpush1.bf16.msra.mxu0 0
      %956 = vmatprep.mubr.bf16.mxu0 %v901
      %957 = vmatmul.mubr.bf16.gmra.mrb[0].mxu0 %v787
      %v958 = vpop.f32.mrb[0].mxu0
      %v959 = vadd.f32 0.0, %v958
      %v960 = vpop.f32.mrb[0].mxu0
      %v961 = vpop.f32.mrb[0].mxu0
      %v962 = vadd.f32 0.0, %v961
      %v963 = vpop.f32.mrb[0].mxu0
      %964 = vmatprep.mubr.bf16.mxu0 %v904
      %965 = vmatmul.mubr.bf16.gmra.mrb[0].mxu0 %v789
      %v966 = vpop.f32.mrb[0].mxu0
      %v967 = vadd.f32 0.0, %v966
      %v968 = vpop.f32.mrb[0].mxu0
      %v969 = vpop.f32.mrb[0].mxu0
      %v970 = vadd.f32 0.0, %v969
      %v971 = vpop.f32.mrb[0].mxu0
      %972 = vmatprep.mubr.bf16.mxu0 %v907
      %973 = vmatmul.mubr.bf16.gmra.mrb[0].mxu0 %v791
      %v974 = vpop.f32.mrb[0].mxu0
      %v975 = vadd.f32 0.0, %v974
      %v976 = vpop.f32.mrb[0].mxu0
      %v977 = vpop.f32.mrb[0].mxu0
      %v978 = vadd.f32 0.0, %v977
      %v979 = vpop.f32.mrb[0].mxu0
      %980 = vmatprep.mubr.bf16.mxu0 %v910
      %981 = vmatmul.mubr.bf16.gmra.mrb[0].mxu0 %v793
      %v982 = vpop.f32.mrb[0].mxu0
      %v983 = vadd.f32 0.0, %v982
      %v984 = vpop.f32.mrb[0].mxu0
      %v985 = vpop.f32.mrb[0].mxu0
      %v986 = vadd.f32 0.0, %v985
      %v987 = vpop.f32.mrb[0].mxu0
      %988 = vmatprep.mubr.bf16.mxu0 %v913
      %989 = vmatmul.mubr.bf16.gmra.mrb[0].mxu0 %v795
      %v990 = vpop.f32.mrb[0].mxu0
      %v991 = vadd.f32 0.0, %v990
      %v992 = vpop.f32.mrb[0].mxu0
      %v993 = vpop.f32.mrb[0].mxu0
      %v994 = vadd.f32 0.0, %v993
      %v995 = vpop.f32.mrb[0].mxu0
      %996 = vmatprep.mubr.bf16.mxu0 %v916
      %997 = vmatmul.mubr.bf16.gmra.mrb[0].mxu0 %v797
      %v998 = vpop.f32.mrb[0].mxu0
      %v999 = vadd.f32 0.0, %v998
      %v1000 = vpop.f32.mrb[0].mxu0
      %v1001 = vpop.f32.mrb[0].mxu0
      %v1002 = vadd.f32 0.0, %v1001
      %v1003 = vpop.f32.mrb[0].mxu0
      %1004 = vmatprep.mubr.bf16.mxu0 %v919
      %1005 = vmatmul.mubr.bf16.gmra.mrb[0].mxu0 %v799
      %v1006 = vpop.f32.mrb[0].mxu0
      %v1007 = vadd.f32 0.0, %v1006
      %v1008 = vpop.f32.mrb[0].mxu0
      %v1009 = vpop.f32.mrb[0].mxu0
      %v1010 = vadd.f32 0.0, %v1009
      %v1011 = vpop.f32.mrb[0].mxu0
      %1012 = vmatprep.mubr.bf16.mxu0 %v922
      %1013 = vmatmul.mubr.bf16.gmra.mrb[0].mxu0 %v801
      %v1014 = vpop.f32.mrb[0].mxu0
      %v1015 = vadd.f32 0.0, %v1014
      %v1016 = vpop.f32.mrb[0].mxu0
      %v1017 = vpop.f32.mrb[0].mxu0
      %v1018 = vadd.f32 0.0, %v1017
      %v1019 = vpop.f32.mrb[0].mxu0
      %1020 = vdwg.mxu0
      %v1045 = vunpack.c.l.b16 %v762
      %v1046 = vunpack.c.l.b16 %v763
      %v1047 = vunpack.c.l.b16 %v764
      %v1048 = vunpack.c.l.b16 %v765
      %v1049 = vunpack.c.l.b16 %v766
      %v1050 = vunpack.c.l.b16 %v767
      %v1051 = vunpack.c.l.b16 %v768
      %v1052 = vunpack.c.l.b16 %v769
      %v1053 = vunpack.c.l.b16 %v770
      %v1054 = vunpack.c.l.b16 %v771
      %v1055 = vunpack.c.l.b16 %v772
      %v1056 = vunpack.c.l.b16 %v773
      %v1057 = vunpack.c.l.b16 %v774
      %v1058 = vunpack.c.l.b16 %v775
      %v1059 = vunpack.c.l.b16 %v776
      %v1060 = vunpack.c.l.b16 %v777
      %v1061 = vunpack.c.l.b16 %v778
      %v1062 = vunpack.c.l.b16 %v779
      %v1063 = vunpack.c.l.b16 %v780
      %v1064 = vunpack.c.l.b16 %v781
      %v1065 = vunpack.c.l.b16 %v782
      %v1066 = vunpack.c.l.b16 %v783
      %v1067 = vunpack.c.l.b16 %v784
      %v1068 = vunpack.c.l.b16 %v785
      %v1069 = vpack.c.b16 %v1046, %v1045
      %v1070 = vpack.c.b16 %v1048, %v1047
      %v1071 = vpack.c.b16 %v1050, %v1049
      %v1072 = vpack.c.b16 %v1052, %v1051
      %v1073 = vpack.c.b16 %v1054, %v1053
      %v1074 = vpack.c.b16 %v1056, %v1055
      %v1075 = vpack.c.b16 %v1058, %v1057
      %v1076 = vpack.c.b16 %v1060, %v1059
      %v1077 = vpack.c.b16 %v1062, %v1061
      %v1078 = vpack.c.b16 %v1064, %v1063
      %v1079 = vpack.c.b16 %v1066, %v1065
      %v1080 = vpack.c.b16 %v1068, %v1067
      %v1094 = vsel %vm288, %v747, 0
      %v1097 = vsel %vm288, %v749, 0
      %v1100 = vsel %vm288, %v751, 0
      %v1103 = vsel %vm288, %v753, 0
      %v1106 = vsel %vm288, %v755, 0
      %v1109 = vsel %vm288, %v757, 0
      %v1112 = vsel %vm288, %v759, 0
      %v1115 = vsel %vm288, %v761, 0
      %1117 = vmatprep.subr.bf16.mxu0 0
      %1118 = vmatpush1.bf16.msra.mxu0 %v1069
      %1119 = vmatprep.subr.bf16.mxu0 0
      %1120 = vmatpush1.bf16.msra.mxu0 %v1070
      %1121 = vmatprep.subr.bf16.mxu0 0
      %1122 = vmatpush1.bf16.msra.mxu0 %v1071
      %1123 = vmatprep.subr.bf16.mxu0 0
      %1124 = vmatpush1.bf16.msra.mxu0 %v1072
      %1125 = vmatprep.subr.bf16.mxu0 0
      %1126 = vmatpush1.bf16.msra.mxu0 %v1073
      %1127 = vmatprep.subr.bf16.mxu0 0
      %1128 = vmatpush1.bf16.msra.mxu0 %v1074
      %1129 = vmatprep.subr.bf16.mxu0 0
      %1130 = vmatpush1.bf16.msra.mxu0 %v1075
      %1131 = vmatprep.subr.bf16.mxu0 0
      %1132 = vmatpush1.bf16.msra.mxu0 %v1076
      %1133 = vmatprep.subr.bf16.mxu0 0
      %1134 = vmatpush1.bf16.msra.mxu0 %v1077
      %1135 = vmatprep.subr.bf16.mxu0 0
      %1136 = vmatpush1.bf16.msra.mxu0 %v1078
      %1137 = vmatprep.subr.bf16.mxu0 0
      %1138 = vmatpush1.bf16.msra.mxu0 %v1079
      %1139 = vmatprep.subr.bf16.mxu0 0
      %1140 = vmatpush1.bf16.msra.mxu0 %v1080
      %1141 = vmatprep.subr.bf16.mxu0 0
      %1142 = vmatpush1.bf16.msra.mxu0 0
      %1143 = vmatprep.subr.bf16.mxu0 0
      %1144 = vmatpush1.bf16.msra.mxu0 0
      %1145 = vmatprep.subr.bf16.mxu0 0
      %1146 = vmatpush1.bf16.msra.mxu0 0
      %1147 = vmatprep.subr.bf16.mxu0 0
      %1148 = vmatpush1.bf16.msra.mxu0 0
      %1149 = vmatprep.mubr.bf16.mxu0 %v1094
      %1150 = vmatmul.mubr.bf16.gmra.mrb[0].mxu0 %v746
      %v1151 = vpop.f32.mrb[0].mxu0
      %v1152 = vadd.f32 %v959, %v1151
      %v1153 = vpop.f32.mrb[0].mxu0
      %v1154 = vpop.f32.mrb[0].mxu0
      %v1155 = vadd.f32 %v962, %v1154
      %v1156 = vpop.f32.mrb[0].mxu0
      %1157 = vmatprep.mubr.bf16.mxu0 %v1097
      %1158 = vmatmul.mubr.bf16.gmra.mrb[0].mxu0 %v748
      %v1159 = vpop.f32.mrb[0].mxu0
      %v1160 = vadd.f32 %v967, %v1159
      %v1161 = vpop.f32.mrb[0].mxu0
      %v1162 = vpop.f32.mrb[0].mxu0
      %v1163 = vadd.f32 %v970, %v1162
      %v1164 = vpop.f32.mrb[0].mxu0
      %1165 = vmatprep.mubr.bf16.mxu0 %v1100
      %1166 = vmatmul.mubr.bf16.gmra.mrb[0].mxu0 %v750
      %v1167 = vpop.f32.mrb[0].mxu0
      %v1168 = vadd.f32 %v975, %v1167
      %v1169 = vpop.f32.mrb[0].mxu0
      %v1170 = vpop.f32.mrb[0].mxu0
      %v1171 = vadd.f32 %v978, %v1170
      %v1172 = vpop.f32.mrb[0].mxu0
      %1173 = vmatprep.mubr.bf16.mxu0 %v1103
      %1174 = vmatmul.mubr.bf16.gmra.mrb[0].mxu0 %v752
      %v1175 = vpop.f32.mrb[0].mxu0
      %v1176 = vadd.f32 %v983, %v1175
      %v1177 = vpop.f32.mrb[0].mxu0
      %v1178 = vpop.f32.mrb[0].mxu0
      %v1179 = vadd.f32 %v986, %v1178
      %v1180 = vpop.f32.mrb[0].mxu0
      %1181 = vmatprep.mubr.bf16.mxu0 %v1106
      %1182 = vmatmul.mubr.bf16.gmra.mrb[0].mxu0 %v754
      %v1183 = vpop.f32.mrb[0].mxu0
      %v1184 = vadd.f32 %v991, %v1183
      %v1185 = vpop.f32.mrb[0].mxu0
      %v1186 = vpop.f32.mrb[0].mxu0
      %v1187 = vadd.f32 %v994, %v1186
      %v1188 = vpop.f32.mrb[0].mxu0
      %1189 = vmatprep.mubr.bf16.mxu0 %v1109
      %1190 = vmatmul.mubr.bf16.gmra.mrb[0].mxu0 %v756
      %v1191 = vpop.f32.mrb[0].mxu0
      %v1192 = vadd.f32 %v999, %v1191
      %v1193 = vpop.f32.mrb[0].mxu0
      %v1194 = vpop.f32.mrb[0].mxu0
      %v1195 = vadd.f32 %v1002, %v1194
      %v1196 = vpop.f32.mrb[0].mxu0
      %1197 = vmatprep.mubr.bf16.mxu0 %v1112
      %1198 = vmatmul.mubr.bf16.gmra.mrb[0].mxu0 %v758
      %v1199 = vpop.f32.mrb[0].mxu0
      %v1200 = vadd.f32 %v1007, %v1199
      %v1201 = vpop.f32.mrb[0].mxu0
      %v1202 = vpop.f32.mrb[0].mxu0
      %v1203 = vadd.f32 %v1010, %v1202
      %v1204 = vpop.f32.mrb[0].mxu0
      %1205 = vmatprep.mubr.bf16.mxu0 %v1115
      %1206 = vmatmul.mubr.bf16.gmra.mrb[0].mxu0 %v760
      %v1207 = vpop.f32.mrb[0].mxu0
      %v1208 = vadd.f32 %v1015, %v1207
      %v1209 = vpop.f32.mrb[0].mxu0
      %v1210 = vpop.f32.mrb[0].mxu0
      %v1211 = vadd.f32 %v1018, %v1210
      %v1212 = vpop.f32.mrb[0].mxu0
      %1213 = vdwg.mxu0
      %s1214 = scalar_lea.vmem [#allocation3], 32
      %v1215 = vld [vmem:[%s1214] sm:$0xff]
      %v1216 = vld [vmem:[%s1214 + $0x8] sm:$0xff]
      %v1217 = vld [vmem:[%s1214 + $0x10] sm:$0xff]
      %v1218 = vld [vmem:[%s1214 + $0x18] sm:$0xff]
      %v1219 = vld [vmem:[%s1214 + $0x20] sm:$0xff]
      %v1220 = vld [vmem:[%s1214 + $0x28] sm:$0xff]
      %v1221 = vld [vmem:[%s1214 + $0x30] sm:$0xff]
      %v1222 = vld [vmem:[%s1214 + $0x38] sm:$0xff]
      %v1223 = vld [vmem:[%s1214 + $0x40] sm:$0xff]
      %v1224 = vld [vmem:[%s1214 + $0x48] sm:$0xff]
      %v1225 = vld [vmem:[%s1214 + $0x50] sm:$0xff]
      %v1226 = vld [vmem:[%s1214 + $0x58] sm:$0xff]
      %v1227 = vld [vmem:[%s1214 + $0x60] sm:$0xff]
      %v1228 = vld [vmem:[%s1214 + $0x68] sm:$0xff]
      %v1229 = vld [vmem:[%s1214 + $0x70] sm:$0xff]
      %v1230 = vld [vmem:[%s1214 + $0x78] sm:$0xff]
      %s1231 = scalar_lea.vmem %s2, 192
      %v1232 = vld [vmem:[%s1231] sm:$0xf]
      %v1233 = vld [vmem:[%s1231 + $0x4] sm:$0xf]
      %v1234 = vld [vmem:[%s1231 + $0x8] sm:$0xf]
      %v1235 = vld [vmem:[%s1231 + $0xc] sm:$0xf]
      %v1236 = vld [vmem:[%s1231 + $0x10] sm:$0xf]
      %v1237 = vld [vmem:[%s1231 + $0x14] sm:$0xf]
      %v1238 = vld [vmem:[%s1231 + $0x18] sm:$0xf]
      %v1239 = vld [vmem:[%s1231 + $0x1c] sm:$0xf]
      %v1240 = vld [vmem:[%s1231 + $0x20] sm:$0xf]
      %v1241 = vld [vmem:[%s1231 + $0x24] sm:$0xf]
      %v1242 = vld [vmem:[%s1231 + $0x28] sm:$0xf]
      %v1243 = vld [vmem:[%s1231 + $0x2c] sm:$0xf]
      %v1244 = vld [vmem:[%s1231 + $0x30] sm:$0xf]
      %v1245 = vld [vmem:[%s1231 + $0x34] sm:$0xf]
      %v1246 = vld [vmem:[%s1231 + $0x38] sm:$0xf]
      %v1247 = vld [vmem:[%s1231 + $0x3c] sm:$0xf]
      %v1248 = vld [vmem:[%s1231 + $0x40] sm:$0xf]
      %v1249 = vld [vmem:[%s1231 + $0x44] sm:$0xf]
      %v1250 = vld [vmem:[%s1231 + $0x48] sm:$0xf]
      %v1251 = vld [vmem:[%s1231 + $0x4c] sm:$0xf]
      %v1252 = vld [vmem:[%s1231 + $0x50] sm:$0xf]
      %v1253 = vld [vmem:[%s1231 + $0x54] sm:$0xf]
      %v1254 = vld [vmem:[%s1231 + $0x58] sm:$0xf]
      %v1255 = vld [vmem:[%s1231 + $0x5c] sm:$0xf]
      %v1280 = vunpack.c.l.b16 %v1232
      %v1281 = vunpack.c.l.b16 %v1233
      %v1282 = vunpack.c.l.b16 %v1234
      %v1283 = vunpack.c.l.b16 %v1235
      %v1284 = vunpack.c.l.b16 %v1236
      %v1285 = vunpack.c.l.b16 %v1237
      %v1286 = vunpack.c.l.b16 %v1238
      %v1287 = vunpack.c.l.b16 %v1239
      %v1288 = vunpack.c.l.b16 %v1240
      %v1289 = vunpack.c.l.b16 %v1241
      %v1290 = vunpack.c.l.b16 %v1242
      %v1291 = vunpack.c.l.b16 %v1243
      %v1292 = vunpack.c.l.b16 %v1244
      %v1293 = vunpack.c.l.b16 %v1245
      %v1294 = vunpack.c.l.b16 %v1246
      %v1295 = vunpack.c.l.b16 %v1247
      %v1296 = vunpack.c.l.b16 %v1248
      %v1297 = vunpack.c.l.b16 %v1249
      %v1298 = vunpack.c.l.b16 %v1250
      %v1299 = vunpack.c.l.b16 %v1251
      %v1300 = vunpack.c.l.b16 %v1252
      %v1301 = vunpack.c.l.b16 %v1253
      %v1302 = vunpack.c.l.b16 %v1254
      %v1303 = vunpack.c.l.b16 %v1255
      %v1304 = vpack.c.b16 %v1281, %v1280
      %v1305 = vpack.c.b16 %v1283, %v1282
      %v1306 = vpack.c.b16 %v1285, %v1284
      %v1307 = vpack.c.b16 %v1287, %v1286
      %v1308 = vpack.c.b16 %v1289, %v1288
      %v1309 = vpack.c.b16 %v1291, %v1290
      %v1310 = vpack.c.b16 %v1293, %v1292
      %v1311 = vpack.c.b16 %v1295, %v1294
      %v1312 = vpack.c.b16 %v1297, %v1296
      %v1313 = vpack.c.b16 %v1299, %v1298
      %v1314 = vpack.c.b16 %v1301, %v1300
      %v1315 = vpack.c.b16 %v1303, %v1302
      %v1329 = vsel %vm288, %v1216, 0
      %v1332 = vsel %vm288, %v1218, 0
      %v1335 = vsel %vm288, %v1220, 0
      %v1338 = vsel %vm288, %v1222, 0
      %v1341 = vsel %vm288, %v1224, 0
      %v1344 = vsel %vm288, %v1226, 0
      %v1347 = vsel %vm288, %v1228, 0
      %v1350 = vsel %vm288, %v1230, 0
      %1352 = vmatprep.subr.bf16.mxu0 0
      %1353 = vmatpush1.bf16.msra.mxu0 %v1304
      %1354 = vmatprep.subr.bf16.mxu0 0
      %1355 = vmatpush1.bf16.msra.mxu0 %v1305
      %1356 = vmatprep.subr.bf16.mxu0 0
      %1357 = vmatpush1.bf16.msra.mxu0 %v1306
      %1358 = vmatprep.subr.bf16.mxu0 0
      %1359 = vmatpush1.bf16.msra.mxu0 %v1307
      %1360 = vmatprep.subr.bf16.mxu0 0
      %1361 = vmatpush1.bf16.msra.mxu0 %v1308
      %1362 = vmatprep.subr.bf16.mxu0 0
      %1363 = vmatpush1.bf16.msra.mxu0 %v1309
      %1364 = vmatprep.subr.bf16.mxu0 0
      %1365 = vmatpush1.bf16.msra.mxu0 %v1310
      %1366 = vmatprep.subr.bf16.mxu0 0
      %1367 = vmatpush1.bf16.msra.mxu0 %v1311
      %1368 = vmatprep.subr.bf16.mxu0 0
      %1369 = vmatpush1.bf16.msra.mxu0 %v1312
      %1370 = vmatprep.subr.bf16.mxu0 0
      %1371 = vmatpush1.bf16.msra.mxu0 %v1313
      %1372 = vmatprep.subr.bf16.mxu0 0
      %1373 = vmatpush1.bf16.msra.mxu0 %v1314
      %1374 = vmatprep.subr.bf16.mxu0 0
      %1375 = vmatpush1.bf16.msra.mxu0 %v1315
      %1376 = vmatprep.subr.bf16.mxu0 0
      %1377 = vmatpush1.bf16.msra.mxu0 0
      %1378 = vmatprep.subr.bf16.mxu0 0
      %1379 = vmatpush1.bf16.msra.mxu0 0
      %1380 = vmatprep.subr.bf16.mxu0 0
      %1381 = vmatpush1.bf16.msra.mxu0 0
      %1382 = vmatprep.subr.bf16.mxu0 0
      %1383 = vmatpush1.bf16.msra.mxu0 0
      %1384 = vmatprep.mubr.bf16.mxu0 %v1329
      %1385 = vmatmul.mubr.bf16.gmra.mrb[0].mxu0 %v1215
      %v1386 = vpop.f32.mrb[0].mxu0
      %v1387 = vadd.f32 0.0, %v1386
      %v1388 = vpop.f32.mrb[0].mxu0
      %v1389 = vpop.f32.mrb[0].mxu0
      %v1390 = vadd.f32 0.0, %v1389
      %v1391 = vpop.f32.mrb[0].mxu0
      %1392 = vmatprep.mubr.bf16.mxu0 %v1332
      %1393 = vmatmul.mubr.bf16.gmra.mrb[0].mxu0 %v1217
      %v1394 = vpop.f32.mrb[0].mxu0
      %v1395 = vadd.f32 0.0, %v1394
      %v1396 = vpop.f32.mrb[0].mxu0
      %v1397 = vpop.f32.mrb[0].mxu0
      %v1398 = vadd.f32 0.0, %v1397
      %v1399 = vpop.f32.mrb[0].mxu0
      %1400 = vmatprep.mubr.bf16.mxu0 %v1335
      %1401 = vmatmul.mubr.bf16.gmra.mrb[0].mxu0 %v1219
      %v1402 = vpop.f32.mrb[0].mxu0
      %v1403 = vadd.f32 0.0, %v1402
      %v1404 = vpop.f32.mrb[0].mxu0
      %v1405 = vpop.f32.mrb[0].mxu0
      %v1406 = vadd.f32 0.0, %v1405
      %v1407 = vpop.f32.mrb[0].mxu0
      %1408 = vmatprep.mubr.bf16.mxu0 %v1338
      %1409 = vmatmul.mubr.bf16.gmra.mrb[0].mxu0 %v1221
      %v1410 = vpop.f32.mrb[0].mxu0
      %v1411 = vadd.f32 0.0, %v1410
      %v1412 = vpop.f32.mrb[0].mxu0
      %v1413 = vpop.f32.mrb[0].mxu0
      %v1414 = vadd.f32 0.0, %v1413
      %v1415 = vpop.f32.mrb[0].mxu0
      %1416 = vmatprep.mubr.bf16.mxu0 %v1341
      %1417 = vmatmul.mubr.bf16.gmra.mrb[0].mxu0 %v1223
      %v1418 = vpop.f32.mrb[0].mxu0
      %v1419 = vadd.f32 0.0, %v1418
      %v1420 = vpop.f32.mrb[0].mxu0
      %v1421 = vpop.f32.mrb[0].mxu0
      %v1422 = vadd.f32 0.0, %v1421
      %v1423 = vpop.f32.mrb[0].mxu0
      %1424 = vmatprep.mubr.bf16.mxu0 %v1344
      %1425 = vmatmul.mubr.bf16.gmra.mrb[0].mxu0 %v1225
      %v1426 = vpop.f32.mrb[0].mxu0
      %v1427 = vadd.f32 0.0, %v1426
      %v1428 = vpop.f32.mrb[0].mxu0
      %v1429 = vpop.f32.mrb[0].mxu0
      %v1430 = vadd.f32 0.0, %v1429
      %v1431 = vpop.f32.mrb[0].mxu0
      %1432 = vmatprep.mubr.bf16.mxu0 %v1347
      %1433 = vmatmul.mubr.bf16.gmra.mrb[0].mxu0 %v1227
      %v1434 = vpop.f32.mrb[0].mxu0
      %v1435 = vadd.f32 0.0, %v1434
      %v1436 = vpop.f32.mrb[0].mxu0
      %v1437 = vpop.f32.mrb[0].mxu0
      %v1438 = vadd.f32 0.0, %v1437
      %v1439 = vpop.f32.mrb[0].mxu0
      %1440 = vmatprep.mubr.bf16.mxu0 %v1350
      %1441 = vmatmul.mubr.bf16.gmra.mrb[0].mxu0 %v1229
      %v1442 = vpop.f32.mrb[0].mxu0
      %v1443 = vadd.f32 0.0, %v1442
      %v1444 = vpop.f32.mrb[0].mxu0
      %v1445 = vpop.f32.mrb[0].mxu0
      %v1446 = vadd.f32 0.0, %v1445
      %v1447 = vpop.f32.mrb[0].mxu0
      %1448 = vdwg.mxu0
      %v1449 = vadd.f32 %v1152, %v1387
      %v1450 = vadd.f32 %v1155, %v1390
      %v1451 = vadd.f32 %v1160, %v1395
      %v1452 = vadd.f32 %v1163, %v1398
      %v1453 = vadd.f32 %v1168, %v1403
      %v1454 = vadd.f32 %v1171, %v1406
      %v1455 = vadd.f32 %v1176, %v1411
      %v1456 = vadd.f32 %v1179, %v1414
      %v1457 = vadd.f32 %v1184, %v1419
      %v1458 = vadd.f32 %v1187, %v1422
      %v1459 = vadd.f32 %v1192, %v1427
      %v1460 = vadd.f32 %v1195, %v1430
      %v1461 = vadd.f32 %v1200, %v1435
      %v1462 = vadd.f32 %v1203, %v1438
      %v1463 = vadd.f32 %v1208, %v1443
      %v1464 = vadd.f32 %v1211, %v1446
      %v1465 = vld [vmem:[%s3] sm:$0x1]
      %v1467 = vlaneseq
      %v1468 = vshrl.u32 %v1467, 7
      %v1469 = vsub.s32 0, %v1468
      %v1470 = vrot.slane %v1465, %v1469
      %v1472 = vadd.f32 %v1449, %v1470
      %v1473 = vadd.f32 %v1450, %v1470
      %v1474 = vadd.f32 %v1451, %v1470
      %v1475 = vadd.f32 %v1452, %v1470
      %v1476 = vadd.f32 %v1453, %v1470
      %v1477 = vadd.f32 %v1454, %v1470
      %v1478 = vadd.f32 %v1455, %v1470
      %v1479 = vadd.f32 %v1456, %v1470
      %v1480 = vadd.f32 %v1457, %v1470
      %v1481 = vadd.f32 %v1458, %v1470
      %v1482 = vadd.f32 %v1459, %v1470
      %v1483 = vadd.f32 %v1460, %v1470
      %v1484 = vadd.f32 %v1461, %v1470
      %v1485 = vadd.f32 %v1462, %v1470
      %v1486 = vadd.f32 %v1463, %v1470
      %v1487 = vadd.f32 %v1464, %v1470
      %v1488 = vmax.f32 %v1472, 0.0
      %v1489 = vmax.f32 %v1473, 0.0
      %v1490 = vmax.f32 %v1474, 0.0
      %v1491 = vmax.f32 %v1475, 0.0
      %v1492 = vmax.f32 %v1476, 0.0
      %v1493 = vmax.f32 %v1477, 0.0
      %v1494 = vmax.f32 %v1478, 0.0
      %v1495 = vmax.f32 %v1479, 0.0
      %v1496 = vmax.f32 %v1480, 0.0
      %v1497 = vmax.f32 %v1481, 0.0
      %v1498 = vmax.f32 %v1482, 0.0
      %v1499 = vmax.f32 %v1483, 0.0
      %v1500 = vmax.f32 %v1484, 0.0
      %v1501 = vmax.f32 %v1485, 0.0
      %v1502 = vmax.f32 %v1486, 0.0
      %v1503 = vmax.f32 %v1487, 0.0
      %v1504 = vmax.f32 %v1488, %v1490
      %v1505 = vmax.f32 %v1489, %v1491
      %v1506 = vmax.f32 %v1492, %v1494
      %v1507 = vmax.f32 %v1493, %v1495
      %v1508 = vmax.f32 %v1496, %v1498
      %v1509 = vmax.f32 %v1497, %v1499
      %v1510 = vmax.f32 %v1500, %v1502
      %v1511 = vmax.f32 %v1501, %v1503
      %1512 = vst.msk [vmem:[#allocation4] sm:$0xff] %vm288, %v1504
      %1513 = vst.msk [vmem:[#allocation4 + $0x8] sm:$0xff] %vm288, %v1505
      %1514 = vst.msk [vmem:[#allocation4 + $0x10] sm:$0xff] %vm288, %v1506
      %1515 = vst.msk [vmem:[#allocation4 + $0x18] sm:$0xff] %vm288, %v1507
      %1516 = vst.msk [vmem:[#allocation4 + $0x20] sm:$0xff] %vm288, %v1508
      %1517 = vst.msk [vmem:[#allocation4 + $0x28] sm:$0xff] %vm288, %v1509
      %1518 = vst.msk [vmem:[#allocation4 + $0x30] sm:$0xff] %vm288, %v1510
      %1519 = vst.msk [vmem:[#allocation4 + $0x38] sm:$0xff] %vm288, %v1511
      %v1520 = vld [vmem:[#allocation4] ss:$2 sm:$0xff]
      %s1521 = scalar_lea.vmem [#allocation4], 16
      %v1522 = vld [vmem:[%s1521] ss:$2 sm:$0xff]
      %s1523 = scalar_lea.vmem [#allocation4], 32
      %v1524 = vld [vmem:[%s1523] ss:$2 sm:$0xff]
      %s1525 = scalar_lea.vmem [#allocation4], 48
      %v1526 = vld [vmem:[%s1525] ss:$2 sm:$0xff]
      %s1527 = scalar_lea.vmem [#allocation4], 1
      %v1528 = vld [vmem:[%s1527] ss:$2 sm:$0xff]
      %s1529 = scalar_lea.vmem [#allocation4], 17
      %v1530 = vld [vmem:[%s1529] ss:$2 sm:$0xff]
      %s1531 = scalar_lea.vmem [#allocation4], 33
      %v1532 = vld [vmem:[%s1531] ss:$2 sm:$0xff]
      %s1533 = scalar_lea.vmem [#allocation4], 49
      %v1534 = vld [vmem:[%s1533] ss:$2 sm:$0xff]
      %v1535 = vmax.f32 %v1520, %v1528
      %v1536 = vmax.f32 %v1522, %v1530
      %v1537 = vmax.f32 %v1524, %v1532
      %v1538 = vmax.f32 %v1526, %v1534
      %v1539 = vpack.c.bf16 %v1535, %v1535
      %v1540 = vpack.c.bf16 %v1536, %v1536
      %v1541 = vpack.c.bf16 %v1537, %v1537
      %v1542 = vpack.c.bf16 %v1538, %v1538
      %vm1543 = vcmask 519168
      %1544 = vst.msk [vmem:[%s277] sm:$0xf] %vm1543, %v1539
      %1545 = vst.msk [vmem:[%s277 + $0x4] sm:$0xf] %vm1543, %v1540
      %1546 = vst.msk [vmem:[%s277 + $0x8] sm:$0xf] %vm1543, %v1541
      %1547 = vst.msk [vmem:[%s277 + $0xc] sm:$0xf] %vm1543, %v1542
      %s1548 = smul.u32 4, %s20
      %p1549 = scmp.lt.s32.totalorder %s19, 1
      %s1550 = scalar_select %p1549, %s19, 1
      %p1551 = scmp.lt.s32.totalorder %s1548, 7
      %s1552 = scalar_select %p1551, %s1548, 7
      %s1553 = smul.addr %s1550, 8
      %s1554 = sadd.s32 %s1552, %s1553
      %s1555 = smul.addr %s1554, 4
      %s1556 = scalar_lea.vmem %s4, %s1555
      // Predicated region
      $region37: #{content_forward.5} parent=35 // pred_check
        %p1557 = pneg %p145
      $region38: #{content_forward.5} parent=35 // pred_check_branch
        %1559 = sbr.rel (%p1557) target = $region40
      $region39: #{content_forward.5} parent=35 // pred_region
        %s1560 = smul.u32 4, %s20
      $region40: #{content_forward.5} parent=35 // pred_fallthru
        _
    $region36: #{content_forward.5} parent=5 // pred_fallthru
      _
    %p1561 = scmp.le.s32.totalorder 2, %s10
    // Predicated region
    $region41: #{content_forward.5} parent=5 // pred_check
      %p1562 = pneg %p1561
    $region42: #{content_forward.5} parent=5 // pred_check_branch
      %1564 = sbr.rel (%p1562) target = $region44
    $region43: #{content_forward.5} parent=5 // pred_region
      %s1565 = ssub.s32 %s10, 2
      // Predicated region
      $region45: #{content_forward.5} parent=43 // pred_check
        %p1566 = pneg %p151
      $region46: #{content_forward.5} parent=43 // pred_check_branch
        %1568 = sbr.rel (%p1566) target = $region48
      $region47: #{content_forward.5} parent=43 // pred_region
        %s1569 = smul.u32 4, %s22
        %p1570 = scmp.lt.s32.totalorder %s21, 1
        %s1571 = scalar_select %p1570, %s21, 1
        %p1572 = scmp.lt.s32.totalorder %s1569, 7
        %s1573 = scalar_select %p1572, %s1569, 7
        %s1574 = smul.addr %s1571, 8
        %s1575 = sadd.s32 %s1573, %s1574
        %s1576 = smul.addr %s1575, 4
        %s1577 = scalar_lea.vmem %s4, %s1576
      $region48: #{content_forward.5} parent=43 // pred_fallthru
        _
    $region44: #{content_forward.5} parent=5 // pred_fallthru
      _
  $region6: #{content_forward.5} parent=0 // loop_footer
    %s14 = sadd.s32 1, %s10
  $region7: #{content_forward.5} parent=0 // loop_footer_branch
    %9 = sbr.rel target = $region3
  $region8: #{content_forward.5} parent=0 // loop_exit
    _

// kernel: content_forward.7
$region0: #{content_forward.7}
  #allocation0 [shape = 'u32[]', space=smem, size = 0x4, offset = 0x4, fixed_abs, tag = 'smem constant byte address 0x4 - core index']
  #allocation1 [shape = 'u32[144,128]{1,0:T(1,128)}', space=vmem, size = 0x12000, scoped, tag = 'internal scratch']
  #allocation2 [shape = 'bf16[10,8,128]{2,1,0:T(8,128)(2,1)}', space=vmem, size = 0x5000, scoped, tag = 'scratch operand']
  #allocation3 [shape = 'bf16[10,8,384]{2,1,0:T(8,128)(2,1)}', space=vmem, size = 0xf000, scoped, tag = 'scratch operand']
  %s0 = inlined_call_operand.vmem [shape: bf16[2,8,8,128], index: 0, kind: input, shape index: {}]
  %s1 = inlined_call_operand.vmem [shape: bf16[2,2,8,128], index: 1, kind: input, shape index: {}]
  %s2 = inlined_call_operand.vmem [shape: bf16[3,384,128], index: 2, kind: input, shape index: {}]
  %s3 = inlined_call_operand.vmem [shape: f32[1,128], index: 3, kind: input, shape index: {}]
  %s4 = inlined_call_operand.hbm [shape: f32[2,8,8,128], index: 4, kind: output, shape index: {}]
  %s5 = sld [smem:[#allocation0]]
  $region49: #{content_forward.7} parent=0
    _
  %s7 = ssub.s32 1, %s5
  %s8 = scalar_select 0, %s7, %s5
  $region1: #{content_forward.7} parent=0
    #allocation4 [shape = 'u8[65536]{0}', space=vmem, size = 0x10000, scoped, tag = 'output window, operand 0']
    #allocation5 [shape = 's32[2]{0}', space=sflag, size = 0x8, scoped, tag = 'scoped memory for content_forward.7']
    %9 = vsyncpa [#allocation5], 0
    %s10 = scalar_lea.sflag [#allocation5], 1
    %11 = vsyncpa %s10, 0
    loop: start=0, step=1, limit=4
    $region2: #{content_forward.7} parent=1 // loop_pre_header
      _
    $region3: #{content_forward.7} parent=1 // loop_header
      %s13 = sphi 0, %s17
      %p14 = scmp.ge.s32.totalorder %s13, 4
      %s20 = sphi 0, %s32
      %s21 = sphi 0, %s28
      %s22 = sphi 0, %s20
      %s23 = sphi 0, %s21
      %s24 = sphi 0, %s22
      %s25 = sphi 0, %s23
      %s37 = sphi 0, %s39
      %s40 = sphi 0, %s37
      %s41 = sphi 0, %s40
      %s57 = sphi 0, %s41
      %s65 = sphi 0, %s67
      %s68 = sphi 0, %s65
      %s69 = sphi 0, %s68
      %s85 = sphi 0, %s69
      %s89 = sphi 0, %s89
      %s91 = sphi 0, %s89
      %s92 = sphi 0, %s91
      %s106 = sphi 0, %s92
      %s110 = sphi 0, %s110
      %s112 = sphi 0, %s110
      %s113 = sphi 0, %s112
      %s127 = sphi 0, %s113
      %s135 = sphi 0, %s137
      %s138 = sphi 0, %s135
      %s139 = sphi 0, %s138
      %s155 = sphi 0, %s139
    $region4: #{content_forward.7} parent=1 // loop_header_branch
      %16 = sbr.rel (%p14) target = $region8
    $region5: #{content_forward.7} parent=1 // loop_body
      %s18 = ssub.s32 %s13, 1
      %s19 = ssub.s32 %s13, 2
      %s26 = sadd.s32 1, %s21
      %p27 = scmp.ge.s32.totalorder %s26, 1
      %s28 = scalar_select %p27, 0, %s26
      %s29 = sadd.s32 1, %s20
      %s30 = scalar_select %p27, %s29, %s20
      %p31 = scmp.ge.s32.totalorder %s30, 2
      %s32 = scalar_select %p31, 0, %s30
      %s33 = ssub.s32 %s20, %s32
      %s34 = ssub.s32 %s21, %s28
      %s35 = sor.u32 %s33, %s34
      %p36 = scmp.eq.s32.totalorder %s35, 0
      %s38 = sadd.s32 %s37, 1
      %s39 = scalar_select %p36, %s37, %s38
      %p42 = pneg %p36
      %p43 = scmp.eq.s32.totalorder %s13, 1
      %p44 = por %p42, %p43
      %p45 = scmp.ne.s32.totalorder %s37, %s40
      %p46 = scmp.eq.s32.totalorder %s13, 0
      %p47 = por %p45, %p46
      %p48 = scmp.ne.s32.totalorder %s37, %s40
      %p49 = scmp.eq.s32.totalorder %s18, 1
      %p50 = por %p48, %p49
      %p51 = scmp.ne.s32.totalorder %s40, %s41
      %p52 = scmp.eq.s32.totalorder %s18, 0
      %p53 = por %p51, %p52
      %p54 = scmp.ne.s32.totalorder %s40, %s41
      %p55 = scmp.eq.s32.totalorder %s19, 1
      %p56 = por %p54, %p55
      %p58 = scmp.ne.s32.totalorder %s41, %s57
      %p59 = scmp.eq.s32.totalorder %s19, 0
      %p60 = por %p58, %p59
      %s61 = ssub.s32 %s20, %s32
      %s62 = ssub.s32 %s21, %s28
      %s63 = sor.u32 %s61, %s62
      %p64 = scmp.eq.s32.totalorder %s63, 0
      %s66 = sadd.s32 %s65, 1
      %s67 = scalar_select %p64, %s65, %s66
      %p70 = pneg %p64
      %p71 = scmp.eq.s32.totalorder %s13, 1
      %p72 = por %p70, %p71
      %p73 = scmp.ne.s32.totalorder %s65, %s68
      %p74 = scmp.eq.s32.totalorder %s13, 0
      %p75 = por %p73, %p74
      %p76 = scmp.ne.s32.totalorder %s65, %s68
      %p77 = scmp.eq.s32.totalorder %s18, 1
      %p78 = por %p76, %p77
      %p79 = scmp.ne.s32.totalorder %s68, %s69
      %p80 = scmp.eq.s32.totalorder %s18, 0
      %p81 = por %p79, %p80
      %p82 = scmp.ne.s32.totalorder %s68, %s69
      %p83 = scmp.eq.s32.totalorder %s19, 1
      %p84 = por %p82, %p83
      %p86 = scmp.ne.s32.totalorder %s69, %s85
      %p87 = scmp.eq.s32.totalorder %s19, 0
      %p88 = por %p86, %p87
      %s90 = sadd.s32 %s89, 1
      %p93 = scmp.eq.s32.totalorder %s13, 1
      %p94 = scmp.ne.s32.totalorder %s89, %s91
      %p95 = scmp.eq.s32.totalorder %s13, 0
      %p96 = por %p94, %p95
      %p97 = scmp.ne.s32.totalorder %s89, %s91
      %p98 = scmp.eq.s32.totalorder %s18, 1
      %p99 = por %p97, %p98
      %p100 = scmp.ne.s32.totalorder %s91, %s92
      %p101 = scmp.eq.s32.totalorder %s18, 0
      %p102 = por %p100, %p101
      %p103 = scmp.ne.s32.totalorder %s91, %s92
      %p104 = scmp.eq.s32.totalorder %s19, 1
      %p105 = por %p103, %p104
      %p107 = scmp.ne.s32.totalorder %s92, %s106
      %p108 = scmp.eq.s32.totalorder %s19, 0
      %p109 = por %p107, %p108
      %s111 = sadd.s32 %s110, 1
      %p114 = scmp.eq.s32.totalorder %s13, 1
      %p115 = scmp.ne.s32.totalorder %s110, %s112
      %p116 = scmp.eq.s32.totalorder %s13, 0
      %p117 = por %p115, %p116
      %p118 = scmp.ne.s32.totalorder %s110, %s112
      %p119 = scmp.eq.s32.totalorder %s18, 1
      %p120 = por %p118, %p119
      %p121 = scmp.ne.s32.totalorder %s112, %s113
      %p122 = scmp.eq.s32.totalorder %s18, 0
      %p123 = por %p121, %p122
      %p124 = scmp.ne.s32.totalorder %s112, %s113
      %p125 = scmp.eq.s32.totalorder %s19, 1
      %p126 = por %p124, %p125
      %p128 = scmp.ne.s32.totalorder %s113, %s127
      %p129 = scmp.eq.s32.totalorder %s19, 0
      %p130 = por %p128, %p129
      %s131 = ssub.s32 %s20, %s32
      %s132 = ssub.s32 %s21, %s28
      %s133 = sor.u32 %s131, %s132
      %p134 = scmp.eq.s32.totalorder %s133, 0
      %s136 = sadd.s32 %s135, 1
      %s137 = scalar_select %p134, %s135, %s136
      %p140 = pneg %p134
      %p141 = scmp.eq.s32.totalorder %s13, 1
      %p142 = por %p140, %p141
      %p143 = scmp.ne.s32.totalorder %s135, %s138
      %p144 = scmp.eq.s32.totalorder %s13, 0
      %p145 = por %p143, %p144
      %p146 = scmp.ne.s32.totalorder %s135, %s138
      %p147 = scmp.eq.s32.totalorder %s18, 1
      %p148 = por %p146, %p147
      %p149 = scmp.ne.s32.totalorder %s138, %s139
      %p150 = scmp.eq.s32.totalorder %s18, 0
      %p151 = por %p149, %p150
      %p152 = scmp.ne.s32.totalorder %s138, %s139
      %p153 = scmp.eq.s32.totalorder %s19, 1
      %p154 = por %p152, %p153
      %p156 = scmp.ne.s32.totalorder %s139, %s155
      %p157 = scmp.eq.s32.totalorder %s19, 0
      %p158 = por %p156, %p157
      %p159 = scmp.le.s32.totalorder 1, %s13
      %p160 = scmp.lt.s32.totalorder %s13, 3
      %p161 = pnand %p159, %p160
      %p162 = pneg %p161
      // Predicated region
      $region9: #{content_forward.7} parent=5 // pred_check
        _
      $region10: #{content_forward.7} parent=5 // pred_check_branch
        %164 = sbr.rel (%p161) target = $region12
      $region11: #{content_forward.7} parent=5 // pred_region
        %s165 = ssub.s32 %s13, 1
        // Predicated region
        $region13: #{content_forward.7} parent=11 // pred_check
          %p166 = pneg %p102
        $region14: #{content_forward.7} parent=11 // pred_check_branch
          %168 = sbr.rel (%p166) target = $region16
        $region15: #{content_forward.7} parent=11 // pred_region
          _
        $region16: #{content_forward.7} parent=11 // pred_fallthru
          _
        // Predicated region
        $region17: #{content_forward.7} parent=11 // pred_check
          %p169 = pneg %p123
        $region18: #{content_forward.7} parent=11 // pred_check_branch
          %171 = sbr.rel (%p169) target = $region20
        $region19: #{content_forward.7} parent=11 // pred_region
          _
        $region20: #{content_forward.7} parent=11 // pred_fallthru
          _
      $region12: #{content_forward.7} parent=5 // pred_fallthru
        _
      %p172 = scmp.lt.s32.totalorder %s13, 2
      // Predicated region
      $region21: #{content_forward.7} parent=5 // pred_check
        %p173 = pneg %p172
      $region22: #{content_forward.7} parent=5 // pred_check_branch
        %175 = sbr.rel (%p173) target = $region24
      $region23: #{content_forward.7} parent=5 // pred_region
        // Predicated region
        $region25: #{content_forward.7} parent=23 // pred_check
          %p176 = pneg %p47
        $region26: #{content_forward.7} parent=23 // pred_check_branch
          %178 = sbr.rel (%p176) target = $region28
        $region27: #{content_forward.7} parent=23 // pred_region
          %s179 = smul.u32 8, %s21
          %p180 = scmp.lt.s32.totalorder %s20, 1
          %s181 = scalar_select %p180, %s20, 1
          %p182 = scmp.lt.s32.totalorder %s179, 7
          %s183 = scalar_select %p182, %s179, 7
          %s184 = smul.addr %s181, 8
          %s185 = sadd.s32 %s183, %s184
          %s186 = smul.addr %s185, 4
          %s187 = scalar_lea.vmem %s0, %s186
          %s188 = smul.u32 8, %s21
        $region28: #{content_forward.7} parent=23 // pred_fallthru
          _
        // Predicated region
        $region29: #{content_forward.7} parent=23 // pred_check
          %p189 = pneg %p75
        $region30: #{content_forward.7} parent=23 // pred_check_branch
          %191 = sbr.rel (%p189) target = $region32
        $region31: #{content_forward.7} parent=23 // pred_region
          %s192 = smul.u32 2, %s21
          %p193 = scmp.lt.s32.totalorder %s20, 1
          %s194 = scalar_select %p193, %s20, 1
          %p195 = scmp.lt.s32.totalorder %s192, 1
          %s196 = scalar_select %p195, %s192, 1
          %s197 = smul.addr %s194, 2
          %s198 = sadd.s32 %s196, %s197
          %s199 = smul.addr %s198, 4
          %s200 = scalar_lea.vmem %s1, %s199
          %s201 = smul.u32 2, %s21
        $region32: #{content_forward.7} parent=23 // pred_fallthru
          _
      $region24: #{content_forward.7} parent=5 // pred_fallthru
        _
      %p202 = scmp.le.s32.totalorder 1, %s13
      %p203 = scmp.lt.s32.totalorder %s13, 3
      %p204 = pnand %p202, %p203
      %p205 = pneg %p204
      // Predicated region
      $region33: #{content_forward.7} parent=5 // pred_check
        _
      $region34: #{content_forward.7} parent=5 // pred_check_branch
        %207 = sbr.rel (%p204) target = $region36
      $region35: #{content_forward.7} parent=5 // pred_region
        %s208 = ssub.s32 %s13, 1
        %s209 = smul.u32 8, %s23
        %p210 = scmp.lt.s32.totalorder %s22, 1
        %s211 = scalar_select %p210, %s22, 1
        %p212 = scmp.lt.s32.totalorder %s209, 7
        %s213 = scalar_select %p212, %s209, 7
        %s214 = smul.addr %s211, 8
        %s215 = sadd.s32 %s213, %s214
        %s216 = smul.addr %s215, 4
        %s217 = scalar_lea.vmem %s0, %s216
        %p218 = pneg %p53
        %p219 = pneg %p50
        %s220 = smul.u32 2, %s23
        %p221 = scmp.lt.s32.totalorder %s22, 1
        %s222 = scalar_select %p221, %s22, 1
        %p223 = scmp.lt.s32.totalorder %s220, 1
        %s224 = scalar_select %p223, %s220, 1
        %s225 = smul.addr %s222, 2
        %s226 = sadd.s32 %s224, %s225
        %s227 = smul.addr %s226, 4
        %s228 = scalar_lea.vmem %s1, %s227
        %p229 = pneg %p81
        %p230 = pneg %p78
        %p231 = pneg %p102
        %p232 = pneg %p99
        %p233 = pneg %p123
        %p234 = pneg %p120
        %p235 = pneg %p151
        %p236 = pneg %p148
        %s237 = sand.u32 %s138, 1
        %s238 = scalar_lea.sflag [#allocation5], %s237
        %s239 = sand.u32 %s138, 1
        %s240 = smul.addr %s239, 64
        %s241 = scalar_lea.vmem [#allocation4], %s240
        %s242 = smul.u32 8, %s23
        %p243 = scmp.lt.s32.totalorder %s22, 1
        %s244 = scalar_select %p243, %s22, 1
        %p245 = scmp.lt.s32.totalorder %s242, 7
        %s246 = scalar_select %p245, %s242, 7
        %s247 = smul.addr %s244, 8
        %s248 = sadd.s32 %s246, %s247
        %s249 = smul.addr %s248, 4
        %s250 = scalar_lea.vmem %s0, %s249
        %s251 = smul.u32 8, %s23
        %s252 = smul.u32 2, %s23
        %p253 = scmp.lt.s32.totalorder %s22, 1
        %s254 = scalar_select %p253, %s22, 1
        %p255 = scmp.lt.s32.totalorder %s252, 1
        %s256 = scalar_select %p255, %s252, 1
        %s257 = smul.addr %s254, 2
        %s258 = sadd.s32 %s256, %s257
        %s259 = smul.addr %s258, 4
        %s260 = scalar_lea.vmem %s1, %s259
        %s261 = smul.u32 2, %s23
        %s262 = smul.u32 8, %s23
        %v264 = vld [vmem:[%s260] sm:$0xf]
        %265 = vst [vmem:[#allocation2] sm:$0xf] %v264
        %v266 = vld [vmem:[%s250] sm:$0xf]
        %v267 = vld [vmem:[%s250 + $0x4] sm:$0xf]
        %v268 = vld [vmem:[%s250 + $0x8] sm:$0xf]
        %v269 = vld [vmem:[%s250 + $0xc] sm:$0xf]
        %v270 = vld [vmem:[%s250 + $0x10] sm:$0xf]
        %v271 = vld [vmem:[%s250 + $0x14] sm:$0xf]
        %v272 = vld [vmem:[%s250 + $0x18] sm:$0xf]
        %v273 = vld [vmem:[%s250 + $0x1c] sm:$0xf]
        %s274 = scalar_lea.vmem [#allocation2], 4
        %275 = vst [vmem:[%s274] sm:$0xf] %v266
        %276 = vst [vmem:[%s274 + $0x4] sm:$0xf] %v267
        %277 = vst [vmem:[%s274 + $0x8] sm:$0xf] %v268
        %278 = vst [vmem:[%s274 + $0xc] sm:$0xf] %v269
        %279 = vst [vmem:[%s274 + $0x10] sm:$0xf] %v270
        %280 = vst [vmem:[%s274 + $0x14] sm:$0xf] %v271
        %281 = vst [vmem:[%s274 + $0x18] sm:$0xf] %v272
        %282 = vst [vmem:[%s274 + $0x1c] sm:$0xf] %v273
        %s283 = scalar_lea.vmem %s260, 4
        %v284 = vld [vmem:[%s283] sm:$0xf]
        %s285 = scalar_lea.vmem [#allocation2], 36
        %286 = vst [vmem:[%s285] sm:$0xf] %v284
        %v287 = vld [vmem:[#allocation2] sm:$0xf]
        %v288 = vld [vmem:[#allocation2 + $0x4] sm:$0xf]
        %v289 = vld [vmem:[#allocation2 + $0x8] sm:$0xf]
        %v290 = vld [vmem:[#allocation2 + $0xc] sm:$0xf]
        %v291 = vld [vmem:[#allocation2 + $0x10] sm:$0xf]
        %v292 = vld [vmem:[#allocation2 + $0x14] sm:$0xf]
        %v293 = vld [vmem:[#allocation2 + $0x18] sm:$0xf]
        %v294 = vld [vmem:[#allocation2 + $0x1c] sm:$0xf]
        %v295 = vld [vmem:[#allocation2 + $0x20] sm:$0xf]
        %v296 = vld [vmem:[#allocation2 + $0x24] sm:$0xf]
        %297 = vst [vmem:[#allocation3 + $0x4] sm:$0xf] %v287
        %298 = vst [vmem:[#allocation3 + $0x10] sm:$0xf] %v288
        %299 = vst [vmem:[#allocation3 + $0x1c] sm:$0xf] %v289
        %300 = vst [vmem:[#allocation3 + $0x28] sm:$0xf] %v290
        %301 = vst [vmem:[#allocation3 + $0x34] sm:$0xf] %v291
        %302 = vst [vmem:[#allocation3 + $0x40] sm:$0xf] %v292
        %303 = vst [vmem:[#allocation3 + $0x4c] sm:$0xf] %v293
        %304 = vst [vmem:[#allocation3 + $0x58] sm:$0xf] %v294
        %305 = vst [vmem:[#allocation3 + $0x64] sm:$0xf] %v295
        %306 = vst [vmem:[#allocation3 + $0x70] sm:$0xf] %v296
        %vm307 = vcmask 1040384
        %vm308 = vsmask.f32 256
        %vm309 = vmand %vm307, %vm308
        %v310 = vld [vmem:[#allocation3] sm:$0x1]
        %v311 = vsel %vm309, 0, %v310
        %312 = vst [vmem:[#allocation3] sm:$0x1] %v311
        %v313 = vld [vmem:[#allocation3 + $0xc] sm:$0x1]
        %v314 = vsel %vm309, 0, %v313
        %315 = vst [vmem:[#allocation3 + $0xc] sm:$0x1] %v314
        %v316 = vld [vmem:[#allocation3 + $0x18] sm:$0x1]
        %v317 = vsel %vm309, 0, %v316
        %318 = vst [vmem:[#allocation3 + $0x18] sm:$0x1] %v317
        %v319 = vld [vmem:[#allocation3 + $0x24] sm:$0x1]
        %v320 = vsel %vm309, 0, %v319
        %321 = vst [vmem:[#allocation3 + $0x24] sm:$0x1] %v320
        %v322 = vld [vmem:[#allocation3 + $0x30] sm:$0x1]
        %v323 = vsel %vm309, 0, %v322
        %324 = vst [vmem:[#allocation3 + $0x30] sm:$0x1] %v323
        %v325 = vld [vmem:[#allocation3 + $0x3c] sm:$0x1]
        %v326 = vsel %vm309, 0, %v325
        %327 = vst [vmem:[#allocation3 + $0x3c] sm:$0x1] %v326
        %v328 = vld [vmem:[#allocation3 + $0x48] sm:$0x1]
        %v329 = vsel %vm309, 0, %v328
        %330 = vst [vmem:[#allocation3 + $0x48] sm:$0x1] %v329
        %v331 = vld [vmem:[#allocation3 + $0x54] sm:$0x1]
        %v332 = vsel %vm309, 0, %v331
        %333 = vst [vmem:[#allocation3 + $0x54] sm:$0x1] %v332
        %v334 = vld [vmem:[#allocation3 + $0x60] sm:$0x1]
        %v335 = vsel %vm309, 0, %v334
        %336 = vst [vmem:[#allocation3 + $0x60] sm:$0x1] %v335
        %v337 = vld [vmem:[#allocation3 + $0x6c] sm:$0x1]
        %v338 = vsel %vm309, 0, %v337
        %339 = vst [vmem:[#allocation3 + $0x6c] sm:$0x1] %v338
        %v340 = vld [vmem:[#allocation2] sm:$0xf]
        %v341 = vld [vmem:[#allocation2 + $0x4] sm:$0xf]
        %v342 = vld [vmem:[#allocation2 + $0x8] sm:$0xf]
        %v343 = vld [vmem:[#allocation2 + $0xc] sm:$0xf]
        %v344 = vld [vmem:[#allocation2 + $0x10] sm:$0xf]
        %v345 = vld [vmem:[#allocation2 + $0x14] sm:$0xf]
        %v346 = vld [vmem:[#allocation2 + $0x18] sm:$0xf]
        %v347 = vld [vmem:[#allocation2 + $0x1c] sm:$0xf]
        %v348 = vld [vmem:[#allocation2 + $0x20] sm:$0xf]
        %v349 = vld [vmem:[#allocation2 + $0x24] sm:$0xf]
        %v351 = vshrl.u32 %v340, 16
        %v353 = vrot.slane %v351, 7
        %v354 = vshll.u32 %v340, 16
        %v356 = vor.u32 %v353, %v354
        %v358 = vshrl.u32 %v341, 16
        %v360 = vrot.slane %v358, 7
        %v361 = vshll.u32 %v341, 16
        %v363 = vor.u32 %v360, %v361
        %v365 = vshrl.u32 %v342, 16
        %v367 = vrot.slane %v365, 7
        %v368 = vshll.u32 %v342, 16
        %v370 = vor.u32 %v367, %v368
        %v372 = vshrl.u32 %v343, 16
        %v374 = vrot.slane %v372, 7
        %v375 = vshll.u32 %v343, 16
        %v377 = vor.u32 %v374, %v375
        %v379 = vshrl.u32 %v344, 16
        %v381 = vrot.slane %v379, 7
        %v382 = vshll.u32 %v344, 16
        %v384 = vor.u32 %v381, %v382
        %v386 = vshrl.u32 %v345, 16
        %v388 = vrot.slane %v386, 7
        %v389 = vshll.u32 %v345, 16
        %v391 = vor.u32 %v388, %v389
        %v393 = vshrl.u32 %v346, 16
        %v395 = vrot.slane %v393, 7
        %v396 = vshll.u32 %v346, 16
        %v398 = vor.u32 %v395, %v396
        %v400 = vshrl.u32 %v347, 16
        %v402 = vrot.slane %v400, 7
        %v403 = vshll.u32 %v347, 16
        %v405 = vor.u32 %v402, %v403
        %v407 = vshrl.u32 %v348, 16
        %v409 = vrot.slane %v407, 7
        %v410 = vshll.u32 %v348, 16
        %v412 = vor.u32 %v409, %v410
        %v414 = vshrl.u32 %v349, 16
        %v416 = vrot.slane %v414, 7
        %v417 = vshll.u32 %v349, 16
        %v419 = vor.u32 %v416, %v417
        %vm430 = vcmask 1043456
        %vm431 = vsmask.f32 7938
        %vm432 = vmand %vm430, %vm431
        %v433 = vld [vmem:[#allocation3] sm:$0xf]
        %v434 = vsel %vm432, %v356, %v433
        %435 = vst [vmem:[#allocation3] sm:$0xf] %v434
        %v436 = vld [vmem:[#allocation3 + $0xc] sm:$0xf]
        %v437 = vsel %vm432, %v363, %v436
        %438 = vst [vmem:[#allocation3 + $0xc] sm:$0xf] %v437
        %v439 = vld [vmem:[#allocation3 + $0x18] sm:$0xf]
        %v440 = vsel %vm432, %v370, %v439
        %441 = vst [vmem:[#allocation3 + $0x18] sm:$0xf] %v440
        %v442 = vld [vmem:[#allocation3 + $0x24] sm:$0xf]
        %v443 = vsel %vm432, %v377, %v442
        %444 = vst [vmem:[#allocation3 + $0x24] sm:$0xf] %v443
        %v445 = vld [vmem:[#allocation3 + $0x30] sm:$0xf]
        %v446 = vsel %vm432, %v384, %v445
        %447 = vst [vmem:[#allocation3 + $0x30] sm:$0xf] %v446
        %v448 = vld [vmem:[#allocation3 + $0x3c] sm:$0xf]
        %v449 = vsel %vm432, %v391, %v448
        %450 = vst [vmem:[#allocation3 + $0x3c] sm:$0xf] %v449
        %v451 = vld [vmem:[#allocation3 + $0x48] sm:$0xf]
        %v452 = vsel %vm432, %v398, %v451
        %453 = vst [vmem:[#allocation3 + $0x48] sm:$0xf] %v452
        %v454 = vld [vmem:[#allocation3 + $0x54] sm:$0xf]
        %v455 = vsel %vm432, %v405, %v454
        %456 = vst [vmem:[#allocation3 + $0x54] sm:$0xf] %v455
        %v457 = vld [vmem:[#allocation3 + $0x60] sm:$0xf]
        %v458 = vsel %vm432, %v412, %v457
        %459 = vst [vmem:[#allocation3 + $0x60] sm:$0xf] %v458
        %v460 = vld [vmem:[#allocation3 + $0x6c] sm:$0xf]
        %v461 = vsel %vm432, %v419, %v460
        %462 = vst [vmem:[#allocation3 + $0x6c] sm:$0xf] %v461
        %v463 = vld [vmem:[#allocation2] sm:$0xf]
        %v464 = vld [vmem:[#allocation2 + $0x4] sm:$0xf]
        %v465 = vld [vmem:[#allocation2 + $0x8] sm:$0xf]
        %v466 = vld [vmem:[#allocation2 + $0xc] sm:$0xf]
        %v467 = vld [vmem:[#allocation2 + $0x10] sm:$0xf]
        %v468 = vld [vmem:[#allocation2 + $0x14] sm:$0xf]
        %v469 = vld [vmem:[#allocation2 + $0x18] sm:$0xf]
        %v470 = vld [vmem:[#allocation2 + $0x1c] sm:$0xf]
        %v471 = vld [vmem:[#allocation2 + $0x20] sm:$0xf]
        %v472 = vld [vmem:[#allocation2 + $0x24] sm:$0xf]
        %v474 = vshrl.u32 %v463, 16
        %v476 = vrot.slane %v474, 4
        %v477 = vshll.u32 %v463, 16
        %v479 = vrot.slane %v477, 5
        %v480 = vor.u32 %v476, %v479
        %v481 = vrot.slane %v480, 4
        %v483 = vshrl.u32 %v464, 16
        %v485 = vrot.slane %v483, 4
        %v486 = vshll.u32 %v464, 16
        %v488 = vrot.slane %v486, 5
        %v489 = vor.u32 %v485, %v488
        %v490 = vrot.slane %v489, 4
        %v492 = vshrl.u32 %v465, 16
        %v494 = vrot.slane %v492, 4
        %v495 = vshll.u32 %v465, 16
        %v497 = vrot.slane %v495, 5
        %v498 = vor.u32 %v494, %v497
        %v499 = vrot.slane %v498, 4
        %v501 = vshrl.u32 %v466, 16
        %v503 = vrot.slane %v501, 4
        %v504 = vshll.u32 %v466, 16
        %v506 = vrot.slane %v504, 5
        %v507 = vor.u32 %v503, %v506
        %v508 = vrot.slane %v507, 4
        %v510 = vshrl.u32 %v467, 16
        %v512 = vrot.slane %v510, 4
        %v513 = vshll.u32 %v467, 16
        %v515 = vrot.slane %v513, 5
        %v516 = vor.u32 %v512, %v515
        %v517 = vrot.slane %v516, 4
        %v519 = vshrl.u32 %v468, 16
        %v521 = vrot.slane %v519, 4
        %v522 = vshll.u32 %v468, 16
        %v524 = vrot.slane %v522, 5
        %v525 = vor.u32 %v521, %v524
        %v526 = vrot.slane %v525, 4
        %v528 = vshrl.u32 %v469, 16
        %v530 = vrot.slane %v528, 4
        %v531 = vshll.u32 %v469, 16
        %v533 = vrot.slane %v531, 5
        %v534 = vor.u32 %v530, %v533
        %v535 = vrot.slane %v534, 4
        %v537 = vshrl.u32 %v470, 16
        %v539 = vrot.slane %v537, 4
        %v540 = vshll.u32 %v470, 16
        %v542 = vrot.slane %v540, 5
        %v543 = vor.u32 %v539, %v542
        %v544 = vrot.slane %v543, 4
        %v546 = vshrl.u32 %v471, 16
        %v548 = vrot.slane %v546, 4
        %v549 = vshll.u32 %v471, 16
        %v551 = vrot.slane %v549, 5
        %v552 = vor.u32 %v548, %v551
        %v553 = vrot.slane %v552, 4
        %v555 = vshrl.u32 %v472, 16
        %v557 = vrot.slane %v555, 4
        %v558 = vshll.u32 %v472, 16
        %v560 = vrot.slane %v558, 5
        %v561 = vor.u32 %v557, %v560
        %v562 = vrot.slane %v561, 4
        %vm573 = vsmask.f32 3328
        %vm574 = vmand %vm430, %vm573
        %v575 = vld [vmem:[#allocation3 + $0x8] sm:$0xf]
        %v576 = vsel %vm574, %v481, %v575
        %577 = vst [vmem:[#allocation3 + $0x8] sm:$0xf] %v576
        %v578 = vld [vmem:[#allocation3 + $0x14] sm:$0xf]
        %v579 = vsel %vm574, %v490, %v578
        %580 = vst [vmem:[#allocation3 + $0x14] sm:$0xf] %v579
        %v581 = vld [vmem:[#allocation3 + $0x20] sm:$0xf]
        %v582 = vsel %vm574, %v499, %v581
        %583 = vst [vmem:[#allocation3 + $0x20] sm:$0xf] %v582
        %v584 = vld [vmem:[#allocation3 + $0x2c] sm:$0xf]
        %v585 = vsel %vm574, %v508, %v584
        %586 = vst [vmem:[#allocation3 + $0x2c] sm:$0xf] %v585
        %v587 = vld [vmem:[#allocation3 + $0x38] sm:$0xf]
        %v588 = vsel %vm574, %v517, %v587
        %589 = vst [vmem:[#allocation3 + $0x38] sm:$0xf] %v588
        %v590 = vld [vmem:[#allocation3 + $0x44] sm:$0xf]
        %v591 = vsel %vm574, %v526, %v590
        %592 = vst [vmem:[#allocation3 + $0x44] sm:$0xf] %v591
        %v593 = vld [vmem:[#allocation3 + $0x50] sm:$0xf]
        %v594 = vsel %vm574, %v535, %v593
        %595 = vst [vmem:[#allocation3 + $0x50] sm:$0xf] %v594
        %v596 = vld [vmem:[#allocation3 + $0x5c] sm:$0xf]
        %v597 = vsel %vm574, %v544, %v596
        %598 = vst [vmem:[#allocation3 + $0x5c] sm:$0xf] %v597
        %v599 = vld [vmem:[#allocation3 + $0x68] sm:$0xf]
        %v600 = vsel %vm574, %v553, %v599
        %601 = vst [vmem:[#allocation3 + $0x68] sm:$0xf] %v600
        %v602 = vld [vmem:[#allocation3 + $0x74] sm:$0xf]
        %v603 = vsel %vm574, %v562, %v602
        %604 = vst [vmem:[#allocation3 + $0x74] sm:$0xf] %v603
        %vm605 = vcmask 1043459
        %vm606 = vsmask.f32 7950
        %vm607 = vmand %vm605, %vm606
        %v608 = vld [vmem:[#allocation3 + $0x8] sm:$0x8]
        %v609 = vsel %vm607, 0, %v608
        %610 = vst [vmem:[#allocation3 + $0x8] sm:$0x8] %v609
        %v611 = vld [vmem:[#allocation3 + $0x14] sm:$0x8]
        %v612 = vsel %vm607, 0, %v611
        %613 = vst [vmem:[#allocation3 + $0x14] sm:$0x8] %v612
        %v614 = vld [vmem:[#allocation3 + $0x20] sm:$0x8]
        %v615 = vsel %vm607, 0, %v614
        %616 = vst [vmem:[#allocation3 + $0x20] sm:$0x8] %v615
        %v617 = vld [vmem:[#allocation3 + $0x2c] sm:$0x8]
        %v618 = vsel %vm607, 0, %v617
        %619 = vst [vmem:[#allocation3 + $0x2c] sm:$0x8] %v618
        %v620 = vld [vmem:[#allocation3 + $0x38] sm:$0x8]
        %v621 = vsel %vm607, 0, %v620
        %622 = vst [vmem:[#allocation3 + $0x38] sm:$0x8] %v621
        %v623 = vld [vmem:[#allocation3 + $0x44] sm:$0x8]
        %v624 = vsel %vm607, 0, %v623
        %625 = vst [vmem:[#allocation3 + $0x44] sm:$0x8] %v624
        %v626 = vld [vmem:[#allocation3 + $0x50] sm:$0x8]
        %v627 = vsel %vm607, 0, %v626
        %628 = vst [vmem:[#allocation3 + $0x50] sm:$0x8] %v627
        %v629 = vld [vmem:[#allocation3 + $0x5c] sm:$0x8]
        %v630 = vsel %vm607, 0, %v629
        %631 = vst [vmem:[#allocation3 + $0x5c] sm:$0x8] %v630
        %v632 = vld [vmem:[#allocation3 + $0x68] sm:$0x8]
        %v633 = vsel %vm607, 0, %v632
        %634 = vst [vmem:[#allocation3 + $0x68] sm:$0x8] %v633
        %v635 = vld [vmem:[#allocation3 + $0x74] sm:$0x8]
        %v636 = vsel %vm607, 0, %v635
        %637 = vst [vmem:[#allocation3 + $0x74] sm:$0x8] %v636
        %v638 = vld [vmem:[#allocation3] sm:$0xff]
        %v639 = vld [vmem:[#allocation3 + $0x8] sm:$0xf]
        %v640 = vld [vmem:[#allocation3 + $0xc] sm:$0xff]
        %v641 = vld [vmem:[#allocation3 + $0x14] sm:$0xf]
        %v642 = vld [vmem:[#allocation3 + $0x18] sm:$0xff]
        %v643 = vld [vmem:[#allocation3 + $0x20] sm:$0xf]
        %v644 = vld [vmem:[#allocation3 + $0x24] sm:$0xff]
        %v645 = vld [vmem:[#allocation3 + $0x2c] sm:$0xf]
        %v646 = vld [vmem:[#allocation3 + $0x30] sm:$0xff]
        %v647 = vld [vmem:[#allocation3 + $0x38] sm:$0xf]
        %v648 = vld [vmem:[#allocation3 + $0x3c] sm:$0xff]
        %v649 = vld [vmem:[#allocation3 + $0x44] sm:$0xf]
        %v650 = vld [vmem:[#allocation3 + $0x48] sm:$0xff]
        %v651 = vld [vmem:[#allocation3 + $0x50] sm:$0xf]
        %v652 = vld [vmem:[#allocation3 + $0x54] sm:$0xff]
        %v653 = vld [vmem:[#allocation3 + $0x5c] sm:$0xf]
        %v654 = vld [vmem:[%s2] sm:$0xf]
        %v655 = vld [vmem:[%s2 + $0x4] sm:$0xf]
        %v656 = vld [vmem:[%s2 + $0x8] sm:$0xf]
        %v657 = vld [vmem:[%s2 + $0xc] sm:$0xf]
        %v658 = vld [vmem:[%s2 + $0x10] sm:$0xf]
        %v659 = vld [vmem:[%s2 + $0x14] sm:$0xf]
        %v660 = vld [vmem:[%s2 + $0x18] sm:$0xf]
        %v661 = vld [vmem:[%s2 + $0x1c] sm:$0xf]
        %v662 = vld [vmem:[%s2 + $0x20] sm:$0xf]
        %v663 = vld [vmem:[%s2 + $0x24] sm:$0xf]
        %v664 = vld [vmem:[%s2 + $0x28] sm:$0xf]
        %v665 = vld [vmem:[%s2 + $0x2c] sm:$0xf]
        %v666 = vld [vmem:[%s2 + $0x30] sm:$0xf]
        %v667 = vld [vmem:[%s2 + $0x34] sm:$0xf]
        %v668 = vld [vmem:[%s2 + $0x38] sm:$0xf]
        %v669 = vld [vmem:[%s2 + $0x3c] sm:$0xf]
        %v670 = vld [vmem:[%s2 + $0x40] sm:$0xf]
        %v671 = vld [vmem:[%s2 + $0x44] sm:$0xf]
        %v672 = vld [vmem:[%s2 + $0x48] sm:$0xf]
        %v673 = vld [vmem:[%s2 + $0x4c] sm:$0xf]
        %v674 = vld [vmem:[%s2 + $0x50] sm:$0xf]
        %v675 = vld [vmem:[%s2 + $0x54] sm:$0xf]
        %v676 = vld [vmem:[%s2 + $0x58] sm:$0xf]
        %v677 = vld [vmem:[%s2 + $0x5c] sm:$0xf]
        %v678 = vld [vmem:[%s2 + $0x60] sm:$0xf]
        %v679 = vld [vmem:[%s2 + $0x64] sm:$0xf]
        %v680 = vld [vmem:[%s2 + $0x68] sm:$0xf]
        %v681 = vld [vmem:[%s2 + $0x6c] sm:$0xf]
        %v682 = vld [vmem:[%s2 + $0x70] sm:$0xf]
        %v683 = vld [vmem:[%s2 + $0x74] sm:$0xf]
        %v684 = vld [vmem:[%s2 + $0x78] sm:$0xf]
        %v685 = vld [vmem:[%s2 + $0x7c] sm:$0xf]
        %v686 = vld [vmem:[%s2 + $0x80] sm:$0xf]
        %v687 = vld [vmem:[%s2 + $0x84] sm:$0xf]
        %v688 = vld [vmem:[%s2 + $0x88] sm:$0xf]
        %v689 = vld [vmem:[%s2 + $0x8c] sm:$0xf]
        %v690 = vld [vmem:[%s2 + $0x90] sm:$0xf]
        %v691 = vld [vmem:[%s2 + $0x94] sm:$0xf]
        %v692 = vld [vmem:[%s2 + $0x98] sm:$0xf]
        %v693 = vld [vmem:[%s2 + $0x9c] sm:$0xf]
        %v694 = vld [vmem:[%s2 + $0xa0] sm:$0xf]
        %v695 = vld [vmem:[%s2 + $0xa4] sm:$0xf]
        %v696 = vld [vmem:[%s2 + $0xa8] sm:$0xf]
        %v697 = vld [vmem:[%s2 + $0xac] sm:$0xf]
        %v698 = vld [vmem:[%s2 + $0xb0] sm:$0xf]
        %v699 = vld [vmem:[%s2 + $0xb4] sm:$0xf]
        %v700 = vld [vmem:[%s2 + $0xb8] sm:$0xf]
        %v701 = vld [vmem:[%s2 + $0xbc] sm:$0xf]
        %s702 = scalar_lea.vmem [#allocation3], 12
        %v703 = vld [vmem:[%s702] sm:$0xff]
        %v704 = vld [vmem:[%s702 + $0x8] sm:$0xf]
        %v705 = vld [vmem:[%s702 + $0xc] sm:$0xff]
        %v706 = vld [vmem:[%s702 + $0x14] sm:$0xf]
        %v707 = vld [vmem:[%s702 + $0x18] sm:$0xff]
        %v708 = vld [vmem:[%s702 + $0x20] sm:$0xf]
        %v709 = vld [vmem:[%s702 + $0x24] sm:$0xff]
        %v710 = vld [vmem:[%s702 + $0x2c] sm:$0xf]
        %v711 = vld [vmem:[%s702 + $0x30] sm:$0xff]
        %v712 = vld [vmem:[%s702 + $0x38] sm:$0xf]
        %v713 = vld [vmem:[%s702 + $0x3c] sm:$0xff]
        %v714 = vld [vmem:[%s702 + $0x44] sm:$0xf]
        %v715 = vld [vmem:[%s702 + $0x48] sm:$0xff]
        %v716 = vld [vmem:[%s702 + $0x50] sm:$0xf]
        %v717 = vld [vmem:[%s702 + $0x54] sm:$0xff]
        %v718 = vld [vmem:[%s702 + $0x5c] sm:$0xf]
        %s719 = scalar_lea.vmem %s2, 192
        %v720 = vld [vmem:[%s719] sm:$0xf]
        %v721 = vld [vmem:[%s719 + $0x4] sm:$0xf]
        %v722 = vld [vmem:[%s719 + $0x8] sm:$0xf]
        %v723 = vld [vmem:[%s719 + $0xc] sm:$0xf]
        %v724 = vld [vmem:[%s719 + $0x10] sm:$0xf]
        %v725 = vld [vmem:[%s719 + $0x14] sm:$0xf]
        %v726 = vld [vmem:[%s719 + $0x18] sm:$0xf]
        %v727 = vld [vmem:[%s719 + $0x1c] sm:$0xf]
        %v728 = vld [vmem:[%s719 + $0x20] sm:$0xf]
        %v729 = vld [vmem:[%s719 + $0x24] sm:$0xf]
        %v730 = vld [vmem:[%s719 + $0x28] sm:$0xf]
        %v731 = vld [vmem:[%s719 + $0x2c] sm:$0xf]
        %v732 = vld [vmem:[%s719 + $0x30] sm:$0xf]
        %v733 = vld [vmem:[%s719 + $0x34] sm:$0xf]
        %v734 = vld [vmem:[%s719 + $0x38] sm:$0xf]
        %v735 = vld [vmem:[%s719 + $0x3c] sm:$0xf]
        %v736 = vld [vmem:[%s719 + $0x40] sm:$0xf]
        %v737 = vld [vmem:[%s719 + $0x44] sm:$0xf]
        %v738 = vld [vmem:[%s719 + $0x48] sm:$0xf]
        %v739 = vld [vmem:[%s719 + $0x4c] sm:$0xf]
        %v740 = vld [vmem:[%s719 + $0x50] sm:$0xf]
        %v741 = vld [vmem:[%s719 + $0x54] sm:$0xf]
        %v742 = vld [vmem:[%s719 + $0x58] sm:$0xf]
        %v743 = vld [vmem:[%s719 + $0x5c] sm:$0xf]
        %v744 = vld [vmem:[%s719 + $0x60] sm:$0xf]
        %v745 = vld [vmem:[%s719 + $0x64] sm:$0xf]
        %v746 = vld [vmem:[%s719 + $0x68] sm:$0xf]
        %v747 = vld [vmem:[%s719 + $0x6c] sm:$0xf]
        %v748 = vld [vmem:[%s719 + $0x70] sm:$0xf]
        %v749 = vld [vmem:[%s719 + $0x74] sm:$0xf]
        %v750 = vld [vmem:[%s719 + $0x78] sm:$0xf]
        %v751 = vld [vmem:[%s719 + $0x7c] sm:$0xf]
        %v752 = vld [vmem:[%s719 + $0x80] sm:$0xf]
        %v753 = vld [vmem:[%s719 + $0x84] sm:$0xf]
        %v754 = vld [vmem:[%s719 + $0x88] sm:$0xf]
        %v755 = vld [vmem:[%s719 + $0x8c] sm:$0xf]
        %v756 = vld [vmem:[%s719 + $0x90] sm:$0xf]
        %v757 = vld [vmem:[%s719 + $0x94] sm:$0xf]
        %v758 = vld [vmem:[%s719 + $0x98] sm:$0xf]
        %v759 = vld [vmem:[%s719 + $0x9c] sm:$0xf]
        %v760 = vld [vmem:[%s719 + $0xa0] sm:$0xf]
        %v761 = vld [vmem:[%s719 + $0xa4] sm:$0xf]
        %v762 = vld [vmem:[%s719 + $0xa8] sm:$0xf]
        %v763 = vld [vmem:[%s719 + $0xac] sm:$0xf]
        %v764 = vld [vmem:[%s719 + $0xb0] sm:$0xf]
        %v765 = vld [vmem:[%s719 + $0xb4] sm:$0xf]
        %v766 = vld [vmem:[%s719 + $0xb8] sm:$0xf]
        %v767 = vld [vmem:[%s719 + $0xbc] sm:$0xf]
        %v784 = vunpack.c.l.b16 %v703
        %v785 = vunpack.c.h.b16 %v703
        %v786 = vunpack.c.l.b16 %v704
        %v787 = vunpack.c.l.b16 %v705
        %v788 = vunpack.c.h.b16 %v705
        %v789 = vunpack.c.l.b16 %v706
        %v790 = vunpack.c.l.b16 %v707
        %v791 = vunpack.c.h.b16 %v707
        %v792 = vunpack.c.l.b16 %v708
        %v793 = vunpack.c.l.b16 %v709
        %v794 = vunpack.c.h.b16 %v709
        %v795 = vunpack.c.l.b16 %v710
        %v796 = vunpack.c.l.b16 %v711
        %v797 = vunpack.c.h.b16 %v711
        %v798 = vunpack.c.l.b16 %v712
        %v799 = vunpack.c.l.b16 %v713
        %v800 = vunpack.c.h.b16 %v713
        %v801 = vunpack.c.l.b16 %v714
        %v802 = vunpack.c.l.b16 %v715
        %v803 = vunpack.c.h.b16 %v715
        %v804 = vunpack.c.l.b16 %v716
        %v805 = vunpack.c.l.b16 %v717
        %v806 = vunpack.c.h.b16 %v717
        %v807 = vunpack.c.l.b16 %v718
        %v808 = vpack.c.b16 %v787, %v784
        %v809 = vpack.c.b16 %v788, %v785
        %v810 = vpack.c.b16 %v789, %v786
        %v811 = vpack.c.b16 %v793, %v790
        %v812 = vpack.c.b16 %v794, %v791
        %v813 = vpack.c.b16 %v795, %v792
        %v814 = vpack.c.b16 %v799, %v796
        %v815 = vpack.c.b16 %v800, %v797
        %v816 = vpack.c.b16 %v801, %v798
        %v817 = vpack.c.b16 %v805, %v802
        %v818 = vpack.c.b16 %v806, %v803
        %v819 = vpack.c.b16 %v807, %v804
        %v880 = vunpack.c.l.b16 %v720
        %v881 = vunpack.c.l.b16 %v721
        %v882 = vunpack.c.l.b16 %v722
        %v883 = vunpack.c.l.b16 %v723
        %v884 = vunpack.c.l.b16 %v724
        %v885 = vunpack.c.l.b16 %v725
        %v886 = vunpack.c.l.b16 %v726
        %v887 = vunpack.c.l.b16 %v727
        %v888 = vunpack.c.l.b16 %v728
        %v889 = vunpack.c.l.b16 %v729
        %v890 = vunpack.c.l.b16 %v730
        %v891 = vunpack.c.l.b16 %v731
        %v892 = vunpack.c.l.b16 %v732
        %v893 = vunpack.c.l.b16 %v733
        %v894 = vunpack.c.l.b16 %v734
        %v895 = vunpack.c.l.b16 %v735
        %v896 = vunpack.c.l.b16 %v736
        %v897 = vunpack.c.l.b16 %v737
        %v898 = vunpack.c.l.b16 %v738
        %v899 = vunpack.c.l.b16 %v739
        %v900 = vunpack.c.l.b16 %v740
        %v901 = vunpack.c.l.b16 %v741
        %v902 = vunpack.c.l.b16 %v742
        %v903 = vunpack.c.l.b16 %v743
        %v904 = vunpack.c.l.b16 %v744
        %v905 = vunpack.c.l.b16 %v745
        %v906 = vunpack.c.l.b16 %v746
        %v907 = vunpack.c.l.b16 %v747
        %v908 = vunpack.c.l.b16 %v748
        %v909 = vunpack.c.l.b16 %v749
        %v910 = vunpack.c.l.b16 %v750
        %v911 = vunpack.c.l.b16 %v751
        %v912 = vunpack.c.l.b16 %v752
        %v913 = vunpack.c.l.b16 %v753
        %v914 = vunpack.c.l.b16 %v754
        %v915 = vunpack.c.l.b16 %v755
        %v916 = vunpack.c.l.b16 %v756
        %v917 = vunpack.c.l.b16 %v757
        %v918 = vunpack.c.l.b16 %v758
        %v919 = vunpack.c.l.b16 %v759
        %v920 = vunpack.c.l.b16 %v760
        %v921 = vunpack.c.l.b16 %v761
        %v922 = vunpack.c.l.b16 %v762
        %v923 = vunpack.c.l.b16 %v763
        %v924 = vunpack.c.l.b16 %v764
        %v925 = vunpack.c.l.b16 %v765
        %v926 = vunpack.c.l.b16 %v766
        %v927 = vunpack.c.l.b16 %v767
        %v928 = vpack.c.b16 %v881, %v880
        %v929 = vpack.c.b16 %v883, %v882
        %v930 = vpack.c.b16 %v885, %v884
        %v931 = vpack.c.b16 %v887, %v886
        %v932 = vpack.c.b16 %v889, %v888
        %v933 = vpack.c.b16 %v891, %v890
        %v934 = vpack.c.b16 %v893, %v892
        %v935 = vpack.c.b16 %v895, %v894
        %v936 = vpack.c.b16 %v897, %v896
        %v937 = vpack.c.b16 %v899, %v898
        %v938 = vpack.c.b16 %v901, %v900
        %v939 = vpack.c.b16 %v903, %v902
        %v940 = vpack.c.b16 %v905, %v904
        %v941 = vpack.c.b16 %v907, %v906
        %v942 = vpack.c.b16 %v909, %v908
        %v943 = vpack.c.b16 %v911, %v910
        %v944 = vpack.c.b16 %v913, %v912
        %v945 = vpack.c.b16 %v915, %v914
        %v946 = vpack.c.b16 %v917, %v916
        %v947 = vpack.c.b16 %v919, %v918
        %v948 = vpack.c.b16 %v921, %v920
        %v949 = vpack.c.b16 %v923, %v922
        %v950 = vpack.c.b16 %v925, %v924
        %v951 = vpack.c.b16 %v927, %v926
        %976 = vmatprep.subr.bf16.mxu0 0
        %977 = vmatpush1.bf16.msra.mxu0 %v928
        %978 = vmatprep.subr.bf16.mxu0 0
        %979 = vmatpush1.bf16.msra.mxu0 %v929
        %980 = vmatprep.subr.bf16.mxu0 0
        %981 = vmatpush1.bf16.msra.mxu0 %v930
        %982 = vmatprep.subr.bf16.mxu0 0
        %983 = vmatpush1.bf16.msra.mxu0 %v931
        %984 = vmatprep.subr.bf16.mxu0 0
        %985 = vmatpush1.bf16.msra.mxu0 %v932
        %986 = vmatprep.subr.bf16.mxu0 0
        %987 = vmatpush1.bf16.msra.mxu0 %v933
        %988 = vmatprep.subr.bf16.mxu0 0
        %989 = vmatpush1.bf16.msra.mxu0 %v934
        %990 = vmatprep.subr.bf16.mxu0 0
        %991 = vmatpush1.bf16.msra.mxu0 %v935
        %992 = vmatprep.subr.bf16.mxu0 0
        %993 = vmatpush1.bf16.msra.mxu0 %v936
        %994 = vmatprep.subr.bf16.mxu0 0
        %995 = vmatpush1.bf16.msra.mxu0 %v937
        %996 = vmatprep.subr.bf16.mxu0 0
        %997 = vmatpush1.bf16.msra.mxu0 %v938
        %998 = vmatprep.subr.bf16.mxu0 0
        %999 = vmatpush1.bf16.msra.mxu0 %v939
        %1000 = vmatprep.subr.bf16.mxu0 0
        %1001 = vmatpush1.bf16.msra.mxu0 %v940
        %1002 = vmatprep.subr.bf16.mxu0 0
        %1003 = vmatpush1.bf16.msra.mxu0 %v941
        %1004 = vmatprep.subr.bf16.mxu0 0
        %1005 = vmatpush1.bf16.msra.mxu0 %v942
        %1006 = vmatprep.subr.bf16.mxu0 0
        %1007 = vmatpush1.bf16.msra.mxu0 %v943
        %1008 = vmatprep.mubr.bf16.mxu0 %v809
        %1009 = vmatmul.mubr.bf16.gmra.mrb[0].mxu0 %v808
        %v1010 = vpop.f32.mrb[0].mxu0
        %v1011 = vadd.f32 0.0, %v1010
        %v1012 = vpop.f32.mrb[0].mxu0
        %v1013 = vpop.f32.mrb[0].mxu0
        %v1014 = vadd.f32 0.0, %v1013
        %v1015 = vpop.f32.mrb[0].mxu0
        %1016 = vmatprep.mubr.bf16.mxu0 %v812
        %1017 = vmatmul.mubr.bf16.gmra.mrb[0].mxu0 %v811
        %v1018 = vpop.f32.mrb[0].mxu0
        %v1019 = vadd.f32 0.0, %v1018
        %v1020 = vpop.f32.mrb[0].mxu0
        %v1021 = vpop.f32.mrb[0].mxu0
        %v1022 = vadd.f32 0.0, %v1021
        %v1023 = vpop.f32.mrb[0].mxu0
        %1024 = vmatprep.mubr.bf16.mxu0 %v815
        %1025 = vmatmul.mubr.bf16.gmra.mrb[0].mxu0 %v814
        %v1026 = vpop.f32.mrb[0].mxu0
        %v1027 = vadd.f32 0.0, %v1026
        %v1028 = vpop.f32.mrb[0].mxu0
        %v1029 = vpop.f32.mrb[0].mxu0
        %v1030 = vadd.f32 0.0, %v1029
        %v1031 = vpop.f32.mrb[0].mxu0
        %1032 = vmatprep.mubr.bf16.mxu0 %v818
        %1033 = vmatmul.mubr.bf16.gmra.mrb[0].mxu0 %v817
        %v1034 = vpop.f32.mrb[0].mxu0
        %v1035 = vadd.f32 0.0, %v1034
        %v1036 = vpop.f32.mrb[0].mxu0
        %v1037 = vpop.f32.mrb[0].mxu0
        %v1038 = vadd.f32 0.0, %v1037
        %v1039 = vpop.f32.mrb[0].mxu0
        %1040 = vdwg.mxu0
        %1041 = vmatprep.subr.bf16.mxu0 0
        %1042 = vmatpush1.bf16.msra.mxu0 %v944
        %1043 = vmatprep.subr.bf16.mxu0 0
        %1044 = vmatpush1.bf16.msra.mxu0 %v945
        %1045 = vmatprep.subr.bf16.mxu0 0
        %1046 = vmatpush1.bf16.msra.mxu0 %v946
        %1047 = vmatprep.subr.bf16.mxu0 0
        %1048 = vmatpush1.bf16.msra.mxu0 %v947
        %1049 = vmatprep.subr.bf16.mxu0 0
        %1050 = vmatpush1.bf16.msra.mxu0 %v948
        %1051 = vmatprep.subr.bf16.mxu0 0
        %1052 = vmatpush1.bf16.msra.mxu0 %v949
        %1053 = vmatprep.subr.bf16.mxu0 0
        %1054 = vmatpush1.bf16.msra.mxu0 %v950
        %1055 = vmatprep.subr.bf16.mxu0 0
        %1056 = vmatpush1.bf16.msra.mxu0 %v951
        %1057 = vmatprep.subr.bf16.mxu0 0
        %1058 = vmatpush1.bf16.msra.mxu0 0
        %1059 = vmatprep.subr.bf16.mxu0 0
        %1060 = vmatpush1.bf16.msra.mxu0 0
        %1061 = vmatprep.subr.bf16.mxu0 0
        %1062 = vmatpush1.bf16.msra.mxu0 0
        %1063 = vmatprep.subr.bf16.mxu0 0
        %1064 = vmatpush1.bf16.msra.mxu0 0
        %1065 = vmatprep.subr.bf16.mxu0 0
        %1066 = vmatpush1.bf16.msra.mxu0 0
        %1067 = vmatprep.subr.bf16.mxu0 0
        %1068 = vmatpush1.bf16.msra.mxu0 0
        %1069 = vmatprep.subr.bf16.mxu0 0
        %1070 = vmatpush1.bf16.msra.mxu0 0
        %1071 = vmatprep.subr.bf16.mxu0 0
        %1072 = vmatpush1.bf16.msra.mxu0 0
        %1073 = vmatprep.mubr.bf16.mxu0 0
        %1074 = vmatmul.mubr.bf16.gmra.mrb[0].mxu0 %v810
        %v1075 = vpop.f32.mrb[0].mxu0
        %v1076 = vadd.f32 %v1011, %v1075
        %v1077 = vpop.f32.mrb[0].mxu0
        %v1078 = vpop.f32.mrb[0].mxu0
        %v1079 = vadd.f32 %v1014, %v1078
        %v1080 = vpop.f32.mrb[0].mxu0
        %1081 = vmatprep.mubr.bf16.mxu0 0
        %1082 = vmatmul.mubr.bf16.gmra.mrb[0].mxu0 %v813
        %v1083 = vpop.f32.mrb[0].mxu0
        %v1084 = vadd.f32 %v1019, %v1083
        %v1085 = vpop.f32.mrb[0].mxu0
        %v1086 = vpop.f32.mrb[0].mxu0
        %v1087 = vadd.f32 %v1022, %v1086
        %v1088 = vpop.f32.mrb[0].mxu0
        %1089 = vmatprep.mubr.bf16.mxu0 0
        %1090 = vmatmul.mubr.bf16.gmra.mrb[0].mxu0 %v816
        %v1091 = vpop.f32.mrb[0].mxu0
        %v1092 = vadd.f32 %v1027, %v1091
        %v1093 = vpop.f32.mrb[0].mxu0
        %v1094 = vpop.f32.mrb[0].mxu0
        %v1095 = vadd.f32 %v1030, %v1094
        %v1096 = vpop.f32.mrb[0].mxu0
        %1097 = vmatprep.mubr.bf16.mxu0 0
        %1098 = vmatmul.mubr.bf16.gmra.mrb[0].mxu0 %v819
        %v1099 = vpop.f32.mrb[0].mxu0
        %v1100 = vadd.f32 %v1035, %v1099
        %v1101 = vpop.f32.mrb[0].mxu0
        %v1102 = vpop.f32.mrb[0].mxu0
        %v1103 = vadd.f32 %v1038, %v1102
        %v1104 = vpop.f32.mrb[0].mxu0
        %1105 = vdwg.mxu0
        %v1122 = vunpack.c.l.b16 %v638
        %v1123 = vunpack.c.h.b16 %v638
        %v1124 = vunpack.c.l.b16 %v639
        %v1125 = vunpack.c.l.b16 %v640
        %v1126 = vunpack.c.h.b16 %v640
        %v1127 = vunpack.c.l.b16 %v641
        %v1128 = vunpack.c.l.b16 %v642
        %v1129 = vunpack.c.h.b16 %v642
        %v1130 = vunpack.c.l.b16 %v643
        %v1131 = vunpack.c.l.b16 %v644
        %v1132 = vunpack.c.h.b16 %v644
        %v1133 = vunpack.c.l.b16 %v645
        %v1134 = vunpack.c.l.b16 %v646
        %v1135 = vunpack.c.h.b16 %v646
        %v1136 = vunpack.c.l.b16 %v647
        %v1137 = vunpack.c.l.b16 %v648
        %v1138 = vunpack.c.h.b16 %v648
        %v1139 = vunpack.c.l.b16 %v649
        %v1140 = vunpack.c.l.b16 %v650
        %v1141 = vunpack.c.h.b16 %v650
        %v1142 = vunpack.c.l.b16 %v651
        %v1143 = vunpack.c.l.b16 %v652
        %v1144 = vunpack.c.h.b16 %v652
        %v1145 = vunpack.c.l.b16 %v653
        %v1146 = vpack.c.b16 %v1125, %v1122
        %v1147 = vpack.c.b16 %v1126, %v1123
        %v1148 = vpack.c.b16 %v1127, %v1124
        %v1149 = vpack.c.b16 %v1131, %v1128
        %v1150 = vpack.c.b16 %v1132, %v1129
        %v1151 = vpack.c.b16 %v1133, %v1130
        %v1152 = vpack.c.b16 %v1137, %v1134
        %v1153 = vpack.c.b16 %v1138, %v1135
        %v1154 = vpack.c.b16 %v1139, %v1136
        %v1155 = vpack.c.b16 %v1143, %v1140
        %v1156 = vpack.c.b16 %v1144, %v1141
        %v1157 = vpack.c.b16 %v1145, %v1142
        %v1218 = vunpack.c.l.b16 %v654
        %v1219 = vunpack.c.l.b16 %v655
        %v1220 = vunpack.c.l.b16 %v656
        %v1221 = vunpack.c.l.b16 %v657
        %v1222 = vunpack.c.l.b16 %v658
        %v1223 = vunpack.c.l.b16 %v659
        %v1224 = vunpack.c.l.b16 %v660
        %v1225 = vunpack.c.l.b16 %v661
        %v1226 = vunpack.c.l.b16 %v662
        %v1227 = vunpack.c.l.b16 %v663
        %v1228 = vunpack.c.l.b16 %v664
        %v1229 = vunpack.c.l.b16 %v665
        %v1230 = vunpack.c.l.b16 %v666
        %v1231 = vunpack.c.l.b16 %v667
        %v1232 = vunpack.c.l.b16 %v668
        %v1233 = vunpack.c.l.b16 %v669
        %v1234 = vunpack.c.l.b16 %v670
        %v1235 = vunpack.c.l.b16 %v671
        %v1236 = vunpack.c.l.b16 %v672
        %v1237 = vunpack.c.l.b16 %v673
        %v1238 = vunpack.c.l.b16 %v674
        %v1239 = vunpack.c.l.b16 %v675
        %v1240 = vunpack.c.l.b16 %v676
        %v1241 = vunpack.c.l.b16 %v677
        %v1242 = vunpack.c.l.b16 %v678
        %v1243 = vunpack.c.l.b16 %v679
        %v1244 = vunpack.c.l.b16 %v680
        %v1245 = vunpack.c.l.b16 %v681
        %v1246 = vunpack.c.l.b16 %v682
        %v1247 = vunpack.c.l.b16 %v683
        %v1248 = vunpack.c.l.b16 %v684
        %v1249 = vunpack.c.l.b16 %v685
        %v1250 = vunpack.c.l.b16 %v686
        %v1251 = vunpack.c.l.b16 %v687
        %v1252 = vunpack.c.l.b16 %v688
        %v1253 = vunpack.c.l.b16 %v689
        %v1254 = vunpack.c.l.b16 %v690
        %v1255 = vunpack.c.l.b16 %v691
        %v1256 = vunpack.c.l.b16 %v692
        %v1257 = vunpack.c.l.b16 %v693
        %v1258 = vunpack.c.l.b16 %v694
        %v1259 = vunpack.c.l.b16 %v695
        %v1260 = vunpack.c.l.b16 %v696
        %v1261 = vunpack.c.l.b16 %v697
        %v1262 = vunpack.c.l.b16 %v698
        %v1263 = vunpack.c.l.b16 %v699
        %v1264 = vunpack.c.l.b16 %v700
        %v1265 = vunpack.c.l.b16 %v701
        %v1266 = vpack.c.b16 %v1219, %v1218
        %v1267 = vpack.c.b16 %v1221, %v1220
        %v1268 = vpack.c.b16 %v1223, %v1222
        %v1269 = vpack.c.b16 %v1225, %v1224
        %v1270 = vpack.c.b16 %v1227, %v1226
        %v1271 = vpack.c.b16 %v1229, %v1228
        %v1272 = vpack.c.b16 %v1231, %v1230
        %v1273 = vpack.c.b16 %v1233, %v1232
        %v1274 = vpack.c.b16 %v1235, %v1234
        %v1275 = vpack.c.b16 %v1237, %v1236
        %v1276 = vpack.c.b16 %v1239, %v1238
        %v1277 = vpack.c.b16 %v1241, %v1240
        %v1278 = vpack.c.b16 %v1243, %v1242
        %v1279 = vpack.c.b16 %v1245, %v1244
        %v1280 = vpack.c.b16 %v1247, %v1246
        %v1281 = vpack.c.b16 %v1249, %v1248
        %v1282 = vpack.c.b16 %v1251, %v1250
        %v1283 = vpack.c.b16 %v1253, %v1252
        %v1284 = vpack.c.b16 %v1255, %v1254
        %v1285 = vpack.c.b16 %v1257, %v1256
        %v1286 = vpack.c.b16 %v1259, %v1258
        %v1287 = vpack.c.b16 %v1261, %v1260
        %v1288 = vpack.c.b16 %v1263, %v1262
        %v1289 = vpack.c.b16 %v1265, %v1264
        %1314 = vmatprep.subr.bf16.mxu0 0
        %1315 = vmatpush1.bf16.msra.mxu0 %v1266
        %1316 = vmatprep.subr.bf16.mxu0 0
        %1317 = vmatpush1.bf16.msra.mxu0 %v1267
        %1318 = vmatprep.subr.bf16.mxu0 0
        %1319 = vmatpush1.bf16.msra.mxu0 %v1268
        %1320 = vmatprep.subr.bf16.mxu0 0
        %1321 = vmatpush1.bf16.msra.mxu0 %v1269
        %1322 = vmatprep.subr.bf16.mxu0 0
        %1323 = vmatpush1.bf16.msra.mxu0 %v1270
        %1324 = vmatprep.subr.bf16.mxu0 0
        %1325 = vmatpush1.bf16.msra.mxu0 %v1271
        %1326 = vmatprep.subr.bf16.mxu0 0
        %1327 = vmatpush1.bf16.msra.mxu0 %v1272
        %1328 = vmatprep.subr.bf16.mxu0 0
        %1329 = vmatpush1.bf16.msra.mxu0 %v1273
        %1330 = vmatprep.subr.bf16.mxu0 0
        %1331 = vmatpush1.bf16.msra.mxu0 %v1274
        %1332 = vmatprep.subr.bf16.mxu0 0
        %1333 = vmatpush1.bf16.msra.mxu0 %v1275
        %1334 = vmatprep.subr.bf16.mxu0 0
        %1335 = vmatpush1.bf16.msra.mxu0 %v1276
        %1336 = vmatprep.subr.bf16.mxu0 0
        %1337 = vmatpush1.bf16.msra.mxu0 %v1277
        %1338 = vmatprep.subr.bf16.mxu0 0
        %1339 = vmatpush1.bf16.msra.mxu0 %v1278
        %1340 = vmatprep.subr.bf16.mxu0 0
        %1341 = vmatpush1.bf16.msra.mxu0 %v1279
        %1342 = vmatprep.subr.bf16.mxu0 0
        %1343 = vmatpush1.bf16.msra.mxu0 %v1280
        %1344 = vmatprep.subr.bf16.mxu0 0
        %1345 = vmatpush1.bf16.msra.mxu0 %v1281
        %1346 = vmatprep.mubr.bf16.mxu0 %v1147
        %1347 = vmatmul.mubr.bf16.gmra.mrb[0].mxu0 %v1146
        %v1348 = vpop.f32.mrb[0].mxu0
        %v1349 = vadd.f32 %v1076, %v1348
        %v1350 = vpop.f32.mrb[0].mxu0
        %v1351 = vpop.f32.mrb[0].mxu0
        %v1352 = vadd.f32 %v1079, %v1351
        %v1353 = vpop.f32.mrb[0].mxu0
        %1354 = vmatprep.mubr.bf16.mxu0 %v1150
        %1355 = vmatmul.mubr.bf16.gmra.mrb[0].mxu0 %v1149
        %v1356 = vpop.f32.mrb[0].mxu0
        %v1357 = vadd.f32 %v1084, %v1356
        %v1358 = vpop.f32.mrb[0].mxu0
        %v1359 = vpop.f32.mrb[0].mxu0
        %v1360 = vadd.f32 %v1087, %v1359
        %v1361 = vpop.f32.mrb[0].mxu0
        %1362 = vmatprep.mubr.bf16.mxu0 %v1153
        %1363 = vmatmul.mubr.bf16.gmra.mrb[0].mxu0 %v1152
        %v1364 = vpop.f32.mrb[0].mxu0
        %v1365 = vadd.f32 %v1092, %v1364
        %v1366 = vpop.f32.mrb[0].mxu0
        %v1367 = vpop.f32.mrb[0].mxu0
        %v1368 = vadd.f32 %v1095, %v1367
        %v1369 = vpop.f32.mrb[0].mxu0
        %1370 = vmatprep.mubr.bf16.mxu0 %v1156
        %1371 = vmatmul.mubr.bf16.gmra.mrb[0].mxu0 %v1155
        %v1372 = vpop.f32.mrb[0].mxu0
        %v1373 = vadd.f32 %v1100, %v1372
        %v1374 = vpop.f32.mrb[0].mxu0
        %v1375 = vpop.f32.mrb[0].mxu0
        %v1376 = vadd.f32 %v1103, %v1375
        %v1377 = vpop.f32.mrb[0].mxu0
        %1378 = vdwg.mxu0
        %1379 = vmatprep.subr.bf16.mxu0 0
        %1380 = vmatpush1.bf16.msra.mxu0 %v1282
        %1381 = vmatprep.subr.bf16.mxu0 0
        %1382 = vmatpush1.bf16.msra.mxu0 %v1283
        %1383 = vmatprep.subr.bf16.mxu0 0
        %1384 = vmatpush1.bf16.msra.mxu0 %v1284
        %1385 = vmatprep.subr.bf16.mxu0 0
        %1386 = vmatpush1.bf16.msra.mxu0 %v1285
        %1387 = vmatprep.subr.bf16.mxu0 0
        %1388 = vmatpush1.bf16.msra.mxu0 %v1286
        %1389 = vmatprep.subr.bf16.mxu0 0
        %1390 = vmatpush1.bf16.msra.mxu0 %v1287
        %1391 = vmatprep.subr.bf16.mxu0 0
        %1392 = vmatpush1.bf16.msra.mxu0 %v1288
        %1393 = vmatprep.subr.bf16.mxu0 0
        %1394 = vmatpush1.bf16.msra.mxu0 %v1289
        %1395 = vmatprep.subr.bf16.mxu0 0
        %1396 = vmatpush1.bf16.msra.mxu0 0
        %1397 = vmatprep.subr.bf16.mxu0 0
        %1398 = vmatpush1.bf16.msra.mxu0 0
        %1399 = vmatprep.subr.bf16.mxu0 0
        %1400 = vmatpush1.bf16.msra.mxu0 0
        %1401 = vmatprep.subr.bf16.mxu0 0
        %1402 = vmatpush1.bf16.msra.mxu0 0
        %1403 = vmatprep.subr.bf16.mxu0 0
        %1404 = vmatpush1.bf16.msra.mxu0 0
        %1405 = vmatprep.subr.bf16.mxu0 0
        %1406 = vmatpush1.bf16.msra.mxu0 0
        %1407 = vmatprep.subr.bf16.mxu0 0
        %1408 = vmatpush1.bf16.msra.mxu0 0
        %1409 = vmatprep.subr.bf16.mxu0 0
        %1410 = vmatpush1.bf16.msra.mxu0 0
        %1411 = vmatprep.mubr.bf16.mxu0 0
        %1412 = vmatmul.mubr.bf16.gmra.mrb[0].mxu0 %v1148
        %v1413 = vpop.f32.mrb[0].mxu0
        %v1414 = vadd.f32 %v1349, %v1413
        %v1415 = vpop.f32.mrb[0].mxu0
        %v1416 = vpop.f32.mrb[0].mxu0
        %v1417 = vadd.f32 %v1352, %v1416
        %v1418 = vpop.f32.mrb[0].mxu0
        %1419 = vmatprep.mubr.bf16.mxu0 0
        %1420 = vmatmul.mubr.bf16.gmra.mrb[0].mxu0 %v1151
        %v1421 = vpop.f32.mrb[0].mxu0
        %v1422 = vadd.f32 %v1357, %v1421
        %v1423 = vpop.f32.mrb[0].mxu0
        %v1424 = vpop.f32.mrb[0].mxu0
        %v1425 = vadd.f32 %v1360, %v1424
        %v1426 = vpop.f32.mrb[0].mxu0
        %1427 = vmatprep.mubr.bf16.mxu0 0
        %1428 = vmatmul.mubr.bf16.gmra.mrb[0].mxu0 %v1154
        %v1429 = vpop.f32.mrb[0].mxu0
        %v1430 = vadd.f32 %v1365, %v1429
        %v1431 = vpop.f32.mrb[0].mxu0
        %v1432 = vpop.f32.mrb[0].mxu0
        %v1433 = vadd.f32 %v1368, %v1432
        %v1434 = vpop.f32.mrb[0].mxu0
        %1435 = vmatprep.mubr.bf16.mxu0 0
        %1436 = vmatmul.mubr.bf16.gmra.mrb[0].mxu0 %v1157
        %v1437 = vpop.f32.mrb[0].mxu0
        %v1438 = vadd.f32 %v1373, %v1437
        %v1439 = vpop.f32.mrb[0].mxu0
        %v1440 = vpop.f32.mrb[0].mxu0
        %v1441 = vadd.f32 %v1376, %v1440
        %v1442 = vpop.f32.mrb[0].mxu0
        %1443 = vdwg.mxu0
        %s1444 = scalar_lea.vmem [#allocation3], 24
        %v1445 = vld [vmem:[%s1444] sm:$0xff]
        %v1446 = vld [vmem:[%s1444 + $0x8] sm:$0xf]
        %v1447 = vld [vmem:[%s1444 + $0xc] sm:$0xff]
        %v1448 = vld [vmem:[%s1444 + $0x14] sm:$0xf]
        %v1449 = vld [vmem:[%s1444 + $0x18] sm:$0xff]
        %v1450 = vld [vmem:[%s1444 + $0x20] sm:$0xf]
        %v1451 = vld [vmem:[%s1444 + $0x24] sm:$0xff]
        %v1452 = vld [vmem:[%s1444 + $0x2c] sm:$0xf]
        %v1453 = vld [vmem:[%s1444 + $0x30] sm:$0xff]
        %v1454 = vld [vmem:[%s1444 + $0x38] sm:$0xf]
        %v1455 = vld [vmem:[%s1444 + $0x3c] sm:$0xff]
        %v1456 = vld [vmem:[%s1444 + $0x44] sm:$0xf]
        %v1457 = vld [vmem:[%s1444 + $0x48] sm:$0xff]
        %v1458 = vld [vmem:[%s1444 + $0x50] sm:$0xf]
        %v1459 = vld [vmem:[%s1444 + $0x54] sm:$0xff]
        %v1460 = vld [vmem:[%s1444 + $0x5c] sm:$0xf]
        %s1461 = scalar_lea.vmem %s2, 384
        %v1462 = vld [vmem:[%s1461] sm:$0xf]
        %v1463 = vld [vmem:[%s1461 + $0x4] sm:$0xf]
        %v1464 = vld [vmem:[%s1461 + $0x8] sm:$0xf]
        %v1465 = vld [vmem:[%s1461 + $0xc] sm:$0xf]
        %v1466 = vld [vmem:[%s1461 + $0x10] sm:$0xf]
        %v1467 = vld [vmem:[%s1461 + $0x14] sm:$0xf]
        %v1468 = vld [vmem:[%s1461 + $0x18] sm:$0xf]
        %v1469 = vld [vmem:[%s1461 + $0x1c] sm:$0xf]
        %v1470 = vld [vmem:[%s1461 + $0x20] sm:$0xf]
        %v1471 = vld [vmem:[%s1461 + $0x24] sm:$0xf]
        %v1472 = vld [vmem:[%s1461 + $0x28] sm:$0xf]
        %v1473 = vld [vmem:[%s1461 + $0x2c] sm:$0xf]
        %v1474 = vld [vmem:[%s1461 + $0x30] sm:$0xf]
        %v1475 = vld [vmem:[%s1461 + $0x34] sm:$0xf]
        %v1476 = vld [vmem:[%s1461 + $0x38] sm:$0xf]
        %v1477 = vld [vmem:[%s1461 + $0x3c] sm:$0xf]
        %v1478 = vld [vmem:[%s1461 + $0x40] sm:$0xf]
        %v1479 = vld [vmem:[%s1461 + $0x44] sm:$0xf]
        %v1480 = vld [vmem:[%s1461 + $0x48] sm:$0xf]
        %v1481 = vld [vmem:[%s1461 + $0x4c] sm:$0xf]
        %v1482 = vld [vmem:[%s1461 + $0x50] sm:$0xf]
        %v1483 = vld [vmem:[%s1461 + $0x54] sm:$0xf]
        %v1484 = vld [vmem:[%s1461 + $0x58] sm:$0xf]
        %v1485 = vld [vmem:[%s1461 + $0x5c] sm:$0xf]
        %v1486 = vld [vmem:[%s1461 + $0x60] sm:$0xf]
        %v1487 = vld [vmem:[%s1461 + $0x64] sm:$0xf]
        %v1488 = vld [vmem:[%s1461 + $0x68] sm:$0xf]
        %v1489 = vld [vmem:[%s1461 + $0x6c] sm:$0xf]
        %v1490 = vld [vmem:[%s1461 + $0x70] sm:$0xf]
        %v1491 = vld [vmem:[%s1461 + $0x74] sm:$0xf]
        %v1492 = vld [vmem:[%s1461 + $0x78] sm:$0xf]
        %v1493 = vld [vmem:[%s1461 + $0x7c] sm:$0xf]
        %v1494 = vld [vmem:[%s1461 + $0x80] sm:$0xf]
        %v1495 = vld [vmem:[%s1461 + $0x84] sm:$0xf]
        %v1496 = vld [vmem:[%s1461 + $0x88] sm:$0xf]
        %v1497 = vld [vmem:[%s1461 + $0x8c] sm:$0xf]
        %v1498 = vld [vmem:[%s1461 + $0x90] sm:$0xf]
        %v1499 = vld [vmem:[%s1461 + $0x94] sm:$0xf]
        %v1500 = vld [vmem:[%s1461 + $0x98] sm:$0xf]
        %v1501 = vld [vmem:[%s1461 + $0x9c] sm:$0xf]
        %v1502 = vld [vmem:[%s1461 + $0xa0] sm:$0xf]
        %v1503 = vld [vmem:[%s1461 + $0xa4] sm:$0xf]
        %v1504 = vld [vmem:[%s1461 + $0xa8] sm:$0xf]
        %v1505 = vld [vmem:[%s1461 + $0xac] sm:$0xf]
        %v1506 = vld [vmem:[%s1461 + $0xb0] sm:$0xf]
        %v1507 = vld [vmem:[%s1461 + $0xb4] sm:$0xf]
        %v1508 = vld [vmem:[%s1461 + $0xb8] sm:$0xf]
        %v1509 = vld [vmem:[%s1461 + $0xbc] sm:$0xf]
        %v1526 = vunpack.c.l.b16 %v1445
        %v1527 = vunpack.c.h.b16 %v1445
        %v1528 = vunpack.c.l.b16 %v1446
        %v1529 = vunpack.c.l.b16 %v1447
        %v1530 = vunpack.c.h.b16 %v1447
        %v1531 = vunpack.c.l.b16 %v1448
        %v1532 = vunpack.c.l.b16 %v1449
        %v1533 = vunpack.c.h.b16 %v1449
        %v1534 = vunpack.c.l.b16 %v1450
        %v1535 = vunpack.c.l.b16 %v1451
        %v1536 = vunpack.c.h.b16 %v1451
        %v1537 = vunpack.c.l.b16 %v1452
        %v1538 = vunpack.c.l.b16 %v1453
        %v1539 = vunpack.c.h.b16 %v1453
        %v1540 = vunpack.c.l.b16 %v1454
        %v1541 = vunpack.c.l.b16 %v1455
        %v1542 = vunpack.c.h.b16 %v1455
        %v1543 = vunpack.c.l.b16 %v1456
        %v1544 = vunpack.c.l.b16 %v1457
        %v1545 = vunpack.c.h.b16 %v1457
        %v1546 = vunpack.c.l.b16 %v1458
        %v1547 = vunpack.c.l.b16 %v1459
        %v1548 = vunpack.c.h.b16 %v1459
        %v1549 = vunpack.c.l.b16 %v1460
        %v1550 = vpack.c.b16 %v1529, %v1526
        %v1551 = vpack.c.b16 %v1530, %v1527
        %v1552 = vpack.c.b16 %v1531, %v1528
        %v1553 = vpack.c.b16 %v1535, %v1532
        %v1554 = vpack.c.b16 %v1536, %v1533
        %v1555 = vpack.c.b16 %v1537, %v1534
        %v1556 = vpack.c.b16 %v1541, %v1538
        %v1557 = vpack.c.b16 %v1542, %v1539
        %v1558 = vpack.c.b16 %v1543, %v1540
        %v1559 = vpack.c.b16 %v1547, %v1544
        %v1560 = vpack.c.b16 %v1548, %v1545
        %v1561 = vpack.c.b16 %v1549, %v1546
        %v1622 = vunpack.c.l.b16 %v1462
        %v1623 = vunpack.c.l.b16 %v1463
        %v1624 = vunpack.c.l.b16 %v1464
        %v1625 = vunpack.c.l.b16 %v1465
        %v1626 = vunpack.c.l.b16 %v1466
        %v1627 = vunpack.c.l.b16 %v1467
        %v1628 = vunpack.c.l.b16 %v1468
        %v1629 = vunpack.c.l.b16 %v1469
        %v1630 = vunpack.c.l.b16 %v1470
        %v1631 = vunpack.c.l.b16 %v1471
        %v1632 = vunpack.c.l.b16 %v1472
        %v1633 = vunpack.c.l.b16 %v1473
        %v1634 = vunpack.c.l.b16 %v1474
        %v1635 = vunpack.c.l.b16 %v1475
        %v1636 = vunpack.c.l.b16 %v1476
        %v1637 = vunpack.c.l.b16 %v1477
        %v1638 = vunpack.c.l.b16 %v1478
        %v1639 = vunpack.c.l.b16 %v1479
        %v1640 = vunpack.c.l.b16 %v1480
        %v1641 = vunpack.c.l.b16 %v1481
        %v1642 = vunpack.c.l.b16 %v1482
        %v1643 = vunpack.c.l.b16 %v1483
        %v1644 = vunpack.c.l.b16 %v1484
        %v1645 = vunpack.c.l.b16 %v1485
        %v1646 = vunpack.c.l.b16 %v1486
        %v1647 = vunpack.c.l.b16 %v1487
        %v1648 = vunpack.c.l.b16 %v1488
        %v1649 = vunpack.c.l.b16 %v1489
        %v1650 = vunpack.c.l.b16 %v1490
        %v1651 = vunpack.c.l.b16 %v1491
        %v1652 = vunpack.c.l.b16 %v1492
        %v1653 = vunpack.c.l.b16 %v1493
        %v1654 = vunpack.c.l.b16 %v1494
        %v1655 = vunpack.c.l.b16 %v1495
        %v1656 = vunpack.c.l.b16 %v1496
        %v1657 = vunpack.c.l.b16 %v1497
        %v1658 = vunpack.c.l.b16 %v1498
        %v1659 = vunpack.c.l.b16 %v1499
        %v1660 = vunpack.c.l.b16 %v1500
        %v1661 = vunpack.c.l.b16 %v1501
        %v1662 = vunpack.c.l.b16 %v1502
        %v1663 = vunpack.c.l.b16 %v1503
        %v1664 = vunpack.c.l.b16 %v1504
        %v1665 = vunpack.c.l.b16 %v1505
        %v1666 = vunpack.c.l.b16 %v1506
        %v1667 = vunpack.c.l.b16 %v1507
        %v1668 = vunpack.c.l.b16 %v1508
        %v1669 = vunpack.c.l.b16 %v1509
        %v1670 = vpack.c.b16 %v1623, %v1622
        %v1671 = vpack.c.b16 %v1625, %v1624
        %v1672 = vpack.c.b16 %v1627, %v1626
        %v1673 = vpack.c.b16 %v1629, %v1628
        %v1674 = vpack.c.b16 %v1631, %v1630
        %v1675 = vpack.c.b16 %v1633, %v1632
        %v1676 = vpack.c.b16 %v1635, %v1634
        %v1677 = vpack.c.b16 %v1637, %v1636
        %v1678 = vpack.c.b16 %v1639, %v1638
        %v1679 = vpack.c.b16 %v1641, %v1640
        %v1680 = vpack.c.b16 %v1643, %v1642
        %v1681 = vpack.c.b16 %v1645, %v1644
        %v1682 = vpack.c.b16 %v1647, %v1646
        %v1683 = vpack.c.b16 %v1649, %v1648
        %v1684 = vpack.c.b16 %v1651, %v1650
        %v1685 = vpack.c.b16 %v1653, %v1652
        %v1686 = vpack.c.b16 %v1655, %v1654
        %v1687 = vpack.c.b16 %v1657, %v1656
        %v1688 = vpack.c.b16 %v1659, %v1658
        %v1689 = vpack.c.b16 %v1661, %v1660
        %v1690 = vpack.c.b16 %v1663, %v1662
        %v1691 = vpack.c.b16 %v1665, %v1664
        %v1692 = vpack.c.b16 %v1667, %v1666
        %v1693 = vpack.c.b16 %v1669, %v1668
        %1718 = vmatprep.subr.bf16.mxu0 0
        %1719 = vmatpush1.bf16.msra.mxu0 %v1670
        %1720 = vmatprep.subr.bf16.mxu0 0
        %1721 = vmatpush1.bf16.msra.mxu0 %v1671
        %1722 = vmatprep.subr.bf16.mxu0 0
        %1723 = vmatpush1.bf16.msra.mxu0 %v1672
        %1724 = vmatprep.subr.bf16.mxu0 0
        %1725 = vmatpush1.bf16.msra.mxu0 %v1673
        %1726 = vmatprep.subr.bf16.mxu0 0
        %1727 = vmatpush1.bf16.msra.mxu0 %v1674
        %1728 = vmatprep.subr.bf16.mxu0 0
        %1729 = vmatpush1.bf16.msra.mxu0 %v1675
        %1730 = vmatprep.subr.bf16.mxu0 0
        %1731 = vmatpush1.bf16.msra.mxu0 %v1676
        %1732 = vmatprep.subr.bf16.mxu0 0
        %1733 = vmatpush1.bf16.msra.mxu0 %v1677
        %1734 = vmatprep.subr.bf16.mxu0 0
        %1735 = vmatpush1.bf16.msra.mxu0 %v1678
        %1736 = vmatprep.subr.bf16.mxu0 0
        %1737 = vmatpush1.bf16.msra.mxu0 %v1679
        %1738 = vmatprep.subr.bf16.mxu0 0
        %1739 = vmatpush1.bf16.msra.mxu0 %v1680
        %1740 = vmatprep.subr.bf16.mxu0 0
        %1741 = vmatpush1.bf16.msra.mxu0 %v1681
        %1742 = vmatprep.subr.bf16.mxu0 0
        %1743 = vmatpush1.bf16.msra.mxu0 %v1682
        %1744 = vmatprep.subr.bf16.mxu0 0
        %1745 = vmatpush1.bf16.msra.mxu0 %v1683
        %1746 = vmatprep.subr.bf16.mxu0 0
        %1747 = vmatpush1.bf16.msra.mxu0 %v1684
        %1748 = vmatprep.subr.bf16.mxu0 0
        %1749 = vmatpush1.bf16.msra.mxu0 %v1685
        %1750 = vmatprep.mubr.bf16.mxu0 %v1551
        %1751 = vmatmul.mubr.bf16.gmra.mrb[0].mxu0 %v1550
        %v1752 = vpop.f32.mrb[0].mxu0
        %v1753 = vadd.f32 0.0, %v1752
        %v1754 = vpop.f32.mrb[0].mxu0
        %v1755 = vpop.f32.mrb[0].mxu0
        %v1756 = vadd.f32 0.0, %v1755
        %v1757 = vpop.f32.mrb[0].mxu0
        %1758 = vmatprep.mubr.bf16.mxu0 %v1554
        %1759 = vmatmul.mubr.bf16.gmra.mrb[0].mxu0 %v1553
        %v1760 = vpop.f32.mrb[0].mxu0
        %v1761 = vadd.f32 0.0, %v1760
        %v1762 = vpop.f32.mrb[0].mxu0
        %v1763 = vpop.f32.mrb[0].mxu0
        %v1764 = vadd.f32 0.0, %v1763
        %v1765 = vpop.f32.mrb[0].mxu0
        %1766 = vmatprep.mubr.bf16.mxu0 %v1557
        %1767 = vmatmul.mubr.bf16.gmra.mrb[0].mxu0 %v1556
        %v1768 = vpop.f32.mrb[0].mxu0
        %v1769 = vadd.f32 0.0, %v1768
        %v1770 = vpop.f32.mrb[0].mxu0
        %v1771 = vpop.f32.mrb[0].mxu0
        %v1772 = vadd.f32 0.0, %v1771
        %v1773 = vpop.f32.mrb[0].mxu0
        %1774 = vmatprep.mubr.bf16.mxu0 %v1560
        %1775 = vmatmul.mubr.bf16.gmra.mrb[0].mxu0 %v1559
        %v1776 = vpop.f32.mrb[0].mxu0
        %v1777 = vadd.f32 0.0, %v1776
        %v1778 = vpop.f32.mrb[0].mxu0
        %v1779 = vpop.f32.mrb[0].mxu0
        %v1780 = vadd.f32 0.0, %v1779
        %v1781 = vpop.f32.mrb[0].mxu0
        %1782 = vdwg.mxu0
        %1783 = vmatprep.subr.bf16.mxu0 0
        %1784 = vmatpush1.bf16.msra.mxu0 %v1686
        %1785 = vmatprep.subr.bf16.mxu0 0
        %1786 = vmatpush1.bf16.msra.mxu0 %v1687
        %1787 = vmatprep.subr.bf16.mxu0 0
        %1788 = vmatpush1.bf16.msra.mxu0 %v1688
        %1789 = vmatprep.subr.bf16.mxu0 0
        %1790 = vmatpush1.bf16.msra.mxu0 %v1689
        %1791 = vmatprep.subr.bf16.mxu0 0
        %1792 = vmatpush1.bf16.msra.mxu0 %v1690
        %1793 = vmatprep.subr.bf16.mxu0 0
        %1794 = vmatpush1.bf16.msra.mxu0 %v1691
        %1795 = vmatprep.subr.bf16.mxu0 0
        %1796 = vmatpush1.bf16.msra.mxu0 %v1692
        %1797 = vmatprep.subr.bf16.mxu0 0
        %1798 = vmatpush1.bf16.msra.mxu0 %v1693
        %1799 = vmatprep.subr.bf16.mxu0 0
        %1800 = vmatpush1.bf16.msra.mxu0 0
        %1801 = vmatprep.subr.bf16.mxu0 0
        %1802 = vmatpush1.bf16.msra.mxu0 0
        %1803 = vmatprep.subr.bf16.mxu0 0
        %1804 = vmatpush1.bf16.msra.mxu0 0
        %1805 = vmatprep.subr.bf16.mxu0 0
        %1806 = vmatpush1.bf16.msra.mxu0 0
        %1807 = vmatprep.subr.bf16.mxu0 0
        %1808 = vmatpush1.bf16.msra.mxu0 0
        %1809 = vmatprep.subr.bf16.mxu0 0
        %1810 = vmatpush1.bf16.msra.mxu0 0
        %1811 = vmatprep.subr.bf16.mxu0 0
        %1812 = vmatpush1.bf16.msra.mxu0 0
        %1813 = vmatprep.subr.bf16.mxu0 0
        %1814 = vmatpush1.bf16.msra.mxu0 0
        %1815 = vmatprep.mubr.bf16.mxu0 0
        %1816 = vmatmul.mubr.bf16.gmra.mrb[0].mxu0 %v1552
        %v1817 = vpop.f32.mrb[0].mxu0
        %v1818 = vadd.f32 %v1753, %v1817
        %v1819 = vpop.f32.mrb[0].mxu0
        %v1820 = vpop.f32.mrb[0].mxu0
        %v1821 = vadd.f32 %v1756, %v1820
        %v1822 = vpop.f32.mrb[0].mxu0
        %1823 = vmatprep.mubr.bf16.mxu0 0
        %1824 = vmatmul.mubr.bf16.gmra.mrb[0].mxu0 %v1555
        %v1825 = vpop.f32.mrb[0].mxu0
        %v1826 = vadd.f32 %v1761, %v1825
        %v1827 = vpop.f32.mrb[0].mxu0
        %v1828 = vpop.f32.mrb[0].mxu0
        %v1829 = vadd.f32 %v1764, %v1828
        %v1830 = vpop.f32.mrb[0].mxu0
        %1831 = vmatprep.mubr.bf16.mxu0 0
        %1832 = vmatmul.mubr.bf16.gmra.mrb[0].mxu0 %v1558
        %v1833 = vpop.f32.mrb[0].mxu0
        %v1834 = vadd.f32 %v1769, %v1833
        %v1835 = vpop.f32.mrb[0].mxu0
        %v1836 = vpop.f32.mrb[0].mxu0
        %v1837 = vadd.f32 %v1772, %v1836
        %v1838 = vpop.f32.mrb[0].mxu0
        %1839 = vmatprep.mubr.bf16.mxu0 0
        %1840 = vmatmul.mubr.bf16.gmra.mrb[0].mxu0 %v1561
        %v1841 = vpop.f32.mrb[0].mxu0
        %v1842 = vadd.f32 %v1777, %v1841
        %v1843 = vpop.f32.mrb[0].mxu0
        %v1844 = vpop.f32.mrb[0].mxu0
        %v1845 = vadd.f32 %v1780, %v1844
        %v1846 = vpop.f32.mrb[0].mxu0
        %1847 = vdwg.mxu0
        %v1848 = vadd.f32 %v1414, %v1818
        %v1849 = vadd.f32 %v1417, %v1821
        %v1850 = vadd.f32 %v1422, %v1826
        %v1851 = vadd.f32 %v1425, %v1829
        %v1852 = vadd.f32 %v1430, %v1834
        %v1853 = vadd.f32 %v1433, %v1837
        %v1854 = vadd.f32 %v1438, %v1842
        %v1855 = vadd.f32 %v1441, %v1845
        %v1856 = vld [vmem:[%s3] sm:$0x1]
        %v1858 = vlaneseq
        %v1859 = vshrl.u32 %v1858, 7
        %v1860 = vsub.s32 0, %v1859
        %v1861 = vrot.slane %v1856, %v1860
        %v1863 = vadd.f32 %v1848, %v1861
        %v1864 = vadd.f32 %v1849, %v1861
        %v1865 = vadd.f32 %v1850, %v1861
        %v1866 = vadd.f32 %v1851, %v1861
        %v1867 = vadd.f32 %v1852, %v1861
        %v1868 = vadd.f32 %v1853, %v1861
        %v1869 = vadd.f32 %v1854, %v1861
        %v1870 = vadd.f32 %v1855, %v1861
        %v1871 = vmax.f32 %v1863, 0.0
        %v1872 = vmax.f32 %v1864, 0.0
        %v1873 = vmax.f32 %v1865, 0.0
        %v1874 = vmax.f32 %v1866, 0.0
        %v1875 = vmax.f32 %v1867, 0.0
        %v1876 = vmax.f32 %v1868, 0.0
        %v1877 = vmax.f32 %v1869, 0.0
        %v1878 = vmax.f32 %v1870, 0.0
        %1879 = vst [vmem:[%s241] sm:$0xff] %v1871
        %1880 = vst [vmem:[%s241 + $0x8] sm:$0xff] %v1872
        %1881 = vst [vmem:[%s241 + $0x10] sm:$0xff] %v1873
        %1882 = vst [vmem:[%s241 + $0x18] sm:$0xff] %v1874
        %1883 = vst [vmem:[%s241 + $0x20] sm:$0xff] %v1875
        %1884 = vst [vmem:[%s241 + $0x28] sm:$0xff] %v1876
        %1885 = vst [vmem:[%s241 + $0x30] sm:$0xff] %v1877
        %1886 = vst [vmem:[%s241 + $0x38] sm:$0xff] %v1878
        %s1887 = sand.u32 %s138, 1
        %s1888 = scalar_lea.sflag [#allocation5], %s1887
        %s1889 = sand.u32 %s138, 1
        %s1890 = smul.addr %s1889, 64
        %s1891 = scalar_lea.vmem [#allocation4], %s1890
        // Predicated region
        $region37: #{content_forward.7} parent=35 // pred_check
          %p1892 = pneg %p148
        $region38: #{content_forward.7} parent=35 // pred_check_branch
          %1894 = sbr.rel (%p1892) target = $region40
        $region39: #{content_forward.7} parent=35 // pred_region
          %s1895 = smul.u32 8, %s23
          %s1897 = ssub.s32 1024, 1024
          %1898 = vsyncadd %s1888, %s1897
          %s1899 = smul.addr %s22, 8
          %s1900 = sadd.s32 %s1895, %s1899
          %s1901 = smul.addr %s1900, 128
          %s1902 = scalar_lea.hbm %s4, %s1901
          %s1903 = sshll.u32 %s1891, 4
          %s1904 = int_to_ptr.vmem [resolvable:$true] %s1903
          %1909 = dma.vmem_to_hbm [thread:$0]  %s1904, 1024, %s1902, %s1888, 128, 128, 8
        $region40: #{content_forward.7} parent=35 // pred_fallthru
          _
      $region36: #{content_forward.7} parent=5 // pred_fallthru
        _
      %p1910 = scmp.le.s32.totalorder 2, %s13
      // Predicated region
      $region41: #{content_forward.7} parent=5 // pred_check
        %p1911 = pneg %p1910
      $region42: #{content_forward.7} parent=5 // pred_check_branch
        %1913 = sbr.rel (%p1911) target = $region44
      $region43: #{content_forward.7} parent=5 // pred_region
        %s1914 = ssub.s32 %s13, 2
        // Predicated region
        $region45: #{content_forward.7} parent=43 // pred_check
          %p1915 = pneg %p154
        $region46: #{content_forward.7} parent=43 // pred_check_branch
          %1917 = sbr.rel (%p1915) target = $region48
        $region47: #{content_forward.7} parent=43 // pred_region
          %s1918 = sand.u32 %s139, 1
          %s1919 = scalar_lea.sflag [#allocation5], %s1918
          %s1920 = sand.u32 %s139, 1
          %s1921 = smul.addr %s1920, 64
          %s1922 = scalar_lea.vmem [#allocation4], %s1921
          %1923 = dma.done %s1919, 1024
        $region48: #{content_forward.7} parent=43 // pred_fallthru
          _
      $region44: #{content_forward.7} parent=5 // pred_fallthru
        _
    $region6: #{content_forward.7} parent=1 // loop_footer
      %s17 = sadd.s32 1, %s13
    $region7: #{content_forward.7} parent=1 // loop_footer_branch
      %12 = sbr.rel target = $region3
    $region8: #{content_forward.7} parent=1 // loop_exit
      _
    %1924 = vsyncpa [#allocation5], 1
    %s1925 = scalar_lea.sflag [#allocation5], 1
    %1926 = vsyncpa %s1925, 1

</llo_original>
